<compile_context>
chip_gen: v6e
topology: v6e:2x2x1
jax: 0.10.0
libtpu: 0.0.40
codegen_flags: <defaults>
</compile_context>

<pallas_src>
import functools

import jax
import jax.numpy as jnp
from jax.experimental import pallas as pl
from jax.experimental.pallas import tpu as pltpu


_BATCH_PAD = 16                     # bf16 vregs pack 16 sublanes -> unmasked stores
_TIME_CHUNK = 8                     # LSTM steps per grid step (amortizes grid overhead)
_VMEM_LIMIT = 32 * 1024 * 1024      # explicit scoped-VMEM cap, valid on v5e/v6e/v7x


def _round_up(n, m):
    return ((n + m - 1) // m) * m


# ---------------------------------------------------------------------------
# Pallas kernels
# ---------------------------------------------------------------------------
def _lstm_step(gx, h, c, w_hh, hidden):
    """One LSTM cell update from precomputed input gates gx = x@W_ih^T + b.

    Only the recurrent matmul (B,H)x(H,4H) runs here (bf16 on the MXU, f32 acc);
    gate math and the cell/hidden state stay in f32.
    """
    gates = gx + jnp.dot(h.astype(jnp.bfloat16), w_hh,
                         preferred_element_type=jnp.float32)
    i_g = jax.nn.sigmoid(gates[:, 0 * hidden:1 * hidden])
    f_g = jax.nn.sigmoid(gates[:, 1 * hidden:2 * hidden])
    g_g = jnp.tanh(gates[:, 2 * hidden:3 * hidden])
    o_g = jax.nn.sigmoid(gates[:, 3 * hidden:4 * hidden])
    c_new = f_g * c + i_g * g_g
    h_new = o_g * jnp.tanh(c_new)
    return h_new, c_new


def _bilstm_kernel(len_ref, gxf_ref, gxb_ref, whf_ref, whb_ref,
                   hf_ref, cf_ref, hb_ref, cb_ref,
                   hf_sc, cf_sc, hb_sc, cb_sc, *, hidden, chunk, total_t):
    """One time-chunk of the bidirectional encoder LSTM (grid = (T/chunk,)).

    Forward direction handles times [c*chunk, (c+1)*chunk); the backward direction
    handles the mirrored chunk (remapped via its BlockSpec index_map), both interleaved
    for ILP.  Packed semantics: a row's carry is frozen past its length; only the final
    states are emitted (the per-step outputs were unused with attn=None).
    """
    c = pl.program_id(0)
    nc = pl.num_programs(0)

    @pl.when(c == 0)
    def _():
        hf_sc[...] = jnp.zeros_like(hf_sc)
        cf_sc[...] = jnp.zeros_like(cf_sc)
        hb_sc[...] = jnp.zeros_like(hb_sc)
        cb_sc[...] = jnp.zeros_like(cb_sc)

    lengths = len_ref[...]                                   # (B, 1) int32
    t0 = c * chunk

    for s in range(chunk):                                   # fully unrolled
        # ---- forward direction: global time t0 + s ----
        t_f = t0 + s
        m_f = t_f < lengths                                  # (B, 1) bool
        h_new, c_new = _lstm_step(gxf_ref[s], hf_sc[...], cf_sc[...],
                                  whf_ref[...], hidden)
        hf_sc[...] = jnp.where(m_f, h_new, hf_sc[...])
        cf_sc[...] = jnp.where(m_f, c_new, cf_sc[...])

        # ---- backward direction: global time total_t - 1 - (t0 + s) ----
        m_b = (total_t - 1 - t_f) < lengths
        h_new, c_new = _lstm_step(gxb_ref[chunk - 1 - s], hb_sc[...], cb_sc[...],
                                  whb_ref[...], hidden)
        hb_sc[...] = jnp.where(m_b, h_new, hb_sc[...])
        cb_sc[...] = jnp.where(m_b, c_new, cb_sc[...])

    @pl.when(c == nc - 1)
    def _():
        hf_ref[...] = hf_sc[...]
        cf_ref[...] = cf_sc[...]
        hb_ref[...] = hb_sc[...]
        cb_ref[...] = cb_sc[...]


def _lstm_kernel(gx_ref, h0_ref, c0_ref, w_ref,
                 out_ref, hT_ref, cT_ref, h_sc, c_sc, *, hidden, chunk, t_real):
    """One time-chunk of the unidirectional decoder LSTM (grid = (T/chunk,)).

    The time axis may be padded up to a chunk multiple; the carry is frozen for padded
    steps (t >= t_real) so the returned final state matches the true last step.
    """
    c = pl.program_id(0)
    nc = pl.num_programs(0)

    @pl.when(c == 0)
    def _():
        h_sc[...] = h0_ref[...]
        c_sc[...] = c0_ref[...]

    t0 = c * chunk
    for s in range(chunk):                                   # fully unrolled
        h_new, c_new = _lstm_step(gx_ref[s], h_sc[...], c_sc[...],
                                  w_ref[...], hidden)
        out_ref[s] = h_new.astype(out_ref.dtype)
        valid = (t0 + s) < t_real                            # scalar bool
        h_sc[...] = jnp.where(valid, h_new, h_sc[...])
        c_sc[...] = jnp.where(valid, c_new, c_sc[...])

    @pl.when(c == nc - 1)
    def _():
        hT_ref[...] = h_sc[...]
        cT_ref[...] = c_sc[...]


def _linear_kernel(x_ref, w_ref, b_ref, o_ref):
    """o = x @ w + b   (bf16 tiles on the MXU, f32 accumulation)."""
    o_ref[...] = (jnp.dot(x_ref[...], w_ref[...],
                          preferred_element_type=jnp.float32)
                  + b_ref[...]).astype(o_ref.dtype)


# ---------------------------------------------------------------------------
# Pallas wrappers
# ---------------------------------------------------------------------------
def run_linear(x, w, b, *, out_dtype=jnp.float32, tm=256, tn=512):
    """Tiled matmul out = x @ w + b with padding to tile multiples.

    x: (N, K) bf16, w: (K, V) bf16, b: (V,) f32.  N and V are padded up to the tile
    sizes (lane-dense multiple-of-128 output tiles) and the result is sliced back.
    """
    N, K = x.shape
    V = w.shape[1]
    tm_e = tm if N >= tm else _round_up(N, 16)
    tn_e = tn if V >= tn else _round_up(V, 128)
    Np = _round_up(N, tm_e)
    Vp = _round_up(V, tn_e)

    xp = x if Np == N else jnp.pad(x, ((0, Np - N), (0, 0)))
    wp = w if Vp == V else jnp.pad(w, ((0, 0), (0, Vp - V)))
    bp = (b if Vp == V else jnp.pad(b, (0, Vp - V)))
    bp = bp.reshape(1, Vp).astype(jnp.float32)

    itm = lambda dt: jnp.dtype(dt).itemsize
    cost = pl.CostEstimate(
        flops=2 * Np * K * Vp, transcendentals=0,
        bytes_accessed=(Np * K * itm(x.dtype) + K * Vp * itm(w.dtype)
                        + 4 * Vp + Np * Vp * itm(out_dtype)))

    out = pl.pallas_call(
        _linear_kernel,
        grid=(Np // tm_e, Vp // tn_e),
        in_specs=[
            pl.BlockSpec((tm_e, K), lambda i, j: (i, 0)),
            pl.BlockSpec((K, tn_e), lambda i, j: (0, j)),
            pl.BlockSpec((1, tn_e), lambda i, j: (0, j)),
        ],
        out_specs=pl.BlockSpec((tm_e, tn_e), lambda i, j: (i, j)),
        out_shape=jax.ShapeDtypeStruct((Np, Vp), out_dtype),
        compiler_params=pltpu.CompilerParams(
            dimension_semantics=("parallel", "parallel"),
            vmem_limit_bytes=_VMEM_LIMIT),
        cost_estimate=cost,
    )(xp, wp, bp)
    return out if (Np == N and Vp == V) else out[:N, :V]


def run_bilstm_encoder(lengths_b1, gxf, gxb, whf, whb, *, chunk):
    """gxf/gxb: (Tp, B, 4*Hh) f32 precomputed input gates; returns final states."""
    Tp, B, _ = gxf.shape
    Hh = whf.shape[0]
    nc = Tp // chunk

    const2 = lambda c: (0, 0)
    fwd3 = lambda c: (c, 0, 0)
    bwd3 = lambda c: (nc - 1 - c, 0, 0)
    state = jax.ShapeDtypeStruct((B, Hh), jnp.float32)

    return pl.pallas_call(
        functools.partial(_bilstm_kernel, hidden=Hh, chunk=chunk, total_t=Tp),
        grid=(nc,),
        in_specs=[
            pl.BlockSpec((B, 1), const2),                 # lengths (resident)
            pl.BlockSpec((chunk, B, 4 * Hh), fwd3),       # fwd input gates
            pl.BlockSpec((chunk, B, 4 * Hh), bwd3),       # bwd input gates (reversed)
            pl.BlockSpec(whf.shape, const2),              # recurrent weights (resident)
            pl.BlockSpec(whb.shape, const2),
        ],
        out_specs=(
            pl.BlockSpec((B, Hh), const2),                # final states only
            pl.BlockSpec((B, Hh), const2),
            pl.BlockSpec((B, Hh), const2),
            pl.BlockSpec((B, Hh), const2),
        ),
        out_shape=(state, state, state, state),
        scratch_shapes=[pltpu.VMEM((B, Hh), jnp.float32)] * 4,
        compiler_params=pltpu.CompilerParams(
            dimension_semantics=("arbitrary",),           # time is a recurrence
            vmem_limit_bytes=_VMEM_LIMIT),
    )(lengths_b1, gxf, gxb, whf, whb)


def run_lstm_decoder(gx, h0, c0, w_hh, *, chunk, t_real):
    """gx: (Tp, B, 4H) f32 precomputed input gates; h0/c0: (B, H) f32."""
    Tp, B, _ = gx.shape
    H = h0.shape[-1]
    nc = Tp // chunk

    const2 = lambda c: (0, 0)
    step3 = lambda c: (c, 0, 0)

    return pl.pallas_call(
        functools.partial(_lstm_kernel, hidden=H, chunk=chunk, t_real=t_real),
        grid=(nc,),
        in_specs=[
            pl.BlockSpec((chunk, B, 4 * H), step3),
            pl.BlockSpec((B, H), const2),
            pl.BlockSpec((B, H), const2),
            pl.BlockSpec(w_hh.shape, const2),
        ],
        out_specs=(
            pl.BlockSpec((chunk, B, H), step3),           # per-step hidden (time-major)
            pl.BlockSpec((B, H), const2),
            pl.BlockSpec((B, H), const2),
        ),
        out_shape=(
            jax.ShapeDtypeStruct((Tp, B, H), jnp.bfloat16),   # feeds the generator
            jax.ShapeDtypeStruct((B, H), jnp.float32),
            jax.ShapeDtypeStruct((B, H), jnp.float32),
        ),
        scratch_shapes=[pltpu.VMEM((B, H), jnp.float32)] * 2,
        compiler_params=pltpu.CompilerParams(
            dimension_semantics=("arbitrary",),
            vmem_limit_bytes=_VMEM_LIMIT),
    )(gx, h0, c0, w_hh)


# ---------------------------------------------------------------------------
# Parameter helpers
# ---------------------------------------------------------------------------
def _proj_weights(p):
    """PyTorch (4H, H_in) W_ih -> (H_in, 4H) bf16; combined bias (4H,) f32."""
    return (jnp.transpose(p["w_ih"]).astype(jnp.bfloat16),
            (p["b_ih"] + p["b_hh"]).astype(jnp.float32))


def _recur_weights(p):
    """PyTorch (4H, H) W_hh -> (H, 4H) bf16."""
    return jnp.transpose(p["w_hh"]).astype(jnp.bfloat16)


def init_params(key, src_vocab, tgt_vocab, hidden, pad_idx=0):
    h_half = hidden // 2
    ks = iter(jax.random.split(key, 24))

    def u(shape, scale):
        return jax.random.uniform(next(ks), shape, jnp.float32, -scale, scale)

    k_enc = 1.0 / jnp.sqrt(h_half)
    k_dec = 1.0 / jnp.sqrt(hidden)

    enc_emb = u((src_vocab, hidden), 1.0).at[pad_idx].set(0.0)
    dec_emb = u((tgt_vocab, hidden), 1.0).at[pad_idx].set(0.0)

    def lstm_dir(h_in, h_out, k):
        return dict(w_ih=u((4 * h_out, h_in), k), w_hh=u((4 * h_out, h_out), k),
                    b_ih=u((4 * h_out,), k), b_hh=u((4 * h_out,), k))

    return dict(
        enc_embedding=enc_emb,
        enc_fwd=lstm_dir(hidden, h_half, k_enc),
        enc_bwd=lstm_dir(hidden, h_half, k_enc),
        dec_embedding=dec_emb,
        dec_lstm=lstm_dir(hidden, hidden, k_dec),
        gen_bias=u((tgt_vocab,), k_dec),   # generator.weight tied to dec_embedding
    )


# ---------------------------------------------------------------------------
# Seq2Seq forward
# ---------------------------------------------------------------------------
@jax.jit
def seq2seq_forward(params, src, src_lengths, tgt, dec_hidden=None):
    B, Ts = src.shape
    _, Tt = tgt.shape
    hidden = params["dec_embedding"].shape[1]
    h_half = hidden // 2

    Bp = _round_up(B, _BATCH_PAD)
    pad_b = Bp - B
    Tsp = _round_up(Ts, _TIME_CHUNK)
    Ttp = _round_up(Tt, _TIME_CHUNK)

    # ---------------- Encoder ----------------
    # Gather embeddings directly in time-major layout (avoids a (B,T,H) transpose).
    src_emb = jnp.take(params["enc_embedding"], src.T, axis=0)          # (Ts, B, H)
    x_enc = jnp.pad(src_emb, ((0, Tsp - Ts), (0, pad_b), (0, 0))).astype(jnp.bfloat16)
    lengths = jnp.pad(src_lengths.astype(jnp.int32), (0, pad_b)).reshape(Bp, 1)

    # Hoisted input projections: one big MXU matmul per direction (near-peak M),
    # leaving only h @ W_hh inside the recurrence.
    wixf, bf = _proj_weights(params["enc_fwd"])
    wixb, bb = _proj_weights(params["enc_bwd"])
    x_rows = x_enc.reshape(Tsp * Bp, hidden)
    gxf = run_linear(x_rows, wixf, bf).reshape(Tsp, Bp, 4 * h_half)
    gxb = run_linear(x_rows, wixb, bb).reshape(Tsp, Bp, 4 * h_half)

    whf = _recur_weights(params["enc_fwd"])
    whb = _recur_weights(params["enc_bwd"])
    hf, cf, hb, cb = run_bilstm_encoder(lengths, gxf, gxb, whf, whb,
                                        chunk=_TIME_CHUNK)
    # encoder per-step outputs are not materialized: the attn=None decoder never
    # reads them (use_attention flag would re-enable them).

    final_enc_h = jnp.concatenate([hf, hb], axis=-1)                    # (Bp, H)
    final_enc_c = jnp.concatenate([cf, cb], axis=-1)

    if dec_hidden is None:
        h0, c0 = final_enc_h, final_enc_c
    else:
        h0 = jnp.pad(dec_hidden[0][0], ((0, pad_b), (0, 0)))
        c0 = jnp.pad(dec_hidden[1][0], ((0, pad_b), (0, 0)))

    # ---------------- Decoder (attn=None, dropout = eval identity) ----------
    tgt_emb = jnp.take(params["dec_embedding"], tgt.T, axis=0)          # (Tt, B, H)
    x_dec = jnp.pad(tgt_emb, ((0, Ttp - Tt), (0, pad_b), (0, 0))).astype(jnp.bfloat16)
    wixd, bd = _proj_weights(params["dec_lstm"])
    gxd = run_linear(x_dec.reshape(Ttp * Bp, hidden), wixd, bd)
    gxd = gxd.reshape(Ttp, Bp, 4 * hidden)

    whd = _recur_weights(params["dec_lstm"])
    out_d, hd, cd = run_lstm_decoder(gxd, h0, c0, whd,
                                     chunk=_TIME_CHUNK, t_real=Tt)      # (Ttp, Bp, H)

    # ---------------- Generator (weight tied to decoder embedding) ----------
    # Consume the decoder output time-major (matmul is row-order agnostic); only the
    # final logits view is sliced/reordered to batch-first.
    w_gen_t = jnp.transpose(params["dec_embedding"]).astype(jnp.bfloat16)
    logits_rows = run_linear(out_d.reshape(Ttp * Bp, hidden), w_gen_t,
                             params["gen_bias"], out_dtype=jnp.bfloat16)
    logits = jnp.transpose(
        logits_rows.reshape(Ttp, Bp, -1)[:Tt, :B], (1, 0, 2))           # (B, Tt, V)

    return logits, (hd[:B][None], cd[:B][None])


# ---------------------------------------------------------------------------
if __name__ == "__main__":
    B, Ts, Tt = 2, 8, 7
    HIDDEN = 32
    SRC_VOCAB, TGT_VOCAB = 20, 24
    PAD = 0

    key = jax.random.PRNGKey(0)
    k_par, k_src, k_tgt = jax.random.split(key, 3)

    params = init_params(k_par, SRC_VOCAB, TGT_VOCAB, HIDDEN, pad_idx=PAD)

    src_lengths = jnp.array([Ts, 5], dtype=jnp.int32)
    src = jax.random.randint(k_src, (B, Ts), 1, SRC_VOCAB, dtype=jnp.int32)
    valid = jnp.arange(Ts)[None, :] < src_lengths[:, None]
    src = jnp.where(valid, src, PAD)                 # zero out padded positions
    tgt = jax.random.randint(k_tgt, (B, Tt), 1, TGT_VOCAB, dtype=jnp.int32)

    logits, (dec_h, dec_c) = seq2seq_forward(params, src, src_lengths, tgt)
    jax.block_until_ready((logits, dec_h, dec_c))

    assert logits.shape == (B, Tt, TGT_VOCAB)
    assert dec_h.shape == (1, B, HIDDEN) and dec_c.shape == (1, B, HIDDEN)
    assert bool(jnp.all(jnp.isfinite(logits.astype(jnp.float32))))
    print("KERNEL_OK")
</pallas_src>

<mosaic_0001>
module attributes {stable_mosaic.version = 11 : i64} {
  func.func @_bilstm_kernel(%arg0: i32, %arg1: memref<16x1xi32, #tpu.memory_space<vmem>>, %arg2: memref<8x16x64xf32, #tpu.memory_space<vmem>>, %arg3: memref<8x16x64xf32, #tpu.memory_space<vmem>>, %arg4: memref<16x64xbf16, #tpu.memory_space<vmem>>, %arg5: memref<16x64xbf16, #tpu.memory_space<vmem>>, %arg6: memref<16x16xf32, #tpu.memory_space<vmem>>, %arg7: memref<16x16xf32, #tpu.memory_space<vmem>>, %arg8: memref<16x16xf32, #tpu.memory_space<vmem>>, %arg9: memref<16x16xf32, #tpu.memory_space<vmem>>, %arg10: memref<16x16xf32, #tpu.memory_space<vmem>>, %arg11: memref<16x16xf32, #tpu.memory_space<vmem>>, %arg12: memref<16x16xf32, #tpu.memory_space<vmem>>, %arg13: memref<16x16xf32, #tpu.memory_space<vmem>>) attributes {dimension_semantics = [#tpu.dimension_semantics<arbitrary>], iteration_bounds = array<i64: 1>, scalar_prefetch = 0 : i64, scratch_operands = 4 : i64, tpu.core_type = #tpu.core_type<tc>, window_params = [{pipeline_mode = #tpu.pipeline_mode<synchronous>, transform_indices = @transform_0, window_bounds = array<i64: 16, 1>}, {transform_indices = @transform_1, window_bounds = array<i64: 8, 16, 64>}, {transform_indices = @transform_2, window_bounds = array<i64: 8, 16, 64>}, {pipeline_mode = #tpu.pipeline_mode<synchronous>, transform_indices = @transform_3, window_bounds = array<i64: 16, 64>}, {pipeline_mode = #tpu.pipeline_mode<synchronous>, transform_indices = @transform_4, window_bounds = array<i64: 16, 64>}, {pipeline_mode = #tpu.pipeline_mode<synchronous>, transform_indices = @transform_5, window_bounds = array<i64: 16, 16>}, {pipeline_mode = #tpu.pipeline_mode<synchronous>, transform_indices = @transform_6, window_bounds = array<i64: 16, 16>}, {pipeline_mode = #tpu.pipeline_mode<synchronous>, transform_indices = @transform_7, window_bounds = array<i64: 16, 16>}, {pipeline_mode = #tpu.pipeline_mode<synchronous>, transform_indices = @transform_8, window_bounds = array<i64: 16, 16>}]} {
    %c0_i32 = arith.constant 0 : i32
    %0 = arith.cmpi eq, %arg0, %c0_i32 : i32
    %1 = arith.extui %0 : i1 to i32
    %c0_i32_0 = arith.constant 0 : i32
    %2 = arith.cmpi ne, %1, %c0_i32_0 : i32
    scf.if %2 {
      %cst_341 = arith.constant 0.000000e+00 : f32
      %744 = vector.broadcast %cst_341 : f32 to vector<16x16xf32>
      %c0_342 = arith.constant 0 : index
      %c0_343 = arith.constant 0 : index
      %745 = vector.load %arg10[%c0_342, %c0_343] : memref<16x16xf32, #tpu.memory_space<vmem>>, vector<16x16xf32>
      tpu.vector_store %arg10[%c0_342, %c0_343], %744 {strides = array<i32>} : memref<16x16xf32, #tpu.memory_space<vmem>>, vector<16x16xf32>,
      %cst_344 = arith.constant 0.000000e+00 : f32
      %746 = vector.broadcast %cst_344 : f32 to vector<16x16xf32>
      %c0_345 = arith.constant 0 : index
      %c0_346 = arith.constant 0 : index
      %747 = vector.load %arg11[%c0_345, %c0_346] : memref<16x16xf32, #tpu.memory_space<vmem>>, vector<16x16xf32>
      tpu.vector_store %arg11[%c0_345, %c0_346], %746 {strides = array<i32>} : memref<16x16xf32, #tpu.memory_space<vmem>>, vector<16x16xf32>,
      %cst_347 = arith.constant 0.000000e+00 : f32
      %748 = vector.broadcast %cst_347 : f32 to vector<16x16xf32>
      %c0_348 = arith.constant 0 : index
      %c0_349 = arith.constant 0 : index
      %749 = vector.load %arg12[%c0_348, %c0_349] : memref<16x16xf32, #tpu.memory_space<vmem>>, vector<16x16xf32>
      tpu.vector_store %arg12[%c0_348, %c0_349], %748 {strides = array<i32>} : memref<16x16xf32, #tpu.memory_space<vmem>>, vector<16x16xf32>,
      %cst_350 = arith.constant 0.000000e+00 : f32
      %750 = vector.broadcast %cst_350 : f32 to vector<16x16xf32>
      %c0_351 = arith.constant 0 : index
      %c0_352 = arith.constant 0 : index
      %751 = vector.load %arg13[%c0_351, %c0_352] : memref<16x16xf32, #tpu.memory_space<vmem>>, vector<16x16xf32>
      tpu.vector_store %arg13[%c0_351, %c0_352], %750 {strides = array<i32>} : memref<16x16xf32, #tpu.memory_space<vmem>>, vector<16x16xf32>,
    } else {
    }
    %c0 = arith.constant 0 : index
    %c0_1 = arith.constant 0 : index
    %3 = vector.load %arg1[%c0, %c0_1] : memref<16x1xi32, #tpu.memory_space<vmem>>, vector<16x1xi32>
    %c8_i32 = arith.constant 8 : i32
    %4 = arith.muli %arg0, %c8_i32 : i32
    %c0_i32_2 = arith.constant 0 : i32
    %5 = arith.addi %4, %c0_i32_2 : i32
    %6 = vector.broadcast %5 : i32 to vector<16x1xi32>
    %7 = arith.cmpi slt, %6, %3 : vector<16x1xi32>
    %c0_3 = arith.constant 0 : index
    %c0_4 = arith.constant 0 : index
    %c0_5 = arith.constant 0 : index
    %8 = vector.load %arg2[%c0_3, %c0_4, %c0_5] : memref<8x16x64xf32, #tpu.memory_space<vmem>>, vector<1x16x64xf32>
    %9 = vector.shape_cast %8 : vector<1x16x64xf32> to vector<16x64xf32>
    %c0_6 = arith.constant 0 : index
    %c0_7 = arith.constant 0 : index
    %10 = vector.load %arg10[%c0_6, %c0_7] : memref<16x16xf32, #tpu.memory_space<vmem>>, vector<16x16xf32>
    %c0_8 = arith.constant 0 : index
    %c0_9 = arith.constant 0 : index
    %11 = vector.load %arg11[%c0_8, %c0_9] : memref<16x16xf32, #tpu.memory_space<vmem>>, vector<16x16xf32>
    %c0_10 = arith.constant 0 : index
    %c0_11 = arith.constant 0 : index
    %12 = vector.load %arg4[%c0_10, %c0_11] : memref<16x64xbf16, #tpu.memory_space<vmem>>, vector<16x64xbf16>
    %13 = arith.truncf %10 : vector<16x16xf32> to vector<16x16xbf16>
    %cst = arith.constant dense<0.000000e+00> : vector<16x64xf32>
    %14 = tpu.matmul %13, %12, %cst {dimension_numbers = #tpu.dot_dimension_numbers<[1], [0], [0], [1], [0, 0, 1, 1], [], []>} : vector<16x16xbf16>, vector<16x64xbf16>, vector<16x64xf32> -> vector<16x64xf32>
    %15 = arith.addf %9, %14 : vector<16x64xf32>
    %16 = vector.extract_strided_slice %15 {offsets = [0, 0], sizes = [16, 16], strides = [1, 1]} : vector<16x64xf32> to vector<16x16xf32>
    %17 = arith.negf %16 : vector<16x16xf32>
    %18 = math.exp %17 : vector<16x16xf32>
    %cst_12 = arith.constant 1.000000e+00 : f32
    %19 = vector.broadcast %cst_12 : f32 to vector<16x16xf32>
    %20 = arith.addf %19, %18 : vector<16x16xf32>
    %21 = arith.divf %19, %20 : vector<16x16xf32>
    %22 = vector.extract_strided_slice %15 {offsets = [0, 16], sizes = [16, 16], strides = [1, 1]} : vector<16x64xf32> to vector<16x16xf32>
    %23 = arith.negf %22 : vector<16x16xf32>
    %24 = math.exp %23 : vector<16x16xf32>
    %cst_13 = arith.constant 1.000000e+00 : f32
    %25 = vector.broadcast %cst_13 : f32 to vector<16x16xf32>
    %26 = arith.addf %25, %24 : vector<16x16xf32>
    %27 = arith.divf %25, %26 : vector<16x16xf32>
    %28 = vector.extract_strided_slice %15 {offsets = [0, 32], sizes = [16, 16], strides = [1, 1]} : vector<16x64xf32> to vector<16x16xf32>
    %29 = math.tanh %28 : vector<16x16xf32>
    %30 = vector.extract_strided_slice %15 {offsets = [0, 48], sizes = [16, 16], strides = [1, 1]} : vector<16x64xf32> to vector<16x16xf32>
    %31 = arith.negf %30 : vector<16x16xf32>
    %32 = math.exp %31 : vector<16x16xf32>
    %cst_14 = arith.constant 1.000000e+00 : f32
    %33 = vector.broadcast %cst_14 : f32 to vector<16x16xf32>
    %34 = arith.addf %33, %32 : vector<16x16xf32>
    %35 = arith.divf %33, %34 : vector<16x16xf32>
    %36 = arith.mulf %27, %11 : vector<16x16xf32>
    %37 = arith.mulf %21, %29 : vector<16x16xf32>
    %38 = arith.addf %36, %37 : vector<16x16xf32>
    %39 = math.tanh %38 : vector<16x16xf32>
    %40 = arith.mulf %35, %39 : vector<16x16xf32>
    %c0_15 = arith.constant 0 : index
    %c0_16 = arith.constant 0 : index
    %41 = vector.load %arg10[%c0_15, %c0_16] : memref<16x16xf32, #tpu.memory_space<vmem>>, vector<16x16xf32>
    %42 = vector.shape_cast %7 : vector<16x1xi1> to vector<16x1xi1>
    %43 = vector.broadcast %42 : vector<16x1xi1> to vector<16x16xi1>
    %44 = arith.select %43, %40, %41 : vector<16x16xi1>, vector<16x16xf32>
    %c0_17 = arith.constant 0 : index
    %c0_18 = arith.constant 0 : index
    %45 = vector.load %arg10[%c0_17, %c0_18] : memref<16x16xf32, #tpu.memory_space<vmem>>, vector<16x16xf32>
    tpu.vector_store %arg10[%c0_17, %c0_18], %44 {strides = array<i32>} : memref<16x16xf32, #tpu.memory_space<vmem>>, vector<16x16xf32>,
    %c0_19 = arith.constant 0 : index
    %c0_20 = arith.constant 0 : index
    %46 = vector.load %arg11[%c0_19, %c0_20] : memref<16x16xf32, #tpu.memory_space<vmem>>, vector<16x16xf32>
    %47 = vector.shape_cast %7 : vector<16x1xi1> to vector<16x1xi1>
    %48 = vector.broadcast %47 : vector<16x1xi1> to vector<16x16xi1>
    %49 = arith.select %48, %38, %46 : vector<16x16xi1>, vector<16x16xf32>
    %c0_21 = arith.constant 0 : index
    %c0_22 = arith.constant 0 : index
    %50 = vector.load %arg11[%c0_21, %c0_22] : memref<16x16xf32, #tpu.memory_space<vmem>>, vector<16x16xf32>
    tpu.vector_store %arg11[%c0_21, %c0_22], %49 {strides = array<i32>} : memref<16x16xf32, #tpu.memory_space<vmem>>, vector<16x16xf32>,
    %c7_i32 = arith.constant 7 : i32
    %51 = arith.subi %c7_i32, %5 : i32
    %52 = vector.broadcast %51 : i32 to vector<16x1xi32>
    %53 = arith.cmpi slt, %52, %3 : vector<16x1xi32>
    %c7 = arith.constant 7 : index
    %c0_23 = arith.constant 0 : index
    %c0_24 = arith.constant 0 : index
    %54 = vector.load %arg3[%c7, %c0_23, %c0_24] : memref<8x16x64xf32, #tpu.memory_space<vmem>>, vector<1x16x64xf32>
    %55 = vector.shape_cast %54 : vector<1x16x64xf32> to vector<16x64xf32>
    %c0_25 = arith.constant 0 : index
    %c0_26 = arith.constant 0 : index
    %56 = vector.load %arg12[%c0_25, %c0_26] : memref<16x16xf32, #tpu.memory_space<vmem>>, vector<16x16xf32>
    %c0_27 = arith.constant 0 : index
    %c0_28 = arith.constant 0 : index
    %57 = vector.load %arg13[%c0_27, %c0_28] : memref<16x16xf32, #tpu.memory_space<vmem>>, vector<16x16xf32>
    %c0_29 = arith.constant 0 : index
    %c0_30 = arith.constant 0 : index
    %58 = vector.load %arg5[%c0_29, %c0_30] : memref<16x64xbf16, #tpu.memory_space<vmem>>, vector<16x64xbf16>
    %59 = arith.truncf %56 : vector<16x16xf32> to vector<16x16xbf16>
    %cst_31 = arith.constant dense<0.000000e+00> : vector<16x64xf32>
    %60 = tpu.matmul %59, %58, %cst_31 {dimension_numbers = #tpu.dot_dimension_numbers<[1], [0], [0], [1], [0, 0, 1, 1], [], []>} : vector<16x16xbf16>, vector<16x64xbf16>, vector<16x64xf32> -> vector<16x64xf32>
    %61 = arith.addf %55, %60 : vector<16x64xf32>
    %62 = vector.extract_strided_slice %61 {offsets = [0, 0], sizes = [16, 16], strides = [1, 1]} : vector<16x64xf32> to vector<16x16xf32>
    %63 = arith.negf %62 : vector<16x16xf32>
    %64 = math.exp %63 : vector<16x16xf32>
    %cst_32 = arith.constant 1.000000e+00 : f32
    %65 = vector.broadcast %cst_32 : f32 to vector<16x16xf32>
    %66 = arith.addf %65, %64 : vector<16x16xf32>
    %67 = arith.divf %65, %66 : vector<16x16xf32>
    %68 = vector.extract_strided_slice %61 {offsets = [0, 16], sizes = [16, 16], strides = [1, 1]} : vector<16x64xf32> to vector<16x16xf32>
    %69 = arith.negf %68 : vector<16x16xf32>
    %70 = math.exp %69 : vector<16x16xf32>
    %cst_33 = arith.constant 1.000000e+00 : f32
    %71 = vector.broadcast %cst_33 : f32 to vector<16x16xf32>
    %72 = arith.addf %71, %70 : vector<16x16xf32>
    %73 = arith.divf %71, %72 : vector<16x16xf32>
    %74 = vector.extract_strided_slice %61 {offsets = [0, 32], sizes = [16, 16], strides = [1, 1]} : vector<16x64xf32> to vector<16x16xf32>
    %75 = math.tanh %74 : vector<16x16xf32>
    %76 = vector.extract_strided_slice %61 {offsets = [0, 48], sizes = [16, 16], strides = [1, 1]} : vector<16x64xf32> to vector<16x16xf32>
    %77 = arith.negf %76 : vector<16x16xf32>
    %78 = math.exp %77 : vector<16x16xf32>
    %cst_34 = arith.constant 1.000000e+00 : f32
    %79 = vector.broadcast %cst_34 : f32 to vector<16x16xf32>
    %80 = arith.addf %79, %78 : vector<16x16xf32>
    %81 = arith.divf %79, %80 : vector<16x16xf32>
    %82 = arith.mulf %73, %57 : vector<16x16xf32>
    %83 = arith.mulf %67, %75 : vector<16x16xf32>
    %84 = arith.addf %82, %83 : vector<16x16xf32>
    %85 = math.tanh %84 : vector<16x16xf32>
    %86 = arith.mulf %81, %85 : vector<16x16xf32>
    %c0_35 = arith.constant 0 : index
    %c0_36 = arith.constant 0 : index
    %87 = vector.load %arg12[%c0_35, %c0_36] : memref<16x16xf32, #tpu.memory_space<vmem>>, vector<16x16xf32>
    %88 = vector.shape_cast %53 : vector<16x1xi1> to vector<16x1xi1>
    %89 = vector.broadcast %88 : vector<16x1xi1> to vector<16x16xi1>
    %90 = arith.select %89, %86, %87 : vector<16x16xi1>, vector<16x16xf32>
    %c0_37 = arith.constant 0 : index
    %c0_38 = arith.constant 0 : index
    %91 = vector.load %arg12[%c0_37, %c0_38] : memref<16x16xf32, #tpu.memory_space<vmem>>, vector<16x16xf32>
    tpu.vector_store %arg12[%c0_37, %c0_38], %90 {strides = array<i32>} : memref<16x16xf32, #tpu.memory_space<vmem>>, vector<16x16xf32>,
    %c0_39 = arith.constant 0 : index
    %c0_40 = arith.constant 0 : index
    %92 = vector.load %arg13[%c0_39, %c0_40] : memref<16x16xf32, #tpu.memory_space<vmem>>, vector<16x16xf32>
    %93 = vector.shape_cast %53 : vector<16x1xi1> to vector<16x1xi1>
    %94 = vector.broadcast %93 : vector<16x1xi1> to vector<16x16xi1>
    %95 = arith.select %94, %84, %92 : vector<16x16xi1>, vector<16x16xf32>
    %c0_41 = arith.constant 0 : index
    %c0_42 = arith.constant 0 : index
    %96 = vector.load %arg13[%c0_41, %c0_42] : memref<16x16xf32, #tpu.memory_space<vmem>>, vector<16x16xf32>
    tpu.vector_store %arg13[%c0_41, %c0_42], %95 {strides = array<i32>} : memref<16x16xf32, #tpu.memory_space<vmem>>, vector<16x16xf32>,
    %c1_i32 = arith.constant 1 : i32
    %97 = arith.addi %4, %c1_i32 : i32
    %98 = vector.broadcast %97 : i32 to vector<16x1xi32>
    %99 = arith.cmpi slt, %98, %3 : vector<16x1xi32>
    %c1 = arith.constant 1 : index
    %c0_43 = arith.constant 0 : index
    %c0_44 = arith.constant 0 : index
    %100 = vector.load %arg2[%c1, %c0_43, %c0_44] : memref<8x16x64xf32, #tpu.memory_space<vmem>>, vector<1x16x64xf32>
    %101 = vector.shape_cast %100 : vector<1x16x64xf32> to vector<16x64xf32>
    %c0_45 = arith.constant 0 : index
    %c0_46 = arith.constant 0 : index
    %102 = vector.load %arg10[%c0_45, %c0_46] : memref<16x16xf32, #tpu.memory_space<vmem>>, vector<16x16xf32>
    %c0_47 = arith.constant 0 : index
    %c0_48 = arith.constant 0 : index
    %103 = vector.load %arg11[%c0_47, %c0_48] : memref<16x16xf32, #tpu.memory_space<vmem>>, vector<16x16xf32>
    %c0_49 = arith.constant 0 : index
    %c0_50 = arith.constant 0 : index
    %104 = vector.load %arg4[%c0_49, %c0_50] : memref<16x64xbf16, #tpu.memory_space<vmem>>, vector<16x64xbf16>
    %105 = arith.truncf %102 : vector<16x16xf32> to vector<16x16xbf16>
    %cst_51 = arith.constant dense<0.000000e+00> : vector<16x64xf32>
    %106 = tpu.matmul %105, %104, %cst_51 {dimension_numbers = #tpu.dot_dimension_numbers<[1], [0], [0], [1], [0, 0, 1, 1], [], []>} : vector<16x16xbf16>, vector<16x64xbf16>, vector<16x64xf32> -> vector<16x64xf32>
    %107 = arith.addf %101, %106 : vector<16x64xf32>
    %108 = vector.extract_strided_slice %107 {offsets = [0, 0], sizes = [16, 16], strides = [1, 1]} : vector<16x64xf32> to vector<16x16xf32>
    %109 = arith.negf %108 : vector<16x16xf32>
    %110 = math.exp %109 : vector<16x16xf32>
    %cst_52 = arith.constant 1.000000e+00 : f32
    %111 = vector.broadcast %cst_52 : f32 to vector<16x16xf32>
    %112 = arith.addf %111, %110 : vector<16x16xf32>
    %113 = arith.divf %111, %112 : vector<16x16xf32>
    %114 = vector.extract_strided_slice %107 {offsets = [0, 16], sizes = [16, 16], strides = [1, 1]} : vector<16x64xf32> to vector<16x16xf32>
    %115 = arith.negf %114 : vector<16x16xf32>
    %116 = math.exp %115 : vector<16x16xf32>
    %cst_53 = arith.constant 1.000000e+00 : f32
    %117 = vector.broadcast %cst_53 : f32 to vector<16x16xf32>
    %118 = arith.addf %117, %116 : vector<16x16xf32>
    %119 = arith.divf %117, %118 : vector<16x16xf32>
    %120 = vector.extract_strided_slice %107 {offsets = [0, 32], sizes = [16, 16], strides = [1, 1]} : vector<16x64xf32> to vector<16x16xf32>
    %121 = math.tanh %120 : vector<16x16xf32>
    %122 = vector.extract_strided_slice %107 {offsets = [0, 48], sizes = [16, 16], strides = [1, 1]} : vector<16x64xf32> to vector<16x16xf32>
    %123 = arith.negf %122 : vector<16x16xf32>
    %124 = math.exp %123 : vector<16x16xf32>
    %cst_54 = arith.constant 1.000000e+00 : f32
    %125 = vector.broadcast %cst_54 : f32 to vector<16x16xf32>
    %126 = arith.addf %125, %124 : vector<16x16xf32>
    %127 = arith.divf %125, %126 : vector<16x16xf32>
    %128 = arith.mulf %119, %103 : vector<16x16xf32>
    %129 = arith.mulf %113, %121 : vector<16x16xf32>
    %130 = arith.addf %128, %129 : vector<16x16xf32>
    %131 = math.tanh %130 : vector<16x16xf32>
    %132 = arith.mulf %127, %131 : vector<16x16xf32>
    %c0_55 = arith.constant 0 : index
    %c0_56 = arith.constant 0 : index
    %133 = vector.load %arg10[%c0_55, %c0_56] : memref<16x16xf32, #tpu.memory_space<vmem>>, vector<16x16xf32>
    %134 = vector.shape_cast %99 : vector<16x1xi1> to vector<16x1xi1>
    %135 = vector.broadcast %134 : vector<16x1xi1> to vector<16x16xi1>
    %136 = arith.select %135, %132, %133 : vector<16x16xi1>, vector<16x16xf32>
    %c0_57 = arith.constant 0 : index
    %c0_58 = arith.constant 0 : index
    %137 = vector.load %arg10[%c0_57, %c0_58] : memref<16x16xf32, #tpu.memory_space<vmem>>, vector<16x16xf32>
    tpu.vector_store %arg10[%c0_57, %c0_58], %136 {strides = array<i32>} : memref<16x16xf32, #tpu.memory_space<vmem>>, vector<16x16xf32>,
    %c0_59 = arith.constant 0 : index
    %c0_60 = arith.constant 0 : index
    %138 = vector.load %arg11[%c0_59, %c0_60] : memref<16x16xf32, #tpu.memory_space<vmem>>, vector<16x16xf32>
    %139 = vector.shape_cast %99 : vector<16x1xi1> to vector<16x1xi1>
    %140 = vector.broadcast %139 : vector<16x1xi1> to vector<16x16xi1>
    %141 = arith.select %140, %130, %138 : vector<16x16xi1>, vector<16x16xf32>
    %c0_61 = arith.constant 0 : index
    %c0_62 = arith.constant 0 : index
    %142 = vector.load %arg11[%c0_61, %c0_62] : memref<16x16xf32, #tpu.memory_space<vmem>>, vector<16x16xf32>
    tpu.vector_store %arg11[%c0_61, %c0_62], %141 {strides = array<i32>} : memref<16x16xf32, #tpu.memory_space<vmem>>, vector<16x16xf32>,
    %c7_i32_63 = arith.constant 7 : i32
    %143 = arith.subi %c7_i32_63, %97 : i32
    %144 = vector.broadcast %143 : i32 to vector<16x1xi32>
    %145 = arith.cmpi slt, %144, %3 : vector<16x1xi32>
    %c6 = arith.constant 6 : index
    %c0_64 = arith.constant 0 : index
    %c0_65 = arith.constant 0 : index
    %146 = vector.load %arg3[%c6, %c0_64, %c0_65] : memref<8x16x64xf32, #tpu.memory_space<vmem>>, vector<1x16x64xf32>
    %147 = vector.shape_cast %146 : vector<1x16x64xf32> to vector<16x64xf32>
    %c0_66 = arith.constant 0 : index
    %c0_67 = arith.constant 0 : index
    %148 = vector.load %arg12[%c0_66, %c0_67] : memref<16x16xf32, #tpu.memory_space<vmem>>, vector<16x16xf32>
    %c0_68 = arith.constant 0 : index
    %c0_69 = arith.constant 0 : index
    %149 = vector.load %arg13[%c0_68, %c0_69] : memref<16x16xf32, #tpu.memory_space<vmem>>, vector<16x16xf32>
    %c0_70 = arith.constant 0 : index
    %c0_71 = arith.constant 0 : index
    %150 = vector.load %arg5[%c0_70, %c0_71] : memref<16x64xbf16, #tpu.memory_space<vmem>>, vector<16x64xbf16>
    %151 = arith.truncf %148 : vector<16x16xf32> to vector<16x16xbf16>
    %cst_72 = arith.constant dense<0.000000e+00> : vector<16x64xf32>
    %152 = tpu.matmul %151, %150, %cst_72 {dimension_numbers = #tpu.dot_dimension_numbers<[1], [0], [0], [1], [0, 0, 1, 1], [], []>} : vector<16x16xbf16>, vector<16x64xbf16>, vector<16x64xf32> -> vector<16x64xf32>
    %153 = arith.addf %147, %152 : vector<16x64xf32>
    %154 = vector.extract_strided_slice %153 {offsets = [0, 0], sizes = [16, 16], strides = [1, 1]} : vector<16x64xf32> to vector<16x16xf32>
    %155 = arith.negf %154 : vector<16x16xf32>
    %156 = math.exp %155 : vector<16x16xf32>
    %cst_73 = arith.constant 1.000000e+00 : f32
    %157 = vector.broadcast %cst_73 : f32 to vector<16x16xf32>
    %158 = arith.addf %157, %156 : vector<16x16xf32>
    %159 = arith.divf %157, %158 : vector<16x16xf32>
    %160 = vector.extract_strided_slice %153 {offsets = [0, 16], sizes = [16, 16], strides = [1, 1]} : vector<16x64xf32> to vector<16x16xf32>
    %161 = arith.negf %160 : vector<16x16xf32>
    %162 = math.exp %161 : vector<16x16xf32>
    %cst_74 = arith.constant 1.000000e+00 : f32
    %163 = vector.broadcast %cst_74 : f32 to vector<16x16xf32>
    %164 = arith.addf %163, %162 : vector<16x16xf32>
    %165 = arith.divf %163, %164 : vector<16x16xf32>
    %166 = vector.extract_strided_slice %153 {offsets = [0, 32], sizes = [16, 16], strides = [1, 1]} : vector<16x64xf32> to vector<16x16xf32>
    %167 = math.tanh %166 : vector<16x16xf32>
    %168 = vector.extract_strided_slice %153 {offsets = [0, 48], sizes = [16, 16], strides = [1, 1]} : vector<16x64xf32> to vector<16x16xf32>
    %169 = arith.negf %168 : vector<16x16xf32>
    %170 = math.exp %169 : vector<16x16xf32>
    %cst_75 = arith.constant 1.000000e+00 : f32
    %171 = vector.broadcast %cst_75 : f32 to vector<16x16xf32>
    %172 = arith.addf %171, %170 : vector<16x16xf32>
    %173 = arith.divf %171, %172 : vector<16x16xf32>
    %174 = arith.mulf %165, %149 : vector<16x16xf32>
    %175 = arith.mulf %159, %167 : vector<16x16xf32>
    %176 = arith.addf %174, %175 : vector<16x16xf32>
    %177 = math.tanh %176 : vector<16x16xf32>
    %178 = arith.mulf %173, %177 : vector<16x16xf32>
    %c0_76 = arith.constant 0 : index
    %c0_77 = arith.constant 0 : index
    %179 = vector.load %arg12[%c0_76, %c0_77] : memref<16x16xf32, #tpu.memory_space<vmem>>, vector<16x16xf32>
    %180 = vector.shape_cast %145 : vector<16x1xi1> to vector<16x1xi1>
    %181 = vector.broadcast %180 : vector<16x1xi1> to vector<16x16xi1>
    %182 = arith.select %181, %178, %179 : vector<16x16xi1>, vector<16x16xf32>
    %c0_78 = arith.constant 0 : index
    %c0_79 = arith.constant 0 : index
    %183 = vector.load %arg12[%c0_78, %c0_79] : memref<16x16xf32, #tpu.memory_space<vmem>>, vector<16x16xf32>
    tpu.vector_store %arg12[%c0_78, %c0_79], %182 {strides = array<i32>} : memref<16x16xf32, #tpu.memory_space<vmem>>, vector<16x16xf32>,
    %c0_80 = arith.constant 0 : index
    %c0_81 = arith.constant 0 : index
    %184 = vector.load %arg13[%c0_80, %c0_81] : memref<16x16xf32, #tpu.memory_space<vmem>>, vector<16x16xf32>
    %185 = vector.shape_cast %145 : vector<16x1xi1> to vector<16x1xi1>
    %186 = vector.broadcast %185 : vector<16x1xi1> to vector<16x16xi1>
    %187 = arith.select %186, %176, %184 : vector<16x16xi1>, vector<16x16xf32>
    %c0_82 = arith.constant 0 : index
    %c0_83 = arith.constant 0 : index
    %188 = vector.load %arg13[%c0_82, %c0_83] : memref<16x16xf32, #tpu.memory_space<vmem>>, vector<16x16xf32>
    tpu.vector_store %arg13[%c0_82, %c0_83], %187 {strides = array<i32>} : memref<16x16xf32, #tpu.memory_space<vmem>>, vector<16x16xf32>,
    %c2_i32 = arith.constant 2 : i32
    %189 = arith.addi %4, %c2_i32 : i32
    %190 = vector.broadcast %189 : i32 to vector<16x1xi32>
    %191 = arith.cmpi slt, %190, %3 : vector<16x1xi32>
    %c2 = arith.constant 2 : index
    %c0_84 = arith.constant 0 : index
    %c0_85 = arith.constant 0 : index
    %192 = vector.load %arg2[%c2, %c0_84, %c0_85] : memref<8x16x64xf32, #tpu.memory_space<vmem>>, vector<1x16x64xf32>
    %193 = vector.shape_cast %192 : vector<1x16x64xf32> to vector<16x64xf32>
    %c0_86 = arith.constant 0 : index
    %c0_87 = arith.constant 0 : index
    %194 = vector.load %arg10[%c0_86, %c0_87] : memref<16x16xf32, #tpu.memory_space<vmem>>, vector<16x16xf32>
    %c0_88 = arith.constant 0 : index
    %c0_89 = arith.constant 0 : index
    %195 = vector.load %arg11[%c0_88, %c0_89] : memref<16x16xf32, #tpu.memory_space<vmem>>, vector<16x16xf32>
    %c0_90 = arith.constant 0 : index
    %c0_91 = arith.constant 0 : index
    %196 = vector.load %arg4[%c0_90, %c0_91] : memref<16x64xbf16, #tpu.memory_space<vmem>>, vector<16x64xbf16>
    %197 = arith.truncf %194 : vector<16x16xf32> to vector<16x16xbf16>
    %cst_92 = arith.constant dense<0.000000e+00> : vector<16x64xf32>
    %198 = tpu.matmul %197, %196, %cst_92 {dimension_numbers = #tpu.dot_dimension_numbers<[1], [0], [0], [1], [0, 0, 1, 1], [], []>} : vector<16x16xbf16>, vector<16x64xbf16>, vector<16x64xf32> -> vector<16x64xf32>
    %199 = arith.addf %193, %198 : vector<16x64xf32>
    %200 = vector.extract_strided_slice %199 {offsets = [0, 0], sizes = [16, 16], strides = [1, 1]} : vector<16x64xf32> to vector<16x16xf32>
    %201 = arith.negf %200 : vector<16x16xf32>
    %202 = math.exp %201 : vector<16x16xf32>
    %cst_93 = arith.constant 1.000000e+00 : f32
    %203 = vector.broadcast %cst_93 : f32 to vector<16x16xf32>
    %204 = arith.addf %203, %202 : vector<16x16xf32>
    %205 = arith.divf %203, %204 : vector<16x16xf32>
    %206 = vector.extract_strided_slice %199 {offsets = [0, 16], sizes = [16, 16], strides = [1, 1]} : vector<16x64xf32> to vector<16x16xf32>
    %207 = arith.negf %206 : vector<16x16xf32>
    %208 = math.exp %207 : vector<16x16xf32>
    %cst_94 = arith.constant 1.000000e+00 : f32
    %209 = vector.broadcast %cst_94 : f32 to vector<16x16xf32>
    %210 = arith.addf %209, %208 : vector<16x16xf32>
    %211 = arith.divf %209, %210 : vector<16x16xf32>
    %212 = vector.extract_strided_slice %199 {offsets = [0, 32], sizes = [16, 16], strides = [1, 1]} : vector<16x64xf32> to vector<16x16xf32>
    %213 = math.tanh %212 : vector<16x16xf32>
    %214 = vector.extract_strided_slice %199 {offsets = [0, 48], sizes = [16, 16], strides = [1, 1]} : vector<16x64xf32> to vector<16x16xf32>
    %215 = arith.negf %214 : vector<16x16xf32>
    %216 = math.exp %215 : vector<16x16xf32>
    %cst_95 = arith.constant 1.000000e+00 : f32
    %217 = vector.broadcast %cst_95 : f32 to vector<16x16xf32>
    %218 = arith.addf %217, %216 : vector<16x16xf32>
    %219 = arith.divf %217, %218 : vector<16x16xf32>
    %220 = arith.mulf %211, %195 : vector<16x16xf32>
    %221 = arith.mulf %205, %213 : vector<16x16xf32>
    %222 = arith.addf %220, %221 : vector<16x16xf32>
    %223 = math.tanh %222 : vector<16x16xf32>
    %224 = arith.mulf %219, %223 : vector<16x16xf32>
    %c0_96 = arith.constant 0 : index
    %c0_97 = arith.constant 0 : index
    %225 = vector.load %arg10[%c0_96, %c0_97] : memref<16x16xf32, #tpu.memory_space<vmem>>, vector<16x16xf32>
    %226 = vector.shape_cast %191 : vector<16x1xi1> to vector<16x1xi1>
    %227 = vector.broadcast %226 : vector<16x1xi1> to vector<16x16xi1>
    %228 = arith.select %227, %224, %225 : vector<16x16xi1>, vector<16x16xf32>
    %c0_98 = arith.constant 0 : index
    %c0_99 = arith.constant 0 : index
    %229 = vector.load %arg10[%c0_98, %c0_99] : memref<16x16xf32, #tpu.memory_space<vmem>>, vector<16x16xf32>
    tpu.vector_store %arg10[%c0_98, %c0_99], %228 {strides = array<i32>} : memref<16x16xf32, #tpu.memory_space<vmem>>, vector<16x16xf32>,
    %c0_100 = arith.constant 0 : index
    %c0_101 = arith.constant 0 : index
    %230 = vector.load %arg11[%c0_100, %c0_101] : memref<16x16xf32, #tpu.memory_space<vmem>>, vector<16x16xf32>
    %231 = vector.shape_cast %191 : vector<16x1xi1> to vector<16x1xi1>
    %232 = vector.broadcast %231 : vector<16x1xi1> to vector<16x16xi1>
    %233 = arith.select %232, %222, %230 : vector<16x16xi1>, vector<16x16xf32>
    %c0_102 = arith.constant 0 : index
    %c0_103 = arith.constant 0 : index
    %234 = vector.load %arg11[%c0_102, %c0_103] : memref<16x16xf32, #tpu.memory_space<vmem>>, vector<16x16xf32>
    tpu.vector_store %arg11[%c0_102, %c0_103], %233 {strides = array<i32>} : memref<16x16xf32, #tpu.memory_space<vmem>>, vector<16x16xf32>,
    %c7_i32_104 = arith.constant 7 : i32
    %235 = arith.subi %c7_i32_104, %189 : i32
    %236 = vector.broadcast %235 : i32 to vector<16x1xi32>
    %237 = arith.cmpi slt, %236, %3 : vector<16x1xi32>
    %c5 = arith.constant 5 : index
    %c0_105 = arith.constant 0 : index
    %c0_106 = arith.constant 0 : index
    %238 = vector.load %arg3[%c5, %c0_105, %c0_106] : memref<8x16x64xf32, #tpu.memory_space<vmem>>, vector<1x16x64xf32>
    %239 = vector.shape_cast %238 : vector<1x16x64xf32> to vector<16x64xf32>
    %c0_107 = arith.constant 0 : index
    %c0_108 = arith.constant 0 : index
    %240 = vector.load %arg12[%c0_107, %c0_108] : memref<16x16xf32, #tpu.memory_space<vmem>>, vector<16x16xf32>
    %c0_109 = arith.constant 0 : index
    %c0_110 = arith.constant 0 : index
    %241 = vector.load %arg13[%c0_109, %c0_110] : memref<16x16xf32, #tpu.memory_space<vmem>>, vector<16x16xf32>
    %c0_111 = arith.constant 0 : index
    %c0_112 = arith.constant 0 : index
    %242 = vector.load %arg5[%c0_111, %c0_112] : memref<16x64xbf16, #tpu.memory_space<vmem>>, vector<16x64xbf16>
    %243 = arith.truncf %240 : vector<16x16xf32> to vector<16x16xbf16>
    %cst_113 = arith.constant dense<0.000000e+00> : vector<16x64xf32>
    %244 = tpu.matmul %243, %242, %cst_113 {dimension_numbers = #tpu.dot_dimension_numbers<[1], [0], [0], [1], [0, 0, 1, 1], [], []>} : vector<16x16xbf16>, vector<16x64xbf16>, vector<16x64xf32> -> vector<16x64xf32>
    %245 = arith.addf %239, %244 : vector<16x64xf32>
    %246 = vector.extract_strided_slice %245 {offsets = [0, 0], sizes = [16, 16], strides = [1, 1]} : vector<16x64xf32> to vector<16x16xf32>
    %247 = arith.negf %246 : vector<16x16xf32>
    %248 = math.exp %247 : vector<16x16xf32>
    %cst_114 = arith.constant 1.000000e+00 : f32
    %249 = vector.broadcast %cst_114 : f32 to vector<16x16xf32>
    %250 = arith.addf %249, %248 : vector<16x16xf32>
    %251 = arith.divf %249, %250 : vector<16x16xf32>
    %252 = vector.extract_strided_slice %245 {offsets = [0, 16], sizes = [16, 16], strides = [1, 1]} : vector<16x64xf32> to vector<16x16xf32>
    %253 = arith.negf %252 : vector<16x16xf32>
    %254 = math.exp %253 : vector<16x16xf32>
    %cst_115 = arith.constant 1.000000e+00 : f32
    %255 = vector.broadcast %cst_115 : f32 to vector<16x16xf32>
    %256 = arith.addf %255, %254 : vector<16x16xf32>
    %257 = arith.divf %255, %256 : vector<16x16xf32>
    %258 = vector.extract_strided_slice %245 {offsets = [0, 32], sizes = [16, 16], strides = [1, 1]} : vector<16x64xf32> to vector<16x16xf32>
    %259 = math.tanh %258 : vector<16x16xf32>
    %260 = vector.extract_strided_slice %245 {offsets = [0, 48], sizes = [16, 16], strides = [1, 1]} : vector<16x64xf32> to vector<16x16xf32>
    %261 = arith.negf %260 : vector<16x16xf32>
    %262 = math.exp %261 : vector<16x16xf32>
    %cst_116 = arith.constant 1.000000e+00 : f32
    %263 = vector.broadcast %cst_116 : f32 to vector<16x16xf32>
    %264 = arith.addf %263, %262 : vector<16x16xf32>
    %265 = arith.divf %263, %264 : vector<16x16xf32>
    %266 = arith.mulf %257, %241 : vector<16x16xf32>
    %267 = arith.mulf %251, %259 : vector<16x16xf32>
    %268 = arith.addf %266, %267 : vector<16x16xf32>
    %269 = math.tanh %268 : vector<16x16xf32>
    %270 = arith.mulf %265, %269 : vector<16x16xf32>
    %c0_117 = arith.constant 0 : index
    %c0_118 = arith.constant 0 : index
    %271 = vector.load %arg12[%c0_117, %c0_118] : memref<16x16xf32, #tpu.memory_space<vmem>>, vector<16x16xf32>
    %272 = vector.shape_cast %237 : vector<16x1xi1> to vector<16x1xi1>
    %273 = vector.broadcast %272 : vector<16x1xi1> to vector<16x16xi1>
    %274 = arith.select %273, %270, %271 : vector<16x16xi1>, vector<16x16xf32>
    %c0_119 = arith.constant 0 : index
    %c0_120 = arith.constant 0 : index
    %275 = vector.load %arg12[%c0_119, %c0_120] : memref<16x16xf32, #tpu.memory_space<vmem>>, vector<16x16xf32>
    tpu.vector_store %arg12[%c0_119, %c0_120], %274 {strides = array<i32>} : memref<16x16xf32, #tpu.memory_space<vmem>>, vector<16x16xf32>,
    %c0_121 = arith.constant 0 : index
    %c0_122 = arith.constant 0 : index
    %276 = vector.load %arg13[%c0_121, %c0_122] : memref<16x16xf32, #tpu.memory_space<vmem>>, vector<16x16xf32>
    %277 = vector.shape_cast %237 : vector<16x1xi1> to vector<16x1xi1>
    %278 = vector.broadcast %277 : vector<16x1xi1> to vector<16x16xi1>
    %279 = arith.select %278, %268, %276 : vector<16x16xi1>, vector<16x16xf32>
    %c0_123 = arith.constant 0 : index
    %c0_124 = arith.constant 0 : index
    %280 = vector.load %arg13[%c0_123, %c0_124] : memref<16x16xf32, #tpu.memory_space<vmem>>, vector<16x16xf32>
    tpu.vector_store %arg13[%c0_123, %c0_124], %279 {strides = array<i32>} : memref<16x16xf32, #tpu.memory_space<vmem>>, vector<16x16xf32>,
    %c3_i32 = arith.constant 3 : i32
    %281 = arith.addi %4, %c3_i32 : i32
    %282 = vector.broadcast %281 : i32 to vector<16x1xi32>
    %283 = arith.cmpi slt, %282, %3 : vector<16x1xi32>
    %c3 = arith.constant 3 : index
    %c0_125 = arith.constant 0 : index
    %c0_126 = arith.constant 0 : index
    %284 = vector.load %arg2[%c3, %c0_125, %c0_126] : memref<8x16x64xf32, #tpu.memory_space<vmem>>, vector<1x16x64xf32>
    %285 = vector.shape_cast %284 : vector<1x16x64xf32> to vector<16x64xf32>
    %c0_127 = arith.constant 0 : index
    %c0_128 = arith.constant 0 : index
    %286 = vector.load %arg10[%c0_127, %c0_128] : memref<16x16xf32, #tpu.memory_space<vmem>>, vector<16x16xf32>
    %c0_129 = arith.constant 0 : index
    %c0_130 = arith.constant 0 : index
    %287 = vector.load %arg11[%c0_129, %c0_130] : memref<16x16xf32, #tpu.memory_space<vmem>>, vector<16x16xf32>
    %c0_131 = arith.constant 0 : index
    %c0_132 = arith.constant 0 : index
    %288 = vector.load %arg4[%c0_131, %c0_132] : memref<16x64xbf16, #tpu.memory_space<vmem>>, vector<16x64xbf16>
    %289 = arith.truncf %286 : vector<16x16xf32> to vector<16x16xbf16>
    %cst_133 = arith.constant dense<0.000000e+00> : vector<16x64xf32>
    %290 = tpu.matmul %289, %288, %cst_133 {dimension_numbers = #tpu.dot_dimension_numbers<[1], [0], [0], [1], [0, 0, 1, 1], [], []>} : vector<16x16xbf16>, vector<16x64xbf16>, vector<16x64xf32> -> vector<16x64xf32>
    %291 = arith.addf %285, %290 : vector<16x64xf32>
    %292 = vector.extract_strided_slice %291 {offsets = [0, 0], sizes = [16, 16], strides = [1, 1]} : vector<16x64xf32> to vector<16x16xf32>
    %293 = arith.negf %292 : vector<16x16xf32>
    %294 = math.exp %293 : vector<16x16xf32>
    %cst_134 = arith.constant 1.000000e+00 : f32
    %295 = vector.broadcast %cst_134 : f32 to vector<16x16xf32>
    %296 = arith.addf %295, %294 : vector<16x16xf32>
    %297 = arith.divf %295, %296 : vector<16x16xf32>
    %298 = vector.extract_strided_slice %291 {offsets = [0, 16], sizes = [16, 16], strides = [1, 1]} : vector<16x64xf32> to vector<16x16xf32>
    %299 = arith.negf %298 : vector<16x16xf32>
    %300 = math.exp %299 : vector<16x16xf32>
    %cst_135 = arith.constant 1.000000e+00 : f32
    %301 = vector.broadcast %cst_135 : f32 to vector<16x16xf32>
    %302 = arith.addf %301, %300 : vector<16x16xf32>
    %303 = arith.divf %301, %302 : vector<16x16xf32>
    %304 = vector.extract_strided_slice %291 {offsets = [0, 32], sizes = [16, 16], strides = [1, 1]} : vector<16x64xf32> to vector<16x16xf32>
    %305 = math.tanh %304 : vector<16x16xf32>
    %306 = vector.extract_strided_slice %291 {offsets = [0, 48], sizes = [16, 16], strides = [1, 1]} : vector<16x64xf32> to vector<16x16xf32>
    %307 = arith.negf %306 : vector<16x16xf32>
    %308 = math.exp %307 : vector<16x16xf32>
    %cst_136 = arith.constant 1.000000e+00 : f32
    %309 = vector.broadcast %cst_136 : f32 to vector<16x16xf32>
    %310 = arith.addf %309, %308 : vector<16x16xf32>
    %311 = arith.divf %309, %310 : vector<16x16xf32>
    %312 = arith.mulf %303, %287 : vector<16x16xf32>
    %313 = arith.mulf %297, %305 : vector<16x16xf32>
    %314 = arith.addf %312, %313 : vector<16x16xf32>
    %315 = math.tanh %314 : vector<16x16xf32>
    %316 = arith.mulf %311, %315 : vector<16x16xf32>
    %c0_137 = arith.constant 0 : index
    %c0_138 = arith.constant 0 : index
    %317 = vector.load %arg10[%c0_137, %c0_138] : memref<16x16xf32, #tpu.memory_space<vmem>>, vector<16x16xf32>
    %318 = vector.shape_cast %283 : vector<16x1xi1> to vector<16x1xi1>
    %319 = vector.broadcast %318 : vector<16x1xi1> to vector<16x16xi1>
    %320 = arith.select %319, %316, %317 : vector<16x16xi1>, vector<16x16xf32>
    %c0_139 = arith.constant 0 : index
    %c0_140 = arith.constant 0 : index
    %321 = vector.load %arg10[%c0_139, %c0_140] : memref<16x16xf32, #tpu.memory_space<vmem>>, vector<16x16xf32>
    tpu.vector_store %arg10[%c0_139, %c0_140], %320 {strides = array<i32>} : memref<16x16xf32, #tpu.memory_space<vmem>>, vector<16x16xf32>,
    %c0_141 = arith.constant 0 : index
    %c0_142 = arith.constant 0 : index
    %322 = vector.load %arg11[%c0_141, %c0_142] : memref<16x16xf32, #tpu.memory_space<vmem>>, vector<16x16xf32>
    %323 = vector.shape_cast %283 : vector<16x1xi1> to vector<16x1xi1>
    %324 = vector.broadcast %323 : vector<16x1xi1> to vector<16x16xi1>
    %325 = arith.select %324, %314, %322 : vector<16x16xi1>, vector<16x16xf32>
    %c0_143 = arith.constant 0 : index
    %c0_144 = arith.constant 0 : index
    %326 = vector.load %arg11[%c0_143, %c0_144] : memref<16x16xf32, #tpu.memory_space<vmem>>, vector<16x16xf32>
    tpu.vector_store %arg11[%c0_143, %c0_144], %325 {strides = array<i32>} : memref<16x16xf32, #tpu.memory_space<vmem>>, vector<16x16xf32>,
    %c7_i32_145 = arith.constant 7 : i32
    %327 = arith.subi %c7_i32_145, %281 : i32
    %328 = vector.broadcast %327 : i32 to vector<16x1xi32>
    %329 = arith.cmpi slt, %328, %3 : vector<16x1xi32>
    %c4 = arith.constant 4 : index
    %c0_146 = arith.constant 0 : index
    %c0_147 = arith.constant 0 : index
    %330 = vector.load %arg3[%c4, %c0_146, %c0_147] : memref<8x16x64xf32, #tpu.memory_space<vmem>>, vector<1x16x64xf32>
    %331 = vector.shape_cast %330 : vector<1x16x64xf32> to vector<16x64xf32>
    %c0_148 = arith.constant 0 : index
    %c0_149 = arith.constant 0 : index
    %332 = vector.load %arg12[%c0_148, %c0_149] : memref<16x16xf32, #tpu.memory_space<vmem>>, vector<16x16xf32>
    %c0_150 = arith.constant 0 : index
    %c0_151 = arith.constant 0 : index
    %333 = vector.load %arg13[%c0_150, %c0_151] : memref<16x16xf32, #tpu.memory_space<vmem>>, vector<16x16xf32>
    %c0_152 = arith.constant 0 : index
    %c0_153 = arith.constant 0 : index
    %334 = vector.load %arg5[%c0_152, %c0_153] : memref<16x64xbf16, #tpu.memory_space<vmem>>, vector<16x64xbf16>
    %335 = arith.truncf %332 : vector<16x16xf32> to vector<16x16xbf16>
    %cst_154 = arith.constant dense<0.000000e+00> : vector<16x64xf32>
    %336 = tpu.matmul %335, %334, %cst_154 {dimension_numbers = #tpu.dot_dimension_numbers<[1], [0], [0], [1], [0, 0, 1, 1], [], []>} : vector<16x16xbf16>, vector<16x64xbf16>, vector<16x64xf32> -> vector<16x64xf32>
    %337 = arith.addf %331, %336 : vector<16x64xf32>
    %338 = vector.extract_strided_slice %337 {offsets = [0, 0], sizes = [16, 16], strides = [1, 1]} : vector<16x64xf32> to vector<16x16xf32>
    %339 = arith.negf %338 : vector<16x16xf32>
    %340 = math.exp %339 : vector<16x16xf32>
    %cst_155 = arith.constant 1.000000e+00 : f32
    %341 = vector.broadcast %cst_155 : f32 to vector<16x16xf32>
    %342 = arith.addf %341, %340 : vector<16x16xf32>
    %343 = arith.divf %341, %342 : vector<16x16xf32>
    %344 = vector.extract_strided_slice %337 {offsets = [0, 16], sizes = [16, 16], strides = [1, 1]} : vector<16x64xf32> to vector<16x16xf32>
    %345 = arith.negf %344 : vector<16x16xf32>
    %346 = math.exp %345 : vector<16x16xf32>
    %cst_156 = arith.constant 1.000000e+00 : f32
    %347 = vector.broadcast %cst_156 : f32 to vector<16x16xf32>
    %348 = arith.addf %347, %346 : vector<16x16xf32>
    %349 = arith.divf %347, %348 : vector<16x16xf32>
    %350 = vector.extract_strided_slice %337 {offsets = [0, 32], sizes = [16, 16], strides = [1, 1]} : vector<16x64xf32> to vector<16x16xf32>
    %351 = math.tanh %350 : vector<16x16xf32>
    %352 = vector.extract_strided_slice %337 {offsets = [0, 48], sizes = [16, 16], strides = [1, 1]} : vector<16x64xf32> to vector<16x16xf32>
    %353 = arith.negf %352 : vector<16x16xf32>
    %354 = math.exp %353 : vector<16x16xf32>
    %cst_157 = arith.constant 1.000000e+00 : f32
    %355 = vector.broadcast %cst_157 : f32 to vector<16x16xf32>
    %356 = arith.addf %355, %354 : vector<16x16xf32>
    %357 = arith.divf %355, %356 : vector<16x16xf32>
    %358 = arith.mulf %349, %333 : vector<16x16xf32>
    %359 = arith.mulf %343, %351 : vector<16x16xf32>
    %360 = arith.addf %358, %359 : vector<16x16xf32>
    %361 = math.tanh %360 : vector<16x16xf32>
    %362 = arith.mulf %357, %361 : vector<16x16xf32>
    %c0_158 = arith.constant 0 : index
    %c0_159 = arith.constant 0 : index
    %363 = vector.load %arg12[%c0_158, %c0_159] : memref<16x16xf32, #tpu.memory_space<vmem>>, vector<16x16xf32>
    %364 = vector.shape_cast %329 : vector<16x1xi1> to vector<16x1xi1>
    %365 = vector.broadcast %364 : vector<16x1xi1> to vector<16x16xi1>
    %366 = arith.select %365, %362, %363 : vector<16x16xi1>, vector<16x16xf32>
    %c0_160 = arith.constant 0 : index
    %c0_161 = arith.constant 0 : index
    %367 = vector.load %arg12[%c0_160, %c0_161] : memref<16x16xf32, #tpu.memory_space<vmem>>, vector<16x16xf32>
    tpu.vector_store %arg12[%c0_160, %c0_161], %366 {strides = array<i32>} : memref<16x16xf32, #tpu.memory_space<vmem>>, vector<16x16xf32>,
    %c0_162 = arith.constant 0 : index
    %c0_163 = arith.constant 0 : index
    %368 = vector.load %arg13[%c0_162, %c0_163] : memref<16x16xf32, #tpu.memory_space<vmem>>, vector<16x16xf32>
    %369 = vector.shape_cast %329 : vector<16x1xi1> to vector<16x1xi1>
    %370 = vector.broadcast %369 : vector<16x1xi1> to vector<16x16xi1>
    %371 = arith.select %370, %360, %368 : vector<16x16xi1>, vector<16x16xf32>
    %c0_164 = arith.constant 0 : index
    %c0_165 = arith.constant 0 : index
    %372 = vector.load %arg13[%c0_164, %c0_165] : memref<16x16xf32, #tpu.memory_space<vmem>>, vector<16x16xf32>
    tpu.vector_store %arg13[%c0_164, %c0_165], %371 {strides = array<i32>} : memref<16x16xf32, #tpu.memory_space<vmem>>, vector<16x16xf32>,
    %c4_i32 = arith.constant 4 : i32
    %373 = arith.addi %4, %c4_i32 : i32
    %374 = vector.broadcast %373 : i32 to vector<16x1xi32>
    %375 = arith.cmpi slt, %374, %3 : vector<16x1xi32>
    %c4_166 = arith.constant 4 : index
    %c0_167 = arith.constant 0 : index
    %c0_168 = arith.constant 0 : index
    %376 = vector.load %arg2[%c4_166, %c0_167, %c0_168] : memref<8x16x64xf32, #tpu.memory_space<vmem>>, vector<1x16x64xf32>
    %377 = vector.shape_cast %376 : vector<1x16x64xf32> to vector<16x64xf32>
    %c0_169 = arith.constant 0 : index
    %c0_170 = arith.constant 0 : index
    %378 = vector.load %arg10[%c0_169, %c0_170] : memref<16x16xf32, #tpu.memory_space<vmem>>, vector<16x16xf32>
    %c0_171 = arith.constant 0 : index
    %c0_172 = arith.constant 0 : index
    %379 = vector.load %arg11[%c0_171, %c0_172] : memref<16x16xf32, #tpu.memory_space<vmem>>, vector<16x16xf32>
    %c0_173 = arith.constant 0 : index
    %c0_174 = arith.constant 0 : index
    %380 = vector.load %arg4[%c0_173, %c0_174] : memref<16x64xbf16, #tpu.memory_space<vmem>>, vector<16x64xbf16>
    %381 = arith.truncf %378 : vector<16x16xf32> to vector<16x16xbf16>
    %cst_175 = arith.constant dense<0.000000e+00> : vector<16x64xf32>
    %382 = tpu.matmul %381, %380, %cst_175 {dimension_numbers = #tpu.dot_dimension_numbers<[1], [0], [0], [1], [0, 0, 1, 1], [], []>} : vector<16x16xbf16>, vector<16x64xbf16>, vector<16x64xf32> -> vector<16x64xf32>
    %383 = arith.addf %377, %382 : vector<16x64xf32>
    %384 = vector.extract_strided_slice %383 {offsets = [0, 0], sizes = [16, 16], strides = [1, 1]} : vector<16x64xf32> to vector<16x16xf32>
    %385 = arith.negf %384 : vector<16x16xf32>
    %386 = math.exp %385 : vector<16x16xf32>
    %cst_176 = arith.constant 1.000000e+00 : f32
    %387 = vector.broadcast %cst_176 : f32 to vector<16x16xf32>
    %388 = arith.addf %387, %386 : vector<16x16xf32>
    %389 = arith.divf %387, %388 : vector<16x16xf32>
    %390 = vector.extract_strided_slice %383 {offsets = [0, 16], sizes = [16, 16], strides = [1, 1]} : vector<16x64xf32> to vector<16x16xf32>
    %391 = arith.negf %390 : vector<16x16xf32>
    %392 = math.exp %391 : vector<16x16xf32>
    %cst_177 = arith.constant 1.000000e+00 : f32
    %393 = vector.broadcast %cst_177 : f32 to vector<16x16xf32>
    %394 = arith.addf %393, %392 : vector<16x16xf32>
    %395 = arith.divf %393, %394 : vector<16x16xf32>
    %396 = vector.extract_strided_slice %383 {offsets = [0, 32], sizes = [16, 16], strides = [1, 1]} : vector<16x64xf32> to vector<16x16xf32>
    %397 = math.tanh %396 : vector<16x16xf32>
    %398 = vector.extract_strided_slice %383 {offsets = [0, 48], sizes = [16, 16], strides = [1, 1]} : vector<16x64xf32> to vector<16x16xf32>
    %399 = arith.negf %398 : vector<16x16xf32>
    %400 = math.exp %399 : vector<16x16xf32>
    %cst_178 = arith.constant 1.000000e+00 : f32
    %401 = vector.broadcast %cst_178 : f32 to vector<16x16xf32>
    %402 = arith.addf %401, %400 : vector<16x16xf32>
    %403 = arith.divf %401, %402 : vector<16x16xf32>
    %404 = arith.mulf %395, %379 : vector<16x16xf32>
    %405 = arith.mulf %389, %397 : vector<16x16xf32>
    %406 = arith.addf %404, %405 : vector<16x16xf32>
    %407 = math.tanh %406 : vector<16x16xf32>
    %408 = arith.mulf %403, %407 : vector<16x16xf32>
    %c0_179 = arith.constant 0 : index
    %c0_180 = arith.constant 0 : index
    %409 = vector.load %arg10[%c0_179, %c0_180] : memref<16x16xf32, #tpu.memory_space<vmem>>, vector<16x16xf32>
    %410 = vector.shape_cast %375 : vector<16x1xi1> to vector<16x1xi1>
    %411 = vector.broadcast %410 : vector<16x1xi1> to vector<16x16xi1>
    %412 = arith.select %411, %408, %409 : vector<16x16xi1>, vector<16x16xf32>
    %c0_181 = arith.constant 0 : index
    %c0_182 = arith.constant 0 : index
    %413 = vector.load %arg10[%c0_181, %c0_182] : memref<16x16xf32, #tpu.memory_space<vmem>>, vector<16x16xf32>
    tpu.vector_store %arg10[%c0_181, %c0_182], %412 {strides = array<i32>} : memref<16x16xf32, #tpu.memory_space<vmem>>, vector<16x16xf32>,
    %c0_183 = arith.constant 0 : index
    %c0_184 = arith.constant 0 : index
    %414 = vector.load %arg11[%c0_183, %c0_184] : memref<16x16xf32, #tpu.memory_space<vmem>>, vector<16x16xf32>
    %415 = vector.shape_cast %375 : vector<16x1xi1> to vector<16x1xi1>
    %416 = vector.broadcast %415 : vector<16x1xi1> to vector<16x16xi1>
    %417 = arith.select %416, %406, %414 : vector<16x16xi1>, vector<16x16xf32>
    %c0_185 = arith.constant 0 : index
    %c0_186 = arith.constant 0 : index
    %418 = vector.load %arg11[%c0_185, %c0_186] : memref<16x16xf32, #tpu.memory_space<vmem>>, vector<16x16xf32>
    tpu.vector_store %arg11[%c0_185, %c0_186], %417 {strides = array<i32>} : memref<16x16xf32, #tpu.memory_space<vmem>>, vector<16x16xf32>,
    %c7_i32_187 = arith.constant 7 : i32
    %419 = arith.subi %c7_i32_187, %373 : i32
    %420 = vector.broadcast %419 : i32 to vector<16x1xi32>
    %421 = arith.cmpi slt, %420, %3 : vector<16x1xi32>
    %c3_188 = arith.constant 3 : index
    %c0_189 = arith.constant 0 : index
    %c0_190 = arith.constant 0 : index
    %422 = vector.load %arg3[%c3_188, %c0_189, %c0_190] : memref<8x16x64xf32, #tpu.memory_space<vmem>>, vector<1x16x64xf32>
    %423 = vector.shape_cast %422 : vector<1x16x64xf32> to vector<16x64xf32>
    %c0_191 = arith.constant 0 : index
    %c0_192 = arith.constant 0 : index
    %424 = vector.load %arg12[%c0_191, %c0_192] : memref<16x16xf32, #tpu.memory_space<vmem>>, vector<16x16xf32>
    %c0_193 = arith.constant 0 : index
    %c0_194 = arith.constant 0 : index
    %425 = vector.load %arg13[%c0_193, %c0_194] : memref<16x16xf32, #tpu.memory_space<vmem>>, vector<16x16xf32>
    %c0_195 = arith.constant 0 : index
    %c0_196 = arith.constant 0 : index
    %426 = vector.load %arg5[%c0_195, %c0_196] : memref<16x64xbf16, #tpu.memory_space<vmem>>, vector<16x64xbf16>
    %427 = arith.truncf %424 : vector<16x16xf32> to vector<16x16xbf16>
    %cst_197 = arith.constant dense<0.000000e+00> : vector<16x64xf32>
    %428 = tpu.matmul %427, %426, %cst_197 {dimension_numbers = #tpu.dot_dimension_numbers<[1], [0], [0], [1], [0, 0, 1, 1], [], []>} : vector<16x16xbf16>, vector<16x64xbf16>, vector<16x64xf32> -> vector<16x64xf32>
    %429 = arith.addf %423, %428 : vector<16x64xf32>
    %430 = vector.extract_strided_slice %429 {offsets = [0, 0], sizes = [16, 16], strides = [1, 1]} : vector<16x64xf32> to vector<16x16xf32>
    %431 = arith.negf %430 : vector<16x16xf32>
    %432 = math.exp %431 : vector<16x16xf32>
    %cst_198 = arith.constant 1.000000e+00 : f32
    %433 = vector.broadcast %cst_198 : f32 to vector<16x16xf32>
    %434 = arith.addf %433, %432 : vector<16x16xf32>
    %435 = arith.divf %433, %434 : vector<16x16xf32>
    %436 = vector.extract_strided_slice %429 {offsets = [0, 16], sizes = [16, 16], strides = [1, 1]} : vector<16x64xf32> to vector<16x16xf32>
    %437 = arith.negf %436 : vector<16x16xf32>
    %438 = math.exp %437 : vector<16x16xf32>
    %cst_199 = arith.constant 1.000000e+00 : f32
    %439 = vector.broadcast %cst_199 : f32 to vector<16x16xf32>
    %440 = arith.addf %439, %438 : vector<16x16xf32>
    %441 = arith.divf %439, %440 : vector<16x16xf32>
    %442 = vector.extract_strided_slice %429 {offsets = [0, 32], sizes = [16, 16], strides = [1, 1]} : vector<16x64xf32> to vector<16x16xf32>
    %443 = math.tanh %442 : vector<16x16xf32>
    %444 = vector.extract_strided_slice %429 {offsets = [0, 48], sizes = [16, 16], strides = [1, 1]} : vector<16x64xf32> to vector<16x16xf32>
    %445 = arith.negf %444 : vector<16x16xf32>
    %446 = math.exp %445 : vector<16x16xf32>
    %cst_200 = arith.constant 1.000000e+00 : f32
    %447 = vector.broadcast %cst_200 : f32 to vector<16x16xf32>
    %448 = arith.addf %447, %446 : vector<16x16xf32>
    %449 = arith.divf %447, %448 : vector<16x16xf32>
    %450 = arith.mulf %441, %425 : vector<16x16xf32>
    %451 = arith.mulf %435, %443 : vector<16x16xf32>
    %452 = arith.addf %450, %451 : vector<16x16xf32>
    %453 = math.tanh %452 : vector<16x16xf32>
    %454 = arith.mulf %449, %453 : vector<16x16xf32>
    %c0_201 = arith.constant 0 : index
    %c0_202 = arith.constant 0 : index
    %455 = vector.load %arg12[%c0_201, %c0_202] : memref<16x16xf32, #tpu.memory_space<vmem>>, vector<16x16xf32>
    %456 = vector.shape_cast %421 : vector<16x1xi1> to vector<16x1xi1>
    %457 = vector.broadcast %456 : vector<16x1xi1> to vector<16x16xi1>
    %458 = arith.select %457, %454, %455 : vector<16x16xi1>, vector<16x16xf32>
    %c0_203 = arith.constant 0 : index
    %c0_204 = arith.constant 0 : index
    %459 = vector.load %arg12[%c0_203, %c0_204] : memref<16x16xf32, #tpu.memory_space<vmem>>, vector<16x16xf32>
    tpu.vector_store %arg12[%c0_203, %c0_204], %458 {strides = array<i32>} : memref<16x16xf32, #tpu.memory_space<vmem>>, vector<16x16xf32>,
    %c0_205 = arith.constant 0 : index
    %c0_206 = arith.constant 0 : index
    %460 = vector.load %arg13[%c0_205, %c0_206] : memref<16x16xf32, #tpu.memory_space<vmem>>, vector<16x16xf32>
    %461 = vector.shape_cast %421 : vector<16x1xi1> to vector<16x1xi1>
    %462 = vector.broadcast %461 : vector<16x1xi1> to vector<16x16xi1>
    %463 = arith.select %462, %452, %460 : vector<16x16xi1>, vector<16x16xf32>
    %c0_207 = arith.constant 0 : index
    %c0_208 = arith.constant 0 : index
    %464 = vector.load %arg13[%c0_207, %c0_208] : memref<16x16xf32, #tpu.memory_space<vmem>>, vector<16x16xf32>
    tpu.vector_store %arg13[%c0_207, %c0_208], %463 {strides = array<i32>} : memref<16x16xf32, #tpu.memory_space<vmem>>, vector<16x16xf32>,
    %c5_i32 = arith.constant 5 : i32
    %465 = arith.addi %4, %c5_i32 : i32
    %466 = vector.broadcast %465 : i32 to vector<16x1xi32>
    %467 = arith.cmpi slt, %466, %3 : vector<16x1xi32>
    %c5_209 = arith.constant 5 : index
    %c0_210 = arith.constant 0 : index
    %c0_211 = arith.constant 0 : index
    %468 = vector.load %arg2[%c5_209, %c0_210, %c0_211] : memref<8x16x64xf32, #tpu.memory_space<vmem>>, vector<1x16x64xf32>
    %469 = vector.shape_cast %468 : vector<1x16x64xf32> to vector<16x64xf32>
    %c0_212 = arith.constant 0 : index
    %c0_213 = arith.constant 0 : index
    %470 = vector.load %arg10[%c0_212, %c0_213] : memref<16x16xf32, #tpu.memory_space<vmem>>, vector<16x16xf32>
    %c0_214 = arith.constant 0 : index
    %c0_215 = arith.constant 0 : index
    %471 = vector.load %arg11[%c0_214, %c0_215] : memref<16x16xf32, #tpu.memory_space<vmem>>, vector<16x16xf32>
    %c0_216 = arith.constant 0 : index
    %c0_217 = arith.constant 0 : index
    %472 = vector.load %arg4[%c0_216, %c0_217] : memref<16x64xbf16, #tpu.memory_space<vmem>>, vector<16x64xbf16>
    %473 = arith.truncf %470 : vector<16x16xf32> to vector<16x16xbf16>
    %cst_218 = arith.constant dense<0.000000e+00> : vector<16x64xf32>
    %474 = tpu.matmul %473, %472, %cst_218 {dimension_numbers = #tpu.dot_dimension_numbers<[1], [0], [0], [1], [0, 0, 1, 1], [], []>} : vector<16x16xbf16>, vector<16x64xbf16>, vector<16x64xf32> -> vector<16x64xf32>
    %475 = arith.addf %469, %474 : vector<16x64xf32>
    %476 = vector.extract_strided_slice %475 {offsets = [0, 0], sizes = [16, 16], strides = [1, 1]} : vector<16x64xf32> to vector<16x16xf32>
    %477 = arith.negf %476 : vector<16x16xf32>
    %478 = math.exp %477 : vector<16x16xf32>
    %cst_219 = arith.constant 1.000000e+00 : f32
    %479 = vector.broadcast %cst_219 : f32 to vector<16x16xf32>
    %480 = arith.addf %479, %478 : vector<16x16xf32>
    %481 = arith.divf %479, %480 : vector<16x16xf32>
    %482 = vector.extract_strided_slice %475 {offsets = [0, 16], sizes = [16, 16], strides = [1, 1]} : vector<16x64xf32> to vector<16x16xf32>
    %483 = arith.negf %482 : vector<16x16xf32>
    %484 = math.exp %483 : vector<16x16xf32>
    %cst_220 = arith.constant 1.000000e+00 : f32
    %485 = vector.broadcast %cst_220 : f32 to vector<16x16xf32>
    %486 = arith.addf %485, %484 : vector<16x16xf32>
    %487 = arith.divf %485, %486 : vector<16x16xf32>
    %488 = vector.extract_strided_slice %475 {offsets = [0, 32], sizes = [16, 16], strides = [1, 1]} : vector<16x64xf32> to vector<16x16xf32>
    %489 = math.tanh %488 : vector<16x16xf32>
    %490 = vector.extract_strided_slice %475 {offsets = [0, 48], sizes = [16, 16], strides = [1, 1]} : vector<16x64xf32> to vector<16x16xf32>
    %491 = arith.negf %490 : vector<16x16xf32>
    %492 = math.exp %491 : vector<16x16xf32>
    %cst_221 = arith.constant 1.000000e+00 : f32
    %493 = vector.broadcast %cst_221 : f32 to vector<16x16xf32>
    %494 = arith.addf %493, %492 : vector<16x16xf32>
    %495 = arith.divf %493, %494 : vector<16x16xf32>
    %496 = arith.mulf %487, %471 : vector<16x16xf32>
    %497 = arith.mulf %481, %489 : vector<16x16xf32>
    %498 = arith.addf %496, %497 : vector<16x16xf32>
    %499 = math.tanh %498 : vector<16x16xf32>
    %500 = arith.mulf %495, %499 : vector<16x16xf32>
    %c0_222 = arith.constant 0 : index
    %c0_223 = arith.constant 0 : index
    %501 = vector.load %arg10[%c0_222, %c0_223] : memref<16x16xf32, #tpu.memory_space<vmem>>, vector<16x16xf32>
    %502 = vector.shape_cast %467 : vector<16x1xi1> to vector<16x1xi1>
    %503 = vector.broadcast %502 : vector<16x1xi1> to vector<16x16xi1>
    %504 = arith.select %503, %500, %501 : vector<16x16xi1>, vector<16x16xf32>
    %c0_224 = arith.constant 0 : index
    %c0_225 = arith.constant 0 : index
    %505 = vector.load %arg10[%c0_224, %c0_225] : memref<16x16xf32, #tpu.memory_space<vmem>>, vector<16x16xf32>
    tpu.vector_store %arg10[%c0_224, %c0_225], %504 {strides = array<i32>} : memref<16x16xf32, #tpu.memory_space<vmem>>, vector<16x16xf32>,
    %c0_226 = arith.constant 0 : index
    %c0_227 = arith.constant 0 : index
    %506 = vector.load %arg11[%c0_226, %c0_227] : memref<16x16xf32, #tpu.memory_space<vmem>>, vector<16x16xf32>
    %507 = vector.shape_cast %467 : vector<16x1xi1> to vector<16x1xi1>
    %508 = vector.broadcast %507 : vector<16x1xi1> to vector<16x16xi1>
    %509 = arith.select %508, %498, %506 : vector<16x16xi1>, vector<16x16xf32>
    %c0_228 = arith.constant 0 : index
    %c0_229 = arith.constant 0 : index
    %510 = vector.load %arg11[%c0_228, %c0_229] : memref<16x16xf32, #tpu.memory_space<vmem>>, vector<16x16xf32>
    tpu.vector_store %arg11[%c0_228, %c0_229], %509 {strides = array<i32>} : memref<16x16xf32, #tpu.memory_space<vmem>>, vector<16x16xf32>,
    %c7_i32_230 = arith.constant 7 : i32
    %511 = arith.subi %c7_i32_230, %465 : i32
    %512 = vector.broadcast %511 : i32 to vector<16x1xi32>
    %513 = arith.cmpi slt, %512, %3 : vector<16x1xi32>
    %c2_231 = arith.constant 2 : index
    %c0_232 = arith.constant 0 : index
    %c0_233 = arith.constant 0 : index
    %514 = vector.load %arg3[%c2_231, %c0_232, %c0_233] : memref<8x16x64xf32, #tpu.memory_space<vmem>>, vector<1x16x64xf32>
    %515 = vector.shape_cast %514 : vector<1x16x64xf32> to vector<16x64xf32>
    %c0_234 = arith.constant 0 : index
    %c0_235 = arith.constant 0 : index
    %516 = vector.load %arg12[%c0_234, %c0_235] : memref<16x16xf32, #tpu.memory_space<vmem>>, vector<16x16xf32>
    %c0_236 = arith.constant 0 : index
    %c0_237 = arith.constant 0 : index
    %517 = vector.load %arg13[%c0_236, %c0_237] : memref<16x16xf32, #tpu.memory_space<vmem>>, vector<16x16xf32>
    %c0_238 = arith.constant 0 : index
    %c0_239 = arith.constant 0 : index
    %518 = vector.load %arg5[%c0_238, %c0_239] : memref<16x64xbf16, #tpu.memory_space<vmem>>, vector<16x64xbf16>
    %519 = arith.truncf %516 : vector<16x16xf32> to vector<16x16xbf16>
    %cst_240 = arith.constant dense<0.000000e+00> : vector<16x64xf32>
    %520 = tpu.matmul %519, %518, %cst_240 {dimension_numbers = #tpu.dot_dimension_numbers<[1], [0], [0], [1], [0, 0, 1, 1], [], []>} : vector<16x16xbf16>, vector<16x64xbf16>, vector<16x64xf32> -> vector<16x64xf32>
    %521 = arith.addf %515, %520 : vector<16x64xf32>
    %522 = vector.extract_strided_slice %521 {offsets = [0, 0], sizes = [16, 16], strides = [1, 1]} : vector<16x64xf32> to vector<16x16xf32>
    %523 = arith.negf %522 : vector<16x16xf32>
    %524 = math.exp %523 : vector<16x16xf32>
    %cst_241 = arith.constant 1.000000e+00 : f32
    %525 = vector.broadcast %cst_241 : f32 to vector<16x16xf32>
    %526 = arith.addf %525, %524 : vector<16x16xf32>
    %527 = arith.divf %525, %526 : vector<16x16xf32>
    %528 = vector.extract_strided_slice %521 {offsets = [0, 16], sizes = [16, 16], strides = [1, 1]} : vector<16x64xf32> to vector<16x16xf32>
    %529 = arith.negf %528 : vector<16x16xf32>
    %530 = math.exp %529 : vector<16x16xf32>
    %cst_242 = arith.constant 1.000000e+00 : f32
    %531 = vector.broadcast %cst_242 : f32 to vector<16x16xf32>
    %532 = arith.addf %531, %530 : vector<16x16xf32>
    %533 = arith.divf %531, %532 : vector<16x16xf32>
    %534 = vector.extract_strided_slice %521 {offsets = [0, 32], sizes = [16, 16], strides = [1, 1]} : vector<16x64xf32> to vector<16x16xf32>
    %535 = math.tanh %534 : vector<16x16xf32>
    %536 = vector.extract_strided_slice %521 {offsets = [0, 48], sizes = [16, 16], strides = [1, 1]} : vector<16x64xf32> to vector<16x16xf32>
    %537 = arith.negf %536 : vector<16x16xf32>
    %538 = math.exp %537 : vector<16x16xf32>
    %cst_243 = arith.constant 1.000000e+00 : f32
    %539 = vector.broadcast %cst_243 : f32 to vector<16x16xf32>
    %540 = arith.addf %539, %538 : vector<16x16xf32>
    %541 = arith.divf %539, %540 : vector<16x16xf32>
    %542 = arith.mulf %533, %517 : vector<16x16xf32>
    %543 = arith.mulf %527, %535 : vector<16x16xf32>
    %544 = arith.addf %542, %543 : vector<16x16xf32>
    %545 = math.tanh %544 : vector<16x16xf32>
    %546 = arith.mulf %541, %545 : vector<16x16xf32>
    %c0_244 = arith.constant 0 : index
    %c0_245 = arith.constant 0 : index
    %547 = vector.load %arg12[%c0_244, %c0_245] : memref<16x16xf32, #tpu.memory_space<vmem>>, vector<16x16xf32>
    %548 = vector.shape_cast %513 : vector<16x1xi1> to vector<16x1xi1>
    %549 = vector.broadcast %548 : vector<16x1xi1> to vector<16x16xi1>
    %550 = arith.select %549, %546, %547 : vector<16x16xi1>, vector<16x16xf32>
    %c0_246 = arith.constant 0 : index
    %c0_247 = arith.constant 0 : index
    %551 = vector.load %arg12[%c0_246, %c0_247] : memref<16x16xf32, #tpu.memory_space<vmem>>, vector<16x16xf32>
    tpu.vector_store %arg12[%c0_246, %c0_247], %550 {strides = array<i32>} : memref<16x16xf32, #tpu.memory_space<vmem>>, vector<16x16xf32>,
    %c0_248 = arith.constant 0 : index
    %c0_249 = arith.constant 0 : index
    %552 = vector.load %arg13[%c0_248, %c0_249] : memref<16x16xf32, #tpu.memory_space<vmem>>, vector<16x16xf32>
    %553 = vector.shape_cast %513 : vector<16x1xi1> to vector<16x1xi1>
    %554 = vector.broadcast %553 : vector<16x1xi1> to vector<16x16xi1>
    %555 = arith.select %554, %544, %552 : vector<16x16xi1>, vector<16x16xf32>
    %c0_250 = arith.constant 0 : index
    %c0_251 = arith.constant 0 : index
    %556 = vector.load %arg13[%c0_250, %c0_251] : memref<16x16xf32, #tpu.memory_space<vmem>>, vector<16x16xf32>
    tpu.vector_store %arg13[%c0_250, %c0_251], %555 {strides = array<i32>} : memref<16x16xf32, #tpu.memory_space<vmem>>, vector<16x16xf32>,
    %c6_i32 = arith.constant 6 : i32
    %557 = arith.addi %4, %c6_i32 : i32
    %558 = vector.broadcast %557 : i32 to vector<16x1xi32>
    %559 = arith.cmpi slt, %558, %3 : vector<16x1xi32>
    %c6_252 = arith.constant 6 : index
    %c0_253 = arith.constant 0 : index
    %c0_254 = arith.constant 0 : index
    %560 = vector.load %arg2[%c6_252, %c0_253, %c0_254] : memref<8x16x64xf32, #tpu.memory_space<vmem>>, vector<1x16x64xf32>
    %561 = vector.shape_cast %560 : vector<1x16x64xf32> to vector<16x64xf32>
    %c0_255 = arith.constant 0 : index
    %c0_256 = arith.constant 0 : index
    %562 = vector.load %arg10[%c0_255, %c0_256] : memref<16x16xf32, #tpu.memory_space<vmem>>, vector<16x16xf32>
    %c0_257 = arith.constant 0 : index
    %c0_258 = arith.constant 0 : index
    %563 = vector.load %arg11[%c0_257, %c0_258] : memref<16x16xf32, #tpu.memory_space<vmem>>, vector<16x16xf32>
    %c0_259 = arith.constant 0 : index
    %c0_260 = arith.constant 0 : index
    %564 = vector.load %arg4[%c0_259, %c0_260] : memref<16x64xbf16, #tpu.memory_space<vmem>>, vector<16x64xbf16>
    %565 = arith.truncf %562 : vector<16x16xf32> to vector<16x16xbf16>
    %cst_261 = arith.constant dense<0.000000e+00> : vector<16x64xf32>
    %566 = tpu.matmul %565, %564, %cst_261 {dimension_numbers = #tpu.dot_dimension_numbers<[1], [0], [0], [1], [0, 0, 1, 1], [], []>} : vector<16x16xbf16>, vector<16x64xbf16>, vector<16x64xf32> -> vector<16x64xf32>
    %567 = arith.addf %561, %566 : vector<16x64xf32>
    %568 = vector.extract_strided_slice %567 {offsets = [0, 0], sizes = [16, 16], strides = [1, 1]} : vector<16x64xf32> to vector<16x16xf32>
    %569 = arith.negf %568 : vector<16x16xf32>
    %570 = math.exp %569 : vector<16x16xf32>
    %cst_262 = arith.constant 1.000000e+00 : f32
    %571 = vector.broadcast %cst_262 : f32 to vector<16x16xf32>
    %572 = arith.addf %571, %570 : vector<16x16xf32>
    %573 = arith.divf %571, %572 : vector<16x16xf32>
    %574 = vector.extract_strided_slice %567 {offsets = [0, 16], sizes = [16, 16], strides = [1, 1]} : vector<16x64xf32> to vector<16x16xf32>
    %575 = arith.negf %574 : vector<16x16xf32>
    %576 = math.exp %575 : vector<16x16xf32>
    %cst_263 = arith.constant 1.000000e+00 : f32
    %577 = vector.broadcast %cst_263 : f32 to vector<16x16xf32>
    %578 = arith.addf %577, %576 : vector<16x16xf32>
    %579 = arith.divf %577, %578 : vector<16x16xf32>
    %580 = vector.extract_strided_slice %567 {offsets = [0, 32], sizes = [16, 16], strides = [1, 1]} : vector<16x64xf32> to vector<16x16xf32>
    %581 = math.tanh %580 : vector<16x16xf32>
    %582 = vector.extract_strided_slice %567 {offsets = [0, 48], sizes = [16, 16], strides = [1, 1]} : vector<16x64xf32> to vector<16x16xf32>
    %583 = arith.negf %582 : vector<16x16xf32>
    %584 = math.exp %583 : vector<16x16xf32>
    %cst_264 = arith.constant 1.000000e+00 : f32
    %585 = vector.broadcast %cst_264 : f32 to vector<16x16xf32>
    %586 = arith.addf %585, %584 : vector<16x16xf32>
    %587 = arith.divf %585, %586 : vector<16x16xf32>
    %588 = arith.mulf %579, %563 : vector<16x16xf32>
    %589 = arith.mulf %573, %581 : vector<16x16xf32>
    %590 = arith.addf %588, %589 : vector<16x16xf32>
    %591 = math.tanh %590 : vector<16x16xf32>
    %592 = arith.mulf %587, %591 : vector<16x16xf32>
    %c0_265 = arith.constant 0 : index
    %c0_266 = arith.constant 0 : index
    %593 = vector.load %arg10[%c0_265, %c0_266] : memref<16x16xf32, #tpu.memory_space<vmem>>, vector<16x16xf32>
    %594 = vector.shape_cast %559 : vector<16x1xi1> to vector<16x1xi1>
    %595 = vector.broadcast %594 : vector<16x1xi1> to vector<16x16xi1>
    %596 = arith.select %595, %592, %593 : vector<16x16xi1>, vector<16x16xf32>
    %c0_267 = arith.constant 0 : index
    %c0_268 = arith.constant 0 : index
    %597 = vector.load %arg10[%c0_267, %c0_268] : memref<16x16xf32, #tpu.memory_space<vmem>>, vector<16x16xf32>
    tpu.vector_store %arg10[%c0_267, %c0_268], %596 {strides = array<i32>} : memref<16x16xf32, #tpu.memory_space<vmem>>, vector<16x16xf32>,
    %c0_269 = arith.constant 0 : index
    %c0_270 = arith.constant 0 : index
    %598 = vector.load %arg11[%c0_269, %c0_270] : memref<16x16xf32, #tpu.memory_space<vmem>>, vector<16x16xf32>
    %599 = vector.shape_cast %559 : vector<16x1xi1> to vector<16x1xi1>
    %600 = vector.broadcast %599 : vector<16x1xi1> to vector<16x16xi1>
    %601 = arith.select %600, %590, %598 : vector<16x16xi1>, vector<16x16xf32>
    %c0_271 = arith.constant 0 : index
    %c0_272 = arith.constant 0 : index
    %602 = vector.load %arg11[%c0_271, %c0_272] : memref<16x16xf32, #tpu.memory_space<vmem>>, vector<16x16xf32>
    tpu.vector_store %arg11[%c0_271, %c0_272], %601 {strides = array<i32>} : memref<16x16xf32, #tpu.memory_space<vmem>>, vector<16x16xf32>,
    %c7_i32_273 = arith.constant 7 : i32
    %603 = arith.subi %c7_i32_273, %557 : i32
    %604 = vector.broadcast %603 : i32 to vector<16x1xi32>
    %605 = arith.cmpi slt, %604, %3 : vector<16x1xi32>
    %c1_274 = arith.constant 1 : index
    %c0_275 = arith.constant 0 : index
    %c0_276 = arith.constant 0 : index
    %606 = vector.load %arg3[%c1_274, %c0_275, %c0_276] : memref<8x16x64xf32, #tpu.memory_space<vmem>>, vector<1x16x64xf32>
    %607 = vector.shape_cast %606 : vector<1x16x64xf32> to vector<16x64xf32>
    %c0_277 = arith.constant 0 : index
    %c0_278 = arith.constant 0 : index
    %608 = vector.load %arg12[%c0_277, %c0_278] : memref<16x16xf32, #tpu.memory_space<vmem>>, vector<16x16xf32>
    %c0_279 = arith.constant 0 : index
    %c0_280 = arith.constant 0 : index
    %609 = vector.load %arg13[%c0_279, %c0_280] : memref<16x16xf32, #tpu.memory_space<vmem>>, vector<16x16xf32>
    %c0_281 = arith.constant 0 : index
    %c0_282 = arith.constant 0 : index
    %610 = vector.load %arg5[%c0_281, %c0_282] : memref<16x64xbf16, #tpu.memory_space<vmem>>, vector<16x64xbf16>
    %611 = arith.truncf %608 : vector<16x16xf32> to vector<16x16xbf16>
    %cst_283 = arith.constant dense<0.000000e+00> : vector<16x64xf32>
    %612 = tpu.matmul %611, %610, %cst_283 {dimension_numbers = #tpu.dot_dimension_numbers<[1], [0], [0], [1], [0, 0, 1, 1], [], []>} : vector<16x16xbf16>, vector<16x64xbf16>, vector<16x64xf32> -> vector<16x64xf32>
    %613 = arith.addf %607, %612 : vector<16x64xf32>
    %614 = vector.extract_strided_slice %613 {offsets = [0, 0], sizes = [16, 16], strides = [1, 1]} : vector<16x64xf32> to vector<16x16xf32>
    %615 = arith.negf %614 : vector<16x16xf32>
    %616 = math.exp %615 : vector<16x16xf32>
    %cst_284 = arith.constant 1.000000e+00 : f32
    %617 = vector.broadcast %cst_284 : f32 to vector<16x16xf32>
    %618 = arith.addf %617, %616 : vector<16x16xf32>
    %619 = arith.divf %617, %618 : vector<16x16xf32>
    %620 = vector.extract_strided_slice %613 {offsets = [0, 16], sizes = [16, 16], strides = [1, 1]} : vector<16x64xf32> to vector<16x16xf32>
    %621 = arith.negf %620 : vector<16x16xf32>
    %622 = math.exp %621 : vector<16x16xf32>
    %cst_285 = arith.constant 1.000000e+00 : f32
    %623 = vector.broadcast %cst_285 : f32 to vector<16x16xf32>
    %624 = arith.addf %623, %622 : vector<16x16xf32>
    %625 = arith.divf %623, %624 : vector<16x16xf32>
    %626 = vector.extract_strided_slice %613 {offsets = [0, 32], sizes = [16, 16], strides = [1, 1]} : vector<16x64xf32> to vector<16x16xf32>
    %627 = math.tanh %626 : vector<16x16xf32>
    %628 = vector.extract_strided_slice %613 {offsets = [0, 48], sizes = [16, 16], strides = [1, 1]} : vector<16x64xf32> to vector<16x16xf32>
    %629 = arith.negf %628 : vector<16x16xf32>
    %630 = math.exp %629 : vector<16x16xf32>
    %cst_286 = arith.constant 1.000000e+00 : f32
    %631 = vector.broadcast %cst_286 : f32 to vector<16x16xf32>
    %632 = arith.addf %631, %630 : vector<16x16xf32>
    %633 = arith.divf %631, %632 : vector<16x16xf32>
    %634 = arith.mulf %625, %609 : vector<16x16xf32>
    %635 = arith.mulf %619, %627 : vector<16x16xf32>
    %636 = arith.addf %634, %635 : vector<16x16xf32>
    %637 = math.tanh %636 : vector<16x16xf32>
    %638 = arith.mulf %633, %637 : vector<16x16xf32>
    %c0_287 = arith.constant 0 : index
    %c0_288 = arith.constant 0 : index
    %639 = vector.load %arg12[%c0_287, %c0_288] : memref<16x16xf32, #tpu.memory_space<vmem>>, vector<16x16xf32>
    %640 = vector.shape_cast %605 : vector<16x1xi1> to vector<16x1xi1>
    %641 = vector.broadcast %640 : vector<16x1xi1> to vector<16x16xi1>
    %642 = arith.select %641, %638, %639 : vector<16x16xi1>, vector<16x16xf32>
    %c0_289 = arith.constant 0 : index
    %c0_290 = arith.constant 0 : index
    %643 = vector.load %arg12[%c0_289, %c0_290] : memref<16x16xf32, #tpu.memory_space<vmem>>, vector<16x16xf32>
    tpu.vector_store %arg12[%c0_289, %c0_290], %642 {strides = array<i32>} : memref<16x16xf32, #tpu.memory_space<vmem>>, vector<16x16xf32>,
    %c0_291 = arith.constant 0 : index
    %c0_292 = arith.constant 0 : index
    %644 = vector.load %arg13[%c0_291, %c0_292] : memref<16x16xf32, #tpu.memory_space<vmem>>, vector<16x16xf32>
    %645 = vector.shape_cast %605 : vector<16x1xi1> to vector<16x1xi1>
    %646 = vector.broadcast %645 : vector<16x1xi1> to vector<16x16xi1>
    %647 = arith.select %646, %636, %644 : vector<16x16xi1>, vector<16x16xf32>
    %c0_293 = arith.constant 0 : index
    %c0_294 = arith.constant 0 : index
    %648 = vector.load %arg13[%c0_293, %c0_294] : memref<16x16xf32, #tpu.memory_space<vmem>>, vector<16x16xf32>
    tpu.vector_store %arg13[%c0_293, %c0_294], %647 {strides = array<i32>} : memref<16x16xf32, #tpu.memory_space<vmem>>, vector<16x16xf32>,
    %c7_i32_295 = arith.constant 7 : i32
    %649 = arith.addi %4, %c7_i32_295 : i32
    %650 = vector.broadcast %649 : i32 to vector<16x1xi32>
    %651 = arith.cmpi slt, %650, %3 : vector<16x1xi32>
    %c7_296 = arith.constant 7 : index
    %c0_297 = arith.constant 0 : index
    %c0_298 = arith.constant 0 : index
    %652 = vector.load %arg2[%c7_296, %c0_297, %c0_298] : memref<8x16x64xf32, #tpu.memory_space<vmem>>, vector<1x16x64xf32>
    %653 = vector.shape_cast %652 : vector<1x16x64xf32> to vector<16x64xf32>
    %c0_299 = arith.constant 0 : index
    %c0_300 = arith.constant 0 : index
    %654 = vector.load %arg10[%c0_299, %c0_300] : memref<16x16xf32, #tpu.memory_space<vmem>>, vector<16x16xf32>
    %c0_301 = arith.constant 0 : index
    %c0_302 = arith.constant 0 : index
    %655 = vector.load %arg11[%c0_301, %c0_302] : memref<16x16xf32, #tpu.memory_space<vmem>>, vector<16x16xf32>
    %c0_303 = arith.constant 0 : index
    %c0_304 = arith.constant 0 : index
    %656 = vector.load %arg4[%c0_303, %c0_304] : memref<16x64xbf16, #tpu.memory_space<vmem>>, vector<16x64xbf16>
    %657 = arith.truncf %654 : vector<16x16xf32> to vector<16x16xbf16>
    %cst_305 = arith.constant dense<0.000000e+00> : vector<16x64xf32>
    %658 = tpu.matmul %657, %656, %cst_305 {dimension_numbers = #tpu.dot_dimension_numbers<[1], [0], [0], [1], [0, 0, 1, 1], [], []>} : vector<16x16xbf16>, vector<16x64xbf16>, vector<16x64xf32> -> vector<16x64xf32>
    %659 = arith.addf %653, %658 : vector<16x64xf32>
    %660 = vector.extract_strided_slice %659 {offsets = [0, 0], sizes = [16, 16], strides = [1, 1]} : vector<16x64xf32> to vector<16x16xf32>
    %661 = arith.negf %660 : vector<16x16xf32>
    %662 = math.exp %661 : vector<16x16xf32>
    %cst_306 = arith.constant 1.000000e+00 : f32
    %663 = vector.broadcast %cst_306 : f32 to vector<16x16xf32>
    %664 = arith.addf %663, %662 : vector<16x16xf32>
    %665 = arith.divf %663, %664 : vector<16x16xf32>
    %666 = vector.extract_strided_slice %659 {offsets = [0, 16], sizes = [16, 16], strides = [1, 1]} : vector<16x64xf32> to vector<16x16xf32>
    %667 = arith.negf %666 : vector<16x16xf32>
    %668 = math.exp %667 : vector<16x16xf32>
    %cst_307 = arith.constant 1.000000e+00 : f32
    %669 = vector.broadcast %cst_307 : f32 to vector<16x16xf32>
    %670 = arith.addf %669, %668 : vector<16x16xf32>
    %671 = arith.divf %669, %670 : vector<16x16xf32>
    %672 = vector.extract_strided_slice %659 {offsets = [0, 32], sizes = [16, 16], strides = [1, 1]} : vector<16x64xf32> to vector<16x16xf32>
    %673 = math.tanh %672 : vector<16x16xf32>
    %674 = vector.extract_strided_slice %659 {offsets = [0, 48], sizes = [16, 16], strides = [1, 1]} : vector<16x64xf32> to vector<16x16xf32>
    %675 = arith.negf %674 : vector<16x16xf32>
    %676 = math.exp %675 : vector<16x16xf32>
    %cst_308 = arith.constant 1.000000e+00 : f32
    %677 = vector.broadcast %cst_308 : f32 to vector<16x16xf32>
    %678 = arith.addf %677, %676 : vector<16x16xf32>
    %679 = arith.divf %677, %678 : vector<16x16xf32>
    %680 = arith.mulf %671, %655 : vector<16x16xf32>
    %681 = arith.mulf %665, %673 : vector<16x16xf32>
    %682 = arith.addf %680, %681 : vector<16x16xf32>
    %683 = math.tanh %682 : vector<16x16xf32>
    %684 = arith.mulf %679, %683 : vector<16x16xf32>
    %c0_309 = arith.constant 0 : index
    %c0_310 = arith.constant 0 : index
    %685 = vector.load %arg10[%c0_309, %c0_310] : memref<16x16xf32, #tpu.memory_space<vmem>>, vector<16x16xf32>
    %686 = vector.shape_cast %651 : vector<16x1xi1> to vector<16x1xi1>
    %687 = vector.broadcast %686 : vector<16x1xi1> to vector<16x16xi1>
    %688 = arith.select %687, %684, %685 : vector<16x16xi1>, vector<16x16xf32>
    %c0_311 = arith.constant 0 : index
    %c0_312 = arith.constant 0 : index
    %689 = vector.load %arg10[%c0_311, %c0_312] : memref<16x16xf32, #tpu.memory_space<vmem>>, vector<16x16xf32>
    tpu.vector_store %arg10[%c0_311, %c0_312], %688 {strides = array<i32>} : memref<16x16xf32, #tpu.memory_space<vmem>>, vector<16x16xf32>,
    %c0_313 = arith.constant 0 : index
    %c0_314 = arith.constant 0 : index
    %690 = vector.load %arg11[%c0_313, %c0_314] : memref<16x16xf32, #tpu.memory_space<vmem>>, vector<16x16xf32>
    %691 = vector.shape_cast %651 : vector<16x1xi1> to vector<16x1xi1>
    %692 = vector.broadcast %691 : vector<16x1xi1> to vector<16x16xi1>
    %693 = arith.select %692, %682, %690 : vector<16x16xi1>, vector<16x16xf32>
    %c0_315 = arith.constant 0 : index
    %c0_316 = arith.constant 0 : index
    %694 = vector.load %arg11[%c0_315, %c0_316] : memref<16x16xf32, #tpu.memory_space<vmem>>, vector<16x16xf32>
    tpu.vector_store %arg11[%c0_315, %c0_316], %693 {strides = array<i32>} : memref<16x16xf32, #tpu.memory_space<vmem>>, vector<16x16xf32>,
    %c7_i32_317 = arith.constant 7 : i32
    %695 = arith.subi %c7_i32_317, %649 : i32
    %696 = vector.broadcast %695 : i32 to vector<16x1xi32>
    %697 = arith.cmpi slt, %696, %3 : vector<16x1xi32>
    %c0_318 = arith.constant 0 : index
    %c0_319 = arith.constant 0 : index
    %c0_320 = arith.constant 0 : index
    %698 = vector.load %arg3[%c0_318, %c0_319, %c0_320] : memref<8x16x64xf32, #tpu.memory_space<vmem>>, vector<1x16x64xf32>
    %699 = vector.shape_cast %698 : vector<1x16x64xf32> to vector<16x64xf32>
    %c0_321 = arith.constant 0 : index
    %c0_322 = arith.constant 0 : index
    %700 = vector.load %arg12[%c0_321, %c0_322] : memref<16x16xf32, #tpu.memory_space<vmem>>, vector<16x16xf32>
    %c0_323 = arith.constant 0 : index
    %c0_324 = arith.constant 0 : index
    %701 = vector.load %arg13[%c0_323, %c0_324] : memref<16x16xf32, #tpu.memory_space<vmem>>, vector<16x16xf32>
    %c0_325 = arith.constant 0 : index
    %c0_326 = arith.constant 0 : index
    %702 = vector.load %arg5[%c0_325, %c0_326] : memref<16x64xbf16, #tpu.memory_space<vmem>>, vector<16x64xbf16>
    %703 = arith.truncf %700 : vector<16x16xf32> to vector<16x16xbf16>
    %cst_327 = arith.constant dense<0.000000e+00> : vector<16x64xf32>
    %704 = tpu.matmul %703, %702, %cst_327 {dimension_numbers = #tpu.dot_dimension_numbers<[1], [0], [0], [1], [0, 0, 1, 1], [], []>} : vector<16x16xbf16>, vector<16x64xbf16>, vector<16x64xf32> -> vector<16x64xf32>
    %705 = arith.addf %699, %704 : vector<16x64xf32>
    %706 = vector.extract_strided_slice %705 {offsets = [0, 0], sizes = [16, 16], strides = [1, 1]} : vector<16x64xf32> to vector<16x16xf32>
    %707 = arith.negf %706 : vector<16x16xf32>
    %708 = math.exp %707 : vector<16x16xf32>
    %cst_328 = arith.constant 1.000000e+00 : f32
    %709 = vector.broadcast %cst_328 : f32 to vector<16x16xf32>
    %710 = arith.addf %709, %708 : vector<16x16xf32>
    %711 = arith.divf %709, %710 : vector<16x16xf32>
    %712 = vector.extract_strided_slice %705 {offsets = [0, 16], sizes = [16, 16], strides = [1, 1]} : vector<16x64xf32> to vector<16x16xf32>
    %713 = arith.negf %712 : vector<16x16xf32>
    %714 = math.exp %713 : vector<16x16xf32>
    %cst_329 = arith.constant 1.000000e+00 : f32
    %715 = vector.broadcast %cst_329 : f32 to vector<16x16xf32>
    %716 = arith.addf %715, %714 : vector<16x16xf32>
    %717 = arith.divf %715, %716 : vector<16x16xf32>
    %718 = vector.extract_strided_slice %705 {offsets = [0, 32], sizes = [16, 16], strides = [1, 1]} : vector<16x64xf32> to vector<16x16xf32>
    %719 = math.tanh %718 : vector<16x16xf32>
    %720 = vector.extract_strided_slice %705 {offsets = [0, 48], sizes = [16, 16], strides = [1, 1]} : vector<16x64xf32> to vector<16x16xf32>
    %721 = arith.negf %720 : vector<16x16xf32>
    %722 = math.exp %721 : vector<16x16xf32>
    %cst_330 = arith.constant 1.000000e+00 : f32
    %723 = vector.broadcast %cst_330 : f32 to vector<16x16xf32>
    %724 = arith.addf %723, %722 : vector<16x16xf32>
    %725 = arith.divf %723, %724 : vector<16x16xf32>
    %726 = arith.mulf %717, %701 : vector<16x16xf32>
    %727 = arith.mulf %711, %719 : vector<16x16xf32>
    %728 = arith.addf %726, %727 : vector<16x16xf32>
    %729 = math.tanh %728 : vector<16x16xf32>
    %730 = arith.mulf %725, %729 : vector<16x16xf32>
    %c0_331 = arith.constant 0 : index
    %c0_332 = arith.constant 0 : index
    %731 = vector.load %arg12[%c0_331, %c0_332] : memref<16x16xf32, #tpu.memory_space<vmem>>, vector<16x16xf32>
    %732 = vector.shape_cast %697 : vector<16x1xi1> to vector<16x1xi1>
    %733 = vector.broadcast %732 : vector<16x1xi1> to vector<16x16xi1>
    %734 = arith.select %733, %730, %731 : vector<16x16xi1>, vector<16x16xf32>
    %c0_333 = arith.constant 0 : index
    %c0_334 = arith.constant 0 : index
    %735 = vector.load %arg12[%c0_333, %c0_334] : memref<16x16xf32, #tpu.memory_space<vmem>>, vector<16x16xf32>
    tpu.vector_store %arg12[%c0_333, %c0_334], %734 {strides = array<i32>} : memref<16x16xf32, #tpu.memory_space<vmem>>, vector<16x16xf32>,
    %c0_335 = arith.constant 0 : index
    %c0_336 = arith.constant 0 : index
    %736 = vector.load %arg13[%c0_335, %c0_336] : memref<16x16xf32, #tpu.memory_space<vmem>>, vector<16x16xf32>
    %737 = vector.shape_cast %697 : vector<16x1xi1> to vector<16x1xi1>
    %738 = vector.broadcast %737 : vector<16x1xi1> to vector<16x16xi1>
    %739 = arith.select %738, %728, %736 : vector<16x16xi1>, vector<16x16xf32>
    %c0_337 = arith.constant 0 : index
    %c0_338 = arith.constant 0 : index
    %740 = vector.load %arg13[%c0_337, %c0_338] : memref<16x16xf32, #tpu.memory_space<vmem>>, vector<16x16xf32>
    tpu.vector_store %arg13[%c0_337, %c0_338], %739 {strides = array<i32>} : memref<16x16xf32, #tpu.memory_space<vmem>>, vector<16x16xf32>,
    %c0_i32_339 = arith.constant 0 : i32
    %741 = arith.cmpi eq, %arg0, %c0_i32_339 : i32
    %742 = arith.extui %741 : i1 to i32
    %c0_i32_340 = arith.constant 0 : i32
    %743 = arith.cmpi ne, %742, %c0_i32_340 : i32
    scf.if %743 {
      %c0_341 = arith.constant 0 : index
      %c0_342 = arith.constant 0 : index
      %744 = vector.load %arg10[%c0_341, %c0_342] : memref<16x16xf32, #tpu.memory_space<vmem>>, vector<16x16xf32>
      %c0_343 = arith.constant 0 : index
      %c0_344 = arith.constant 0 : index
      %745 = vector.load %arg6[%c0_343, %c0_344] : memref<16x16xf32, #tpu.memory_space<vmem>>, vector<16x16xf32>
      tpu.vector_store %arg6[%c0_343, %c0_344], %744 {strides = array<i32>} : memref<16x16xf32, #tpu.memory_space<vmem>>, vector<16x16xf32>,
      %c0_345 = arith.constant 0 : index
      %c0_346 = arith.constant 0 : index
      %746 = vector.load %arg11[%c0_345, %c0_346] : memref<16x16xf32, #tpu.memory_space<vmem>>, vector<16x16xf32>
      %c0_347 = arith.constant 0 : index
      %c0_348 = arith.constant 0 : index
      %747 = vector.load %arg7[%c0_347, %c0_348] : memref<16x16xf32, #tpu.memory_space<vmem>>, vector<16x16xf32>
      tpu.vector_store %arg7[%c0_347, %c0_348], %746 {strides = array<i32>} : memref<16x16xf32, #tpu.memory_space<vmem>>, vector<16x16xf32>,
      %c0_349 = arith.constant 0 : index
      %c0_350 = arith.constant 0 : index
      %748 = vector.load %arg12[%c0_349, %c0_350] : memref<16x16xf32, #tpu.memory_space<vmem>>, vector<16x16xf32>
      %c0_351 = arith.constant 0 : index
      %c0_352 = arith.constant 0 : index
      %749 = vector.load %arg8[%c0_351, %c0_352] : memref<16x16xf32, #tpu.memory_space<vmem>>, vector<16x16xf32>
      tpu.vector_store %arg8[%c0_351, %c0_352], %748 {strides = array<i32>} : memref<16x16xf32, #tpu.memory_space<vmem>>, vector<16x16xf32>,
      %c0_353 = arith.constant 0 : index
      %c0_354 = arith.constant 0 : index
      %750 = vector.load %arg13[%c0_353, %c0_354] : memref<16x16xf32, #tpu.memory_space<vmem>>, vector<16x16xf32>
      %c0_355 = arith.constant 0 : index
      %c0_356 = arith.constant 0 : index
      %751 = vector.load %arg9[%c0_355, %c0_356] : memref<16x16xf32, #tpu.memory_space<vmem>>, vector<16x16xf32>
      tpu.vector_store %arg9[%c0_355, %c0_356], %750 {strides = array<i32>} : memref<16x16xf32, #tpu.memory_space<vmem>>, vector<16x16xf32>,
    } else {
    }
    return
  }
  func.func @transform_0(%arg0: i32) -> (i32, i32) {
    %c0_i32 = arith.constant 0 : i32
    %c0_i32_0 = arith.constant 0 : i32
    %c0_i32_1 = arith.constant 0 : i32
    return %c0_i32, %c0_i32_0 : i32, i32
  }
  func.func @transform_1(%arg0: i32) -> (i32, i32, i32) {
    %c0_i32 = arith.constant 0 : i32
    %c0_i32_0 = arith.constant 0 : i32
    %c0_i32_1 = arith.constant 0 : i32
    return %arg0, %c0_i32, %c0_i32_0 : i32, i32, i32
  }
  func.func @transform_2(%arg0: i32) -> (i32, i32, i32) {
    %c0_i32 = arith.constant 0 : i32
    %0 = arith.subi %c0_i32, %arg0 : i32
    %c0_i32_0 = arith.constant 0 : i32
    %c0_i32_1 = arith.constant 0 : i32
    %c0_i32_2 = arith.constant 0 : i32
    return %0, %c0_i32_0, %c0_i32_1 : i32, i32, i32
  }
  func.func @transform_3(%arg0: i32) -> (i32, i32) {
    %c0_i32 = arith.constant 0 : i32
    %c0_i32_0 = arith.constant 0 : i32
    %c0_i32_1 = arith.constant 0 : i32
    return %c0_i32, %c0_i32_0 : i32, i32
  }
  func.func @transform_4(%arg0: i32) -> (i32, i32) {
    %c0_i32 = arith.constant 0 : i32
    %c0_i32_0 = arith.constant 0 : i32
    %c0_i32_1 = arith.constant 0 : i32
    return %c0_i32, %c0_i32_0 : i32, i32
  }
  func.func @transform_5(%arg0: i32) -> (i32, i32) {
    %c0_i32 = arith.constant 0 : i32
    %c0_i32_0 = arith.constant 0 : i32
    %c0_i32_1 = arith.constant 0 : i32
    return %c0_i32, %c0_i32_0 : i32, i32
  }
  func.func @transform_6(%arg0: i32) -> (i32, i32) {
    %c0_i32 = arith.constant 0 : i32
    %c0_i32_0 = arith.constant 0 : i32
    %c0_i32_1 = arith.constant 0 : i32
    return %c0_i32, %c0_i32_0 : i32, i32
  }
  func.func @transform_7(%arg0: i32) -> (i32, i32) {
    %c0_i32 = arith.constant 0 : i32
    %c0_i32_0 = arith.constant 0 : i32
    %c0_i32_1 = arith.constant 0 : i32
    return %c0_i32, %c0_i32_0 : i32, i32
  }
  func.func @transform_8(%arg0: i32) -> (i32, i32) {
    %c0_i32 = arith.constant 0 : i32
    %c0_i32_0 = arith.constant 0 : i32
    %c0_i32_1 = arith.constant 0 : i32
    return %c0_i32, %c0_i32_0 : i32, i32
  }
}

module attributes {stable_mosaic.version = 11 : i64} {
  func.func @_linear_kernel(%arg0: i32, %arg1: i32, %arg2: memref<128x32xbf16, #tpu.memory_space<vmem>>, %arg3: memref<32x128xbf16, #tpu.memory_space<vmem>>, %arg4: memref<1x128xf32, #tpu.memory_space<vmem>>, %arg5: memref<128x128xf32, #tpu.memory_space<vmem>>) attributes {dimension_semantics = [#tpu.dimension_semantics<parallel>, #tpu.dimension_semantics<parallel>], iteration_bounds = array<i64: 1, 1>, scalar_prefetch = 0 : i64, scratch_operands = 0 : i64, tpu.core_type = #tpu.core_type<tc>, window_params = [{transform_indices = @transform_0, window_bounds = array<i64: 128, 32>}, {transform_indices = @transform_1, window_bounds = array<i64: 32, 128>}, {transform_indices = @transform_2, window_bounds = array<i64: 1, 128>}, {transform_indices = @transform_3, window_bounds = array<i64: 128, 128>}]} {
    %c0 = arith.constant 0 : index
    %c0_0 = arith.constant 0 : index
    %0 = vector.load %arg2[%c0, %c0_0] : memref<128x32xbf16, #tpu.memory_space<vmem>>, vector<128x32xbf16>
    %c0_1 = arith.constant 0 : index
    %c0_2 = arith.constant 0 : index
    %1 = vector.load %arg3[%c0_1, %c0_2] : memref<32x128xbf16, #tpu.memory_space<vmem>>, vector<32x128xbf16>
    %cst = arith.constant dense<0.000000e+00> : vector<128x128xf32>
    %2 = tpu.matmul %0, %1, %cst {dimension_numbers = #tpu.dot_dimension_numbers<[1], [0], [0], [1], [0, 0, 1, 1], [], []>} : vector<128x32xbf16>, vector<32x128xbf16>, vector<128x128xf32> -> vector<128x128xf32>
    %c0_3 = arith.constant 0 : index
    %c0_4 = arith.constant 0 : index
    %3 = vector.load %arg4[%c0_3, %c0_4] : memref<1x128xf32, #tpu.memory_space<vmem>>, vector<1x128xf32>
    %4 = vector.broadcast %3 : vector<1x128xf32> to vector<128x128xf32>
    %5 = arith.addf %2, %4 : vector<128x128xf32>
    %c0_5 = arith.constant 0 : index
    %c0_6 = arith.constant 0 : index
    %6 = vector.load %arg5[%c0_5, %c0_6] : memref<128x128xf32, #tpu.memory_space<vmem>>, vector<128x128xf32>
    tpu.vector_store %arg5[%c0_5, %c0_6], %5 {strides = array<i32>} : memref<128x128xf32, #tpu.memory_space<vmem>>, vector<128x128xf32>,
    return
  }
  func.func @transform_0(%arg0: i32, %arg1: i32) -> (i32, i32) {
    %c0_i32 = arith.constant 0 : i32
    %c0_i32_0 = arith.constant 0 : i32
    return %arg0, %c0_i32 : i32, i32
  }
  func.func @transform_1(%arg0: i32, %arg1: i32) -> (i32, i32) {
    %c0_i32 = arith.constant 0 : i32
    %c0_i32_0 = arith.constant 0 : i32
    return %c0_i32, %arg1 : i32, i32
  }
  func.func @transform_2(%arg0: i32, %arg1: i32) -> (i32, i32) {
    %c0_i32 = arith.constant 0 : i32
    %c0_i32_0 = arith.constant 0 : i32
    return %c0_i32, %arg1 : i32, i32
  }
  func.func @transform_3(%arg0: i32, %arg1: i32) -> (i32, i32) {
    %c0_i32 = arith.constant 0 : i32
    return %arg0, %arg1 : i32, i32
  }
}

module attributes {stable_mosaic.version = 11 : i64} {
  func.func @_lstm_kernel(%arg0: i32, %arg1: memref<8x16x128xf32, #tpu.memory_space<vmem>>, %arg2: memref<16x32xf32, #tpu.memory_space<vmem>>, %arg3: memref<16x32xf32, #tpu.memory_space<vmem>>, %arg4: memref<32x128xbf16, #tpu.memory_space<vmem>>, %arg5: memref<8x16x32xbf16, #tpu.memory_space<vmem>>, %arg6: memref<16x32xf32, #tpu.memory_space<vmem>>, %arg7: memref<16x32xf32, #tpu.memory_space<vmem>>, %arg8: memref<16x32xf32, #tpu.memory_space<vmem>>, %arg9: memref<16x32xf32, #tpu.memory_space<vmem>>) attributes {dimension_semantics = [#tpu.dimension_semantics<arbitrary>], iteration_bounds = array<i64: 1>, scalar_prefetch = 0 : i64, scratch_operands = 2 : i64, tpu.core_type = #tpu.core_type<tc>, window_params = [{transform_indices = @transform_0, window_bounds = array<i64: 8, 16, 128>}, {pipeline_mode = #tpu.pipeline_mode<synchronous>, transform_indices = @transform_1, window_bounds = array<i64: 16, 32>}, {pipeline_mode = #tpu.pipeline_mode<synchronous>, transform_indices = @transform_2, window_bounds = array<i64: 16, 32>}, {pipeline_mode = #tpu.pipeline_mode<synchronous>, transform_indices = @transform_3, window_bounds = array<i64: 32, 128>}, {transform_indices = @transform_4, window_bounds = array<i64: 8, 16, 32>}, {pipeline_mode = #tpu.pipeline_mode<synchronous>, transform_indices = @transform_5, window_bounds = array<i64: 16, 32>}, {pipeline_mode = #tpu.pipeline_mode<synchronous>, transform_indices = @transform_6, window_bounds = array<i64: 16, 32>}]} {
    %c0_i32 = arith.constant 0 : i32
    %0 = arith.cmpi eq, %arg0, %c0_i32 : i32
    %1 = arith.extui %0 : i1 to i32
    %c0_i32_0 = arith.constant 0 : i32
    %2 = arith.cmpi ne, %1, %c0_i32_0 : i32
    scf.if %2 {
      %c0_195 = arith.constant 0 : index
      %c0_196 = arith.constant 0 : index
      %367 = vector.load %arg2[%c0_195, %c0_196] : memref<16x32xf32, #tpu.memory_space<vmem>>, vector<16x32xf32>
      %c0_197 = arith.constant 0 : index
      %c0_198 = arith.constant 0 : index
      %368 = vector.load %arg8[%c0_197, %c0_198] : memref<16x32xf32, #tpu.memory_space<vmem>>, vector<16x32xf32>
      tpu.vector_store %arg8[%c0_197, %c0_198], %367 {strides = array<i32>} : memref<16x32xf32, #tpu.memory_space<vmem>>, vector<16x32xf32>,
      %c0_199 = arith.constant 0 : index
      %c0_200 = arith.constant 0 : index
      %369 = vector.load %arg3[%c0_199, %c0_200] : memref<16x32xf32, #tpu.memory_space<vmem>>, vector<16x32xf32>
      %c0_201 = arith.constant 0 : index
      %c0_202 = arith.constant 0 : index
      %370 = vector.load %arg9[%c0_201, %c0_202] : memref<16x32xf32, #tpu.memory_space<vmem>>, vector<16x32xf32>
      tpu.vector_store %arg9[%c0_201, %c0_202], %369 {strides = array<i32>} : memref<16x32xf32, #tpu.memory_space<vmem>>, vector<16x32xf32>,
    } else {
    }
    %c8_i32 = arith.constant 8 : i32
    %3 = arith.muli %arg0, %c8_i32 : i32
    %c0 = arith.constant 0 : index
    %c0_1 = arith.constant 0 : index
    %c0_2 = arith.constant 0 : index
    %4 = vector.load %arg1[%c0, %c0_1, %c0_2] : memref<8x16x128xf32, #tpu.memory_space<vmem>>, vector<1x16x128xf32>
    %5 = vector.shape_cast %4 : vector<1x16x128xf32> to vector<16x128xf32>
    %c0_3 = arith.constant 0 : index
    %c0_4 = arith.constant 0 : index
    %6 = vector.load %arg8[%c0_3, %c0_4] : memref<16x32xf32, #tpu.memory_space<vmem>>, vector<16x32xf32>
    %c0_5 = arith.constant 0 : index
    %c0_6 = arith.constant 0 : index
    %7 = vector.load %arg9[%c0_5, %c0_6] : memref<16x32xf32, #tpu.memory_space<vmem>>, vector<16x32xf32>
    %c0_7 = arith.constant 0 : index
    %c0_8 = arith.constant 0 : index
    %8 = vector.load %arg4[%c0_7, %c0_8] : memref<32x128xbf16, #tpu.memory_space<vmem>>, vector<32x128xbf16>
    %9 = arith.truncf %6 : vector<16x32xf32> to vector<16x32xbf16>
    %cst = arith.constant dense<0.000000e+00> : vector<16x128xf32>
    %10 = tpu.matmul %9, %8, %cst {dimension_numbers = #tpu.dot_dimension_numbers<[1], [0], [0], [1], [0, 0, 1, 1], [], []>} : vector<16x32xbf16>, vector<32x128xbf16>, vector<16x128xf32> -> vector<16x128xf32>
    %11 = arith.addf %5, %10 : vector<16x128xf32>
    %12 = vector.extract_strided_slice %11 {offsets = [0, 0], sizes = [16, 32], strides = [1, 1]} : vector<16x128xf32> to vector<16x32xf32>
    %13 = arith.negf %12 : vector<16x32xf32>
    %14 = math.exp %13 : vector<16x32xf32>
    %cst_9 = arith.constant 1.000000e+00 : f32
    %15 = vector.broadcast %cst_9 : f32 to vector<16x32xf32>
    %16 = arith.addf %15, %14 : vector<16x32xf32>
    %17 = arith.divf %15, %16 : vector<16x32xf32>
    %18 = vector.extract_strided_slice %11 {offsets = [0, 32], sizes = [16, 32], strides = [1, 1]} : vector<16x128xf32> to vector<16x32xf32>
    %19 = arith.negf %18 : vector<16x32xf32>
    %20 = math.exp %19 : vector<16x32xf32>
    %cst_10 = arith.constant 1.000000e+00 : f32
    %21 = vector.broadcast %cst_10 : f32 to vector<16x32xf32>
    %22 = arith.addf %21, %20 : vector<16x32xf32>
    %23 = arith.divf %21, %22 : vector<16x32xf32>
    %24 = vector.extract_strided_slice %11 {offsets = [0, 64], sizes = [16, 32], strides = [1, 1]} : vector<16x128xf32> to vector<16x32xf32>
    %25 = math.tanh %24 : vector<16x32xf32>
    %26 = vector.extract_strided_slice %11 {offsets = [0, 96], sizes = [16, 32], strides = [1, 1]} : vector<16x128xf32> to vector<16x32xf32>
    %27 = arith.negf %26 : vector<16x32xf32>
    %28 = math.exp %27 : vector<16x32xf32>
    %cst_11 = arith.constant 1.000000e+00 : f32
    %29 = vector.broadcast %cst_11 : f32 to vector<16x32xf32>
    %30 = arith.addf %29, %28 : vector<16x32xf32>
    %31 = arith.divf %29, %30 : vector<16x32xf32>
    %32 = arith.mulf %23, %7 : vector<16x32xf32>
    %33 = arith.mulf %17, %25 : vector<16x32xf32>
    %34 = arith.addf %32, %33 : vector<16x32xf32>
    %35 = math.tanh %34 : vector<16x32xf32>
    %36 = arith.mulf %31, %35 : vector<16x32xf32>
    %37 = arith.truncf %36 : vector<16x32xf32> to vector<16x32xbf16>
    %c0_12 = arith.constant 0 : index
    %c0_13 = arith.constant 0 : index
    %c0_14 = arith.constant 0 : index
    %38 = vector.load %arg5[%c0_12, %c0_13, %c0_14] : memref<8x16x32xbf16, #tpu.memory_space<vmem>>, vector<1x16x32xbf16>
    %39 = vector.shape_cast %38 : vector<1x16x32xbf16> to vector<16x32xbf16>
    %40 = vector.shape_cast %37 : vector<16x32xbf16> to vector<1x16x32xbf16>
    tpu.vector_store %arg5[%c0_12, %c0_13, %c0_14], %40 {strides = array<i32>} : memref<8x16x32xbf16, #tpu.memory_space<vmem>>, vector<1x16x32xbf16>,
    %c0_i32_15 = arith.constant 0 : i32
    %41 = arith.addi %3, %c0_i32_15 : i32
    %c7_i32 = arith.constant 7 : i32
    %42 = arith.cmpi slt, %41, %c7_i32 : i32
    %c0_16 = arith.constant 0 : index
    %c0_17 = arith.constant 0 : index
    %43 = vector.load %arg8[%c0_16, %c0_17] : memref<16x32xf32, #tpu.memory_space<vmem>>, vector<16x32xf32>
    %44 = arith.select %42, %36, %43 : vector<16x32xf32>
    %c0_18 = arith.constant 0 : index
    %c0_19 = arith.constant 0 : index
    %45 = vector.load %arg8[%c0_18, %c0_19] : memref<16x32xf32, #tpu.memory_space<vmem>>, vector<16x32xf32>
    tpu.vector_store %arg8[%c0_18, %c0_19], %44 {strides = array<i32>} : memref<16x32xf32, #tpu.memory_space<vmem>>, vector<16x32xf32>,
    %c0_20 = arith.constant 0 : index
    %c0_21 = arith.constant 0 : index
    %46 = vector.load %arg9[%c0_20, %c0_21] : memref<16x32xf32, #tpu.memory_space<vmem>>, vector<16x32xf32>
    %47 = arith.select %42, %34, %46 : vector<16x32xf32>
    %c0_22 = arith.constant 0 : index
    %c0_23 = arith.constant 0 : index
    %48 = vector.load %arg9[%c0_22, %c0_23] : memref<16x32xf32, #tpu.memory_space<vmem>>, vector<16x32xf32>
    tpu.vector_store %arg9[%c0_22, %c0_23], %47 {strides = array<i32>} : memref<16x32xf32, #tpu.memory_space<vmem>>, vector<16x32xf32>,
    %c1 = arith.constant 1 : index
    %c0_24 = arith.constant 0 : index
    %c0_25 = arith.constant 0 : index
    %49 = vector.load %arg1[%c1, %c0_24, %c0_25] : memref<8x16x128xf32, #tpu.memory_space<vmem>>, vector<1x16x128xf32>
    %50 = vector.shape_cast %49 : vector<1x16x128xf32> to vector<16x128xf32>
    %c0_26 = arith.constant 0 : index
    %c0_27 = arith.constant 0 : index
    %51 = vector.load %arg8[%c0_26, %c0_27] : memref<16x32xf32, #tpu.memory_space<vmem>>, vector<16x32xf32>
    %c0_28 = arith.constant 0 : index
    %c0_29 = arith.constant 0 : index
    %52 = vector.load %arg9[%c0_28, %c0_29] : memref<16x32xf32, #tpu.memory_space<vmem>>, vector<16x32xf32>
    %c0_30 = arith.constant 0 : index
    %c0_31 = arith.constant 0 : index
    %53 = vector.load %arg4[%c0_30, %c0_31] : memref<32x128xbf16, #tpu.memory_space<vmem>>, vector<32x128xbf16>
    %54 = arith.truncf %51 : vector<16x32xf32> to vector<16x32xbf16>
    %cst_32 = arith.constant dense<0.000000e+00> : vector<16x128xf32>
    %55 = tpu.matmul %54, %53, %cst_32 {dimension_numbers = #tpu.dot_dimension_numbers<[1], [0], [0], [1], [0, 0, 1, 1], [], []>} : vector<16x32xbf16>, vector<32x128xbf16>, vector<16x128xf32> -> vector<16x128xf32>
    %56 = arith.addf %50, %55 : vector<16x128xf32>
    %57 = vector.extract_strided_slice %56 {offsets = [0, 0], sizes = [16, 32], strides = [1, 1]} : vector<16x128xf32> to vector<16x32xf32>
    %58 = arith.negf %57 : vector<16x32xf32>
    %59 = math.exp %58 : vector<16x32xf32>
    %cst_33 = arith.constant 1.000000e+00 : f32
    %60 = vector.broadcast %cst_33 : f32 to vector<16x32xf32>
    %61 = arith.addf %60, %59 : vector<16x32xf32>
    %62 = arith.divf %60, %61 : vector<16x32xf32>
    %63 = vector.extract_strided_slice %56 {offsets = [0, 32], sizes = [16, 32], strides = [1, 1]} : vector<16x128xf32> to vector<16x32xf32>
    %64 = arith.negf %63 : vector<16x32xf32>
    %65 = math.exp %64 : vector<16x32xf32>
    %cst_34 = arith.constant 1.000000e+00 : f32
    %66 = vector.broadcast %cst_34 : f32 to vector<16x32xf32>
    %67 = arith.addf %66, %65 : vector<16x32xf32>
    %68 = arith.divf %66, %67 : vector<16x32xf32>
    %69 = vector.extract_strided_slice %56 {offsets = [0, 64], sizes = [16, 32], strides = [1, 1]} : vector<16x128xf32> to vector<16x32xf32>
    %70 = math.tanh %69 : vector<16x32xf32>
    %71 = vector.extract_strided_slice %56 {offsets = [0, 96], sizes = [16, 32], strides = [1, 1]} : vector<16x128xf32> to vector<16x32xf32>
    %72 = arith.negf %71 : vector<16x32xf32>
    %73 = math.exp %72 : vector<16x32xf32>
    %cst_35 = arith.constant 1.000000e+00 : f32
    %74 = vector.broadcast %cst_35 : f32 to vector<16x32xf32>
    %75 = arith.addf %74, %73 : vector<16x32xf32>
    %76 = arith.divf %74, %75 : vector<16x32xf32>
    %77 = arith.mulf %68, %52 : vector<16x32xf32>
    %78 = arith.mulf %62, %70 : vector<16x32xf32>
    %79 = arith.addf %77, %78 : vector<16x32xf32>
    %80 = math.tanh %79 : vector<16x32xf32>
    %81 = arith.mulf %76, %80 : vector<16x32xf32>
    %82 = arith.truncf %81 : vector<16x32xf32> to vector<16x32xbf16>
    %c1_36 = arith.constant 1 : index
    %c0_37 = arith.constant 0 : index
    %c0_38 = arith.constant 0 : index
    %83 = vector.load %arg5[%c1_36, %c0_37, %c0_38] : memref<8x16x32xbf16, #tpu.memory_space<vmem>>, vector<1x16x32xbf16>
    %84 = vector.shape_cast %83 : vector<1x16x32xbf16> to vector<16x32xbf16>
    %85 = vector.shape_cast %82 : vector<16x32xbf16> to vector<1x16x32xbf16>
    tpu.vector_store %arg5[%c1_36, %c0_37, %c0_38], %85 {strides = array<i32>} : memref<8x16x32xbf16, #tpu.memory_space<vmem>>, vector<1x16x32xbf16>,
    %c1_i32 = arith.constant 1 : i32
    %86 = arith.addi %3, %c1_i32 : i32
    %c7_i32_39 = arith.constant 7 : i32
    %87 = arith.cmpi slt, %86, %c7_i32_39 : i32
    %c0_40 = arith.constant 0 : index
    %c0_41 = arith.constant 0 : index
    %88 = vector.load %arg8[%c0_40, %c0_41] : memref<16x32xf32, #tpu.memory_space<vmem>>, vector<16x32xf32>
    %89 = arith.select %87, %81, %88 : vector<16x32xf32>
    %c0_42 = arith.constant 0 : index
    %c0_43 = arith.constant 0 : index
    %90 = vector.load %arg8[%c0_42, %c0_43] : memref<16x32xf32, #tpu.memory_space<vmem>>, vector<16x32xf32>
    tpu.vector_store %arg8[%c0_42, %c0_43], %89 {strides = array<i32>} : memref<16x32xf32, #tpu.memory_space<vmem>>, vector<16x32xf32>,
    %c0_44 = arith.constant 0 : index
    %c0_45 = arith.constant 0 : index
    %91 = vector.load %arg9[%c0_44, %c0_45] : memref<16x32xf32, #tpu.memory_space<vmem>>, vector<16x32xf32>
    %92 = arith.select %87, %79, %91 : vector<16x32xf32>
    %c0_46 = arith.constant 0 : index
    %c0_47 = arith.constant 0 : index
    %93 = vector.load %arg9[%c0_46, %c0_47] : memref<16x32xf32, #tpu.memory_space<vmem>>, vector<16x32xf32>
    tpu.vector_store %arg9[%c0_46, %c0_47], %92 {strides = array<i32>} : memref<16x32xf32, #tpu.memory_space<vmem>>, vector<16x32xf32>,
    %c2 = arith.constant 2 : index
    %c0_48 = arith.constant 0 : index
    %c0_49 = arith.constant 0 : index
    %94 = vector.load %arg1[%c2, %c0_48, %c0_49] : memref<8x16x128xf32, #tpu.memory_space<vmem>>, vector<1x16x128xf32>
    %95 = vector.shape_cast %94 : vector<1x16x128xf32> to vector<16x128xf32>
    %c0_50 = arith.constant 0 : index
    %c0_51 = arith.constant 0 : index
    %96 = vector.load %arg8[%c0_50, %c0_51] : memref<16x32xf32, #tpu.memory_space<vmem>>, vector<16x32xf32>
    %c0_52 = arith.constant 0 : index
    %c0_53 = arith.constant 0 : index
    %97 = vector.load %arg9[%c0_52, %c0_53] : memref<16x32xf32, #tpu.memory_space<vmem>>, vector<16x32xf32>
    %c0_54 = arith.constant 0 : index
    %c0_55 = arith.constant 0 : index
    %98 = vector.load %arg4[%c0_54, %c0_55] : memref<32x128xbf16, #tpu.memory_space<vmem>>, vector<32x128xbf16>
    %99 = arith.truncf %96 : vector<16x32xf32> to vector<16x32xbf16>
    %cst_56 = arith.constant dense<0.000000e+00> : vector<16x128xf32>
    %100 = tpu.matmul %99, %98, %cst_56 {dimension_numbers = #tpu.dot_dimension_numbers<[1], [0], [0], [1], [0, 0, 1, 1], [], []>} : vector<16x32xbf16>, vector<32x128xbf16>, vector<16x128xf32> -> vector<16x128xf32>
    %101 = arith.addf %95, %100 : vector<16x128xf32>
    %102 = vector.extract_strided_slice %101 {offsets = [0, 0], sizes = [16, 32], strides = [1, 1]} : vector<16x128xf32> to vector<16x32xf32>
    %103 = arith.negf %102 : vector<16x32xf32>
    %104 = math.exp %103 : vector<16x32xf32>
    %cst_57 = arith.constant 1.000000e+00 : f32
    %105 = vector.broadcast %cst_57 : f32 to vector<16x32xf32>
    %106 = arith.addf %105, %104 : vector<16x32xf32>
    %107 = arith.divf %105, %106 : vector<16x32xf32>
    %108 = vector.extract_strided_slice %101 {offsets = [0, 32], sizes = [16, 32], strides = [1, 1]} : vector<16x128xf32> to vector<16x32xf32>
    %109 = arith.negf %108 : vector<16x32xf32>
    %110 = math.exp %109 : vector<16x32xf32>
    %cst_58 = arith.constant 1.000000e+00 : f32
    %111 = vector.broadcast %cst_58 : f32 to vector<16x32xf32>
    %112 = arith.addf %111, %110 : vector<16x32xf32>
    %113 = arith.divf %111, %112 : vector<16x32xf32>
    %114 = vector.extract_strided_slice %101 {offsets = [0, 64], sizes = [16, 32], strides = [1, 1]} : vector<16x128xf32> to vector<16x32xf32>
    %115 = math.tanh %114 : vector<16x32xf32>
    %116 = vector.extract_strided_slice %101 {offsets = [0, 96], sizes = [16, 32], strides = [1, 1]} : vector<16x128xf32> to vector<16x32xf32>
    %117 = arith.negf %116 : vector<16x32xf32>
    %118 = math.exp %117 : vector<16x32xf32>
    %cst_59 = arith.constant 1.000000e+00 : f32
    %119 = vector.broadcast %cst_59 : f32 to vector<16x32xf32>
    %120 = arith.addf %119, %118 : vector<16x32xf32>
    %121 = arith.divf %119, %120 : vector<16x32xf32>
    %122 = arith.mulf %113, %97 : vector<16x32xf32>
    %123 = arith.mulf %107, %115 : vector<16x32xf32>
    %124 = arith.addf %122, %123 : vector<16x32xf32>
    %125 = math.tanh %124 : vector<16x32xf32>
    %126 = arith.mulf %121, %125 : vector<16x32xf32>
    %127 = arith.truncf %126 : vector<16x32xf32> to vector<16x32xbf16>
    %c2_60 = arith.constant 2 : index
    %c0_61 = arith.constant 0 : index
    %c0_62 = arith.constant 0 : index
    %128 = vector.load %arg5[%c2_60, %c0_61, %c0_62] : memref<8x16x32xbf16, #tpu.memory_space<vmem>>, vector<1x16x32xbf16>
    %129 = vector.shape_cast %128 : vector<1x16x32xbf16> to vector<16x32xbf16>
    %130 = vector.shape_cast %127 : vector<16x32xbf16> to vector<1x16x32xbf16>
    tpu.vector_store %arg5[%c2_60, %c0_61, %c0_62], %130 {strides = array<i32>} : memref<8x16x32xbf16, #tpu.memory_space<vmem>>, vector<1x16x32xbf16>,
    %c2_i32 = arith.constant 2 : i32
    %131 = arith.addi %3, %c2_i32 : i32
    %c7_i32_63 = arith.constant 7 : i32
    %132 = arith.cmpi slt, %131, %c7_i32_63 : i32
    %c0_64 = arith.constant 0 : index
    %c0_65 = arith.constant 0 : index
    %133 = vector.load %arg8[%c0_64, %c0_65] : memref<16x32xf32, #tpu.memory_space<vmem>>, vector<16x32xf32>
    %134 = arith.select %132, %126, %133 : vector<16x32xf32>
    %c0_66 = arith.constant 0 : index
    %c0_67 = arith.constant 0 : index
    %135 = vector.load %arg8[%c0_66, %c0_67] : memref<16x32xf32, #tpu.memory_space<vmem>>, vector<16x32xf32>
    tpu.vector_store %arg8[%c0_66, %c0_67], %134 {strides = array<i32>} : memref<16x32xf32, #tpu.memory_space<vmem>>, vector<16x32xf32>,
    %c0_68 = arith.constant 0 : index
    %c0_69 = arith.constant 0 : index
    %136 = vector.load %arg9[%c0_68, %c0_69] : memref<16x32xf32, #tpu.memory_space<vmem>>, vector<16x32xf32>
    %137 = arith.select %132, %124, %136 : vector<16x32xf32>
    %c0_70 = arith.constant 0 : index
    %c0_71 = arith.constant 0 : index
    %138 = vector.load %arg9[%c0_70, %c0_71] : memref<16x32xf32, #tpu.memory_space<vmem>>, vector<16x32xf32>
    tpu.vector_store %arg9[%c0_70, %c0_71], %137 {strides = array<i32>} : memref<16x32xf32, #tpu.memory_space<vmem>>, vector<16x32xf32>,
    %c3 = arith.constant 3 : index
    %c0_72 = arith.constant 0 : index
    %c0_73 = arith.constant 0 : index
    %139 = vector.load %arg1[%c3, %c0_72, %c0_73] : memref<8x16x128xf32, #tpu.memory_space<vmem>>, vector<1x16x128xf32>
    %140 = vector.shape_cast %139 : vector<1x16x128xf32> to vector<16x128xf32>
    %c0_74 = arith.constant 0 : index
    %c0_75 = arith.constant 0 : index
    %141 = vector.load %arg8[%c0_74, %c0_75] : memref<16x32xf32, #tpu.memory_space<vmem>>, vector<16x32xf32>
    %c0_76 = arith.constant 0 : index
    %c0_77 = arith.constant 0 : index
    %142 = vector.load %arg9[%c0_76, %c0_77] : memref<16x32xf32, #tpu.memory_space<vmem>>, vector<16x32xf32>
    %c0_78 = arith.constant 0 : index
    %c0_79 = arith.constant 0 : index
    %143 = vector.load %arg4[%c0_78, %c0_79] : memref<32x128xbf16, #tpu.memory_space<vmem>>, vector<32x128xbf16>
    %144 = arith.truncf %141 : vector<16x32xf32> to vector<16x32xbf16>
    %cst_80 = arith.constant dense<0.000000e+00> : vector<16x128xf32>
    %145 = tpu.matmul %144, %143, %cst_80 {dimension_numbers = #tpu.dot_dimension_numbers<[1], [0], [0], [1], [0, 0, 1, 1], [], []>} : vector<16x32xbf16>, vector<32x128xbf16>, vector<16x128xf32> -> vector<16x128xf32>
    %146 = arith.addf %140, %145 : vector<16x128xf32>
    %147 = vector.extract_strided_slice %146 {offsets = [0, 0], sizes = [16, 32], strides = [1, 1]} : vector<16x128xf32> to vector<16x32xf32>
    %148 = arith.negf %147 : vector<16x32xf32>
    %149 = math.exp %148 : vector<16x32xf32>
    %cst_81 = arith.constant 1.000000e+00 : f32
    %150 = vector.broadcast %cst_81 : f32 to vector<16x32xf32>
    %151 = arith.addf %150, %149 : vector<16x32xf32>
    %152 = arith.divf %150, %151 : vector<16x32xf32>
    %153 = vector.extract_strided_slice %146 {offsets = [0, 32], sizes = [16, 32], strides = [1, 1]} : vector<16x128xf32> to vector<16x32xf32>
    %154 = arith.negf %153 : vector<16x32xf32>
    %155 = math.exp %154 : vector<16x32xf32>
    %cst_82 = arith.constant 1.000000e+00 : f32
    %156 = vector.broadcast %cst_82 : f32 to vector<16x32xf32>
    %157 = arith.addf %156, %155 : vector<16x32xf32>
    %158 = arith.divf %156, %157 : vector<16x32xf32>
    %159 = vector.extract_strided_slice %146 {offsets = [0, 64], sizes = [16, 32], strides = [1, 1]} : vector<16x128xf32> to vector<16x32xf32>
    %160 = math.tanh %159 : vector<16x32xf32>
    %161 = vector.extract_strided_slice %146 {offsets = [0, 96], sizes = [16, 32], strides = [1, 1]} : vector<16x128xf32> to vector<16x32xf32>
    %162 = arith.negf %161 : vector<16x32xf32>
    %163 = math.exp %162 : vector<16x32xf32>
    %cst_83 = arith.constant 1.000000e+00 : f32
    %164 = vector.broadcast %cst_83 : f32 to vector<16x32xf32>
    %165 = arith.addf %164, %163 : vector<16x32xf32>
    %166 = arith.divf %164, %165 : vector<16x32xf32>
    %167 = arith.mulf %158, %142 : vector<16x32xf32>
    %168 = arith.mulf %152, %160 : vector<16x32xf32>
    %169 = arith.addf %167, %168 : vector<16x32xf32>
    %170 = math.tanh %169 : vector<16x32xf32>
    %171 = arith.mulf %166, %170 : vector<16x32xf32>
    %172 = arith.truncf %171 : vector<16x32xf32> to vector<16x32xbf16>
    %c3_84 = arith.constant 3 : index
    %c0_85 = arith.constant 0 : index
    %c0_86 = arith.constant 0 : index
    %173 = vector.load %arg5[%c3_84, %c0_85, %c0_86] : memref<8x16x32xbf16, #tpu.memory_space<vmem>>, vector<1x16x32xbf16>
    %174 = vector.shape_cast %173 : vector<1x16x32xbf16> to vector<16x32xbf16>
    %175 = vector.shape_cast %172 : vector<16x32xbf16> to vector<1x16x32xbf16>
    tpu.vector_store %arg5[%c3_84, %c0_85, %c0_86], %175 {strides = array<i32>} : memref<8x16x32xbf16, #tpu.memory_space<vmem>>, vector<1x16x32xbf16>,
    %c3_i32 = arith.constant 3 : i32
    %176 = arith.addi %3, %c3_i32 : i32
    %c7_i32_87 = arith.constant 7 : i32
    %177 = arith.cmpi slt, %176, %c7_i32_87 : i32
    %c0_88 = arith.constant 0 : index
    %c0_89 = arith.constant 0 : index
    %178 = vector.load %arg8[%c0_88, %c0_89] : memref<16x32xf32, #tpu.memory_space<vmem>>, vector<16x32xf32>
    %179 = arith.select %177, %171, %178 : vector<16x32xf32>
    %c0_90 = arith.constant 0 : index
    %c0_91 = arith.constant 0 : index
    %180 = vector.load %arg8[%c0_90, %c0_91] : memref<16x32xf32, #tpu.memory_space<vmem>>, vector<16x32xf32>
    tpu.vector_store %arg8[%c0_90, %c0_91], %179 {strides = array<i32>} : memref<16x32xf32, #tpu.memory_space<vmem>>, vector<16x32xf32>,
    %c0_92 = arith.constant 0 : index
    %c0_93 = arith.constant 0 : index
    %181 = vector.load %arg9[%c0_92, %c0_93] : memref<16x32xf32, #tpu.memory_space<vmem>>, vector<16x32xf32>
    %182 = arith.select %177, %169, %181 : vector<16x32xf32>
    %c0_94 = arith.constant 0 : index
    %c0_95 = arith.constant 0 : index
    %183 = vector.load %arg9[%c0_94, %c0_95] : memref<16x32xf32, #tpu.memory_space<vmem>>, vector<16x32xf32>
    tpu.vector_store %arg9[%c0_94, %c0_95], %182 {strides = array<i32>} : memref<16x32xf32, #tpu.memory_space<vmem>>, vector<16x32xf32>,
    %c4 = arith.constant 4 : index
    %c0_96 = arith.constant 0 : index
    %c0_97 = arith.constant 0 : index
    %184 = vector.load %arg1[%c4, %c0_96, %c0_97] : memref<8x16x128xf32, #tpu.memory_space<vmem>>, vector<1x16x128xf32>
    %185 = vector.shape_cast %184 : vector<1x16x128xf32> to vector<16x128xf32>
    %c0_98 = arith.constant 0 : index
    %c0_99 = arith.constant 0 : index
    %186 = vector.load %arg8[%c0_98, %c0_99] : memref<16x32xf32, #tpu.memory_space<vmem>>, vector<16x32xf32>
    %c0_100 = arith.constant 0 : index
    %c0_101 = arith.constant 0 : index
    %187 = vector.load %arg9[%c0_100, %c0_101] : memref<16x32xf32, #tpu.memory_space<vmem>>, vector<16x32xf32>
    %c0_102 = arith.constant 0 : index
    %c0_103 = arith.constant 0 : index
    %188 = vector.load %arg4[%c0_102, %c0_103] : memref<32x128xbf16, #tpu.memory_space<vmem>>, vector<32x128xbf16>
    %189 = arith.truncf %186 : vector<16x32xf32> to vector<16x32xbf16>
    %cst_104 = arith.constant dense<0.000000e+00> : vector<16x128xf32>
    %190 = tpu.matmul %189, %188, %cst_104 {dimension_numbers = #tpu.dot_dimension_numbers<[1], [0], [0], [1], [0, 0, 1, 1], [], []>} : vector<16x32xbf16>, vector<32x128xbf16>, vector<16x128xf32> -> vector<16x128xf32>
    %191 = arith.addf %185, %190 : vector<16x128xf32>
    %192 = vector.extract_strided_slice %191 {offsets = [0, 0], sizes = [16, 32], strides = [1, 1]} : vector<16x128xf32> to vector<16x32xf32>
    %193 = arith.negf %192 : vector<16x32xf32>
    %194 = math.exp %193 : vector<16x32xf32>
    %cst_105 = arith.constant 1.000000e+00 : f32
    %195 = vector.broadcast %cst_105 : f32 to vector<16x32xf32>
    %196 = arith.addf %195, %194 : vector<16x32xf32>
    %197 = arith.divf %195, %196 : vector<16x32xf32>
    %198 = vector.extract_strided_slice %191 {offsets = [0, 32], sizes = [16, 32], strides = [1, 1]} : vector<16x128xf32> to vector<16x32xf32>
    %199 = arith.negf %198 : vector<16x32xf32>
    %200 = math.exp %199 : vector<16x32xf32>
    %cst_106 = arith.constant 1.000000e+00 : f32
    %201 = vector.broadcast %cst_106 : f32 to vector<16x32xf32>
    %202 = arith.addf %201, %200 : vector<16x32xf32>
    %203 = arith.divf %201, %202 : vector<16x32xf32>
    %204 = vector.extract_strided_slice %191 {offsets = [0, 64], sizes = [16, 32], strides = [1, 1]} : vector<16x128xf32> to vector<16x32xf32>
    %205 = math.tanh %204 : vector<16x32xf32>
    %206 = vector.extract_strided_slice %191 {offsets = [0, 96], sizes = [16, 32], strides = [1, 1]} : vector<16x128xf32> to vector<16x32xf32>
    %207 = arith.negf %206 : vector<16x32xf32>
    %208 = math.exp %207 : vector<16x32xf32>
    %cst_107 = arith.constant 1.000000e+00 : f32
    %209 = vector.broadcast %cst_107 : f32 to vector<16x32xf32>
    %210 = arith.addf %209, %208 : vector<16x32xf32>
    %211 = arith.divf %209, %210 : vector<16x32xf32>
    %212 = arith.mulf %203, %187 : vector<16x32xf32>
    %213 = arith.mulf %197, %205 : vector<16x32xf32>
    %214 = arith.addf %212, %213 : vector<16x32xf32>
    %215 = math.tanh %214 : vector<16x32xf32>
    %216 = arith.mulf %211, %215 : vector<16x32xf32>
    %217 = arith.truncf %216 : vector<16x32xf32> to vector<16x32xbf16>
    %c4_108 = arith.constant 4 : index
    %c0_109 = arith.constant 0 : index
    %c0_110 = arith.constant 0 : index
    %218 = vector.load %arg5[%c4_108, %c0_109, %c0_110] : memref<8x16x32xbf16, #tpu.memory_space<vmem>>, vector<1x16x32xbf16>
    %219 = vector.shape_cast %218 : vector<1x16x32xbf16> to vector<16x32xbf16>
    %220 = vector.shape_cast %217 : vector<16x32xbf16> to vector<1x16x32xbf16>
    tpu.vector_store %arg5[%c4_108, %c0_109, %c0_110], %220 {strides = array<i32>} : memref<8x16x32xbf16, #tpu.memory_space<vmem>>, vector<1x16x32xbf16>,
    %c4_i32 = arith.constant 4 : i32
    %221 = arith.addi %3, %c4_i32 : i32
    %c7_i32_111 = arith.constant 7 : i32
    %222 = arith.cmpi slt, %221, %c7_i32_111 : i32
    %c0_112 = arith.constant 0 : index
    %c0_113 = arith.constant 0 : index
    %223 = vector.load %arg8[%c0_112, %c0_113] : memref<16x32xf32, #tpu.memory_space<vmem>>, vector<16x32xf32>
    %224 = arith.select %222, %216, %223 : vector<16x32xf32>
    %c0_114 = arith.constant 0 : index
    %c0_115 = arith.constant 0 : index
    %225 = vector.load %arg8[%c0_114, %c0_115] : memref<16x32xf32, #tpu.memory_space<vmem>>, vector<16x32xf32>
    tpu.vector_store %arg8[%c0_114, %c0_115], %224 {strides = array<i32>} : memref<16x32xf32, #tpu.memory_space<vmem>>, vector<16x32xf32>,
    %c0_116 = arith.constant 0 : index
    %c0_117 = arith.constant 0 : index
    %226 = vector.load %arg9[%c0_116, %c0_117] : memref<16x32xf32, #tpu.memory_space<vmem>>, vector<16x32xf32>
    %227 = arith.select %222, %214, %226 : vector<16x32xf32>
    %c0_118 = arith.constant 0 : index
    %c0_119 = arith.constant 0 : index
    %228 = vector.load %arg9[%c0_118, %c0_119] : memref<16x32xf32, #tpu.memory_space<vmem>>, vector<16x32xf32>
    tpu.vector_store %arg9[%c0_118, %c0_119], %227 {strides = array<i32>} : memref<16x32xf32, #tpu.memory_space<vmem>>, vector<16x32xf32>,
    %c5 = arith.constant 5 : index
    %c0_120 = arith.constant 0 : index
    %c0_121 = arith.constant 0 : index
    %229 = vector.load %arg1[%c5, %c0_120, %c0_121] : memref<8x16x128xf32, #tpu.memory_space<vmem>>, vector<1x16x128xf32>
    %230 = vector.shape_cast %229 : vector<1x16x128xf32> to vector<16x128xf32>
    %c0_122 = arith.constant 0 : index
    %c0_123 = arith.constant 0 : index
    %231 = vector.load %arg8[%c0_122, %c0_123] : memref<16x32xf32, #tpu.memory_space<vmem>>, vector<16x32xf32>
    %c0_124 = arith.constant 0 : index
    %c0_125 = arith.constant 0 : index
    %232 = vector.load %arg9[%c0_124, %c0_125] : memref<16x32xf32, #tpu.memory_space<vmem>>, vector<16x32xf32>
    %c0_126 = arith.constant 0 : index
    %c0_127 = arith.constant 0 : index
    %233 = vector.load %arg4[%c0_126, %c0_127] : memref<32x128xbf16, #tpu.memory_space<vmem>>, vector<32x128xbf16>
    %234 = arith.truncf %231 : vector<16x32xf32> to vector<16x32xbf16>
    %cst_128 = arith.constant dense<0.000000e+00> : vector<16x128xf32>
    %235 = tpu.matmul %234, %233, %cst_128 {dimension_numbers = #tpu.dot_dimension_numbers<[1], [0], [0], [1], [0, 0, 1, 1], [], []>} : vector<16x32xbf16>, vector<32x128xbf16>, vector<16x128xf32> -> vector<16x128xf32>
    %236 = arith.addf %230, %235 : vector<16x128xf32>
    %237 = vector.extract_strided_slice %236 {offsets = [0, 0], sizes = [16, 32], strides = [1, 1]} : vector<16x128xf32> to vector<16x32xf32>
    %238 = arith.negf %237 : vector<16x32xf32>
    %239 = math.exp %238 : vector<16x32xf32>
    %cst_129 = arith.constant 1.000000e+00 : f32
    %240 = vector.broadcast %cst_129 : f32 to vector<16x32xf32>
    %241 = arith.addf %240, %239 : vector<16x32xf32>
    %242 = arith.divf %240, %241 : vector<16x32xf32>
    %243 = vector.extract_strided_slice %236 {offsets = [0, 32], sizes = [16, 32], strides = [1, 1]} : vector<16x128xf32> to vector<16x32xf32>
    %244 = arith.negf %243 : vector<16x32xf32>
    %245 = math.exp %244 : vector<16x32xf32>
    %cst_130 = arith.constant 1.000000e+00 : f32
    %246 = vector.broadcast %cst_130 : f32 to vector<16x32xf32>
    %247 = arith.addf %246, %245 : vector<16x32xf32>
    %248 = arith.divf %246, %247 : vector<16x32xf32>
    %249 = vector.extract_strided_slice %236 {offsets = [0, 64], sizes = [16, 32], strides = [1, 1]} : vector<16x128xf32> to vector<16x32xf32>
    %250 = math.tanh %249 : vector<16x32xf32>
    %251 = vector.extract_strided_slice %236 {offsets = [0, 96], sizes = [16, 32], strides = [1, 1]} : vector<16x128xf32> to vector<16x32xf32>
    %252 = arith.negf %251 : vector<16x32xf32>
    %253 = math.exp %252 : vector<16x32xf32>
    %cst_131 = arith.constant 1.000000e+00 : f32
    %254 = vector.broadcast %cst_131 : f32 to vector<16x32xf32>
    %255 = arith.addf %254, %253 : vector<16x32xf32>
    %256 = arith.divf %254, %255 : vector<16x32xf32>
    %257 = arith.mulf %248, %232 : vector<16x32xf32>
    %258 = arith.mulf %242, %250 : vector<16x32xf32>
    %259 = arith.addf %257, %258 : vector<16x32xf32>
    %260 = math.tanh %259 : vector<16x32xf32>
    %261 = arith.mulf %256, %260 : vector<16x32xf32>
    %262 = arith.truncf %261 : vector<16x32xf32> to vector<16x32xbf16>
    %c5_132 = arith.constant 5 : index
    %c0_133 = arith.constant 0 : index
    %c0_134 = arith.constant 0 : index
    %263 = vector.load %arg5[%c5_132, %c0_133, %c0_134] : memref<8x16x32xbf16, #tpu.memory_space<vmem>>, vector<1x16x32xbf16>
    %264 = vector.shape_cast %263 : vector<1x16x32xbf16> to vector<16x32xbf16>
    %265 = vector.shape_cast %262 : vector<16x32xbf16> to vector<1x16x32xbf16>
    tpu.vector_store %arg5[%c5_132, %c0_133, %c0_134], %265 {strides = array<i32>} : memref<8x16x32xbf16, #tpu.memory_space<vmem>>, vector<1x16x32xbf16>,
    %c5_i32 = arith.constant 5 : i32
    %266 = arith.addi %3, %c5_i32 : i32
    %c7_i32_135 = arith.constant 7 : i32
    %267 = arith.cmpi slt, %266, %c7_i32_135 : i32
    %c0_136 = arith.constant 0 : index
    %c0_137 = arith.constant 0 : index
    %268 = vector.load %arg8[%c0_136, %c0_137] : memref<16x32xf32, #tpu.memory_space<vmem>>, vector<16x32xf32>
    %269 = arith.select %267, %261, %268 : vector<16x32xf32>
    %c0_138 = arith.constant 0 : index
    %c0_139 = arith.constant 0 : index
    %270 = vector.load %arg8[%c0_138, %c0_139] : memref<16x32xf32, #tpu.memory_space<vmem>>, vector<16x32xf32>
    tpu.vector_store %arg8[%c0_138, %c0_139], %269 {strides = array<i32>} : memref<16x32xf32, #tpu.memory_space<vmem>>, vector<16x32xf32>,
    %c0_140 = arith.constant 0 : index
    %c0_141 = arith.constant 0 : index
    %271 = vector.load %arg9[%c0_140, %c0_141] : memref<16x32xf32, #tpu.memory_space<vmem>>, vector<16x32xf32>
    %272 = arith.select %267, %259, %271 : vector<16x32xf32>
    %c0_142 = arith.constant 0 : index
    %c0_143 = arith.constant 0 : index
    %273 = vector.load %arg9[%c0_142, %c0_143] : memref<16x32xf32, #tpu.memory_space<vmem>>, vector<16x32xf32>
    tpu.vector_store %arg9[%c0_142, %c0_143], %272 {strides = array<i32>} : memref<16x32xf32, #tpu.memory_space<vmem>>, vector<16x32xf32>,
    %c6 = arith.constant 6 : index
    %c0_144 = arith.constant 0 : index
    %c0_145 = arith.constant 0 : index
    %274 = vector.load %arg1[%c6, %c0_144, %c0_145] : memref<8x16x128xf32, #tpu.memory_space<vmem>>, vector<1x16x128xf32>
    %275 = vector.shape_cast %274 : vector<1x16x128xf32> to vector<16x128xf32>
    %c0_146 = arith.constant 0 : index
    %c0_147 = arith.constant 0 : index
    %276 = vector.load %arg8[%c0_146, %c0_147] : memref<16x32xf32, #tpu.memory_space<vmem>>, vector<16x32xf32>
    %c0_148 = arith.constant 0 : index
    %c0_149 = arith.constant 0 : index
    %277 = vector.load %arg9[%c0_148, %c0_149] : memref<16x32xf32, #tpu.memory_space<vmem>>, vector<16x32xf32>
    %c0_150 = arith.constant 0 : index
    %c0_151 = arith.constant 0 : index
    %278 = vector.load %arg4[%c0_150, %c0_151] : memref<32x128xbf16, #tpu.memory_space<vmem>>, vector<32x128xbf16>
    %279 = arith.truncf %276 : vector<16x32xf32> to vector<16x32xbf16>
    %cst_152 = arith.constant dense<0.000000e+00> : vector<16x128xf32>
    %280 = tpu.matmul %279, %278, %cst_152 {dimension_numbers = #tpu.dot_dimension_numbers<[1], [0], [0], [1], [0, 0, 1, 1], [], []>} : vector<16x32xbf16>, vector<32x128xbf16>, vector<16x128xf32> -> vector<16x128xf32>
    %281 = arith.addf %275, %280 : vector<16x128xf32>
    %282 = vector.extract_strided_slice %281 {offsets = [0, 0], sizes = [16, 32], strides = [1, 1]} : vector<16x128xf32> to vector<16x32xf32>
    %283 = arith.negf %282 : vector<16x32xf32>
    %284 = math.exp %283 : vector<16x32xf32>
    %cst_153 = arith.constant 1.000000e+00 : f32
    %285 = vector.broadcast %cst_153 : f32 to vector<16x32xf32>
    %286 = arith.addf %285, %284 : vector<16x32xf32>
    %287 = arith.divf %285, %286 : vector<16x32xf32>
    %288 = vector.extract_strided_slice %281 {offsets = [0, 32], sizes = [16, 32], strides = [1, 1]} : vector<16x128xf32> to vector<16x32xf32>
    %289 = arith.negf %288 : vector<16x32xf32>
    %290 = math.exp %289 : vector<16x32xf32>
    %cst_154 = arith.constant 1.000000e+00 : f32
    %291 = vector.broadcast %cst_154 : f32 to vector<16x32xf32>
    %292 = arith.addf %291, %290 : vector<16x32xf32>
    %293 = arith.divf %291, %292 : vector<16x32xf32>
    %294 = vector.extract_strided_slice %281 {offsets = [0, 64], sizes = [16, 32], strides = [1, 1]} : vector<16x128xf32> to vector<16x32xf32>
    %295 = math.tanh %294 : vector<16x32xf32>
    %296 = vector.extract_strided_slice %281 {offsets = [0, 96], sizes = [16, 32], strides = [1, 1]} : vector<16x128xf32> to vector<16x32xf32>
    %297 = arith.negf %296 : vector<16x32xf32>
    %298 = math.exp %297 : vector<16x32xf32>
    %cst_155 = arith.constant 1.000000e+00 : f32
    %299 = vector.broadcast %cst_155 : f32 to vector<16x32xf32>
    %300 = arith.addf %299, %298 : vector<16x32xf32>
    %301 = arith.divf %299, %300 : vector<16x32xf32>
    %302 = arith.mulf %293, %277 : vector<16x32xf32>
    %303 = arith.mulf %287, %295 : vector<16x32xf32>
    %304 = arith.addf %302, %303 : vector<16x32xf32>
    %305 = math.tanh %304 : vector<16x32xf32>
    %306 = arith.mulf %301, %305 : vector<16x32xf32>
    %307 = arith.truncf %306 : vector<16x32xf32> to vector<16x32xbf16>
    %c6_156 = arith.constant 6 : index
    %c0_157 = arith.constant 0 : index
    %c0_158 = arith.constant 0 : index
    %308 = vector.load %arg5[%c6_156, %c0_157, %c0_158] : memref<8x16x32xbf16, #tpu.memory_space<vmem>>, vector<1x16x32xbf16>
    %309 = vector.shape_cast %308 : vector<1x16x32xbf16> to vector<16x32xbf16>
    %310 = vector.shape_cast %307 : vector<16x32xbf16> to vector<1x16x32xbf16>
    tpu.vector_store %arg5[%c6_156, %c0_157, %c0_158], %310 {strides = array<i32>} : memref<8x16x32xbf16, #tpu.memory_space<vmem>>, vector<1x16x32xbf16>,
    %c6_i32 = arith.constant 6 : i32
    %311 = arith.addi %3, %c6_i32 : i32
    %c7_i32_159 = arith.constant 7 : i32
    %312 = arith.cmpi slt, %311, %c7_i32_159 : i32
    %c0_160 = arith.constant 0 : index
    %c0_161 = arith.constant 0 : index
    %313 = vector.load %arg8[%c0_160, %c0_161] : memref<16x32xf32, #tpu.memory_space<vmem>>, vector<16x32xf32>
    %314 = arith.select %312, %306, %313 : vector<16x32xf32>
    %c0_162 = arith.constant 0 : index
    %c0_163 = arith.constant 0 : index
    %315 = vector.load %arg8[%c0_162, %c0_163] : memref<16x32xf32, #tpu.memory_space<vmem>>, vector<16x32xf32>
    tpu.vector_store %arg8[%c0_162, %c0_163], %314 {strides = array<i32>} : memref<16x32xf32, #tpu.memory_space<vmem>>, vector<16x32xf32>,
    %c0_164 = arith.constant 0 : index
    %c0_165 = arith.constant 0 : index
    %316 = vector.load %arg9[%c0_164, %c0_165] : memref<16x32xf32, #tpu.memory_space<vmem>>, vector<16x32xf32>
    %317 = arith.select %312, %304, %316 : vector<16x32xf32>
    %c0_166 = arith.constant 0 : index
    %c0_167 = arith.constant 0 : index
    %318 = vector.load %arg9[%c0_166, %c0_167] : memref<16x32xf32, #tpu.memory_space<vmem>>, vector<16x32xf32>
    tpu.vector_store %arg9[%c0_166, %c0_167], %317 {strides = array<i32>} : memref<16x32xf32, #tpu.memory_space<vmem>>, vector<16x32xf32>,
    %c7 = arith.constant 7 : index
    %c0_168 = arith.constant 0 : index
    %c0_169 = arith.constant 0 : index
    %319 = vector.load %arg1[%c7, %c0_168, %c0_169] : memref<8x16x128xf32, #tpu.memory_space<vmem>>, vector<1x16x128xf32>
    %320 = vector.shape_cast %319 : vector<1x16x128xf32> to vector<16x128xf32>
    %c0_170 = arith.constant 0 : index
    %c0_171 = arith.constant 0 : index
    %321 = vector.load %arg8[%c0_170, %c0_171] : memref<16x32xf32, #tpu.memory_space<vmem>>, vector<16x32xf32>
    %c0_172 = arith.constant 0 : index
    %c0_173 = arith.constant 0 : index
    %322 = vector.load %arg9[%c0_172, %c0_173] : memref<16x32xf32, #tpu.memory_space<vmem>>, vector<16x32xf32>
    %c0_174 = arith.constant 0 : index
    %c0_175 = arith.constant 0 : index
    %323 = vector.load %arg4[%c0_174, %c0_175] : memref<32x128xbf16, #tpu.memory_space<vmem>>, vector<32x128xbf16>
    %324 = arith.truncf %321 : vector<16x32xf32> to vector<16x32xbf16>
    %cst_176 = arith.constant dense<0.000000e+00> : vector<16x128xf32>
    %325 = tpu.matmul %324, %323, %cst_176 {dimension_numbers = #tpu.dot_dimension_numbers<[1], [0], [0], [1], [0, 0, 1, 1], [], []>} : vector<16x32xbf16>, vector<32x128xbf16>, vector<16x128xf32> -> vector<16x128xf32>
    %326 = arith.addf %320, %325 : vector<16x128xf32>
    %327 = vector.extract_strided_slice %326 {offsets = [0, 0], sizes = [16, 32], strides = [1, 1]} : vector<16x128xf32> to vector<16x32xf32>
    %328 = arith.negf %327 : vector<16x32xf32>
    %329 = math.exp %328 : vector<16x32xf32>
    %cst_177 = arith.constant 1.000000e+00 : f32
    %330 = vector.broadcast %cst_177 : f32 to vector<16x32xf32>
    %331 = arith.addf %330, %329 : vector<16x32xf32>
    %332 = arith.divf %330, %331 : vector<16x32xf32>
    %333 = vector.extract_strided_slice %326 {offsets = [0, 32], sizes = [16, 32], strides = [1, 1]} : vector<16x128xf32> to vector<16x32xf32>
    %334 = arith.negf %333 : vector<16x32xf32>
    %335 = math.exp %334 : vector<16x32xf32>
    %cst_178 = arith.constant 1.000000e+00 : f32
    %336 = vector.broadcast %cst_178 : f32 to vector<16x32xf32>
    %337 = arith.addf %336, %335 : vector<16x32xf32>
    %338 = arith.divf %336, %337 : vector<16x32xf32>
    %339 = vector.extract_strided_slice %326 {offsets = [0, 64], sizes = [16, 32], strides = [1, 1]} : vector<16x128xf32> to vector<16x32xf32>
    %340 = math.tanh %339 : vector<16x32xf32>
    %341 = vector.extract_strided_slice %326 {offsets = [0, 96], sizes = [16, 32], strides = [1, 1]} : vector<16x128xf32> to vector<16x32xf32>
    %342 = arith.negf %341 : vector<16x32xf32>
    %343 = math.exp %342 : vector<16x32xf32>
    %cst_179 = arith.constant 1.000000e+00 : f32
    %344 = vector.broadcast %cst_179 : f32 to vector<16x32xf32>
    %345 = arith.addf %344, %343 : vector<16x32xf32>
    %346 = arith.divf %344, %345 : vector<16x32xf32>
    %347 = arith.mulf %338, %322 : vector<16x32xf32>
    %348 = arith.mulf %332, %340 : vector<16x32xf32>
    %349 = arith.addf %347, %348 : vector<16x32xf32>
    %350 = math.tanh %349 : vector<16x32xf32>
    %351 = arith.mulf %346, %350 : vector<16x32xf32>
    %352 = arith.truncf %351 : vector<16x32xf32> to vector<16x32xbf16>
    %c7_180 = arith.constant 7 : index
    %c0_181 = arith.constant 0 : index
    %c0_182 = arith.constant 0 : index
    %353 = vector.load %arg5[%c7_180, %c0_181, %c0_182] : memref<8x16x32xbf16, #tpu.memory_space<vmem>>, vector<1x16x32xbf16>
    %354 = vector.shape_cast %353 : vector<1x16x32xbf16> to vector<16x32xbf16>
    %355 = vector.shape_cast %352 : vector<16x32xbf16> to vector<1x16x32xbf16>
    tpu.vector_store %arg5[%c7_180, %c0_181, %c0_182], %355 {strides = array<i32>} : memref<8x16x32xbf16, #tpu.memory_space<vmem>>, vector<1x16x32xbf16>,
    %c7_i32_183 = arith.constant 7 : i32
    %356 = arith.addi %3, %c7_i32_183 : i32
    %c7_i32_184 = arith.constant 7 : i32
    %357 = arith.cmpi slt, %356, %c7_i32_184 : i32
    %c0_185 = arith.constant 0 : index
    %c0_186 = arith.constant 0 : index
    %358 = vector.load %arg8[%c0_185, %c0_186] : memref<16x32xf32, #tpu.memory_space<vmem>>, vector<16x32xf32>
    %359 = arith.select %357, %351, %358 : vector<16x32xf32>
    %c0_187 = arith.constant 0 : index
    %c0_188 = arith.constant 0 : index
    %360 = vector.load %arg8[%c0_187, %c0_188] : memref<16x32xf32, #tpu.memory_space<vmem>>, vector<16x32xf32>
    tpu.vector_store %arg8[%c0_187, %c0_188], %359 {strides = array<i32>} : memref<16x32xf32, #tpu.memory_space<vmem>>, vector<16x32xf32>,
    %c0_189 = arith.constant 0 : index
    %c0_190 = arith.constant 0 : index
    %361 = vector.load %arg9[%c0_189, %c0_190] : memref<16x32xf32, #tpu.memory_space<vmem>>, vector<16x32xf32>
    %362 = arith.select %357, %349, %361 : vector<16x32xf32>
    %c0_191 = arith.constant 0 : index
    %c0_192 = arith.constant 0 : index
    %363 = vector.load %arg9[%c0_191, %c0_192] : memref<16x32xf32, #tpu.memory_space<vmem>>, vector<16x32xf32>
    tpu.vector_store %arg9[%c0_191, %c0_192], %362 {strides = array<i32>} : memref<16x32xf32, #tpu.memory_space<vmem>>, vector<16x32xf32>,
    %c0_i32_193 = arith.constant 0 : i32
    %364 = arith.cmpi eq, %arg0, %c0_i32_193 : i32
    %365 = arith.extui %364 : i1 to i32
    %c0_i32_194 = arith.constant 0 : i32
    %366 = arith.cmpi ne, %365, %c0_i32_194 : i32
    scf.if %366 {
      %c0_195 = arith.constant 0 : index
      %c0_196 = arith.constant 0 : index
      %367 = vector.load %arg8[%c0_195, %c0_196] : memref<16x32xf32, #tpu.memory_space<vmem>>, vector<16x32xf32>
      %c0_197 = arith.constant 0 : index
      %c0_198 = arith.constant 0 : index
      %368 = vector.load %arg6[%c0_197, %c0_198] : memref<16x32xf32, #tpu.memory_space<vmem>>, vector<16x32xf32>
      tpu.vector_store %arg6[%c0_197, %c0_198], %367 {strides = array<i32>} : memref<16x32xf32, #tpu.memory_space<vmem>>, vector<16x32xf32>,
      %c0_199 = arith.constant 0 : index
      %c0_200 = arith.constant 0 : index
      %369 = vector.load %arg9[%c0_199, %c0_200] : memref<16x32xf32, #tpu.memory_space<vmem>>, vector<16x32xf32>
      %c0_201 = arith.constant 0 : index
      %c0_202 = arith.constant 0 : index
      %370 = vector.load %arg7[%c0_201, %c0_202] : memref<16x32xf32, #tpu.memory_space<vmem>>, vector<16x32xf32>
      tpu.vector_store %arg7[%c0_201, %c0_202], %369 {strides = array<i32>} : memref<16x32xf32, #tpu.memory_space<vmem>>, vector<16x32xf32>,
    } else {
    }
    return
  }
  func.func @transform_0(%arg0: i32) -> (i32, i32, i32) {
    %c0_i32 = arith.constant 0 : i32
    %c0_i32_0 = arith.constant 0 : i32
    %c0_i32_1 = arith.constant 0 : i32
    return %arg0, %c0_i32, %c0_i32_0 : i32, i32, i32
  }
  func.func @transform_1(%arg0: i32) -> (i32, i32) {
    %c0_i32 = arith.constant 0 : i32
    %c0_i32_0 = arith.constant 0 : i32
    %c0_i32_1 = arith.constant 0 : i32
    return %c0_i32, %c0_i32_0 : i32, i32
  }
  func.func @transform_2(%arg0: i32) -> (i32, i32) {
    %c0_i32 = arith.constant 0 : i32
    %c0_i32_0 = arith.constant 0 : i32
    %c0_i32_1 = arith.constant 0 : i32
    return %c0_i32, %c0_i32_0 : i32, i32
  }
  func.func @transform_3(%arg0: i32) -> (i32, i32) {
    %c0_i32 = arith.constant 0 : i32
    %c0_i32_0 = arith.constant 0 : i32
    %c0_i32_1 = arith.constant 0 : i32
    return %c0_i32, %c0_i32_0 : i32, i32
  }
  func.func @transform_4(%arg0: i32) -> (i32, i32, i32) {
    %c0_i32 = arith.constant 0 : i32
    %c0_i32_0 = arith.constant 0 : i32
    %c0_i32_1 = arith.constant 0 : i32
    return %arg0, %c0_i32, %c0_i32_0 : i32, i32, i32
  }
  func.func @transform_5(%arg0: i32) -> (i32, i32) {
    %c0_i32 = arith.constant 0 : i32
    %c0_i32_0 = arith.constant 0 : i32
    %c0_i32_1 = arith.constant 0 : i32
    return %c0_i32, %c0_i32_0 : i32, i32
  }
  func.func @transform_6(%arg0: i32) -> (i32, i32) {
    %c0_i32 = arith.constant 0 : i32
    %c0_i32_0 = arith.constant 0 : i32
    %c0_i32_1 = arith.constant 0 : i32
    return %c0_i32, %c0_i32_0 : i32, i32
  }
}

module attributes {stable_mosaic.version = 11 : i64} {
  func.func @_linear_kernel(%arg0: i32, %arg1: i32, %arg2: memref<128x32xbf16, #tpu.memory_space<vmem>>, %arg3: memref<32x128xbf16, #tpu.memory_space<vmem>>, %arg4: memref<1x128xf32, #tpu.memory_space<vmem>>, %arg5: memref<128x128xbf16, #tpu.memory_space<vmem>>) attributes {dimension_semantics = [#tpu.dimension_semantics<parallel>, #tpu.dimension_semantics<parallel>], iteration_bounds = array<i64: 1, 1>, scalar_prefetch = 0 : i64, scratch_operands = 0 : i64, tpu.core_type = #tpu.core_type<tc>, window_params = [{transform_indices = @transform_0, window_bounds = array<i64: 128, 32>}, {transform_indices = @transform_1, window_bounds = array<i64: 32, 128>}, {transform_indices = @transform_2, window_bounds = array<i64: 1, 128>}, {transform_indices = @transform_3, window_bounds = array<i64: 128, 128>}]} {
    %c0 = arith.constant 0 : index
    %c0_0 = arith.constant 0 : index
    %0 = vector.load %arg2[%c0, %c0_0] : memref<128x32xbf16, #tpu.memory_space<vmem>>, vector<128x32xbf16>
    %c0_1 = arith.constant 0 : index
    %c0_2 = arith.constant 0 : index
    %1 = vector.load %arg3[%c0_1, %c0_2] : memref<32x128xbf16, #tpu.memory_space<vmem>>, vector<32x128xbf16>
    %cst = arith.constant dense<0.000000e+00> : vector<128x128xf32>
    %2 = tpu.matmul %0, %1, %cst {dimension_numbers = #tpu.dot_dimension_numbers<[1], [0], [0], [1], [0, 0, 1, 1], [], []>} : vector<128x32xbf16>, vector<32x128xbf16>, vector<128x128xf32> -> vector<128x128xf32>
    %c0_3 = arith.constant 0 : index
    %c0_4 = arith.constant 0 : index
    %3 = vector.load %arg4[%c0_3, %c0_4] : memref<1x128xf32, #tpu.memory_space<vmem>>, vector<1x128xf32>
    %4 = vector.broadcast %3 : vector<1x128xf32> to vector<128x128xf32>
    %5 = arith.addf %2, %4 : vector<128x128xf32>
    %6 = arith.truncf %5 : vector<128x128xf32> to vector<128x128xbf16>
    %c0_5 = arith.constant 0 : index
    %c0_6 = arith.constant 0 : index
    %7 = vector.load %arg5[%c0_5, %c0_6] : memref<128x128xbf16, #tpu.memory_space<vmem>>, vector<128x128xbf16>
    tpu.vector_store %arg5[%c0_5, %c0_6], %6 {strides = array<i32>} : memref<128x128xbf16, #tpu.memory_space<vmem>>, vector<128x128xbf16>,
    return
  }
  func.func @transform_0(%arg0: i32, %arg1: i32) -> (i32, i32) {
    %c0_i32 = arith.constant 0 : i32
    %c0_i32_0 = arith.constant 0 : i32
    return %arg0, %c0_i32 : i32, i32
  }
  func.func @transform_1(%arg0: i32, %arg1: i32) -> (i32, i32) {
    %c0_i32 = arith.constant 0 : i32
    %c0_i32_0 = arith.constant 0 : i32
    return %c0_i32, %arg1 : i32, i32
  }
  func.func @transform_2(%arg0: i32, %arg1: i32) -> (i32, i32) {
    %c0_i32 = arith.constant 0 : i32
    %c0_i32_0 = arith.constant 0 : i32
    return %c0_i32, %arg1 : i32, i32
  }
  func.func @transform_3(%arg0: i32, %arg1: i32) -> (i32, i32) {
    %c0_i32 = arith.constant 0 : i32
    return %arg0, %arg1 : i32, i32
  }
}

</mosaic_0001>

<llo_original>
// kernel: seq2seq_forward.6
$region0: #{seq2seq_forward.6}
  #allocation0 [shape = 'u32[]', space=smem, size = 0x4, offset = 0x4, fixed_abs, tag = 'smem constant byte address 0x4 - core index']
  #allocation1 [shape = 'u32[144,128]{1,0:T(1,128)}', space=vmem, size = 0x12000, scoped, tag = 'internal scratch']
  %s0 = inlined_call_operand.vmem [shape: bf16[128,32], index: 0, kind: input, shape index: {}]
  %s1 = inlined_call_operand.vmem [shape: bf16[32,128], index: 1, kind: input, shape index: {}]
  %s2 = inlined_call_operand.vmem [shape: f32[1,128], index: 2, kind: input, shape index: {}]
  %s3 = inlined_call_operand.vmem [shape: f32[128,128], index: 3, kind: output, shape index: {}]
  %s4 = sld [smem:[#allocation0]]
  $region22: #{seq2seq_forward.6} parent=0
    _
  %s6 = ssub.s32 1, %s4
  %s7 = scalar_select 0, %s6, %s4
  // Predicated region
  $region2: #{seq2seq_forward.6} parent=0 // pred_check
    _
  $region3: #{seq2seq_forward.6} parent=0 // pred_check_branch
    %9 = sbr.rel (0) target = $region5
  $region4: #{seq2seq_forward.6} parent=0 // pred_region
    _
  $region5: #{seq2seq_forward.6} parent=0 // pred_fallthru
    _
  // Predicated region
  $region6: #{seq2seq_forward.6} parent=0 // pred_check
    _
  $region7: #{seq2seq_forward.6} parent=0 // pred_check_branch
    %11 = sbr.rel (0) target = $region9
  $region8: #{seq2seq_forward.6} parent=0 // pred_region
    _
  $region9: #{seq2seq_forward.6} parent=0 // pred_fallthru
    _
  // Predicated region
  $region10: #{seq2seq_forward.6} parent=0 // pred_check
    _
  $region11: #{seq2seq_forward.6} parent=0 // pred_check_branch
    %13 = sbr.rel (0) target = $region13
  $region12: #{seq2seq_forward.6} parent=0 // pred_region
    _
  $region13: #{seq2seq_forward.6} parent=0 // pred_fallthru
    _
  %v15 = vld [vmem:[%s0] sm:$0xf]
  %v16 = vld [vmem:[%s0 + $0x4] sm:$0xf]
  %v17 = vld [vmem:[%s0 + $0x8] sm:$0xf]
  %v18 = vld [vmem:[%s0 + $0xc] sm:$0xf]
  %v19 = vld [vmem:[%s0 + $0x10] sm:$0xf]
  %v20 = vld [vmem:[%s0 + $0x14] sm:$0xf]
  %v21 = vld [vmem:[%s0 + $0x18] sm:$0xf]
  %v22 = vld [vmem:[%s0 + $0x1c] sm:$0xf]
  %v23 = vld [vmem:[%s0 + $0x20] sm:$0xf]
  %v24 = vld [vmem:[%s0 + $0x24] sm:$0xf]
  %v25 = vld [vmem:[%s0 + $0x28] sm:$0xf]
  %v26 = vld [vmem:[%s0 + $0x2c] sm:$0xf]
  %v27 = vld [vmem:[%s0 + $0x30] sm:$0xf]
  %v28 = vld [vmem:[%s0 + $0x34] sm:$0xf]
  %v29 = vld [vmem:[%s0 + $0x38] sm:$0xf]
  %v30 = vld [vmem:[%s0 + $0x3c] sm:$0xf]
  %v31 = vld [vmem:[%s1] sm:$0xf]
  %v32 = vld [vmem:[%s1 + $0x4] sm:$0xf]
  %v33 = vld [vmem:[%s1 + $0x8] sm:$0xf]
  %v34 = vld [vmem:[%s1 + $0xc] sm:$0xf]
  %v35 = vld [vmem:[%s2] sm:$0x1]
  %v37 = vlaneseq
  %v38 = vshrl.u32 %v37, 7
  %v39 = vsub.s32 0, %v38
  %v40 = vrot.slane %v35, %v39
  %v58 = vunpack.c.l.b16 %v15
  %v59 = vunpack.c.l.b16 %v16
  %v60 = vunpack.c.l.b16 %v17
  %v61 = vunpack.c.l.b16 %v18
  %v62 = vunpack.c.l.b16 %v19
  %v63 = vunpack.c.l.b16 %v20
  %v64 = vunpack.c.l.b16 %v21
  %v65 = vunpack.c.l.b16 %v22
  %v66 = vunpack.c.l.b16 %v23
  %v67 = vunpack.c.l.b16 %v24
  %v68 = vunpack.c.l.b16 %v25
  %v69 = vunpack.c.l.b16 %v26
  %v70 = vunpack.c.l.b16 %v27
  %v71 = vunpack.c.l.b16 %v28
  %v72 = vunpack.c.l.b16 %v29
  %v73 = vunpack.c.l.b16 %v30
  %v74 = vpack.c.b16 %v59, %v58
  %v75 = vpack.c.b16 %v61, %v60
  %v76 = vpack.c.b16 %v63, %v62
  %v77 = vpack.c.b16 %v65, %v64
  %v78 = vpack.c.b16 %v67, %v66
  %v79 = vpack.c.b16 %v69, %v68
  %v80 = vpack.c.b16 %v71, %v70
  %v81 = vpack.c.b16 %v73, %v72
  %v86 = vunpack.c.l.b16 %v31
  %v87 = vunpack.c.l.b16 %v32
  %v88 = vunpack.c.l.b16 %v33
  %v89 = vunpack.c.l.b16 %v34
  %v90 = vpack.c.b16 %v87, %v86
  %v91 = vpack.c.b16 %v89, %v88
  %vm94 = vcmask 261120
  %v96 = vsel %vm94, %v74, 0
  %v99 = vsel %vm94, %v75, 0
  %v102 = vsel %vm94, %v76, 0
  %v105 = vsel %vm94, %v77, 0
  %v108 = vsel %vm94, %v78, 0
  %v111 = vsel %vm94, %v79, 0
  %v114 = vsel %vm94, %v80, 0
  %v117 = vsel %vm94, %v81, 0
  %119 = vmatprep.subr.bf16.mxu0 0
  %120 = vmatpush1.bf16.msra.mxu0 0
  %121 = vmatprep.subr.bf16.mxu0 0
  %122 = vmatpush1.bf16.msra.mxu0 0
  %123 = vmatprep.subr.bf16.mxu0 0
  %124 = vmatpush1.bf16.msra.mxu0 0
  %125 = vmatprep.subr.bf16.mxu0 0
  %126 = vmatpush1.bf16.msra.mxu0 0
  %127 = vmatprep.subr.bf16.mxu0 0
  %128 = vmatpush1.bf16.msra.mxu0 0
  %129 = vmatprep.subr.bf16.mxu0 0
  %130 = vmatpush1.bf16.msra.mxu0 0
  %131 = vmatprep.subr.bf16.mxu0 0
  %132 = vmatpush1.bf16.msra.mxu0 %v91
  %133 = vmatprep.subr.bf16.mxu0 0
  %134 = vmatpush1.bf16.msra.mxu0 %v90
  %135 = vmatprep.subr.bf16.mxu0 0
  %136 = vmatpush2.bf16.msra.mxu0 0
  %137 = vmatprep.subr.bf16.mxu0 0
  %138 = vmatpush2.bf16.msra.mxu0 0
  %139 = vmatprep.subr.bf16.mxu0 0
  %140 = vmatpush2.bf16.msra.mxu0 0
  %141 = vmatprep.subr.bf16.mxu0 0
  %142 = vmatpush2.bf16.msra.mxu0 0
  %143 = vmatprep.subr.bf16.mxu0 0
  %144 = vmatpush2.bf16.msra.mxu0 0
  %145 = vmatprep.subr.bf16.mxu0 0
  %146 = vmatpush2.bf16.msra.mxu0 0
  %147 = vmatprep.subr.bf16.mxu0 0
  %148 = vmatpush2.bf16.msra.mxu0 0
  %149 = vmatprep.subr.bf16.mxu0 0
  %150 = vmatpush2.bf16.msra.mxu0 0
  %151 = vmatprep.mubr.bf16.mxu0 0
  %152 = vmatmul.mubr.bf16.gmra.mxu0 %v96
  %v153 = vpop.f32.mrf.mxu0
  %v154 = vadd.f32 %v40, %v153
  %v155 = vpop.f32.mrf.mxu0
  %v156 = vpop.f32.mrf.mxu0
  %v157 = vadd.f32 %v40, %v156
  %v158 = vpop.f32.mrf.mxu0
  %159 = vmatprep.mubr.bf16.mxu0 0
  %160 = vmatmul.mubr.bf16.gmra.mxu0 %v99
  %v161 = vpop.f32.mrf.mxu0
  %v162 = vadd.f32 %v40, %v161
  %v163 = vpop.f32.mrf.mxu0
  %v164 = vpop.f32.mrf.mxu0
  %v165 = vadd.f32 %v40, %v164
  %v166 = vpop.f32.mrf.mxu0
  %167 = vmatprep.mubr.bf16.mxu0 0
  %168 = vmatmul.mubr.bf16.gmra.mxu0 %v102
  %v169 = vpop.f32.mrf.mxu0
  %v170 = vadd.f32 %v40, %v169
  %v171 = vpop.f32.mrf.mxu0
  %v172 = vpop.f32.mrf.mxu0
  %v173 = vadd.f32 %v40, %v172
  %v174 = vpop.f32.mrf.mxu0
  %175 = vmatprep.mubr.bf16.mxu0 0
  %176 = vmatmul.mubr.bf16.gmra.mxu0 %v105
  %v177 = vpop.f32.mrf.mxu0
  %v178 = vadd.f32 %v40, %v177
  %v179 = vpop.f32.mrf.mxu0
  %v180 = vpop.f32.mrf.mxu0
  %v181 = vadd.f32 %v40, %v180
  %v182 = vpop.f32.mrf.mxu0
  %183 = vmatprep.mubr.bf16.mxu0 0
  %184 = vmatmul.mubr.bf16.gmra.mxu0 %v108
  %v185 = vpop.f32.mrf.mxu0
  %v186 = vadd.f32 %v40, %v185
  %v187 = vpop.f32.mrf.mxu0
  %v188 = vpop.f32.mrf.mxu0
  %v189 = vadd.f32 %v40, %v188
  %v190 = vpop.f32.mrf.mxu0
  %191 = vmatprep.mubr.bf16.mxu0 0
  %192 = vmatmul.mubr.bf16.gmra.mxu0 %v111
  %v193 = vpop.f32.mrf.mxu0
  %v194 = vadd.f32 %v40, %v193
  %v195 = vpop.f32.mrf.mxu0
  %v196 = vpop.f32.mrf.mxu0
  %v197 = vadd.f32 %v40, %v196
  %v198 = vpop.f32.mrf.mxu0
  %199 = vmatprep.mubr.bf16.mxu0 0
  %200 = vmatmul.mubr.bf16.gmra.mxu0 %v114
  %v201 = vpop.f32.mrf.mxu0
  %v202 = vadd.f32 %v40, %v201
  %v203 = vpop.f32.mrf.mxu0
  %v204 = vpop.f32.mrf.mxu0
  %v205 = vadd.f32 %v40, %v204
  %v206 = vpop.f32.mrf.mxu0
  %207 = vmatprep.mubr.bf16.mxu0 0
  %208 = vmatmul.mubr.bf16.gmra.mxu0 %v117
  %v209 = vpop.f32.mrf.mxu0
  %v210 = vadd.f32 %v40, %v209
  %v211 = vpop.f32.mrf.mxu0
  %v212 = vpop.f32.mrf.mxu0
  %v213 = vadd.f32 %v40, %v212
  %v214 = vpop.f32.mrf.mxu0
  %215 = vdwg.mxu0
  %216 = vst [vmem:[%s3] sm:$0xff] %v154
  %217 = vst [vmem:[%s3 + $0x8] sm:$0xff] %v157
  %218 = vst [vmem:[%s3 + $0x10] sm:$0xff] %v162
  %219 = vst [vmem:[%s3 + $0x18] sm:$0xff] %v165
  %220 = vst [vmem:[%s3 + $0x20] sm:$0xff] %v170
  %221 = vst [vmem:[%s3 + $0x28] sm:$0xff] %v173
  %222 = vst [vmem:[%s3 + $0x30] sm:$0xff] %v178
  %223 = vst [vmem:[%s3 + $0x38] sm:$0xff] %v181
  %224 = vst [vmem:[%s3 + $0x40] sm:$0xff] %v186
  %225 = vst [vmem:[%s3 + $0x48] sm:$0xff] %v189
  %226 = vst [vmem:[%s3 + $0x50] sm:$0xff] %v194
  %227 = vst [vmem:[%s3 + $0x58] sm:$0xff] %v197
  %228 = vst [vmem:[%s3 + $0x60] sm:$0xff] %v202
  %229 = vst [vmem:[%s3 + $0x68] sm:$0xff] %v205
  %230 = vst [vmem:[%s3 + $0x70] sm:$0xff] %v210
  %231 = vst [vmem:[%s3 + $0x78] sm:$0xff] %v213
  // Predicated region
  $region14: #{seq2seq_forward.6} parent=0 // pred_check
    _
  $region15: #{seq2seq_forward.6} parent=0 // pred_check_branch
    %233 = sbr.rel (0) target = $region17
  $region16: #{seq2seq_forward.6} parent=0 // pred_region
    _
  $region17: #{seq2seq_forward.6} parent=0 // pred_fallthru
    _
  // Predicated region
  $region18: #{seq2seq_forward.6} parent=0 // pred_check
    _
  $region19: #{seq2seq_forward.6} parent=0 // pred_check_branch
    %235 = sbr.rel (0) target = $region21
  $region20: #{seq2seq_forward.6} parent=0 // pred_region
    _
  $region21: #{seq2seq_forward.6} parent=0 // pred_fallthru
    _

// kernel: seq2seq_forward.11
$region0: #{seq2seq_forward.11}
  #allocation0 [shape = 'u32[]', space=smem, size = 0x4, offset = 0x4, fixed_abs, tag = 'smem constant byte address 0x4 - core index']
  #allocation1 [shape = 'u32[144,128]{1,0:T(1,128)}', space=vmem, size = 0x12000, scoped, tag = 'internal scratch']
  %s0 = inlined_call_operand.vmem [shape: bf16[128,32], index: 0, kind: input, shape index: {}]
  %s1 = inlined_call_operand.vmem [shape: bf16[32,128], index: 1, kind: input, shape index: {}]
  %s2 = inlined_call_operand.vmem [shape: f32[1,128], index: 2, kind: input, shape index: {}]
  %s3 = inlined_call_operand.vmem [shape: bf16[128,128], index: 3, kind: output, shape index: {}]
  %s4 = sld [smem:[#allocation0]]
  $region22: #{seq2seq_forward.11} parent=0
    _
  %s6 = ssub.s32 1, %s4
  %s7 = scalar_select 0, %s6, %s4
  // Predicated region
  $region2: #{seq2seq_forward.11} parent=0 // pred_check
    _
  $region3: #{seq2seq_forward.11} parent=0 // pred_check_branch
    %9 = sbr.rel (0) target = $region5
  $region4: #{seq2seq_forward.11} parent=0 // pred_region
    _
  $region5: #{seq2seq_forward.11} parent=0 // pred_fallthru
    _
  // Predicated region
  $region6: #{seq2seq_forward.11} parent=0 // pred_check
    _
  $region7: #{seq2seq_forward.11} parent=0 // pred_check_branch
    %11 = sbr.rel (0) target = $region9
  $region8: #{seq2seq_forward.11} parent=0 // pred_region
    _
  $region9: #{seq2seq_forward.11} parent=0 // pred_fallthru
    _
  // Predicated region
  $region10: #{seq2seq_forward.11} parent=0 // pred_check
    _
  $region11: #{seq2seq_forward.11} parent=0 // pred_check_branch
    %13 = sbr.rel (0) target = $region13
  $region12: #{seq2seq_forward.11} parent=0 // pred_region
    _
  $region13: #{seq2seq_forward.11} parent=0 // pred_fallthru
    _
  %v15 = vld [vmem:[%s0] sm:$0xf]
  %v16 = vld [vmem:[%s0 + $0x4] sm:$0xf]
  %v17 = vld [vmem:[%s0 + $0x8] sm:$0xf]
  %v18 = vld [vmem:[%s0 + $0xc] sm:$0xf]
  %v19 = vld [vmem:[%s0 + $0x10] sm:$0xf]
  %v20 = vld [vmem:[%s0 + $0x14] sm:$0xf]
  %v21 = vld [vmem:[%s0 + $0x18] sm:$0xf]
  %v22 = vld [vmem:[%s0 + $0x1c] sm:$0xf]
  %v23 = vld [vmem:[%s0 + $0x20] sm:$0xf]
  %v24 = vld [vmem:[%s0 + $0x24] sm:$0xf]
  %v25 = vld [vmem:[%s0 + $0x28] sm:$0xf]
  %v26 = vld [vmem:[%s0 + $0x2c] sm:$0xf]
  %v27 = vld [vmem:[%s0 + $0x30] sm:$0xf]
  %v28 = vld [vmem:[%s0 + $0x34] sm:$0xf]
  %v29 = vld [vmem:[%s0 + $0x38] sm:$0xf]
  %v30 = vld [vmem:[%s0 + $0x3c] sm:$0xf]
  %v31 = vld [vmem:[%s1] sm:$0xf]
  %v32 = vld [vmem:[%s1 + $0x4] sm:$0xf]
  %v33 = vld [vmem:[%s1 + $0x8] sm:$0xf]
  %v34 = vld [vmem:[%s1 + $0xc] sm:$0xf]
  %v35 = vld [vmem:[%s2] sm:$0x1]
  %v37 = vlaneseq
  %v38 = vshrl.u32 %v37, 7
  %v39 = vsub.s32 0, %v38
  %v40 = vrot.slane %v35, %v39
  %v58 = vunpack.c.l.b16 %v15
  %v59 = vunpack.c.l.b16 %v16
  %v60 = vunpack.c.l.b16 %v17
  %v61 = vunpack.c.l.b16 %v18
  %v62 = vunpack.c.l.b16 %v19
  %v63 = vunpack.c.l.b16 %v20
  %v64 = vunpack.c.l.b16 %v21
  %v65 = vunpack.c.l.b16 %v22
  %v66 = vunpack.c.l.b16 %v23
  %v67 = vunpack.c.l.b16 %v24
  %v68 = vunpack.c.l.b16 %v25
  %v69 = vunpack.c.l.b16 %v26
  %v70 = vunpack.c.l.b16 %v27
  %v71 = vunpack.c.l.b16 %v28
  %v72 = vunpack.c.l.b16 %v29
  %v73 = vunpack.c.l.b16 %v30
  %v74 = vpack.c.b16 %v59, %v58
  %v75 = vpack.c.b16 %v61, %v60
  %v76 = vpack.c.b16 %v63, %v62
  %v77 = vpack.c.b16 %v65, %v64
  %v78 = vpack.c.b16 %v67, %v66
  %v79 = vpack.c.b16 %v69, %v68
  %v80 = vpack.c.b16 %v71, %v70
  %v81 = vpack.c.b16 %v73, %v72
  %v86 = vunpack.c.l.b16 %v31
  %v87 = vunpack.c.l.b16 %v32
  %v88 = vunpack.c.l.b16 %v33
  %v89 = vunpack.c.l.b16 %v34
  %v90 = vpack.c.b16 %v87, %v86
  %v91 = vpack.c.b16 %v89, %v88
  %vm94 = vcmask 261120
  %v96 = vsel %vm94, %v74, 0
  %v99 = vsel %vm94, %v75, 0
  %v102 = vsel %vm94, %v76, 0
  %v105 = vsel %vm94, %v77, 0
  %v108 = vsel %vm94, %v78, 0
  %v111 = vsel %vm94, %v79, 0
  %v114 = vsel %vm94, %v80, 0
  %v117 = vsel %vm94, %v81, 0
  %119 = vmatprep.subr.bf16.mxu0 0
  %120 = vmatpush1.bf16.msra.mxu0 0
  %121 = vmatprep.subr.bf16.mxu0 0
  %122 = vmatpush1.bf16.msra.mxu0 0
  %123 = vmatprep.subr.bf16.mxu0 0
  %124 = vmatpush1.bf16.msra.mxu0 0
  %125 = vmatprep.subr.bf16.mxu0 0
  %126 = vmatpush1.bf16.msra.mxu0 0
  %127 = vmatprep.subr.bf16.mxu0 0
  %128 = vmatpush1.bf16.msra.mxu0 0
  %129 = vmatprep.subr.bf16.mxu0 0
  %130 = vmatpush1.bf16.msra.mxu0 0
  %131 = vmatprep.subr.bf16.mxu0 0
  %132 = vmatpush1.bf16.msra.mxu0 %v91
  %133 = vmatprep.subr.bf16.mxu0 0
  %134 = vmatpush1.bf16.msra.mxu0 %v90
  %135 = vmatprep.subr.bf16.mxu0 0
  %136 = vmatpush2.bf16.msra.mxu0 0
  %137 = vmatprep.subr.bf16.mxu0 0
  %138 = vmatpush2.bf16.msra.mxu0 0
  %139 = vmatprep.subr.bf16.mxu0 0
  %140 = vmatpush2.bf16.msra.mxu0 0
  %141 = vmatprep.subr.bf16.mxu0 0
  %142 = vmatpush2.bf16.msra.mxu0 0
  %143 = vmatprep.subr.bf16.mxu0 0
  %144 = vmatpush2.bf16.msra.mxu0 0
  %145 = vmatprep.subr.bf16.mxu0 0
  %146 = vmatpush2.bf16.msra.mxu0 0
  %147 = vmatprep.subr.bf16.mxu0 0
  %148 = vmatpush2.bf16.msra.mxu0 0
  %149 = vmatprep.subr.bf16.mxu0 0
  %150 = vmatpush2.bf16.msra.mxu0 0
  %151 = vmatprep.mubr.bf16.mxu0 0
  %152 = vmatmul.mubr.bf16.gmra.mxu0 %v96
  %v153 = vpop.f32.mrf.mxu0
  %v154 = vadd.f32 %v40, %v153
  %v155 = vpop.f32.mrf.mxu0
  %v156 = vpop.f32.mrf.mxu0
  %v157 = vadd.f32 %v40, %v156
  %v158 = vpop.f32.mrf.mxu0
  %159 = vmatprep.mubr.bf16.mxu0 0
  %160 = vmatmul.mubr.bf16.gmra.mxu0 %v99
  %v161 = vpop.f32.mrf.mxu0
  %v162 = vadd.f32 %v40, %v161
  %v163 = vpop.f32.mrf.mxu0
  %v164 = vpop.f32.mrf.mxu0
  %v165 = vadd.f32 %v40, %v164
  %v166 = vpop.f32.mrf.mxu0
  %167 = vmatprep.mubr.bf16.mxu0 0
  %168 = vmatmul.mubr.bf16.gmra.mxu0 %v102
  %v169 = vpop.f32.mrf.mxu0
  %v170 = vadd.f32 %v40, %v169
  %v171 = vpop.f32.mrf.mxu0
  %v172 = vpop.f32.mrf.mxu0
  %v173 = vadd.f32 %v40, %v172
  %v174 = vpop.f32.mrf.mxu0
  %175 = vmatprep.mubr.bf16.mxu0 0
  %176 = vmatmul.mubr.bf16.gmra.mxu0 %v105
  %v177 = vpop.f32.mrf.mxu0
  %v178 = vadd.f32 %v40, %v177
  %v179 = vpop.f32.mrf.mxu0
  %v180 = vpop.f32.mrf.mxu0
  %v181 = vadd.f32 %v40, %v180
  %v182 = vpop.f32.mrf.mxu0
  %183 = vmatprep.mubr.bf16.mxu0 0
  %184 = vmatmul.mubr.bf16.gmra.mxu0 %v108
  %v185 = vpop.f32.mrf.mxu0
  %v186 = vadd.f32 %v40, %v185
  %v187 = vpop.f32.mrf.mxu0
  %v188 = vpop.f32.mrf.mxu0
  %v189 = vadd.f32 %v40, %v188
  %v190 = vpop.f32.mrf.mxu0
  %191 = vmatprep.mubr.bf16.mxu0 0
  %192 = vmatmul.mubr.bf16.gmra.mxu0 %v111
  %v193 = vpop.f32.mrf.mxu0
  %v194 = vadd.f32 %v40, %v193
  %v195 = vpop.f32.mrf.mxu0
  %v196 = vpop.f32.mrf.mxu0
  %v197 = vadd.f32 %v40, %v196
  %v198 = vpop.f32.mrf.mxu0
  %199 = vmatprep.mubr.bf16.mxu0 0
  %200 = vmatmul.mubr.bf16.gmra.mxu0 %v114
  %v201 = vpop.f32.mrf.mxu0
  %v202 = vadd.f32 %v40, %v201
  %v203 = vpop.f32.mrf.mxu0
  %v204 = vpop.f32.mrf.mxu0
  %v205 = vadd.f32 %v40, %v204
  %v206 = vpop.f32.mrf.mxu0
  %207 = vmatprep.mubr.bf16.mxu0 0
  %208 = vmatmul.mubr.bf16.gmra.mxu0 %v117
  %v209 = vpop.f32.mrf.mxu0
  %v210 = vadd.f32 %v40, %v209
  %v211 = vpop.f32.mrf.mxu0
  %v212 = vpop.f32.mrf.mxu0
  %v213 = vadd.f32 %v40, %v212
  %v214 = vpop.f32.mrf.mxu0
  %215 = vdwg.mxu0
  %v216 = vpack.c.bf16 %v157, %v154
  %v217 = vpack.c.bf16 %v165, %v162
  %v218 = vpack.c.bf16 %v173, %v170
  %v219 = vpack.c.bf16 %v181, %v178
  %v220 = vpack.c.bf16 %v189, %v186
  %v221 = vpack.c.bf16 %v197, %v194
  %v222 = vpack.c.bf16 %v205, %v202
  %v223 = vpack.c.bf16 %v213, %v210
  %v232 = vunpack.c.l.b16 %v216
  %v233 = vunpack.c.h.b16 %v216
  %v234 = vunpack.c.l.b16 %v217
  %v235 = vunpack.c.h.b16 %v217
  %v236 = vunpack.c.l.b16 %v218
  %v237 = vunpack.c.h.b16 %v218
  %v238 = vunpack.c.l.b16 %v219
  %v239 = vunpack.c.h.b16 %v219
  %v240 = vunpack.c.l.b16 %v220
  %v241 = vunpack.c.h.b16 %v220
  %v242 = vunpack.c.l.b16 %v221
  %v243 = vunpack.c.h.b16 %v221
  %v244 = vunpack.c.l.b16 %v222
  %v245 = vunpack.c.h.b16 %v222
  %v246 = vunpack.c.l.b16 %v223
  %v247 = vunpack.c.h.b16 %v223
  %v248 = vpack.c.b16 %v232, %v232
  %v249 = vpack.c.b16 %v233, %v233
  %v250 = vpack.c.b16 %v234, %v234
  %v251 = vpack.c.b16 %v235, %v235
  %v252 = vpack.c.b16 %v236, %v236
  %v253 = vpack.c.b16 %v237, %v237
  %v254 = vpack.c.b16 %v238, %v238
  %v255 = vpack.c.b16 %v239, %v239
  %v256 = vpack.c.b16 %v240, %v240
  %v257 = vpack.c.b16 %v241, %v241
  %v258 = vpack.c.b16 %v242, %v242
  %v259 = vpack.c.b16 %v243, %v243
  %v260 = vpack.c.b16 %v244, %v244
  %v261 = vpack.c.b16 %v245, %v245
  %v262 = vpack.c.b16 %v246, %v246
  %v263 = vpack.c.b16 %v247, %v247
  %280 = vst [vmem:[%s3] sm:$0xf] %v248
  %281 = vst [vmem:[%s3 + $0x4] sm:$0xf] %v249
  %282 = vst [vmem:[%s3 + $0x8] sm:$0xf] %v250
  %283 = vst [vmem:[%s3 + $0xc] sm:$0xf] %v251
  %284 = vst [vmem:[%s3 + $0x10] sm:$0xf] %v252
  %285 = vst [vmem:[%s3 + $0x14] sm:$0xf] %v253
  %286 = vst [vmem:[%s3 + $0x18] sm:$0xf] %v254
  %287 = vst [vmem:[%s3 + $0x1c] sm:$0xf] %v255
  %288 = vst [vmem:[%s3 + $0x20] sm:$0xf] %v256
  %289 = vst [vmem:[%s3 + $0x24] sm:$0xf] %v257
  %290 = vst [vmem:[%s3 + $0x28] sm:$0xf] %v258
  %291 = vst [vmem:[%s3 + $0x2c] sm:$0xf] %v259
  %292 = vst [vmem:[%s3 + $0x30] sm:$0xf] %v260
  %293 = vst [vmem:[%s3 + $0x34] sm:$0xf] %v261
  %294 = vst [vmem:[%s3 + $0x38] sm:$0xf] %v262
  %295 = vst [vmem:[%s3 + $0x3c] sm:$0xf] %v263
  // Predicated region
  $region14: #{seq2seq_forward.11} parent=0 // pred_check
    _
  $region15: #{seq2seq_forward.11} parent=0 // pred_check_branch
    %297 = sbr.rel (0) target = $region17
  $region16: #{seq2seq_forward.11} parent=0 // pred_region
    _
  $region17: #{seq2seq_forward.11} parent=0 // pred_fallthru
    _
  // Predicated region
  $region18: #{seq2seq_forward.11} parent=0 // pred_check
    _
  $region19: #{seq2seq_forward.11} parent=0 // pred_check_branch
    %299 = sbr.rel (0) target = $region21
  $region20: #{seq2seq_forward.11} parent=0 // pred_region
    _
  $region21: #{seq2seq_forward.11} parent=0 // pred_fallthru
    _

// kernel: seq2seq_forward.10
$region0: #{seq2seq_forward.10}
  #allocation0 [shape = 'u32[]', space=smem, size = 0x4, offset = 0x4, fixed_abs, tag = 'smem constant byte address 0x4 - core index']
  #allocation1 [shape = 'u32[144,128]{1,0:T(1,128)}', space=vmem, size = 0x12000, scoped, tag = 'internal scratch']
  #allocation2 [shape = 'f32[16,32]{1,0:T(8,128)}', space=vmem, size = 0x2000, scoped, tag = 'scratch operand']
  #allocation3 [shape = 'f32[16,32]{1,0:T(8,128)}', space=vmem, size = 0x2000, scoped, tag = 'scratch operand']
  %s0 = inlined_call_operand.vmem [shape: f32[8,16,128], index: 0, kind: input, shape index: {}]
  %s1 = inlined_call_operand.vmem [shape: f32[16,32], index: 1, kind: input, shape index: {}]
  %s2 = inlined_call_operand.vmem [shape: f32[16,32], index: 2, kind: input, shape index: {}]
  %s3 = inlined_call_operand.vmem [shape: bf16[32,128], index: 3, kind: input, shape index: {}]
  %s4 = inlined_call_operand.vmem [shape: bf16[8,16,32], index: 4, kind: output, shape index: {0}]
  %s5 = inlined_call_operand.vmem [shape: f32[16,32], index: 5, kind: output, shape index: {1}]
  %s6 = inlined_call_operand.vmem [shape: f32[16,32], index: 6, kind: output, shape index: {2}]
  %7 = xla_tuple %s4, %s5, %s6
  %s8 = sld [smem:[#allocation0]]
  $region50: #{seq2seq_forward.10} parent=0
    _
  %s10 = ssub.s32 1, %s8
  %s11 = scalar_select 0, %s10, %s8
  // Predicated region
  $region2: #{seq2seq_forward.10} parent=0 // pred_check
    _
  $region3: #{seq2seq_forward.10} parent=0 // pred_check_branch
    %13 = sbr.rel (0) target = $region5
  $region4: #{seq2seq_forward.10} parent=0 // pred_region
    _
  $region5: #{seq2seq_forward.10} parent=0 // pred_fallthru
    _
  // Predicated region
  $region6: #{seq2seq_forward.10} parent=0 // pred_check
    _
  $region7: #{seq2seq_forward.10} parent=0 // pred_check_branch
    %15 = sbr.rel (0) target = $region9
  $region8: #{seq2seq_forward.10} parent=0 // pred_region
    _
  $region9: #{seq2seq_forward.10} parent=0 // pred_fallthru
    _
  // Predicated region
  $region10: #{seq2seq_forward.10} parent=0 // pred_check
    _
  $region11: #{seq2seq_forward.10} parent=0 // pred_check_branch
    %17 = sbr.rel (0) target = $region13
  $region12: #{seq2seq_forward.10} parent=0 // pred_region
    _
  $region13: #{seq2seq_forward.10} parent=0 // pred_fallthru
    _
  // Predicated region
  $region14: #{seq2seq_forward.10} parent=0 // pred_check
    _
  $region15: #{seq2seq_forward.10} parent=0 // pred_check_branch
    %19 = sbr.rel (0) target = $region17
  $region16: #{seq2seq_forward.10} parent=0 // pred_region
    _
  $region17: #{seq2seq_forward.10} parent=0 // pred_fallthru
    _
  %p21 = scmp.eq.s32.totalorder 0, 0
  // Predicated region
  $region18: #{seq2seq_forward.10} parent=0 // pred_check
    %p22 = pneg %p21
  $region19: #{seq2seq_forward.10} parent=0 // pred_check_branch
    %24 = sbr.rel (%p22) target = $region21
  $region20: #{seq2seq_forward.10} parent=0 // pred_region
    %v25 = vld [vmem:[%s1] sm:$0xff]
    %v26 = vld [vmem:[%s1 + $0x8] sm:$0xff]
    %vm27 = vcmask 261120
    %28 = vst.msk [vmem:[#allocation2] sm:$0xff] %vm27, %v25
    %29 = vst.msk [vmem:[#allocation2 + $0x8] sm:$0xff] %vm27, %v26
    %v30 = vld [vmem:[%s2] sm:$0xff]
    %v31 = vld [vmem:[%s2 + $0x8] sm:$0xff]
    %32 = vst.msk [vmem:[#allocation3] sm:$0xff] %vm27, %v30
    %33 = vst.msk [vmem:[#allocation3 + $0x8] sm:$0xff] %vm27, %v31
  $region21: #{seq2seq_forward.10} parent=0 // pred_fallthru
    _
  %s34 = smul.u32 0, 8
  %v35 = vld [vmem:[%s0] sm:$0xff]
  %v36 = vld [vmem:[%s0 + $0x8] sm:$0xff]
  %v37 = vld [vmem:[#allocation2] sm:$0xff]
  %v38 = vld [vmem:[#allocation2 + $0x8] sm:$0xff]
  %v39 = vld [vmem:[#allocation3] sm:$0xff]
  %v40 = vld [vmem:[#allocation3 + $0x8] sm:$0xff]
  %v41 = vld [vmem:[%s3] sm:$0xf]
  %v42 = vld [vmem:[%s3 + $0x4] sm:$0xf]
  %v43 = vld [vmem:[%s3 + $0x8] sm:$0xf]
  %v44 = vld [vmem:[%s3 + $0xc] sm:$0xf]
  %v45 = vpack.c.bf16 %v38, %v37
  %v50 = vunpack.c.l.b16 %v41
  %v51 = vunpack.c.l.b16 %v42
  %v52 = vunpack.c.l.b16 %v43
  %v53 = vunpack.c.l.b16 %v44
  %v54 = vpack.c.b16 %v51, %v50
  %v55 = vpack.c.b16 %v53, %v52
  %vm58 = vcmask 261120
  %v60 = vsel %vm58, %v45, 0
  %62 = vmatprep.subr.bf16.mxu0 0
  %63 = vmatpush1.bf16.msra.mxu0 0
  %64 = vmatprep.subr.bf16.mxu0 0
  %65 = vmatpush1.bf16.msra.mxu0 0
  %66 = vmatprep.subr.bf16.mxu0 0
  %67 = vmatpush1.bf16.msra.mxu0 0
  %68 = vmatprep.subr.bf16.mxu0 0
  %69 = vmatpush1.bf16.msra.mxu0 0
  %70 = vmatprep.subr.bf16.mxu0 0
  %71 = vmatpush1.bf16.msra.mxu0 0
  %72 = vmatprep.subr.bf16.mxu0 0
  %73 = vmatpush1.bf16.msra.mxu0 0
  %74 = vmatprep.subr.bf16.mxu0 0
  %75 = vmatpush1.bf16.msra.mxu0 %v55
  %76 = vmatprep.subr.bf16.mxu0 0
  %77 = vmatpush1.bf16.msra.mxu0 %v54
  %78 = vmatprep.subr.bf16.mxu0 0
  %79 = vmatpush2.bf16.msra.mxu0 0
  %80 = vmatprep.subr.bf16.mxu0 0
  %81 = vmatpush2.bf16.msra.mxu0 0
  %82 = vmatprep.subr.bf16.mxu0 0
  %83 = vmatpush2.bf16.msra.mxu0 0
  %84 = vmatprep.subr.bf16.mxu0 0
  %85 = vmatpush2.bf16.msra.mxu0 0
  %86 = vmatprep.subr.bf16.mxu0 0
  %87 = vmatpush2.bf16.msra.mxu0 0
  %88 = vmatprep.subr.bf16.mxu0 0
  %89 = vmatpush2.bf16.msra.mxu0 0
  %90 = vmatprep.subr.bf16.mxu0 0
  %91 = vmatpush2.bf16.msra.mxu0 0
  %92 = vmatprep.subr.bf16.mxu0 0
  %93 = vmatpush2.bf16.msra.mxu0 0
  %94 = vmatprep.mubr.bf16.mxu0 0
  %95 = vmatmul.mubr.bf16.gmra.mxu0 %v60
  %v96 = vpop.f32.mrf.mxu0
  %v97 = vadd.f32 0.0, %v96
  %v98 = vpop.f32.mrf.mxu0
  %v99 = vpop.f32.mrf.mxu0
  %v100 = vadd.f32 0.0, %v99
  %v101 = vpop.f32.mrf.mxu0
  %102 = vdwg.mxu0
  %v103 = vadd.f32 %v35, %v97
  %v104 = vadd.f32 %v36, %v100
  %v105 = vxor.u32 %v103, 2147483648
  %v106 = vxor.u32 %v104, 2147483648
  %v107 = vmul.f32 %v105, 1.442695
  %v108 = vpow.pop %v107
  %v109 = vmul.f32 %v106, 1.442695
  %v110 = vpow.pop %v109
  %v111 = vadd.f32 %v108, 1.0
  %v112 = vadd.f32 %v110, 1.0
  %v113 = vrcp.pop %v111
  %v114 = vmul.f32 1.0, %v113
  %v115 = vrcp.pop %v112
  %v116 = vmul.f32 1.0, %v115
  %v117 = vtanh.pop %v103
  %v118 = vtanh.pop %v104
  %121 = vrot.lane.b32.xlu0 %v39, 32
  %v122 = vpop.permute.xlu0 %121
  %123 = vrot.lane.b32.xlu0 %v40, 32
  %v124 = vpop.permute.xlu0 %123
  %v127 = vmul.f32 %v114, %v122
  %v128 = vmul.f32 %v116, %v124
  %131 = vrot.lane.b32.xlu0 %v117, 64
  %v132 = vpop.permute.xlu0 %131
  %133 = vrot.lane.b32.xlu0 %v118, 64
  %v134 = vpop.permute.xlu0 %133
  %v137 = vmul.f32 %v114, %v132
  %v138 = vmul.f32 %v116, %v134
  %141 = vrot.lane.b32.xlu0 %v137, 32
  %v142 = vpop.permute.xlu0 %141
  %143 = vrot.lane.b32.xlu0 %v138, 32
  %v144 = vpop.permute.xlu0 %143
  %v147 = vadd.f32 %v127, %v142
  %v148 = vadd.f32 %v128, %v144
  %v149 = vtanh.pop %v147
  %v150 = vtanh.pop %v148
  %153 = vrot.lane.b32.xlu0 %v149, 64
  %v154 = vpop.permute.xlu0 %153
  %155 = vrot.lane.b32.xlu0 %v150, 64
  %v156 = vpop.permute.xlu0 %155
  %v159 = vmul.f32 %v114, %v154
  %v160 = vmul.f32 %v116, %v156
  %v161 = vpack.c.bf16 %v160, %v159
  %v163 = vunpack.c.l.b16 %v161
  %v164 = vunpack.c.h.b16 %v161
  %v165 = vpack.c.b16 %v163, %v163
  %v166 = vpack.c.b16 %v164, %v164
  %167 = vrot.lane.b32.xlu0 %v165, 32
  %v168 = vpop.permute.xlu0 %167
  %169 = vrot.lane.b32.xlu0 %v166, 32
  %v170 = vpop.permute.xlu0 %169
  %vm173 = vcmask 257024
  %174 = vst.msk [vmem:[%s4] sm:$0xf] %vm173, %v168
  %175 = vst.msk [vmem:[%s4 + $0x4] sm:$0xf] %vm173, %v170
  %p176 = scmp.lt.s32.totalorder %s34, 7
  %v177 = vld [vmem:[#allocation2] sm:$0xff]
  %v178 = vld [vmem:[#allocation2 + $0x8] sm:$0xff]
  %s179 = scalar_select %p176, 1, 0
  %v180 = vstv %s179
  %vm181 = vcmp.eq.s32.totalorder %v180, 1
  %184 = vrot.lane.b32.xlu0 %v177, 96
  %v185 = vpop.permute.xlu0 %184
  %186 = vrot.lane.b32.xlu0 %v178, 96
  %v187 = vpop.permute.xlu0 %186
  %v190 = vsel %vm181, %v159, %v185
  %v191 = vsel %vm181, %v160, %v187
  %194 = vrot.lane.b32.xlu0 %v190, 32
  %v195 = vpop.permute.xlu0 %194
  %196 = vrot.lane.b32.xlu0 %v191, 32
  %v197 = vpop.permute.xlu0 %196
  %200 = vst.msk [vmem:[#allocation2] sm:$0xff] %vm58, %v195
  %201 = vst.msk [vmem:[#allocation2 + $0x8] sm:$0xff] %vm58, %v197
  %v202 = vld [vmem:[#allocation3] sm:$0xff]
  %v203 = vld [vmem:[#allocation3 + $0x8] sm:$0xff]
  %206 = vrot.lane.b32.xlu0 %v202, 32
  %v207 = vpop.permute.xlu0 %206
  %208 = vrot.lane.b32.xlu0 %v203, 32
  %v209 = vpop.permute.xlu0 %208
  %v212 = vsel %vm181, %v147, %v207
  %v213 = vsel %vm181, %v148, %v209
  %216 = vrot.lane.b32.xlu0 %v212, 96
  %v217 = vpop.permute.xlu0 %216
  %218 = vrot.lane.b32.xlu0 %v213, 96
  %v219 = vpop.permute.xlu0 %218
  %222 = vst.msk [vmem:[#allocation3] sm:$0xff] %vm58, %v217
  %223 = vst.msk [vmem:[#allocation3 + $0x8] sm:$0xff] %vm58, %v219
  %s224 = scalar_lea.vmem %s0, 16
  %v225 = vld [vmem:[%s224] sm:$0xff]
  %v226 = vld [vmem:[%s224 + $0x8] sm:$0xff]
  %v227 = vld [vmem:[#allocation2] sm:$0xff]
  %v228 = vld [vmem:[#allocation2 + $0x8] sm:$0xff]
  %v229 = vld [vmem:[#allocation3] sm:$0xff]
  %v230 = vld [vmem:[#allocation3 + $0x8] sm:$0xff]
  %v231 = vld [vmem:[%s3] sm:$0xf]
  %v232 = vld [vmem:[%s3 + $0x4] sm:$0xf]
  %v233 = vld [vmem:[%s3 + $0x8] sm:$0xf]
  %v234 = vld [vmem:[%s3 + $0xc] sm:$0xf]
  %v235 = vpack.c.bf16 %v228, %v227
  %v240 = vunpack.c.l.b16 %v231
  %v241 = vunpack.c.l.b16 %v232
  %v242 = vunpack.c.l.b16 %v233
  %v243 = vunpack.c.l.b16 %v234
  %v244 = vpack.c.b16 %v241, %v240
  %v245 = vpack.c.b16 %v243, %v242
  %v249 = vsel %vm58, %v235, 0
  %251 = vmatprep.subr.bf16.mxu0 0
  %252 = vmatpush1.bf16.msra.mxu0 0
  %253 = vmatprep.subr.bf16.mxu0 0
  %254 = vmatpush1.bf16.msra.mxu0 0
  %255 = vmatprep.subr.bf16.mxu0 0
  %256 = vmatpush1.bf16.msra.mxu0 0
  %257 = vmatprep.subr.bf16.mxu0 0
  %258 = vmatpush1.bf16.msra.mxu0 0
  %259 = vmatprep.subr.bf16.mxu0 0
  %260 = vmatpush1.bf16.msra.mxu0 0
  %261 = vmatprep.subr.bf16.mxu0 0
  %262 = vmatpush1.bf16.msra.mxu0 0
  %263 = vmatprep.subr.bf16.mxu0 0
  %264 = vmatpush1.bf16.msra.mxu0 %v245
  %265 = vmatprep.subr.bf16.mxu0 0
  %266 = vmatpush1.bf16.msra.mxu0 %v244
  %267 = vmatprep.subr.bf16.mxu0 0
  %268 = vmatpush2.bf16.msra.mxu0 0
  %269 = vmatprep.subr.bf16.mxu0 0
  %270 = vmatpush2.bf16.msra.mxu0 0
  %271 = vmatprep.subr.bf16.mxu0 0
  %272 = vmatpush2.bf16.msra.mxu0 0
  %273 = vmatprep.subr.bf16.mxu0 0
  %274 = vmatpush2.bf16.msra.mxu0 0
  %275 = vmatprep.subr.bf16.mxu0 0
  %276 = vmatpush2.bf16.msra.mxu0 0
  %277 = vmatprep.subr.bf16.mxu0 0
  %278 = vmatpush2.bf16.msra.mxu0 0
  %279 = vmatprep.subr.bf16.mxu0 0
  %280 = vmatpush2.bf16.msra.mxu0 0
  %281 = vmatprep.subr.bf16.mxu0 0
  %282 = vmatpush2.bf16.msra.mxu0 0
  %283 = vmatprep.mubr.bf16.mxu0 0
  %284 = vmatmul.mubr.bf16.gmra.mxu0 %v249
  %v285 = vpop.f32.mrf.mxu0
  %v286 = vadd.f32 0.0, %v285
  %v287 = vpop.f32.mrf.mxu0
  %v288 = vpop.f32.mrf.mxu0
  %v289 = vadd.f32 0.0, %v288
  %v290 = vpop.f32.mrf.mxu0
  %291 = vdwg.mxu0
  %v292 = vadd.f32 %v225, %v286
  %v293 = vadd.f32 %v226, %v289
  %v294 = vxor.u32 %v292, 2147483648
  %v295 = vxor.u32 %v293, 2147483648
  %v296 = vmul.f32 %v294, 1.442695
  %v297 = vpow.pop %v296
  %v298 = vmul.f32 %v295, 1.442695
  %v299 = vpow.pop %v298
  %v300 = vadd.f32 %v297, 1.0
  %v301 = vadd.f32 %v299, 1.0
  %v302 = vrcp.pop %v300
  %v303 = vmul.f32 1.0, %v302
  %v304 = vrcp.pop %v301
  %v305 = vmul.f32 1.0, %v304
  %v306 = vtanh.pop %v292
  %v307 = vtanh.pop %v293
  %310 = vrot.lane.b32.xlu0 %v229, 32
  %v311 = vpop.permute.xlu0 %310
  %312 = vrot.lane.b32.xlu0 %v230, 32
  %v313 = vpop.permute.xlu0 %312
  %v316 = vmul.f32 %v303, %v311
  %v317 = vmul.f32 %v305, %v313
  %320 = vrot.lane.b32.xlu0 %v306, 64
  %v321 = vpop.permute.xlu0 %320
  %322 = vrot.lane.b32.xlu0 %v307, 64
  %v323 = vpop.permute.xlu0 %322
  %v326 = vmul.f32 %v303, %v321
  %v327 = vmul.f32 %v305, %v323
  %330 = vrot.lane.b32.xlu0 %v326, 32
  %v331 = vpop.permute.xlu0 %330
  %332 = vrot.lane.b32.xlu0 %v327, 32
  %v333 = vpop.permute.xlu0 %332
  %v336 = vadd.f32 %v316, %v331
  %v337 = vadd.f32 %v317, %v333
  %v338 = vtanh.pop %v336
  %v339 = vtanh.pop %v337
  %342 = vrot.lane.b32.xlu0 %v338, 64
  %v343 = vpop.permute.xlu0 %342
  %344 = vrot.lane.b32.xlu0 %v339, 64
  %v345 = vpop.permute.xlu0 %344
  %v348 = vmul.f32 %v303, %v343
  %v349 = vmul.f32 %v305, %v345
  %v350 = vpack.c.bf16 %v349, %v348
  %v352 = vunpack.c.l.b16 %v350
  %v353 = vunpack.c.h.b16 %v350
  %v354 = vpack.c.b16 %v352, %v352
  %v355 = vpack.c.b16 %v353, %v353
  %356 = vrot.lane.b32.xlu0 %v354, 32
  %v357 = vpop.permute.xlu0 %356
  %358 = vrot.lane.b32.xlu0 %v355, 32
  %v359 = vpop.permute.xlu0 %358
  %s362 = scalar_lea.vmem %s4, 8
  %363 = vst.msk [vmem:[%s362] sm:$0xf] %vm173, %v357
  %364 = vst.msk [vmem:[%s362 + $0x4] sm:$0xf] %vm173, %v359
  %s365 = sadd.s32 %s34, 1
  %p366 = scmp.lt.s32.totalorder %s365, 7
  %v367 = vld [vmem:[#allocation2] sm:$0xff]
  %v368 = vld [vmem:[#allocation2 + $0x8] sm:$0xff]
  %s369 = scalar_select %p366, 1, 0
  %v370 = vstv %s369
  %vm371 = vcmp.eq.s32.totalorder %v370, 1
  %374 = vrot.lane.b32.xlu0 %v367, 96
  %v375 = vpop.permute.xlu0 %374
  %376 = vrot.lane.b32.xlu0 %v368, 96
  %v377 = vpop.permute.xlu0 %376
  %v380 = vsel %vm371, %v348, %v375
  %v381 = vsel %vm371, %v349, %v377
  %384 = vrot.lane.b32.xlu0 %v380, 32
  %v385 = vpop.permute.xlu0 %384
  %386 = vrot.lane.b32.xlu0 %v381, 32
  %v387 = vpop.permute.xlu0 %386
  %390 = vst.msk [vmem:[#allocation2] sm:$0xff] %vm58, %v385
  %391 = vst.msk [vmem:[#allocation2 + $0x8] sm:$0xff] %vm58, %v387
  %v392 = vld [vmem:[#allocation3] sm:$0xff]
  %v393 = vld [vmem:[#allocation3 + $0x8] sm:$0xff]
  %396 = vrot.lane.b32.xlu0 %v392, 32
  %v397 = vpop.permute.xlu0 %396
  %398 = vrot.lane.b32.xlu0 %v393, 32
  %v399 = vpop.permute.xlu0 %398
  %v402 = vsel %vm371, %v336, %v397
  %v403 = vsel %vm371, %v337, %v399
  %406 = vrot.lane.b32.xlu0 %v402, 96
  %v407 = vpop.permute.xlu0 %406
  %408 = vrot.lane.b32.xlu0 %v403, 96
  %v409 = vpop.permute.xlu0 %408
  %412 = vst.msk [vmem:[#allocation3] sm:$0xff] %vm58, %v407
  %413 = vst.msk [vmem:[#allocation3 + $0x8] sm:$0xff] %vm58, %v409
  %s414 = scalar_lea.vmem %s0, 32
  %v415 = vld [vmem:[%s414] sm:$0xff]
  %v416 = vld [vmem:[%s414 + $0x8] sm:$0xff]
  %v417 = vld [vmem:[#allocation2] sm:$0xff]
  %v418 = vld [vmem:[#allocation2 + $0x8] sm:$0xff]
  %v419 = vld [vmem:[#allocation3] sm:$0xff]
  %v420 = vld [vmem:[#allocation3 + $0x8] sm:$0xff]
  %v421 = vld [vmem:[%s3] sm:$0xf]
  %v422 = vld [vmem:[%s3 + $0x4] sm:$0xf]
  %v423 = vld [vmem:[%s3 + $0x8] sm:$0xf]
  %v424 = vld [vmem:[%s3 + $0xc] sm:$0xf]
  %v425 = vpack.c.bf16 %v418, %v417
  %v430 = vunpack.c.l.b16 %v421
  %v431 = vunpack.c.l.b16 %v422
  %v432 = vunpack.c.l.b16 %v423
  %v433 = vunpack.c.l.b16 %v424
  %v434 = vpack.c.b16 %v431, %v430
  %v435 = vpack.c.b16 %v433, %v432
  %v439 = vsel %vm58, %v425, 0
  %441 = vmatprep.subr.bf16.mxu0 0
  %442 = vmatpush1.bf16.msra.mxu0 0
  %443 = vmatprep.subr.bf16.mxu0 0
  %444 = vmatpush1.bf16.msra.mxu0 0
  %445 = vmatprep.subr.bf16.mxu0 0
  %446 = vmatpush1.bf16.msra.mxu0 0
  %447 = vmatprep.subr.bf16.mxu0 0
  %448 = vmatpush1.bf16.msra.mxu0 0
  %449 = vmatprep.subr.bf16.mxu0 0
  %450 = vmatpush1.bf16.msra.mxu0 0
  %451 = vmatprep.subr.bf16.mxu0 0
  %452 = vmatpush1.bf16.msra.mxu0 0
  %453 = vmatprep.subr.bf16.mxu0 0
  %454 = vmatpush1.bf16.msra.mxu0 %v435
  %455 = vmatprep.subr.bf16.mxu0 0
  %456 = vmatpush1.bf16.msra.mxu0 %v434
  %457 = vmatprep.subr.bf16.mxu0 0
  %458 = vmatpush2.bf16.msra.mxu0 0
  %459 = vmatprep.subr.bf16.mxu0 0
  %460 = vmatpush2.bf16.msra.mxu0 0
  %461 = vmatprep.subr.bf16.mxu0 0
  %462 = vmatpush2.bf16.msra.mxu0 0
  %463 = vmatprep.subr.bf16.mxu0 0
  %464 = vmatpush2.bf16.msra.mxu0 0
  %465 = vmatprep.subr.bf16.mxu0 0
  %466 = vmatpush2.bf16.msra.mxu0 0
  %467 = vmatprep.subr.bf16.mxu0 0
  %468 = vmatpush2.bf16.msra.mxu0 0
  %469 = vmatprep.subr.bf16.mxu0 0
  %470 = vmatpush2.bf16.msra.mxu0 0
  %471 = vmatprep.subr.bf16.mxu0 0
  %472 = vmatpush2.bf16.msra.mxu0 0
  %473 = vmatprep.mubr.bf16.mxu0 0
  %474 = vmatmul.mubr.bf16.gmra.mxu0 %v439
  %v475 = vpop.f32.mrf.mxu0
  %v476 = vadd.f32 0.0, %v475
  %v477 = vpop.f32.mrf.mxu0
  %v478 = vpop.f32.mrf.mxu0
  %v479 = vadd.f32 0.0, %v478
  %v480 = vpop.f32.mrf.mxu0
  %481 = vdwg.mxu0
  %v482 = vadd.f32 %v415, %v476
  %v483 = vadd.f32 %v416, %v479
  %v484 = vxor.u32 %v482, 2147483648
  %v485 = vxor.u32 %v483, 2147483648
  %v486 = vmul.f32 %v484, 1.442695
  %v487 = vpow.pop %v486
  %v488 = vmul.f32 %v485, 1.442695
  %v489 = vpow.pop %v488
  %v490 = vadd.f32 %v487, 1.0
  %v491 = vadd.f32 %v489, 1.0
  %v492 = vrcp.pop %v490
  %v493 = vmul.f32 1.0, %v492
  %v494 = vrcp.pop %v491
  %v495 = vmul.f32 1.0, %v494
  %v496 = vtanh.pop %v482
  %v497 = vtanh.pop %v483
  %500 = vrot.lane.b32.xlu0 %v419, 32
  %v501 = vpop.permute.xlu0 %500
  %502 = vrot.lane.b32.xlu0 %v420, 32
  %v503 = vpop.permute.xlu0 %502
  %v506 = vmul.f32 %v493, %v501
  %v507 = vmul.f32 %v495, %v503
  %510 = vrot.lane.b32.xlu0 %v496, 64
  %v511 = vpop.permute.xlu0 %510
  %512 = vrot.lane.b32.xlu0 %v497, 64
  %v513 = vpop.permute.xlu0 %512
  %v516 = vmul.f32 %v493, %v511
  %v517 = vmul.f32 %v495, %v513
  %520 = vrot.lane.b32.xlu0 %v516, 32
  %v521 = vpop.permute.xlu0 %520
  %522 = vrot.lane.b32.xlu0 %v517, 32
  %v523 = vpop.permute.xlu0 %522
  %v526 = vadd.f32 %v506, %v521
  %v527 = vadd.f32 %v507, %v523
  %v528 = vtanh.pop %v526
  %v529 = vtanh.pop %v527
  %532 = vrot.lane.b32.xlu0 %v528, 64
  %v533 = vpop.permute.xlu0 %532
  %534 = vrot.lane.b32.xlu0 %v529, 64
  %v535 = vpop.permute.xlu0 %534
  %v538 = vmul.f32 %v493, %v533
  %v539 = vmul.f32 %v495, %v535
  %v540 = vpack.c.bf16 %v539, %v538
  %v542 = vunpack.c.l.b16 %v540
  %v543 = vunpack.c.h.b16 %v540
  %v544 = vpack.c.b16 %v542, %v542
  %v545 = vpack.c.b16 %v543, %v543
  %546 = vrot.lane.b32.xlu0 %v544, 32
  %v547 = vpop.permute.xlu0 %546
  %548 = vrot.lane.b32.xlu0 %v545, 32
  %v549 = vpop.permute.xlu0 %548
  %s552 = scalar_lea.vmem %s4, 16
  %553 = vst.msk [vmem:[%s552] sm:$0xf] %vm173, %v547
  %554 = vst.msk [vmem:[%s552 + $0x4] sm:$0xf] %vm173, %v549
  %s555 = sadd.s32 %s34, 2
  %p556 = scmp.lt.s32.totalorder %s555, 7
  %v557 = vld [vmem:[#allocation2] sm:$0xff]
  %v558 = vld [vmem:[#allocation2 + $0x8] sm:$0xff]
  %s559 = scalar_select %p556, 1, 0
  %v560 = vstv %s559
  %vm561 = vcmp.eq.s32.totalorder %v560, 1
  %564 = vrot.lane.b32.xlu0 %v557, 96
  %v565 = vpop.permute.xlu0 %564
  %566 = vrot.lane.b32.xlu0 %v558, 96
  %v567 = vpop.permute.xlu0 %566
  %v570 = vsel %vm561, %v538, %v565
  %v571 = vsel %vm561, %v539, %v567
  %574 = vrot.lane.b32.xlu0 %v570, 32
  %v575 = vpop.permute.xlu0 %574
  %576 = vrot.lane.b32.xlu0 %v571, 32
  %v577 = vpop.permute.xlu0 %576
  %580 = vst.msk [vmem:[#allocation2] sm:$0xff] %vm58, %v575
  %581 = vst.msk [vmem:[#allocation2 + $0x8] sm:$0xff] %vm58, %v577
  %v582 = vld [vmem:[#allocation3] sm:$0xff]
  %v583 = vld [vmem:[#allocation3 + $0x8] sm:$0xff]
  %586 = vrot.lane.b32.xlu0 %v582, 32
  %v587 = vpop.permute.xlu0 %586
  %588 = vrot.lane.b32.xlu0 %v583, 32
  %v589 = vpop.permute.xlu0 %588
  %v592 = vsel %vm561, %v526, %v587
  %v593 = vsel %vm561, %v527, %v589
  %596 = vrot.lane.b32.xlu0 %v592, 96
  %v597 = vpop.permute.xlu0 %596
  %598 = vrot.lane.b32.xlu0 %v593, 96
  %v599 = vpop.permute.xlu0 %598
  %602 = vst.msk [vmem:[#allocation3] sm:$0xff] %vm58, %v597
  %603 = vst.msk [vmem:[#allocation3 + $0x8] sm:$0xff] %vm58, %v599
  %s604 = scalar_lea.vmem %s0, 48
  %v605 = vld [vmem:[%s604] sm:$0xff]
  %v606 = vld [vmem:[%s604 + $0x8] sm:$0xff]
  %v607 = vld [vmem:[#allocation2] sm:$0xff]
  %v608 = vld [vmem:[#allocation2 + $0x8] sm:$0xff]
  %v609 = vld [vmem:[#allocation3] sm:$0xff]
  %v610 = vld [vmem:[#allocation3 + $0x8] sm:$0xff]
  %v611 = vld [vmem:[%s3] sm:$0xf]
  %v612 = vld [vmem:[%s3 + $0x4] sm:$0xf]
  %v613 = vld [vmem:[%s3 + $0x8] sm:$0xf]
  %v614 = vld [vmem:[%s3 + $0xc] sm:$0xf]
  %v615 = vpack.c.bf16 %v608, %v607
  %v620 = vunpack.c.l.b16 %v611
  %v621 = vunpack.c.l.b16 %v612
  %v622 = vunpack.c.l.b16 %v613
  %v623 = vunpack.c.l.b16 %v614
  %v624 = vpack.c.b16 %v621, %v620
  %v625 = vpack.c.b16 %v623, %v622
  %v629 = vsel %vm58, %v615, 0
  %631 = vmatprep.subr.bf16.mxu0 0
  %632 = vmatpush1.bf16.msra.mxu0 0
  %633 = vmatprep.subr.bf16.mxu0 0
  %634 = vmatpush1.bf16.msra.mxu0 0
  %635 = vmatprep.subr.bf16.mxu0 0
  %636 = vmatpush1.bf16.msra.mxu0 0
  %637 = vmatprep.subr.bf16.mxu0 0
  %638 = vmatpush1.bf16.msra.mxu0 0
  %639 = vmatprep.subr.bf16.mxu0 0
  %640 = vmatpush1.bf16.msra.mxu0 0
  %641 = vmatprep.subr.bf16.mxu0 0
  %642 = vmatpush1.bf16.msra.mxu0 0
  %643 = vmatprep.subr.bf16.mxu0 0
  %644 = vmatpush1.bf16.msra.mxu0 %v625
  %645 = vmatprep.subr.bf16.mxu0 0
  %646 = vmatpush1.bf16.msra.mxu0 %v624
  %647 = vmatprep.subr.bf16.mxu0 0
  %648 = vmatpush2.bf16.msra.mxu0 0
  %649 = vmatprep.subr.bf16.mxu0 0
  %650 = vmatpush2.bf16.msra.mxu0 0
  %651 = vmatprep.subr.bf16.mxu0 0
  %652 = vmatpush2.bf16.msra.mxu0 0
  %653 = vmatprep.subr.bf16.mxu0 0
  %654 = vmatpush2.bf16.msra.mxu0 0
  %655 = vmatprep.subr.bf16.mxu0 0
  %656 = vmatpush2.bf16.msra.mxu0 0
  %657 = vmatprep.subr.bf16.mxu0 0
  %658 = vmatpush2.bf16.msra.mxu0 0
  %659 = vmatprep.subr.bf16.mxu0 0
  %660 = vmatpush2.bf16.msra.mxu0 0
  %661 = vmatprep.subr.bf16.mxu0 0
  %662 = vmatpush2.bf16.msra.mxu0 0
  %663 = vmatprep.mubr.bf16.mxu0 0
  %664 = vmatmul.mubr.bf16.gmra.mxu0 %v629
  %v665 = vpop.f32.mrf.mxu0
  %v666 = vadd.f32 0.0, %v665
  %v667 = vpop.f32.mrf.mxu0
  %v668 = vpop.f32.mrf.mxu0
  %v669 = vadd.f32 0.0, %v668
  %v670 = vpop.f32.mrf.mxu0
  %671 = vdwg.mxu0
  %v672 = vadd.f32 %v605, %v666
  %v673 = vadd.f32 %v606, %v669
  %v674 = vxor.u32 %v672, 2147483648
  %v675 = vxor.u32 %v673, 2147483648
  %v676 = vmul.f32 %v674, 1.442695
  %v677 = vpow.pop %v676
  %v678 = vmul.f32 %v675, 1.442695
  %v679 = vpow.pop %v678
  %v680 = vadd.f32 %v677, 1.0
  %v681 = vadd.f32 %v679, 1.0
  %v682 = vrcp.pop %v680
  %v683 = vmul.f32 1.0, %v682
  %v684 = vrcp.pop %v681
  %v685 = vmul.f32 1.0, %v684
  %v686 = vtanh.pop %v672
  %v687 = vtanh.pop %v673
  %690 = vrot.lane.b32.xlu0 %v609, 32
  %v691 = vpop.permute.xlu0 %690
  %692 = vrot.lane.b32.xlu0 %v610, 32
  %v693 = vpop.permute.xlu0 %692
  %v696 = vmul.f32 %v683, %v691
  %v697 = vmul.f32 %v685, %v693
  %700 = vrot.lane.b32.xlu0 %v686, 64
  %v701 = vpop.permute.xlu0 %700
  %702 = vrot.lane.b32.xlu0 %v687, 64
  %v703 = vpop.permute.xlu0 %702
  %v706 = vmul.f32 %v683, %v701
  %v707 = vmul.f32 %v685, %v703
  %710 = vrot.lane.b32.xlu0 %v706, 32
  %v711 = vpop.permute.xlu0 %710
  %712 = vrot.lane.b32.xlu0 %v707, 32
  %v713 = vpop.permute.xlu0 %712
  %v716 = vadd.f32 %v696, %v711
  %v717 = vadd.f32 %v697, %v713
  %v718 = vtanh.pop %v716
  %v719 = vtanh.pop %v717
  %722 = vrot.lane.b32.xlu0 %v718, 64
  %v723 = vpop.permute.xlu0 %722
  %724 = vrot.lane.b32.xlu0 %v719, 64
  %v725 = vpop.permute.xlu0 %724
  %v728 = vmul.f32 %v683, %v723
  %v729 = vmul.f32 %v685, %v725
  %v730 = vpack.c.bf16 %v729, %v728
  %v732 = vunpack.c.l.b16 %v730
  %v733 = vunpack.c.h.b16 %v730
  %v734 = vpack.c.b16 %v732, %v732
  %v735 = vpack.c.b16 %v733, %v733
  %736 = vrot.lane.b32.xlu0 %v734, 32
  %v737 = vpop.permute.xlu0 %736
  %738 = vrot.lane.b32.xlu0 %v735, 32
  %v739 = vpop.permute.xlu0 %738
  %s742 = scalar_lea.vmem %s4, 24
  %743 = vst.msk [vmem:[%s742] sm:$0xf] %vm173, %v737
  %744 = vst.msk [vmem:[%s742 + $0x4] sm:$0xf] %vm173, %v739
  %s745 = sadd.s32 %s34, 3
  %p746 = scmp.lt.s32.totalorder %s745, 7
  %v747 = vld [vmem:[#allocation2] sm:$0xff]
  %v748 = vld [vmem:[#allocation2 + $0x8] sm:$0xff]
  %s749 = scalar_select %p746, 1, 0
  %v750 = vstv %s749
  %vm751 = vcmp.eq.s32.totalorder %v750, 1
  %754 = vrot.lane.b32.xlu0 %v747, 96
  %v755 = vpop.permute.xlu0 %754
  %756 = vrot.lane.b32.xlu0 %v748, 96
  %v757 = vpop.permute.xlu0 %756
  %v760 = vsel %vm751, %v728, %v755
  %v761 = vsel %vm751, %v729, %v757
  %764 = vrot.lane.b32.xlu0 %v760, 32
  %v765 = vpop.permute.xlu0 %764
  %766 = vrot.lane.b32.xlu0 %v761, 32
  %v767 = vpop.permute.xlu0 %766
  %770 = vst.msk [vmem:[#allocation2] sm:$0xff] %vm58, %v765
  %771 = vst.msk [vmem:[#allocation2 + $0x8] sm:$0xff] %vm58, %v767
  %v772 = vld [vmem:[#allocation3] sm:$0xff]
  %v773 = vld [vmem:[#allocation3 + $0x8] sm:$0xff]
  %776 = vrot.lane.b32.xlu0 %v772, 32
  %v777 = vpop.permute.xlu0 %776
  %778 = vrot.lane.b32.xlu0 %v773, 32
  %v779 = vpop.permute.xlu0 %778
  %v782 = vsel %vm751, %v716, %v777
  %v783 = vsel %vm751, %v717, %v779
  %786 = vrot.lane.b32.xlu0 %v782, 96
  %v787 = vpop.permute.xlu0 %786
  %788 = vrot.lane.b32.xlu0 %v783, 96
  %v789 = vpop.permute.xlu0 %788
  %792 = vst.msk [vmem:[#allocation3] sm:$0xff] %vm58, %v787
  %793 = vst.msk [vmem:[#allocation3 + $0x8] sm:$0xff] %vm58, %v789
  %s794 = scalar_lea.vmem %s0, 64
  %v795 = vld [vmem:[%s794] sm:$0xff]
  %v796 = vld [vmem:[%s794 + $0x8] sm:$0xff]
  %v797 = vld [vmem:[#allocation2] sm:$0xff]
  %v798 = vld [vmem:[#allocation2 + $0x8] sm:$0xff]
  %v799 = vld [vmem:[#allocation3] sm:$0xff]
  %v800 = vld [vmem:[#allocation3 + $0x8] sm:$0xff]
  %v801 = vld [vmem:[%s3] sm:$0xf]
  %v802 = vld [vmem:[%s3 + $0x4] sm:$0xf]
  %v803 = vld [vmem:[%s3 + $0x8] sm:$0xf]
  %v804 = vld [vmem:[%s3 + $0xc] sm:$0xf]
  %v805 = vpack.c.bf16 %v798, %v797
  %v810 = vunpack.c.l.b16 %v801
  %v811 = vunpack.c.l.b16 %v802
  %v812 = vunpack.c.l.b16 %v803
  %v813 = vunpack.c.l.b16 %v804
  %v814 = vpack.c.b16 %v811, %v810
  %v815 = vpack.c.b16 %v813, %v812
  %v819 = vsel %vm58, %v805, 0
  %821 = vmatprep.subr.bf16.mxu0 0
  %822 = vmatpush1.bf16.msra.mxu0 0
  %823 = vmatprep.subr.bf16.mxu0 0
  %824 = vmatpush1.bf16.msra.mxu0 0
  %825 = vmatprep.subr.bf16.mxu0 0
  %826 = vmatpush1.bf16.msra.mxu0 0
  %827 = vmatprep.subr.bf16.mxu0 0
  %828 = vmatpush1.bf16.msra.mxu0 0
  %829 = vmatprep.subr.bf16.mxu0 0
  %830 = vmatpush1.bf16.msra.mxu0 0
  %831 = vmatprep.subr.bf16.mxu0 0
  %832 = vmatpush1.bf16.msra.mxu0 0
  %833 = vmatprep.subr.bf16.mxu0 0
  %834 = vmatpush1.bf16.msra.mxu0 %v815
  %835 = vmatprep.subr.bf16.mxu0 0
  %836 = vmatpush1.bf16.msra.mxu0 %v814
  %837 = vmatprep.subr.bf16.mxu0 0
  %838 = vmatpush2.bf16.msra.mxu0 0
  %839 = vmatprep.subr.bf16.mxu0 0
  %840 = vmatpush2.bf16.msra.mxu0 0
  %841 = vmatprep.subr.bf16.mxu0 0
  %842 = vmatpush2.bf16.msra.mxu0 0
  %843 = vmatprep.subr.bf16.mxu0 0
  %844 = vmatpush2.bf16.msra.mxu0 0
  %845 = vmatprep.subr.bf16.mxu0 0
  %846 = vmatpush2.bf16.msra.mxu0 0
  %847 = vmatprep.subr.bf16.mxu0 0
  %848 = vmatpush2.bf16.msra.mxu0 0
  %849 = vmatprep.subr.bf16.mxu0 0
  %850 = vmatpush2.bf16.msra.mxu0 0
  %851 = vmatprep.subr.bf16.mxu0 0
  %852 = vmatpush2.bf16.msra.mxu0 0
  %853 = vmatprep.mubr.bf16.mxu0 0
  %854 = vmatmul.mubr.bf16.gmra.mxu0 %v819
  %v855 = vpop.f32.mrf.mxu0
  %v856 = vadd.f32 0.0, %v855
  %v857 = vpop.f32.mrf.mxu0
  %v858 = vpop.f32.mrf.mxu0
  %v859 = vadd.f32 0.0, %v858
  %v860 = vpop.f32.mrf.mxu0
  %861 = vdwg.mxu0
  %v862 = vadd.f32 %v795, %v856
  %v863 = vadd.f32 %v796, %v859
  %v864 = vxor.u32 %v862, 2147483648
  %v865 = vxor.u32 %v863, 2147483648
  %v866 = vmul.f32 %v864, 1.442695
  %v867 = vpow.pop %v866
  %v868 = vmul.f32 %v865, 1.442695
  %v869 = vpow.pop %v868
  %v870 = vadd.f32 %v867, 1.0
  %v871 = vadd.f32 %v869, 1.0
  %v872 = vrcp.pop %v870
  %v873 = vmul.f32 1.0, %v872
  %v874 = vrcp.pop %v871
  %v875 = vmul.f32 1.0, %v874
  %v876 = vtanh.pop %v862
  %v877 = vtanh.pop %v863
  %880 = vrot.lane.b32.xlu0 %v799, 32
  %v881 = vpop.permute.xlu0 %880
  %882 = vrot.lane.b32.xlu0 %v800, 32
  %v883 = vpop.permute.xlu0 %882
  %v886 = vmul.f32 %v873, %v881
  %v887 = vmul.f32 %v875, %v883
  %890 = vrot.lane.b32.xlu0 %v876, 64
  %v891 = vpop.permute.xlu0 %890
  %892 = vrot.lane.b32.xlu0 %v877, 64
  %v893 = vpop.permute.xlu0 %892
  %v896 = vmul.f32 %v873, %v891
  %v897 = vmul.f32 %v875, %v893
  %900 = vrot.lane.b32.xlu0 %v896, 32
  %v901 = vpop.permute.xlu0 %900
  %902 = vrot.lane.b32.xlu0 %v897, 32
  %v903 = vpop.permute.xlu0 %902
  %v906 = vadd.f32 %v886, %v901
  %v907 = vadd.f32 %v887, %v903
  %v908 = vtanh.pop %v906
  %v909 = vtanh.pop %v907
  %912 = vrot.lane.b32.xlu0 %v908, 64
  %v913 = vpop.permute.xlu0 %912
  %914 = vrot.lane.b32.xlu0 %v909, 64
  %v915 = vpop.permute.xlu0 %914
  %v918 = vmul.f32 %v873, %v913
  %v919 = vmul.f32 %v875, %v915
  %v920 = vpack.c.bf16 %v919, %v918
  %v922 = vunpack.c.l.b16 %v920
  %v923 = vunpack.c.h.b16 %v920
  %v924 = vpack.c.b16 %v922, %v922
  %v925 = vpack.c.b16 %v923, %v923
  %926 = vrot.lane.b32.xlu0 %v924, 32
  %v927 = vpop.permute.xlu0 %926
  %928 = vrot.lane.b32.xlu0 %v925, 32
  %v929 = vpop.permute.xlu0 %928
  %s932 = scalar_lea.vmem %s4, 32
  %933 = vst.msk [vmem:[%s932] sm:$0xf] %vm173, %v927
  %934 = vst.msk [vmem:[%s932 + $0x4] sm:$0xf] %vm173, %v929
  %s935 = sadd.s32 %s34, 4
  %p936 = scmp.lt.s32.totalorder %s935, 7
  %v937 = vld [vmem:[#allocation2] sm:$0xff]
  %v938 = vld [vmem:[#allocation2 + $0x8] sm:$0xff]
  %s939 = scalar_select %p936, 1, 0
  %v940 = vstv %s939
  %vm941 = vcmp.eq.s32.totalorder %v940, 1
  %944 = vrot.lane.b32.xlu0 %v937, 96
  %v945 = vpop.permute.xlu0 %944
  %946 = vrot.lane.b32.xlu0 %v938, 96
  %v947 = vpop.permute.xlu0 %946
  %v950 = vsel %vm941, %v918, %v945
  %v951 = vsel %vm941, %v919, %v947
  %954 = vrot.lane.b32.xlu0 %v950, 32
  %v955 = vpop.permute.xlu0 %954
  %956 = vrot.lane.b32.xlu0 %v951, 32
  %v957 = vpop.permute.xlu0 %956
  %960 = vst.msk [vmem:[#allocation2] sm:$0xff] %vm58, %v955
  %961 = vst.msk [vmem:[#allocation2 + $0x8] sm:$0xff] %vm58, %v957
  %v962 = vld [vmem:[#allocation3] sm:$0xff]
  %v963 = vld [vmem:[#allocation3 + $0x8] sm:$0xff]
  %966 = vrot.lane.b32.xlu0 %v962, 32
  %v967 = vpop.permute.xlu0 %966
  %968 = vrot.lane.b32.xlu0 %v963, 32
  %v969 = vpop.permute.xlu0 %968
  %v972 = vsel %vm941, %v906, %v967
  %v973 = vsel %vm941, %v907, %v969
  %976 = vrot.lane.b32.xlu0 %v972, 96
  %v977 = vpop.permute.xlu0 %976
  %978 = vrot.lane.b32.xlu0 %v973, 96
  %v979 = vpop.permute.xlu0 %978
  %982 = vst.msk [vmem:[#allocation3] sm:$0xff] %vm58, %v977
  %983 = vst.msk [vmem:[#allocation3 + $0x8] sm:$0xff] %vm58, %v979
  %s984 = scalar_lea.vmem %s0, 80
  %v985 = vld [vmem:[%s984] sm:$0xff]
  %v986 = vld [vmem:[%s984 + $0x8] sm:$0xff]
  %v987 = vld [vmem:[#allocation2] sm:$0xff]
  %v988 = vld [vmem:[#allocation2 + $0x8] sm:$0xff]
  %v989 = vld [vmem:[#allocation3] sm:$0xff]
  %v990 = vld [vmem:[#allocation3 + $0x8] sm:$0xff]
  %v991 = vld [vmem:[%s3] sm:$0xf]
  %v992 = vld [vmem:[%s3 + $0x4] sm:$0xf]
  %v993 = vld [vmem:[%s3 + $0x8] sm:$0xf]
  %v994 = vld [vmem:[%s3 + $0xc] sm:$0xf]
  %v995 = vpack.c.bf16 %v988, %v987
  %v1000 = vunpack.c.l.b16 %v991
  %v1001 = vunpack.c.l.b16 %v992
  %v1002 = vunpack.c.l.b16 %v993
  %v1003 = vunpack.c.l.b16 %v994
  %v1004 = vpack.c.b16 %v1001, %v1000
  %v1005 = vpack.c.b16 %v1003, %v1002
  %v1009 = vsel %vm58, %v995, 0
  %1011 = vmatprep.subr.bf16.mxu0 0
  %1012 = vmatpush1.bf16.msra.mxu0 0
  %1013 = vmatprep.subr.bf16.mxu0 0
  %1014 = vmatpush1.bf16.msra.mxu0 0
  %1015 = vmatprep.subr.bf16.mxu0 0
  %1016 = vmatpush1.bf16.msra.mxu0 0
  %1017 = vmatprep.subr.bf16.mxu0 0
  %1018 = vmatpush1.bf16.msra.mxu0 0
  %1019 = vmatprep.subr.bf16.mxu0 0
  %1020 = vmatpush1.bf16.msra.mxu0 0
  %1021 = vmatprep.subr.bf16.mxu0 0
  %1022 = vmatpush1.bf16.msra.mxu0 0
  %1023 = vmatprep.subr.bf16.mxu0 0
  %1024 = vmatpush1.bf16.msra.mxu0 %v1005
  %1025 = vmatprep.subr.bf16.mxu0 0
  %1026 = vmatpush1.bf16.msra.mxu0 %v1004
  %1027 = vmatprep.subr.bf16.mxu0 0
  %1028 = vmatpush2.bf16.msra.mxu0 0
  %1029 = vmatprep.subr.bf16.mxu0 0
  %1030 = vmatpush2.bf16.msra.mxu0 0
  %1031 = vmatprep.subr.bf16.mxu0 0
  %1032 = vmatpush2.bf16.msra.mxu0 0
  %1033 = vmatprep.subr.bf16.mxu0 0
  %1034 = vmatpush2.bf16.msra.mxu0 0
  %1035 = vmatprep.subr.bf16.mxu0 0
  %1036 = vmatpush2.bf16.msra.mxu0 0
  %1037 = vmatprep.subr.bf16.mxu0 0
  %1038 = vmatpush2.bf16.msra.mxu0 0
  %1039 = vmatprep.subr.bf16.mxu0 0
  %1040 = vmatpush2.bf16.msra.mxu0 0
  %1041 = vmatprep.subr.bf16.mxu0 0
  %1042 = vmatpush2.bf16.msra.mxu0 0
  %1043 = vmatprep.mubr.bf16.mxu0 0
  %1044 = vmatmul.mubr.bf16.gmra.mxu0 %v1009
  %v1045 = vpop.f32.mrf.mxu0
  %v1046 = vadd.f32 0.0, %v1045
  %v1047 = vpop.f32.mrf.mxu0
  %v1048 = vpop.f32.mrf.mxu0
  %v1049 = vadd.f32 0.0, %v1048
  %v1050 = vpop.f32.mrf.mxu0
  %1051 = vdwg.mxu0
  %v1052 = vadd.f32 %v985, %v1046
  %v1053 = vadd.f32 %v986, %v1049
  %v1054 = vxor.u32 %v1052, 2147483648
  %v1055 = vxor.u32 %v1053, 2147483648
  %v1056 = vmul.f32 %v1054, 1.442695
  %v1057 = vpow.pop %v1056
  %v1058 = vmul.f32 %v1055, 1.442695
  %v1059 = vpow.pop %v1058
  %v1060 = vadd.f32 %v1057, 1.0
  %v1061 = vadd.f32 %v1059, 1.0
  %v1062 = vrcp.pop %v1060
  %v1063 = vmul.f32 1.0, %v1062
  %v1064 = vrcp.pop %v1061
  %v1065 = vmul.f32 1.0, %v1064
  %v1066 = vtanh.pop %v1052
  %v1067 = vtanh.pop %v1053
  %1070 = vrot.lane.b32.xlu0 %v989, 32
  %v1071 = vpop.permute.xlu0 %1070
  %1072 = vrot.lane.b32.xlu0 %v990, 32
  %v1073 = vpop.permute.xlu0 %1072
  %v1076 = vmul.f32 %v1063, %v1071
  %v1077 = vmul.f32 %v1065, %v1073
  %1080 = vrot.lane.b32.xlu0 %v1066, 64
  %v1081 = vpop.permute.xlu0 %1080
  %1082 = vrot.lane.b32.xlu0 %v1067, 64
  %v1083 = vpop.permute.xlu0 %1082
  %v1086 = vmul.f32 %v1063, %v1081
  %v1087 = vmul.f32 %v1065, %v1083
  %1090 = vrot.lane.b32.xlu0 %v1086, 32
  %v1091 = vpop.permute.xlu0 %1090
  %1092 = vrot.lane.b32.xlu0 %v1087, 32
  %v1093 = vpop.permute.xlu0 %1092
  %v1096 = vadd.f32 %v1076, %v1091
  %v1097 = vadd.f32 %v1077, %v1093
  %v1098 = vtanh.pop %v1096
  %v1099 = vtanh.pop %v1097
  %1102 = vrot.lane.b32.xlu0 %v1098, 64
  %v1103 = vpop.permute.xlu0 %1102
  %1104 = vrot.lane.b32.xlu0 %v1099, 64
  %v1105 = vpop.permute.xlu0 %1104
  %v1108 = vmul.f32 %v1063, %v1103
  %v1109 = vmul.f32 %v1065, %v1105
  %v1110 = vpack.c.bf16 %v1109, %v1108
  %v1112 = vunpack.c.l.b16 %v1110
  %v1113 = vunpack.c.h.b16 %v1110
  %v1114 = vpack.c.b16 %v1112, %v1112
  %v1115 = vpack.c.b16 %v1113, %v1113
  %1116 = vrot.lane.b32.xlu0 %v1114, 32
  %v1117 = vpop.permute.xlu0 %1116
  %1118 = vrot.lane.b32.xlu0 %v1115, 32
  %v1119 = vpop.permute.xlu0 %1118
  %s1122 = scalar_lea.vmem %s4, 40
  %1123 = vst.msk [vmem:[%s1122] sm:$0xf] %vm173, %v1117
  %1124 = vst.msk [vmem:[%s1122 + $0x4] sm:$0xf] %vm173, %v1119
  %s1125 = sadd.s32 %s34, 5
  %p1126 = scmp.lt.s32.totalorder %s1125, 7
  %v1127 = vld [vmem:[#allocation2] sm:$0xff]
  %v1128 = vld [vmem:[#allocation2 + $0x8] sm:$0xff]
  %s1129 = scalar_select %p1126, 1, 0
  %v1130 = vstv %s1129
  %vm1131 = vcmp.eq.s32.totalorder %v1130, 1
  %1134 = vrot.lane.b32.xlu0 %v1127, 96
  %v1135 = vpop.permute.xlu0 %1134
  %1136 = vrot.lane.b32.xlu0 %v1128, 96
  %v1137 = vpop.permute.xlu0 %1136
  %v1140 = vsel %vm1131, %v1108, %v1135
  %v1141 = vsel %vm1131, %v1109, %v1137
  %1144 = vrot.lane.b32.xlu0 %v1140, 32
  %v1145 = vpop.permute.xlu0 %1144
  %1146 = vrot.lane.b32.xlu0 %v1141, 32
  %v1147 = vpop.permute.xlu0 %1146
  %1150 = vst.msk [vmem:[#allocation2] sm:$0xff] %vm58, %v1145
  %1151 = vst.msk [vmem:[#allocation2 + $0x8] sm:$0xff] %vm58, %v1147
  %v1152 = vld [vmem:[#allocation3] sm:$0xff]
  %v1153 = vld [vmem:[#allocation3 + $0x8] sm:$0xff]
  %1156 = vrot.lane.b32.xlu0 %v1152, 32
  %v1157 = vpop.permute.xlu0 %1156
  %1158 = vrot.lane.b32.xlu0 %v1153, 32
  %v1159 = vpop.permute.xlu0 %1158
  %v1162 = vsel %vm1131, %v1096, %v1157
  %v1163 = vsel %vm1131, %v1097, %v1159
  %1166 = vrot.lane.b32.xlu0 %v1162, 96
  %v1167 = vpop.permute.xlu0 %1166
  %1168 = vrot.lane.b32.xlu0 %v1163, 96
  %v1169 = vpop.permute.xlu0 %1168
  %1172 = vst.msk [vmem:[#allocation3] sm:$0xff] %vm58, %v1167
  %1173 = vst.msk [vmem:[#allocation3 + $0x8] sm:$0xff] %vm58, %v1169
  %s1174 = scalar_lea.vmem %s0, 96
  %v1175 = vld [vmem:[%s1174] sm:$0xff]
  %v1176 = vld [vmem:[%s1174 + $0x8] sm:$0xff]
  %v1177 = vld [vmem:[#allocation2] sm:$0xff]
  %v1178 = vld [vmem:[#allocation2 + $0x8] sm:$0xff]
  %v1179 = vld [vmem:[#allocation3] sm:$0xff]
  %v1180 = vld [vmem:[#allocation3 + $0x8] sm:$0xff]
  %v1181 = vld [vmem:[%s3] sm:$0xf]
  %v1182 = vld [vmem:[%s3 + $0x4] sm:$0xf]
  %v1183 = vld [vmem:[%s3 + $0x8] sm:$0xf]
  %v1184 = vld [vmem:[%s3 + $0xc] sm:$0xf]
  %v1185 = vpack.c.bf16 %v1178, %v1177
  %v1190 = vunpack.c.l.b16 %v1181
  %v1191 = vunpack.c.l.b16 %v1182
  %v1192 = vunpack.c.l.b16 %v1183
  %v1193 = vunpack.c.l.b16 %v1184
  %v1194 = vpack.c.b16 %v1191, %v1190
  %v1195 = vpack.c.b16 %v1193, %v1192
  %v1199 = vsel %vm58, %v1185, 0
  %1201 = vmatprep.subr.bf16.mxu0 0
  %1202 = vmatpush1.bf16.msra.mxu0 0
  %1203 = vmatprep.subr.bf16.mxu0 0
  %1204 = vmatpush1.bf16.msra.mxu0 0
  %1205 = vmatprep.subr.bf16.mxu0 0
  %1206 = vmatpush1.bf16.msra.mxu0 0
  %1207 = vmatprep.subr.bf16.mxu0 0
  %1208 = vmatpush1.bf16.msra.mxu0 0
  %1209 = vmatprep.subr.bf16.mxu0 0
  %1210 = vmatpush1.bf16.msra.mxu0 0
  %1211 = vmatprep.subr.bf16.mxu0 0
  %1212 = vmatpush1.bf16.msra.mxu0 0
  %1213 = vmatprep.subr.bf16.mxu0 0
  %1214 = vmatpush1.bf16.msra.mxu0 %v1195
  %1215 = vmatprep.subr.bf16.mxu0 0
  %1216 = vmatpush1.bf16.msra.mxu0 %v1194
  %1217 = vmatprep.subr.bf16.mxu0 0
  %1218 = vmatpush2.bf16.msra.mxu0 0
  %1219 = vmatprep.subr.bf16.mxu0 0
  %1220 = vmatpush2.bf16.msra.mxu0 0
  %1221 = vmatprep.subr.bf16.mxu0 0
  %1222 = vmatpush2.bf16.msra.mxu0 0
  %1223 = vmatprep.subr.bf16.mxu0 0
  %1224 = vmatpush2.bf16.msra.mxu0 0
  %1225 = vmatprep.subr.bf16.mxu0 0
  %1226 = vmatpush2.bf16.msra.mxu0 0
  %1227 = vmatprep.subr.bf16.mxu0 0
  %1228 = vmatpush2.bf16.msra.mxu0 0
  %1229 = vmatprep.subr.bf16.mxu0 0
  %1230 = vmatpush2.bf16.msra.mxu0 0
  %1231 = vmatprep.subr.bf16.mxu0 0
  %1232 = vmatpush2.bf16.msra.mxu0 0
  %1233 = vmatprep.mubr.bf16.mxu0 0
  %1234 = vmatmul.mubr.bf16.gmra.mxu0 %v1199
  %v1235 = vpop.f32.mrf.mxu0
  %v1236 = vadd.f32 0.0, %v1235
  %v1237 = vpop.f32.mrf.mxu0
  %v1238 = vpop.f32.mrf.mxu0
  %v1239 = vadd.f32 0.0, %v1238
  %v1240 = vpop.f32.mrf.mxu0
  %1241 = vdwg.mxu0
  %v1242 = vadd.f32 %v1175, %v1236
  %v1243 = vadd.f32 %v1176, %v1239
  %v1244 = vxor.u32 %v1242, 2147483648
  %v1245 = vxor.u32 %v1243, 2147483648
  %v1246 = vmul.f32 %v1244, 1.442695
  %v1247 = vpow.pop %v1246
  %v1248 = vmul.f32 %v1245, 1.442695
  %v1249 = vpow.pop %v1248
  %v1250 = vadd.f32 %v1247, 1.0
  %v1251 = vadd.f32 %v1249, 1.0
  %v1252 = vrcp.pop %v1250
  %v1253 = vmul.f32 1.0, %v1252
  %v1254 = vrcp.pop %v1251
  %v1255 = vmul.f32 1.0, %v1254
  %v1256 = vtanh.pop %v1242
  %v1257 = vtanh.pop %v1243
  %1260 = vrot.lane.b32.xlu0 %v1179, 32
  %v1261 = vpop.permute.xlu0 %1260
  %1262 = vrot.lane.b32.xlu0 %v1180, 32
  %v1263 = vpop.permute.xlu0 %1262
  %v1266 = vmul.f32 %v1253, %v1261
  %v1267 = vmul.f32 %v1255, %v1263
  %1270 = vrot.lane.b32.xlu0 %v1256, 64
  %v1271 = vpop.permute.xlu0 %1270
  %1272 = vrot.lane.b32.xlu0 %v1257, 64
  %v1273 = vpop.permute.xlu0 %1272
  %v1276 = vmul.f32 %v1253, %v1271
  %v1277 = vmul.f32 %v1255, %v1273
  %1280 = vrot.lane.b32.xlu0 %v1276, 32
  %v1281 = vpop.permute.xlu0 %1280
  %1282 = vrot.lane.b32.xlu0 %v1277, 32
  %v1283 = vpop.permute.xlu0 %1282
  %v1286 = vadd.f32 %v1266, %v1281
  %v1287 = vadd.f32 %v1267, %v1283
  %v1288 = vtanh.pop %v1286
  %v1289 = vtanh.pop %v1287
  %1292 = vrot.lane.b32.xlu0 %v1288, 64
  %v1293 = vpop.permute.xlu0 %1292
  %1294 = vrot.lane.b32.xlu0 %v1289, 64
  %v1295 = vpop.permute.xlu0 %1294
  %v1298 = vmul.f32 %v1253, %v1293
  %v1299 = vmul.f32 %v1255, %v1295
  %v1300 = vpack.c.bf16 %v1299, %v1298
  %v1302 = vunpack.c.l.b16 %v1300
  %v1303 = vunpack.c.h.b16 %v1300
  %v1304 = vpack.c.b16 %v1302, %v1302
  %v1305 = vpack.c.b16 %v1303, %v1303
  %1306 = vrot.lane.b32.xlu0 %v1304, 32
  %v1307 = vpop.permute.xlu0 %1306
  %1308 = vrot.lane.b32.xlu0 %v1305, 32
  %v1309 = vpop.permute.xlu0 %1308
  %s1312 = scalar_lea.vmem %s4, 48
  %1313 = vst.msk [vmem:[%s1312] sm:$0xf] %vm173, %v1307
  %1314 = vst.msk [vmem:[%s1312 + $0x4] sm:$0xf] %vm173, %v1309
  %s1315 = sadd.s32 %s34, 6
  %p1316 = scmp.lt.s32.totalorder %s1315, 7
  %v1317 = vld [vmem:[#allocation2] sm:$0xff]
  %v1318 = vld [vmem:[#allocation2 + $0x8] sm:$0xff]
  %s1319 = scalar_select %p1316, 1, 0
  %v1320 = vstv %s1319
  %vm1321 = vcmp.eq.s32.totalorder %v1320, 1
  %1324 = vrot.lane.b32.xlu0 %v1317, 96
  %v1325 = vpop.permute.xlu0 %1324
  %1326 = vrot.lane.b32.xlu0 %v1318, 96
  %v1327 = vpop.permute.xlu0 %1326
  %v1330 = vsel %vm1321, %v1298, %v1325
  %v1331 = vsel %vm1321, %v1299, %v1327
  %1334 = vrot.lane.b32.xlu0 %v1330, 32
  %v1335 = vpop.permute.xlu0 %1334
  %1336 = vrot.lane.b32.xlu0 %v1331, 32
  %v1337 = vpop.permute.xlu0 %1336
  %1340 = vst.msk [vmem:[#allocation2] sm:$0xff] %vm58, %v1335
  %1341 = vst.msk [vmem:[#allocation2 + $0x8] sm:$0xff] %vm58, %v1337
  %v1342 = vld [vmem:[#allocation3] sm:$0xff]
  %v1343 = vld [vmem:[#allocation3 + $0x8] sm:$0xff]
  %1346 = vrot.lane.b32.xlu0 %v1342, 32
  %v1347 = vpop.permute.xlu0 %1346
  %1348 = vrot.lane.b32.xlu0 %v1343, 32
  %v1349 = vpop.permute.xlu0 %1348
  %v1352 = vsel %vm1321, %v1286, %v1347
  %v1353 = vsel %vm1321, %v1287, %v1349
  %1356 = vrot.lane.b32.xlu0 %v1352, 96
  %v1357 = vpop.permute.xlu0 %1356
  %1358 = vrot.lane.b32.xlu0 %v1353, 96
  %v1359 = vpop.permute.xlu0 %1358
  %1362 = vst.msk [vmem:[#allocation3] sm:$0xff] %vm58, %v1357
  %1363 = vst.msk [vmem:[#allocation3 + $0x8] sm:$0xff] %vm58, %v1359
  %s1364 = scalar_lea.vmem %s0, 112
  %v1365 = vld [vmem:[%s1364] sm:$0xff]
  %v1366 = vld [vmem:[%s1364 + $0x8] sm:$0xff]
  %v1367 = vld [vmem:[#allocation2] sm:$0xff]
  %v1368 = vld [vmem:[#allocation2 + $0x8] sm:$0xff]
  %v1369 = vld [vmem:[#allocation3] sm:$0xff]
  %v1370 = vld [vmem:[#allocation3 + $0x8] sm:$0xff]
  %v1371 = vld [vmem:[%s3] sm:$0xf]
  %v1372 = vld [vmem:[%s3 + $0x4] sm:$0xf]
  %v1373 = vld [vmem:[%s3 + $0x8] sm:$0xf]
  %v1374 = vld [vmem:[%s3 + $0xc] sm:$0xf]
  %v1375 = vpack.c.bf16 %v1368, %v1367
  %v1380 = vunpack.c.l.b16 %v1371
  %v1381 = vunpack.c.l.b16 %v1372
  %v1382 = vunpack.c.l.b16 %v1373
  %v1383 = vunpack.c.l.b16 %v1374
  %v1384 = vpack.c.b16 %v1381, %v1380
  %v1385 = vpack.c.b16 %v1383, %v1382
  %v1389 = vsel %vm58, %v1375, 0
  %1391 = vmatprep.subr.bf16.mxu0 0
  %1392 = vmatpush1.bf16.msra.mxu0 0
  %1393 = vmatprep.subr.bf16.mxu0 0
  %1394 = vmatpush1.bf16.msra.mxu0 0
  %1395 = vmatprep.subr.bf16.mxu0 0
  %1396 = vmatpush1.bf16.msra.mxu0 0
  %1397 = vmatprep.subr.bf16.mxu0 0
  %1398 = vmatpush1.bf16.msra.mxu0 0
  %1399 = vmatprep.subr.bf16.mxu0 0
  %1400 = vmatpush1.bf16.msra.mxu0 0
  %1401 = vmatprep.subr.bf16.mxu0 0
  %1402 = vmatpush1.bf16.msra.mxu0 0
  %1403 = vmatprep.subr.bf16.mxu0 0
  %1404 = vmatpush1.bf16.msra.mxu0 %v1385
  %1405 = vmatprep.subr.bf16.mxu0 0
  %1406 = vmatpush1.bf16.msra.mxu0 %v1384
  %1407 = vmatprep.subr.bf16.mxu0 0
  %1408 = vmatpush2.bf16.msra.mxu0 0
  %1409 = vmatprep.subr.bf16.mxu0 0
  %1410 = vmatpush2.bf16.msra.mxu0 0
  %1411 = vmatprep.subr.bf16.mxu0 0
  %1412 = vmatpush2.bf16.msra.mxu0 0
  %1413 = vmatprep.subr.bf16.mxu0 0
  %1414 = vmatpush2.bf16.msra.mxu0 0
  %1415 = vmatprep.subr.bf16.mxu0 0
  %1416 = vmatpush2.bf16.msra.mxu0 0
  %1417 = vmatprep.subr.bf16.mxu0 0
  %1418 = vmatpush2.bf16.msra.mxu0 0
  %1419 = vmatprep.subr.bf16.mxu0 0
  %1420 = vmatpush2.bf16.msra.mxu0 0
  %1421 = vmatprep.subr.bf16.mxu0 0
  %1422 = vmatpush2.bf16.msra.mxu0 0
  %1423 = vmatprep.mubr.bf16.mxu0 0
  %1424 = vmatmul.mubr.bf16.gmra.mxu0 %v1389
  %v1425 = vpop.f32.mrf.mxu0
  %v1426 = vadd.f32 0.0, %v1425
  %v1427 = vpop.f32.mrf.mxu0
  %v1428 = vpop.f32.mrf.mxu0
  %v1429 = vadd.f32 0.0, %v1428
  %v1430 = vpop.f32.mrf.mxu0
  %1431 = vdwg.mxu0
  %v1432 = vadd.f32 %v1365, %v1426
  %v1433 = vadd.f32 %v1366, %v1429
  %v1434 = vxor.u32 %v1432, 2147483648
  %v1435 = vxor.u32 %v1433, 2147483648
  %v1436 = vmul.f32 %v1434, 1.442695
  %v1437 = vpow.pop %v1436
  %v1438 = vmul.f32 %v1435, 1.442695
  %v1439 = vpow.pop %v1438
  %v1440 = vadd.f32 %v1437, 1.0
  %v1441 = vadd.f32 %v1439, 1.0
  %v1442 = vrcp.pop %v1440
  %v1443 = vmul.f32 1.0, %v1442
  %v1444 = vrcp.pop %v1441
  %v1445 = vmul.f32 1.0, %v1444
  %v1446 = vtanh.pop %v1432
  %v1447 = vtanh.pop %v1433
  %1450 = vrot.lane.b32.xlu0 %v1369, 32
  %v1451 = vpop.permute.xlu0 %1450
  %1452 = vrot.lane.b32.xlu0 %v1370, 32
  %v1453 = vpop.permute.xlu0 %1452
  %v1456 = vmul.f32 %v1443, %v1451
  %v1457 = vmul.f32 %v1445, %v1453
  %1460 = vrot.lane.b32.xlu0 %v1446, 64
  %v1461 = vpop.permute.xlu0 %1460
  %1462 = vrot.lane.b32.xlu0 %v1447, 64
  %v1463 = vpop.permute.xlu0 %1462
  %v1466 = vmul.f32 %v1443, %v1461
  %v1467 = vmul.f32 %v1445, %v1463
  %1470 = vrot.lane.b32.xlu0 %v1466, 32
  %v1471 = vpop.permute.xlu0 %1470
  %1472 = vrot.lane.b32.xlu0 %v1467, 32
  %v1473 = vpop.permute.xlu0 %1472
  %v1476 = vadd.f32 %v1456, %v1471
  %v1477 = vadd.f32 %v1457, %v1473
  %v1478 = vtanh.pop %v1476
  %v1479 = vtanh.pop %v1477
  %1482 = vrot.lane.b32.xlu0 %v1478, 64
  %v1483 = vpop.permute.xlu0 %1482
  %1484 = vrot.lane.b32.xlu0 %v1479, 64
  %v1485 = vpop.permute.xlu0 %1484
  %v1488 = vmul.f32 %v1443, %v1483
  %v1489 = vmul.f32 %v1445, %v1485
  %v1490 = vpack.c.bf16 %v1489, %v1488
  %v1492 = vunpack.c.l.b16 %v1490
  %v1493 = vunpack.c.h.b16 %v1490
  %v1494 = vpack.c.b16 %v1492, %v1492
  %v1495 = vpack.c.b16 %v1493, %v1493
  %1496 = vrot.lane.b32.xlu0 %v1494, 32
  %v1497 = vpop.permute.xlu0 %1496
  %1498 = vrot.lane.b32.xlu0 %v1495, 32
  %v1499 = vpop.permute.xlu0 %1498
  %s1502 = scalar_lea.vmem %s4, 56
  %1503 = vst.msk [vmem:[%s1502] sm:$0xf] %vm173, %v1497
  %1504 = vst.msk [vmem:[%s1502 + $0x4] sm:$0xf] %vm173, %v1499
  %s1505 = sadd.s32 %s34, 7
  %p1506 = scmp.lt.s32.totalorder %s1505, 7
  %v1507 = vld [vmem:[#allocation2] sm:$0xff]
  %v1508 = vld [vmem:[#allocation2 + $0x8] sm:$0xff]
  %s1509 = scalar_select %p1506, 1, 0
  %v1510 = vstv %s1509
  %vm1511 = vcmp.eq.s32.totalorder %v1510, 1
  %1514 = vrot.lane.b32.xlu0 %v1507, 96
  %v1515 = vpop.permute.xlu0 %1514
  %1516 = vrot.lane.b32.xlu0 %v1508, 96
  %v1517 = vpop.permute.xlu0 %1516
  %v1520 = vsel %vm1511, %v1488, %v1515
  %v1521 = vsel %vm1511, %v1489, %v1517
  %1524 = vrot.lane.b32.xlu0 %v1520, 32
  %v1525 = vpop.permute.xlu0 %1524
  %1526 = vrot.lane.b32.xlu0 %v1521, 32
  %v1527 = vpop.permute.xlu0 %1526
  %1530 = vst.msk [vmem:[#allocation2] sm:$0xff] %vm58, %v1525
  %1531 = vst.msk [vmem:[#allocation2 + $0x8] sm:$0xff] %vm58, %v1527
  %v1532 = vld [vmem:[#allocation3] sm:$0xff]
  %v1533 = vld [vmem:[#allocation3 + $0x8] sm:$0xff]
  %1536 = vrot.lane.b32.xlu0 %v1532, 32
  %v1537 = vpop.permute.xlu0 %1536
  %1538 = vrot.lane.b32.xlu0 %v1533, 32
  %v1539 = vpop.permute.xlu0 %1538
  %v1542 = vsel %vm1511, %v1476, %v1537
  %v1543 = vsel %vm1511, %v1477, %v1539
  %1546 = vrot.lane.b32.xlu0 %v1542, 96
  %v1547 = vpop.permute.xlu0 %1546
  %1548 = vrot.lane.b32.xlu0 %v1543, 96
  %v1549 = vpop.permute.xlu0 %1548
  %1552 = vst.msk [vmem:[#allocation3] sm:$0xff] %vm58, %v1547
  %1553 = vst.msk [vmem:[#allocation3 + $0x8] sm:$0xff] %vm58, %v1549
  // Predicated region
  $region22: #{seq2seq_forward.10} parent=0 // pred_check
    %p1554 = pneg %p21
  $region23: #{seq2seq_forward.10} parent=0 // pred_check_branch
    %1556 = sbr.rel (%p1554) target = $region25
  $region24: #{seq2seq_forward.10} parent=0 // pred_region
    %v1557 = vld [vmem:[#allocation2] sm:$0xff]
    %v1558 = vld [vmem:[#allocation2 + $0x8] sm:$0xff]
    %1559 = vst.msk [vmem:[%s5] sm:$0xff] %vm58, %v1557
    %1560 = vst.msk [vmem:[%s5 + $0x8] sm:$0xff] %vm58, %v1558
    %v1561 = vld [vmem:[#allocation3] sm:$0xff]
    %v1562 = vld [vmem:[#allocation3 + $0x8] sm:$0xff]
    %1563 = vst.msk [vmem:[%s6] sm:$0xff] %vm58, %v1561
    %1564 = vst.msk [vmem:[%s6 + $0x8] sm:$0xff] %vm58, %v1562
  $region25: #{seq2seq_forward.10} parent=0 // pred_fallthru
    _
  // Predicated region
  $region26: #{seq2seq_forward.10} parent=0 // pred_check
    _
  $region27: #{seq2seq_forward.10} parent=0 // pred_check_branch
    %1566 = sbr.rel (0) target = $region29
  $region28: #{seq2seq_forward.10} parent=0 // pred_region
    _
  $region29: #{seq2seq_forward.10} parent=0 // pred_fallthru
    _
  // Predicated region
  $region30: #{seq2seq_forward.10} parent=0 // pred_check
    _
  $region31: #{seq2seq_forward.10} parent=0 // pred_check_branch
    %1568 = sbr.rel (0) target = $region33
  $region32: #{seq2seq_forward.10} parent=0 // pred_region
    _
  $region33: #{seq2seq_forward.10} parent=0 // pred_fallthru
    _
  // Predicated region
  $region34: #{seq2seq_forward.10} parent=0 // pred_check
    _
  $region35: #{seq2seq_forward.10} parent=0 // pred_check_branch
    %1570 = sbr.rel (0) target = $region37
  $region36: #{seq2seq_forward.10} parent=0 // pred_region
    _
  $region37: #{seq2seq_forward.10} parent=0 // pred_fallthru
    _
  // Predicated region
  $region38: #{seq2seq_forward.10} parent=0 // pred_check
    _
  $region39: #{seq2seq_forward.10} parent=0 // pred_check_branch
    %1572 = sbr.rel (0) target = $region41
  $region40: #{seq2seq_forward.10} parent=0 // pred_region
    _
  $region41: #{seq2seq_forward.10} parent=0 // pred_fallthru
    _
  // Predicated region
  $region42: #{seq2seq_forward.10} parent=0 // pred_check
    _
  $region43: #{seq2seq_forward.10} parent=0 // pred_check_branch
    %1574 = sbr.rel (0) target = $region45
  $region44: #{seq2seq_forward.10} parent=0 // pred_region
    _
  $region45: #{seq2seq_forward.10} parent=0 // pred_fallthru
    _
  // Predicated region
  $region46: #{seq2seq_forward.10} parent=0 // pred_check
    _
  $region47: #{seq2seq_forward.10} parent=0 // pred_check_branch
    %1576 = sbr.rel (0) target = $region49
  $region48: #{seq2seq_forward.10} parent=0 // pred_region
    _
  $region49: #{seq2seq_forward.10} parent=0 // pred_fallthru
    _

// kernel: seq2seq_forward.8
$region0: #{seq2seq_forward.8}
  #allocation0 [shape = 'u32[]', space=smem, size = 0x4, offset = 0x4, fixed_abs, tag = 'smem constant byte address 0x4 - core index']
  #allocation1 [shape = 'u32[144,128]{1,0:T(1,128)}', space=vmem, size = 0x12000, scoped, tag = 'internal scratch']
  #allocation2 [shape = 'f32[16,16]{1,0:T(8,128)}', space=vmem, size = 0x2000, scoped, tag = 'scratch operand']
  #allocation3 [shape = 'f32[16,16]{1,0:T(8,128)}', space=vmem, size = 0x2000, scoped, tag = 'scratch operand']
  #allocation4 [shape = 'f32[16,16]{1,0:T(8,128)}', space=vmem, size = 0x2000, scoped, tag = 'scratch operand']
  #allocation5 [shape = 'f32[16,16]{1,0:T(8,128)}', space=vmem, size = 0x2000, scoped, tag = 'scratch operand']
  %s0 = inlined_call_operand.vmem [shape: s32[16,1], index: 0, kind: input, shape index: {}]
  %s1 = inlined_call_operand.vmem [shape: f32[8,16,64], index: 1, kind: input, shape index: {}]
  %s2 = inlined_call_operand.vmem [shape: f32[8,16,64], index: 2, kind: input, shape index: {}]
  %s3 = inlined_call_operand.vmem [shape: bf16[16,64], index: 3, kind: input, shape index: {}]
  %s4 = inlined_call_operand.vmem [shape: bf16[16,64], index: 4, kind: input, shape index: {}]
  %s5 = inlined_call_operand.vmem [shape: f32[16,16], index: 5, kind: output, shape index: {0}]
  %s6 = inlined_call_operand.vmem [shape: f32[16,16], index: 6, kind: output, shape index: {1}]
  %s7 = inlined_call_operand.vmem [shape: f32[16,16], index: 7, kind: output, shape index: {2}]
  %s8 = inlined_call_operand.vmem [shape: f32[16,16], index: 8, kind: output, shape index: {3}]
  %9 = xla_tuple %s5, %s6, %s7, %s8
  %s10 = sld [smem:[#allocation0]]
  $region62: #{seq2seq_forward.8} parent=0
    _
  %s12 = ssub.s32 1, %s10
  %s13 = scalar_select 0, %s12, %s10
  // Predicated region
  $region2: #{seq2seq_forward.8} parent=0 // pred_check
    _
  $region3: #{seq2seq_forward.8} parent=0 // pred_check_branch
    %15 = sbr.rel (0) target = $region5
  $region4: #{seq2seq_forward.8} parent=0 // pred_region
    _
  $region5: #{seq2seq_forward.8} parent=0 // pred_fallthru
    _
  // Predicated region
  $region6: #{seq2seq_forward.8} parent=0 // pred_check
    _
  $region7: #{seq2seq_forward.8} parent=0 // pred_check_branch
    %17 = sbr.rel (0) target = $region9
  $region8: #{seq2seq_forward.8} parent=0 // pred_region
    _
  $region9: #{seq2seq_forward.8} parent=0 // pred_fallthru
    _
  // Predicated region
  $region10: #{seq2seq_forward.8} parent=0 // pred_check
    _
  $region11: #{seq2seq_forward.8} parent=0 // pred_check_branch
    %19 = sbr.rel (0) target = $region13
  $region12: #{seq2seq_forward.8} parent=0 // pred_region
    %s20 = ssub.s32 0, 0
    %s21 = smul.u32 8, %s20
    %p22 = scmp.lt.s32.totalorder %s21, 7
    %s23 = scalar_select %p22, %s21, 7
    %s24 = smul.addr %s23, 2
    %s25 = smul.addr %s24, 8
    %s26 = scalar_lea.vmem %s2, %s25
    %s27 = ssub.s32 0, 0
    %s28 = smul.u32 8, %s27
  $region13: #{seq2seq_forward.8} parent=0 // pred_fallthru
    _
  // Predicated region
  $region14: #{seq2seq_forward.8} parent=0 // pred_check
    _
  $region15: #{seq2seq_forward.8} parent=0 // pred_check_branch
    %30 = sbr.rel (0) target = $region17
  $region16: #{seq2seq_forward.8} parent=0 // pred_region
    _
  $region17: #{seq2seq_forward.8} parent=0 // pred_fallthru
    _
  // Predicated region
  $region18: #{seq2seq_forward.8} parent=0 // pred_check
    _
  $region19: #{seq2seq_forward.8} parent=0 // pred_check_branch
    %32 = sbr.rel (0) target = $region21
  $region20: #{seq2seq_forward.8} parent=0 // pred_region
    _
  $region21: #{seq2seq_forward.8} parent=0 // pred_fallthru
    _
  %s33 = ssub.s32 0, 0
  %s34 = smul.u32 8, %s33
  %p35 = scmp.lt.s32.totalorder %s34, 7
  %s36 = scalar_select %p35, %s34, 7
  %s37 = smul.addr %s36, 2
  %s38 = smul.addr %s37, 8
  %s39 = scalar_lea.vmem %s2, %s38
  %s40 = ssub.s32 0, 0
  %s41 = smul.u32 8, %s40
  %p42 = scmp.lt.s32.totalorder %s41, 7
  %s43 = scalar_select %p42, %s41, 7
  %s44 = smul.addr %s43, 2
  %s45 = smul.addr %s44, 8
  %s46 = scalar_lea.vmem %s2, %s45
  %s47 = ssub.s32 0, 0
  %s48 = smul.u32 8, %s47
  %p50 = scmp.eq.s32.totalorder 0, 0
  // Predicated region
  $region22: #{seq2seq_forward.8} parent=0 // pred_check
    %p51 = pneg %p50
  $region23: #{seq2seq_forward.8} parent=0 // pred_check_branch
    %53 = sbr.rel (%p51) target = $region25
  $region24: #{seq2seq_forward.8} parent=0 // pred_region
    %vm54 = vcmask 130048
    %55 = vst.msk [vmem:[#allocation2] sm:$0xff] %vm54, 0.0
    %56 = vst.msk [vmem:[#allocation2 + $0x8] sm:$0xff] %vm54, 0.0
    %57 = vst.msk [vmem:[#allocation3] sm:$0xff] %vm54, 0.0
    %58 = vst.msk [vmem:[#allocation3 + $0x8] sm:$0xff] %vm54, 0.0
    %59 = vst.msk [vmem:[#allocation4] sm:$0xff] %vm54, 0.0
    %60 = vst.msk [vmem:[#allocation4 + $0x8] sm:$0xff] %vm54, 0.0
    %61 = vst.msk [vmem:[#allocation5] sm:$0xff] %vm54, 0.0
    %62 = vst.msk [vmem:[#allocation5 + $0x8] sm:$0xff] %vm54, 0.0
  $region25: #{seq2seq_forward.8} parent=0 // pred_fallthru
    _
  %v63 = vld [vmem:[%s0] sm:$0xff]
  %v64 = vld [vmem:[%s0 + $0x8] sm:$0xff]
  %s65 = smul.u32 0, 8
  %v66 = vstv %s65
  %vm67 = vcmp.lt.s32.totalorder %v66, %v63
  %vm68 = vcmp.lt.s32.totalorder %v66, %v64
  %v69 = vld [vmem:[%s1] sm:$0xff]
  %v70 = vld [vmem:[%s1 + $0x8] sm:$0xff]
  %v71 = vld [vmem:[#allocation2] sm:$0xff]
  %v72 = vld [vmem:[#allocation2 + $0x8] sm:$0xff]
  %v73 = vld [vmem:[#allocation3] sm:$0xff]
  %v74 = vld [vmem:[#allocation3 + $0x8] sm:$0xff]
  %v75 = vld [vmem:[%s3] sm:$0xf]
  %v76 = vld [vmem:[%s3 + $0x4] sm:$0xf]
  %v77 = vpack.c.bf16 %v72, %v71
  %v80 = vunpack.c.l.b16 %v75
  %v81 = vunpack.c.l.b16 %v76
  %v82 = vpack.c.b16 %v81, %v80
  %vm84 = vcmask 130048
  %v86 = vsel %vm84, %v77, 0
  %88 = vmatprep.subr.bf16.mxu0 0
  %89 = vmatpush1.bf16.msra.mxu0 0
  %90 = vmatprep.subr.bf16.mxu0 0
  %91 = vmatpush1.bf16.msra.mxu0 0
  %92 = vmatprep.subr.bf16.mxu0 0
  %93 = vmatpush1.bf16.msra.mxu0 0
  %94 = vmatprep.subr.bf16.mxu0 0
  %95 = vmatpush1.bf16.msra.mxu0 0
  %96 = vmatprep.subr.bf16.mxu0 0
  %97 = vmatpush1.bf16.msra.mxu0 0
  %98 = vmatprep.subr.bf16.mxu0 0
  %99 = vmatpush1.bf16.msra.mxu0 0
  %100 = vmatprep.subr.bf16.mxu0 0
  %101 = vmatpush1.bf16.msra.mxu0 0
  %102 = vmatprep.subr.bf16.mxu0 0
  %103 = vmatpush1.bf16.msra.mxu0 %v82
  %104 = vmatprep.subr.bf16.mxu0 0
  %105 = vmatpush2.bf16.msra.mxu0 0
  %106 = vmatprep.subr.bf16.mxu0 0
  %107 = vmatpush2.bf16.msra.mxu0 0
  %108 = vmatprep.subr.bf16.mxu0 0
  %109 = vmatpush2.bf16.msra.mxu0 0
  %110 = vmatprep.subr.bf16.mxu0 0
  %111 = vmatpush2.bf16.msra.mxu0 0
  %112 = vmatprep.subr.bf16.mxu0 0
  %113 = vmatpush2.bf16.msra.mxu0 0
  %114 = vmatprep.subr.bf16.mxu0 0
  %115 = vmatpush2.bf16.msra.mxu0 0
  %116 = vmatprep.subr.bf16.mxu0 0
  %117 = vmatpush2.bf16.msra.mxu0 0
  %118 = vmatprep.subr.bf16.mxu0 0
  %119 = vmatpush2.bf16.msra.mxu0 0
  %120 = vmatprep.mubr.bf16.mxu0 0
  %121 = vmatmul.mubr.bf16.gmra.mxu0 %v86
  %v122 = vpop.f32.mrf.mxu0
  %v123 = vadd.f32 0.0, %v122
  %v124 = vpop.f32.mrf.mxu0
  %v125 = vpop.f32.mrf.mxu0
  %v126 = vadd.f32 0.0, %v125
  %v127 = vpop.f32.mrf.mxu0
  %128 = vdwg.mxu0
  %v129 = vadd.f32 %v69, %v123
  %v130 = vadd.f32 %v70, %v126
  %v131 = vxor.u32 %v129, 2147483648
  %v132 = vxor.u32 %v130, 2147483648
  %v133 = vmul.f32 %v131, 1.442695
  %v134 = vpow.pop %v133
  %v135 = vmul.f32 %v132, 1.442695
  %v136 = vpow.pop %v135
  %v137 = vadd.f32 %v134, 1.0
  %v138 = vadd.f32 %v136, 1.0
  %v139 = vrcp.pop %v137
  %v140 = vmul.f32 1.0, %v139
  %v141 = vrcp.pop %v138
  %v142 = vmul.f32 1.0, %v141
  %v143 = vtanh.pop %v129
  %v144 = vtanh.pop %v130
  %147 = vrot.lane.b32.xlu0 %v73, 16
  %v148 = vpop.permute.xlu0 %147
  %149 = vrot.lane.b32.xlu0 %v74, 16
  %v150 = vpop.permute.xlu0 %149
  %v153 = vmul.f32 %v140, %v148
  %v154 = vmul.f32 %v142, %v150
  %157 = vrot.lane.b32.xlu0 %v143, 96
  %v158 = vpop.permute.xlu0 %157
  %159 = vrot.lane.b32.xlu0 %v144, 96
  %v160 = vpop.permute.xlu0 %159
  %v163 = vmul.f32 %v140, %v158
  %v164 = vmul.f32 %v142, %v160
  %167 = vrot.lane.b32.xlu0 %v163, 16
  %v168 = vpop.permute.xlu0 %167
  %169 = vrot.lane.b32.xlu0 %v164, 16
  %v170 = vpop.permute.xlu0 %169
  %v173 = vadd.f32 %v153, %v168
  %v174 = vadd.f32 %v154, %v170
  %v175 = vtanh.pop %v173
  %v176 = vtanh.pop %v174
  %179 = vrot.lane.b32.xlu0 %v175, 32
  %v180 = vpop.permute.xlu0 %179
  %181 = vrot.lane.b32.xlu0 %v176, 32
  %v182 = vpop.permute.xlu0 %181
  %v185 = vmul.f32 %v140, %v180
  %v186 = vmul.f32 %v142, %v182
  %v187 = vsel %vm67, 1, 0
  %v188 = vsel %vm68, 1, 0
  %189 = vset.pattern.permute.xlu0 0
  %190 = vperm.xlu0 %189, %v187
  %v191 = vpop.permute.xlu0 %190
  %192 = vset.pattern.permute.xlu0 0
  %193 = vperm.xlu0 %192, %v188
  %v194 = vpop.permute.xlu0 %193
  %vm195 = vcmp.eq.s32.totalorder %v191, 1
  %vm196 = vcmp.eq.s32.totalorder %v194, 1
  %199 = vrot.lane.b32.xlu0 %v71, 48
  %v200 = vpop.permute.xlu0 %199
  %201 = vrot.lane.b32.xlu0 %v72, 48
  %v202 = vpop.permute.xlu0 %201
  %v205 = vsel %vm195, %v185, %v200
  %v206 = vsel %vm196, %v186, %v202
  %209 = vrot.lane.b32.xlu0 %v205, 80
  %v210 = vpop.permute.xlu0 %209
  %211 = vrot.lane.b32.xlu0 %v206, 80
  %v212 = vpop.permute.xlu0 %211
  %215 = vst.msk [vmem:[#allocation2] sm:$0xff] %vm84, %v210
  %216 = vst.msk [vmem:[#allocation2 + $0x8] sm:$0xff] %vm84, %v212
  %v217 = vld [vmem:[#allocation3] sm:$0xff]
  %v218 = vld [vmem:[#allocation3 + $0x8] sm:$0xff]
  %221 = vrot.lane.b32.xlu0 %v217, 16
  %v222 = vpop.permute.xlu0 %221
  %223 = vrot.lane.b32.xlu0 %v218, 16
  %v224 = vpop.permute.xlu0 %223
  %v227 = vsel %vm195, %v173, %v222
  %v228 = vsel %vm196, %v174, %v224
  %231 = vrot.lane.b32.xlu0 %v227, 112
  %v232 = vpop.permute.xlu0 %231
  %233 = vrot.lane.b32.xlu0 %v228, 112
  %v234 = vpop.permute.xlu0 %233
  %237 = vst.msk [vmem:[#allocation3] sm:$0xff] %vm84, %v232
  %238 = vst.msk [vmem:[#allocation3 + $0x8] sm:$0xff] %vm84, %v234
  %s239 = ssub.s32 7, %s65
  %v240 = vstv %s239
  %vm241 = vcmp.lt.s32.totalorder %v240, %v63
  %vm242 = vcmp.lt.s32.totalorder %v240, %v64
  %s243 = scalar_lea.vmem %s46, 112
  %v244 = vld [vmem:[%s243] sm:$0xff]
  %v245 = vld [vmem:[%s243 + $0x8] sm:$0xff]
  %v246 = vld [vmem:[#allocation4] sm:$0xff]
  %v247 = vld [vmem:[#allocation4 + $0x8] sm:$0xff]
  %v248 = vld [vmem:[#allocation5] sm:$0xff]
  %v249 = vld [vmem:[#allocation5 + $0x8] sm:$0xff]
  %v250 = vld [vmem:[%s4] sm:$0xf]
  %v251 = vld [vmem:[%s4 + $0x4] sm:$0xf]
  %v252 = vpack.c.bf16 %v247, %v246
  %v255 = vunpack.c.l.b16 %v250
  %v256 = vunpack.c.l.b16 %v251
  %v257 = vpack.c.b16 %v256, %v255
  %v260 = vsel %vm84, %v252, 0
  %262 = vmatprep.subr.bf16.mxu0 0
  %263 = vmatpush1.bf16.msra.mxu0 0
  %264 = vmatprep.subr.bf16.mxu0 0
  %265 = vmatpush1.bf16.msra.mxu0 0
  %266 = vmatprep.subr.bf16.mxu0 0
  %267 = vmatpush1.bf16.msra.mxu0 0
  %268 = vmatprep.subr.bf16.mxu0 0
  %269 = vmatpush1.bf16.msra.mxu0 0
  %270 = vmatprep.subr.bf16.mxu0 0
  %271 = vmatpush1.bf16.msra.mxu0 0
  %272 = vmatprep.subr.bf16.mxu0 0
  %273 = vmatpush1.bf16.msra.mxu0 0
  %274 = vmatprep.subr.bf16.mxu0 0
  %275 = vmatpush1.bf16.msra.mxu0 0
  %276 = vmatprep.subr.bf16.mxu0 0
  %277 = vmatpush1.bf16.msra.mxu0 %v257
  %278 = vmatprep.subr.bf16.mxu0 0
  %279 = vmatpush2.bf16.msra.mxu0 0
  %280 = vmatprep.subr.bf16.mxu0 0
  %281 = vmatpush2.bf16.msra.mxu0 0
  %282 = vmatprep.subr.bf16.mxu0 0
  %283 = vmatpush2.bf16.msra.mxu0 0
  %284 = vmatprep.subr.bf16.mxu0 0
  %285 = vmatpush2.bf16.msra.mxu0 0
  %286 = vmatprep.subr.bf16.mxu0 0
  %287 = vmatpush2.bf16.msra.mxu0 0
  %288 = vmatprep.subr.bf16.mxu0 0
  %289 = vmatpush2.bf16.msra.mxu0 0
  %290 = vmatprep.subr.bf16.mxu0 0
  %291 = vmatpush2.bf16.msra.mxu0 0
  %292 = vmatprep.subr.bf16.mxu0 0
  %293 = vmatpush2.bf16.msra.mxu0 0
  %294 = vmatprep.mubr.bf16.mxu0 0
  %295 = vmatmul.mubr.bf16.gmra.mxu0 %v260
  %v296 = vpop.f32.mrf.mxu0
  %v297 = vadd.f32 0.0, %v296
  %v298 = vpop.f32.mrf.mxu0
  %v299 = vpop.f32.mrf.mxu0
  %v300 = vadd.f32 0.0, %v299
  %v301 = vpop.f32.mrf.mxu0
  %302 = vdwg.mxu0
  %v303 = vadd.f32 %v244, %v297
  %v304 = vadd.f32 %v245, %v300
  %v305 = vxor.u32 %v303, 2147483648
  %v306 = vxor.u32 %v304, 2147483648
  %v307 = vmul.f32 %v305, 1.442695
  %v308 = vpow.pop %v307
  %v309 = vmul.f32 %v306, 1.442695
  %v310 = vpow.pop %v309
  %v311 = vadd.f32 %v308, 1.0
  %v312 = vadd.f32 %v310, 1.0
  %v313 = vrcp.pop %v311
  %v314 = vmul.f32 1.0, %v313
  %v315 = vrcp.pop %v312
  %v316 = vmul.f32 1.0, %v315
  %v317 = vtanh.pop %v303
  %v318 = vtanh.pop %v304
  %321 = vrot.lane.b32.xlu0 %v248, 16
  %v322 = vpop.permute.xlu0 %321
  %323 = vrot.lane.b32.xlu0 %v249, 16
  %v324 = vpop.permute.xlu0 %323
  %v327 = vmul.f32 %v314, %v322
  %v328 = vmul.f32 %v316, %v324
  %331 = vrot.lane.b32.xlu0 %v317, 96
  %v332 = vpop.permute.xlu0 %331
  %333 = vrot.lane.b32.xlu0 %v318, 96
  %v334 = vpop.permute.xlu0 %333
  %v337 = vmul.f32 %v314, %v332
  %v338 = vmul.f32 %v316, %v334
  %341 = vrot.lane.b32.xlu0 %v337, 16
  %v342 = vpop.permute.xlu0 %341
  %343 = vrot.lane.b32.xlu0 %v338, 16
  %v344 = vpop.permute.xlu0 %343
  %v347 = vadd.f32 %v327, %v342
  %v348 = vadd.f32 %v328, %v344
  %v349 = vtanh.pop %v347
  %v350 = vtanh.pop %v348
  %353 = vrot.lane.b32.xlu0 %v349, 32
  %v354 = vpop.permute.xlu0 %353
  %355 = vrot.lane.b32.xlu0 %v350, 32
  %v356 = vpop.permute.xlu0 %355
  %v359 = vmul.f32 %v314, %v354
  %v360 = vmul.f32 %v316, %v356
  %v361 = vsel %vm241, 1, 0
  %v362 = vsel %vm242, 1, 0
  %363 = vset.pattern.permute.xlu0 0
  %364 = vperm.xlu0 %363, %v361
  %v365 = vpop.permute.xlu0 %364
  %366 = vset.pattern.permute.xlu0 0
  %367 = vperm.xlu0 %366, %v362
  %v368 = vpop.permute.xlu0 %367
  %vm369 = vcmp.eq.s32.totalorder %v365, 1
  %vm370 = vcmp.eq.s32.totalorder %v368, 1
  %373 = vrot.lane.b32.xlu0 %v246, 48
  %v374 = vpop.permute.xlu0 %373
  %375 = vrot.lane.b32.xlu0 %v247, 48
  %v376 = vpop.permute.xlu0 %375
  %v379 = vsel %vm369, %v359, %v374
  %v380 = vsel %vm370, %v360, %v376
  %383 = vrot.lane.b32.xlu0 %v379, 80
  %v384 = vpop.permute.xlu0 %383
  %385 = vrot.lane.b32.xlu0 %v380, 80
  %v386 = vpop.permute.xlu0 %385
  %389 = vst.msk [vmem:[#allocation4] sm:$0xff] %vm84, %v384
  %390 = vst.msk [vmem:[#allocation4 + $0x8] sm:$0xff] %vm84, %v386
  %v391 = vld [vmem:[#allocation5] sm:$0xff]
  %v392 = vld [vmem:[#allocation5 + $0x8] sm:$0xff]
  %395 = vrot.lane.b32.xlu0 %v391, 16
  %v396 = vpop.permute.xlu0 %395
  %397 = vrot.lane.b32.xlu0 %v392, 16
  %v398 = vpop.permute.xlu0 %397
  %v401 = vsel %vm369, %v347, %v396
  %v402 = vsel %vm370, %v348, %v398
  %405 = vrot.lane.b32.xlu0 %v401, 112
  %v406 = vpop.permute.xlu0 %405
  %407 = vrot.lane.b32.xlu0 %v402, 112
  %v408 = vpop.permute.xlu0 %407
  %411 = vst.msk [vmem:[#allocation5] sm:$0xff] %vm84, %v406
  %412 = vst.msk [vmem:[#allocation5 + $0x8] sm:$0xff] %vm84, %v408
  %s413 = sadd.s32 %s65, 1
  %v414 = vstv %s413
  %vm415 = vcmp.lt.s32.totalorder %v414, %v63
  %vm416 = vcmp.lt.s32.totalorder %v414, %v64
  %s417 = scalar_lea.vmem %s1, 16
  %v418 = vld [vmem:[%s417] sm:$0xff]
  %v419 = vld [vmem:[%s417 + $0x8] sm:$0xff]
  %v420 = vld [vmem:[#allocation2] sm:$0xff]
  %v421 = vld [vmem:[#allocation2 + $0x8] sm:$0xff]
  %v422 = vld [vmem:[#allocation3] sm:$0xff]
  %v423 = vld [vmem:[#allocation3 + $0x8] sm:$0xff]
  %v424 = vld [vmem:[%s3] sm:$0xf]
  %v425 = vld [vmem:[%s3 + $0x4] sm:$0xf]
  %v426 = vpack.c.bf16 %v421, %v420
  %v429 = vunpack.c.l.b16 %v424
  %v430 = vunpack.c.l.b16 %v425
  %v431 = vpack.c.b16 %v430, %v429
  %v434 = vsel %vm84, %v426, 0
  %436 = vmatprep.subr.bf16.mxu0 0
  %437 = vmatpush1.bf16.msra.mxu0 0
  %438 = vmatprep.subr.bf16.mxu0 0
  %439 = vmatpush1.bf16.msra.mxu0 0
  %440 = vmatprep.subr.bf16.mxu0 0
  %441 = vmatpush1.bf16.msra.mxu0 0
  %442 = vmatprep.subr.bf16.mxu0 0
  %443 = vmatpush1.bf16.msra.mxu0 0
  %444 = vmatprep.subr.bf16.mxu0 0
  %445 = vmatpush1.bf16.msra.mxu0 0
  %446 = vmatprep.subr.bf16.mxu0 0
  %447 = vmatpush1.bf16.msra.mxu0 0
  %448 = vmatprep.subr.bf16.mxu0 0
  %449 = vmatpush1.bf16.msra.mxu0 0
  %450 = vmatprep.subr.bf16.mxu0 0
  %451 = vmatpush1.bf16.msra.mxu0 %v431
  %452 = vmatprep.subr.bf16.mxu0 0
  %453 = vmatpush2.bf16.msra.mxu0 0
  %454 = vmatprep.subr.bf16.mxu0 0
  %455 = vmatpush2.bf16.msra.mxu0 0
  %456 = vmatprep.subr.bf16.mxu0 0
  %457 = vmatpush2.bf16.msra.mxu0 0
  %458 = vmatprep.subr.bf16.mxu0 0
  %459 = vmatpush2.bf16.msra.mxu0 0
  %460 = vmatprep.subr.bf16.mxu0 0
  %461 = vmatpush2.bf16.msra.mxu0 0
  %462 = vmatprep.subr.bf16.mxu0 0
  %463 = vmatpush2.bf16.msra.mxu0 0
  %464 = vmatprep.subr.bf16.mxu0 0
  %465 = vmatpush2.bf16.msra.mxu0 0
  %466 = vmatprep.subr.bf16.mxu0 0
  %467 = vmatpush2.bf16.msra.mxu0 0
  %468 = vmatprep.mubr.bf16.mxu0 0
  %469 = vmatmul.mubr.bf16.gmra.mxu0 %v434
  %v470 = vpop.f32.mrf.mxu0
  %v471 = vadd.f32 0.0, %v470
  %v472 = vpop.f32.mrf.mxu0
  %v473 = vpop.f32.mrf.mxu0
  %v474 = vadd.f32 0.0, %v473
  %v475 = vpop.f32.mrf.mxu0
  %476 = vdwg.mxu0
  %v477 = vadd.f32 %v418, %v471
  %v478 = vadd.f32 %v419, %v474
  %v479 = vxor.u32 %v477, 2147483648
  %v480 = vxor.u32 %v478, 2147483648
  %v481 = vmul.f32 %v479, 1.442695
  %v482 = vpow.pop %v481
  %v483 = vmul.f32 %v480, 1.442695
  %v484 = vpow.pop %v483
  %v485 = vadd.f32 %v482, 1.0
  %v486 = vadd.f32 %v484, 1.0
  %v487 = vrcp.pop %v485
  %v488 = vmul.f32 1.0, %v487
  %v489 = vrcp.pop %v486
  %v490 = vmul.f32 1.0, %v489
  %v491 = vtanh.pop %v477
  %v492 = vtanh.pop %v478
  %495 = vrot.lane.b32.xlu0 %v422, 16
  %v496 = vpop.permute.xlu0 %495
  %497 = vrot.lane.b32.xlu0 %v423, 16
  %v498 = vpop.permute.xlu0 %497
  %v501 = vmul.f32 %v488, %v496
  %v502 = vmul.f32 %v490, %v498
  %505 = vrot.lane.b32.xlu0 %v491, 96
  %v506 = vpop.permute.xlu0 %505
  %507 = vrot.lane.b32.xlu0 %v492, 96
  %v508 = vpop.permute.xlu0 %507
  %v511 = vmul.f32 %v488, %v506
  %v512 = vmul.f32 %v490, %v508
  %515 = vrot.lane.b32.xlu0 %v511, 16
  %v516 = vpop.permute.xlu0 %515
  %517 = vrot.lane.b32.xlu0 %v512, 16
  %v518 = vpop.permute.xlu0 %517
  %v521 = vadd.f32 %v501, %v516
  %v522 = vadd.f32 %v502, %v518
  %v523 = vtanh.pop %v521
  %v524 = vtanh.pop %v522
  %527 = vrot.lane.b32.xlu0 %v523, 32
  %v528 = vpop.permute.xlu0 %527
  %529 = vrot.lane.b32.xlu0 %v524, 32
  %v530 = vpop.permute.xlu0 %529
  %v533 = vmul.f32 %v488, %v528
  %v534 = vmul.f32 %v490, %v530
  %v535 = vsel %vm415, 1, 0
  %v536 = vsel %vm416, 1, 0
  %537 = vset.pattern.permute.xlu0 0
  %538 = vperm.xlu0 %537, %v535
  %v539 = vpop.permute.xlu0 %538
  %540 = vset.pattern.permute.xlu0 0
  %541 = vperm.xlu0 %540, %v536
  %v542 = vpop.permute.xlu0 %541
  %vm543 = vcmp.eq.s32.totalorder %v539, 1
  %vm544 = vcmp.eq.s32.totalorder %v542, 1
  %547 = vrot.lane.b32.xlu0 %v420, 48
  %v548 = vpop.permute.xlu0 %547
  %549 = vrot.lane.b32.xlu0 %v421, 48
  %v550 = vpop.permute.xlu0 %549
  %v553 = vsel %vm543, %v533, %v548
  %v554 = vsel %vm544, %v534, %v550
  %557 = vrot.lane.b32.xlu0 %v553, 80
  %v558 = vpop.permute.xlu0 %557
  %559 = vrot.lane.b32.xlu0 %v554, 80
  %v560 = vpop.permute.xlu0 %559
  %563 = vst.msk [vmem:[#allocation2] sm:$0xff] %vm84, %v558
  %564 = vst.msk [vmem:[#allocation2 + $0x8] sm:$0xff] %vm84, %v560
  %v565 = vld [vmem:[#allocation3] sm:$0xff]
  %v566 = vld [vmem:[#allocation3 + $0x8] sm:$0xff]
  %569 = vrot.lane.b32.xlu0 %v565, 16
  %v570 = vpop.permute.xlu0 %569
  %571 = vrot.lane.b32.xlu0 %v566, 16
  %v572 = vpop.permute.xlu0 %571
  %v575 = vsel %vm543, %v521, %v570
  %v576 = vsel %vm544, %v522, %v572
  %579 = vrot.lane.b32.xlu0 %v575, 112
  %v580 = vpop.permute.xlu0 %579
  %581 = vrot.lane.b32.xlu0 %v576, 112
  %v582 = vpop.permute.xlu0 %581
  %585 = vst.msk [vmem:[#allocation3] sm:$0xff] %vm84, %v580
  %586 = vst.msk [vmem:[#allocation3 + $0x8] sm:$0xff] %vm84, %v582
  %s587 = ssub.s32 6, %s65
  %v588 = vstv %s587
  %vm589 = vcmp.lt.s32.totalorder %v588, %v63
  %vm590 = vcmp.lt.s32.totalorder %v588, %v64
  %s591 = scalar_lea.vmem %s46, 96
  %v592 = vld [vmem:[%s591] sm:$0xff]
  %v593 = vld [vmem:[%s591 + $0x8] sm:$0xff]
  %v594 = vld [vmem:[#allocation4] sm:$0xff]
  %v595 = vld [vmem:[#allocation4 + $0x8] sm:$0xff]
  %v596 = vld [vmem:[#allocation5] sm:$0xff]
  %v597 = vld [vmem:[#allocation5 + $0x8] sm:$0xff]
  %v598 = vld [vmem:[%s4] sm:$0xf]
  %v599 = vld [vmem:[%s4 + $0x4] sm:$0xf]
  %v600 = vpack.c.bf16 %v595, %v594
  %v603 = vunpack.c.l.b16 %v598
  %v604 = vunpack.c.l.b16 %v599
  %v605 = vpack.c.b16 %v604, %v603
  %v608 = vsel %vm84, %v600, 0
  %610 = vmatprep.subr.bf16.mxu0 0
  %611 = vmatpush1.bf16.msra.mxu0 0
  %612 = vmatprep.subr.bf16.mxu0 0
  %613 = vmatpush1.bf16.msra.mxu0 0
  %614 = vmatprep.subr.bf16.mxu0 0
  %615 = vmatpush1.bf16.msra.mxu0 0
  %616 = vmatprep.subr.bf16.mxu0 0
  %617 = vmatpush1.bf16.msra.mxu0 0
  %618 = vmatprep.subr.bf16.mxu0 0
  %619 = vmatpush1.bf16.msra.mxu0 0
  %620 = vmatprep.subr.bf16.mxu0 0
  %621 = vmatpush1.bf16.msra.mxu0 0
  %622 = vmatprep.subr.bf16.mxu0 0
  %623 = vmatpush1.bf16.msra.mxu0 0
  %624 = vmatprep.subr.bf16.mxu0 0
  %625 = vmatpush1.bf16.msra.mxu0 %v605
  %626 = vmatprep.subr.bf16.mxu0 0
  %627 = vmatpush2.bf16.msra.mxu0 0
  %628 = vmatprep.subr.bf16.mxu0 0
  %629 = vmatpush2.bf16.msra.mxu0 0
  %630 = vmatprep.subr.bf16.mxu0 0
  %631 = vmatpush2.bf16.msra.mxu0 0
  %632 = vmatprep.subr.bf16.mxu0 0
  %633 = vmatpush2.bf16.msra.mxu0 0
  %634 = vmatprep.subr.bf16.mxu0 0
  %635 = vmatpush2.bf16.msra.mxu0 0
  %636 = vmatprep.subr.bf16.mxu0 0
  %637 = vmatpush2.bf16.msra.mxu0 0
  %638 = vmatprep.subr.bf16.mxu0 0
  %639 = vmatpush2.bf16.msra.mxu0 0
  %640 = vmatprep.subr.bf16.mxu0 0
  %641 = vmatpush2.bf16.msra.mxu0 0
  %642 = vmatprep.mubr.bf16.mxu0 0
  %643 = vmatmul.mubr.bf16.gmra.mxu0 %v608
  %v644 = vpop.f32.mrf.mxu0
  %v645 = vadd.f32 0.0, %v644
  %v646 = vpop.f32.mrf.mxu0
  %v647 = vpop.f32.mrf.mxu0
  %v648 = vadd.f32 0.0, %v647
  %v649 = vpop.f32.mrf.mxu0
  %650 = vdwg.mxu0
  %v651 = vadd.f32 %v592, %v645
  %v652 = vadd.f32 %v593, %v648
  %v653 = vxor.u32 %v651, 2147483648
  %v654 = vxor.u32 %v652, 2147483648
  %v655 = vmul.f32 %v653, 1.442695
  %v656 = vpow.pop %v655
  %v657 = vmul.f32 %v654, 1.442695
  %v658 = vpow.pop %v657
  %v659 = vadd.f32 %v656, 1.0
  %v660 = vadd.f32 %v658, 1.0
  %v661 = vrcp.pop %v659
  %v662 = vmul.f32 1.0, %v661
  %v663 = vrcp.pop %v660
  %v664 = vmul.f32 1.0, %v663
  %v665 = vtanh.pop %v651
  %v666 = vtanh.pop %v652
  %669 = vrot.lane.b32.xlu0 %v596, 16
  %v670 = vpop.permute.xlu0 %669
  %671 = vrot.lane.b32.xlu0 %v597, 16
  %v672 = vpop.permute.xlu0 %671
  %v675 = vmul.f32 %v662, %v670
  %v676 = vmul.f32 %v664, %v672
  %679 = vrot.lane.b32.xlu0 %v665, 96
  %v680 = vpop.permute.xlu0 %679
  %681 = vrot.lane.b32.xlu0 %v666, 96
  %v682 = vpop.permute.xlu0 %681
  %v685 = vmul.f32 %v662, %v680
  %v686 = vmul.f32 %v664, %v682
  %689 = vrot.lane.b32.xlu0 %v685, 16
  %v690 = vpop.permute.xlu0 %689
  %691 = vrot.lane.b32.xlu0 %v686, 16
  %v692 = vpop.permute.xlu0 %691
  %v695 = vadd.f32 %v675, %v690
  %v696 = vadd.f32 %v676, %v692
  %v697 = vtanh.pop %v695
  %v698 = vtanh.pop %v696
  %701 = vrot.lane.b32.xlu0 %v697, 32
  %v702 = vpop.permute.xlu0 %701
  %703 = vrot.lane.b32.xlu0 %v698, 32
  %v704 = vpop.permute.xlu0 %703
  %v707 = vmul.f32 %v662, %v702
  %v708 = vmul.f32 %v664, %v704
  %v709 = vsel %vm589, 1, 0
  %v710 = vsel %vm590, 1, 0
  %711 = vset.pattern.permute.xlu0 0
  %712 = vperm.xlu0 %711, %v709
  %v713 = vpop.permute.xlu0 %712
  %714 = vset.pattern.permute.xlu0 0
  %715 = vperm.xlu0 %714, %v710
  %v716 = vpop.permute.xlu0 %715
  %vm717 = vcmp.eq.s32.totalorder %v713, 1
  %vm718 = vcmp.eq.s32.totalorder %v716, 1
  %721 = vrot.lane.b32.xlu0 %v594, 48
  %v722 = vpop.permute.xlu0 %721
  %723 = vrot.lane.b32.xlu0 %v595, 48
  %v724 = vpop.permute.xlu0 %723
  %v727 = vsel %vm717, %v707, %v722
  %v728 = vsel %vm718, %v708, %v724
  %731 = vrot.lane.b32.xlu0 %v727, 80
  %v732 = vpop.permute.xlu0 %731
  %733 = vrot.lane.b32.xlu0 %v728, 80
  %v734 = vpop.permute.xlu0 %733
  %737 = vst.msk [vmem:[#allocation4] sm:$0xff] %vm84, %v732
  %738 = vst.msk [vmem:[#allocation4 + $0x8] sm:$0xff] %vm84, %v734
  %v739 = vld [vmem:[#allocation5] sm:$0xff]
  %v740 = vld [vmem:[#allocation5 + $0x8] sm:$0xff]
  %743 = vrot.lane.b32.xlu0 %v739, 16
  %v744 = vpop.permute.xlu0 %743
  %745 = vrot.lane.b32.xlu0 %v740, 16
  %v746 = vpop.permute.xlu0 %745
  %v749 = vsel %vm717, %v695, %v744
  %v750 = vsel %vm718, %v696, %v746
  %753 = vrot.lane.b32.xlu0 %v749, 112
  %v754 = vpop.permute.xlu0 %753
  %755 = vrot.lane.b32.xlu0 %v750, 112
  %v756 = vpop.permute.xlu0 %755
  %759 = vst.msk [vmem:[#allocation5] sm:$0xff] %vm84, %v754
  %760 = vst.msk [vmem:[#allocation5 + $0x8] sm:$0xff] %vm84, %v756
  %s761 = sadd.s32 %s65, 2
  %v762 = vstv %s761
  %vm763 = vcmp.lt.s32.totalorder %v762, %v63
  %vm764 = vcmp.lt.s32.totalorder %v762, %v64
  %s765 = scalar_lea.vmem %s1, 32
  %v766 = vld [vmem:[%s765] sm:$0xff]
  %v767 = vld [vmem:[%s765 + $0x8] sm:$0xff]
  %v768 = vld [vmem:[#allocation2] sm:$0xff]
  %v769 = vld [vmem:[#allocation2 + $0x8] sm:$0xff]
  %v770 = vld [vmem:[#allocation3] sm:$0xff]
  %v771 = vld [vmem:[#allocation3 + $0x8] sm:$0xff]
  %v772 = vld [vmem:[%s3] sm:$0xf]
  %v773 = vld [vmem:[%s3 + $0x4] sm:$0xf]
  %v774 = vpack.c.bf16 %v769, %v768
  %v777 = vunpack.c.l.b16 %v772
  %v778 = vunpack.c.l.b16 %v773
  %v779 = vpack.c.b16 %v778, %v777
  %v782 = vsel %vm84, %v774, 0
  %784 = vmatprep.subr.bf16.mxu0 0
  %785 = vmatpush1.bf16.msra.mxu0 0
  %786 = vmatprep.subr.bf16.mxu0 0
  %787 = vmatpush1.bf16.msra.mxu0 0
  %788 = vmatprep.subr.bf16.mxu0 0
  %789 = vmatpush1.bf16.msra.mxu0 0
  %790 = vmatprep.subr.bf16.mxu0 0
  %791 = vmatpush1.bf16.msra.mxu0 0
  %792 = vmatprep.subr.bf16.mxu0 0
  %793 = vmatpush1.bf16.msra.mxu0 0
  %794 = vmatprep.subr.bf16.mxu0 0
  %795 = vmatpush1.bf16.msra.mxu0 0
  %796 = vmatprep.subr.bf16.mxu0 0
  %797 = vmatpush1.bf16.msra.mxu0 0
  %798 = vmatprep.subr.bf16.mxu0 0
  %799 = vmatpush1.bf16.msra.mxu0 %v779
  %800 = vmatprep.subr.bf16.mxu0 0
  %801 = vmatpush2.bf16.msra.mxu0 0
  %802 = vmatprep.subr.bf16.mxu0 0
  %803 = vmatpush2.bf16.msra.mxu0 0
  %804 = vmatprep.subr.bf16.mxu0 0
  %805 = vmatpush2.bf16.msra.mxu0 0
  %806 = vmatprep.subr.bf16.mxu0 0
  %807 = vmatpush2.bf16.msra.mxu0 0
  %808 = vmatprep.subr.bf16.mxu0 0
  %809 = vmatpush2.bf16.msra.mxu0 0
  %810 = vmatprep.subr.bf16.mxu0 0
  %811 = vmatpush2.bf16.msra.mxu0 0
  %812 = vmatprep.subr.bf16.mxu0 0
  %813 = vmatpush2.bf16.msra.mxu0 0
  %814 = vmatprep.subr.bf16.mxu0 0
  %815 = vmatpush2.bf16.msra.mxu0 0
  %816 = vmatprep.mubr.bf16.mxu0 0
  %817 = vmatmul.mubr.bf16.gmra.mxu0 %v782
  %v818 = vpop.f32.mrf.mxu0
  %v819 = vadd.f32 0.0, %v818
  %v820 = vpop.f32.mrf.mxu0
  %v821 = vpop.f32.mrf.mxu0
  %v822 = vadd.f32 0.0, %v821
  %v823 = vpop.f32.mrf.mxu0
  %824 = vdwg.mxu0
  %v825 = vadd.f32 %v766, %v819
  %v826 = vadd.f32 %v767, %v822
  %v827 = vxor.u32 %v825, 2147483648
  %v828 = vxor.u32 %v826, 2147483648
  %v829 = vmul.f32 %v827, 1.442695
  %v830 = vpow.pop %v829
  %v831 = vmul.f32 %v828, 1.442695
  %v832 = vpow.pop %v831
  %v833 = vadd.f32 %v830, 1.0
  %v834 = vadd.f32 %v832, 1.0
  %v835 = vrcp.pop %v833
  %v836 = vmul.f32 1.0, %v835
  %v837 = vrcp.pop %v834
  %v838 = vmul.f32 1.0, %v837
  %v839 = vtanh.pop %v825
  %v840 = vtanh.pop %v826
  %843 = vrot.lane.b32.xlu0 %v770, 16
  %v844 = vpop.permute.xlu0 %843
  %845 = vrot.lane.b32.xlu0 %v771, 16
  %v846 = vpop.permute.xlu0 %845
  %v849 = vmul.f32 %v836, %v844
  %v850 = vmul.f32 %v838, %v846
  %853 = vrot.lane.b32.xlu0 %v839, 96
  %v854 = vpop.permute.xlu0 %853
  %855 = vrot.lane.b32.xlu0 %v840, 96
  %v856 = vpop.permute.xlu0 %855
  %v859 = vmul.f32 %v836, %v854
  %v860 = vmul.f32 %v838, %v856
  %863 = vrot.lane.b32.xlu0 %v859, 16
  %v864 = vpop.permute.xlu0 %863
  %865 = vrot.lane.b32.xlu0 %v860, 16
  %v866 = vpop.permute.xlu0 %865
  %v869 = vadd.f32 %v849, %v864
  %v870 = vadd.f32 %v850, %v866
  %v871 = vtanh.pop %v869
  %v872 = vtanh.pop %v870
  %875 = vrot.lane.b32.xlu0 %v871, 32
  %v876 = vpop.permute.xlu0 %875
  %877 = vrot.lane.b32.xlu0 %v872, 32
  %v878 = vpop.permute.xlu0 %877
  %v881 = vmul.f32 %v836, %v876
  %v882 = vmul.f32 %v838, %v878
  %v883 = vsel %vm763, 1, 0
  %v884 = vsel %vm764, 1, 0
  %885 = vset.pattern.permute.xlu0 0
  %886 = vperm.xlu0 %885, %v883
  %v887 = vpop.permute.xlu0 %886
  %888 = vset.pattern.permute.xlu0 0
  %889 = vperm.xlu0 %888, %v884
  %v890 = vpop.permute.xlu0 %889
  %vm891 = vcmp.eq.s32.totalorder %v887, 1
  %vm892 = vcmp.eq.s32.totalorder %v890, 1
  %895 = vrot.lane.b32.xlu0 %v768, 48
  %v896 = vpop.permute.xlu0 %895
  %897 = vrot.lane.b32.xlu0 %v769, 48
  %v898 = vpop.permute.xlu0 %897
  %v901 = vsel %vm891, %v881, %v896
  %v902 = vsel %vm892, %v882, %v898
  %905 = vrot.lane.b32.xlu0 %v901, 80
  %v906 = vpop.permute.xlu0 %905
  %907 = vrot.lane.b32.xlu0 %v902, 80
  %v908 = vpop.permute.xlu0 %907
  %911 = vst.msk [vmem:[#allocation2] sm:$0xff] %vm84, %v906
  %912 = vst.msk [vmem:[#allocation2 + $0x8] sm:$0xff] %vm84, %v908
  %v913 = vld [vmem:[#allocation3] sm:$0xff]
  %v914 = vld [vmem:[#allocation3 + $0x8] sm:$0xff]
  %917 = vrot.lane.b32.xlu0 %v913, 16
  %v918 = vpop.permute.xlu0 %917
  %919 = vrot.lane.b32.xlu0 %v914, 16
  %v920 = vpop.permute.xlu0 %919
  %v923 = vsel %vm891, %v869, %v918
  %v924 = vsel %vm892, %v870, %v920
  %927 = vrot.lane.b32.xlu0 %v923, 112
  %v928 = vpop.permute.xlu0 %927
  %929 = vrot.lane.b32.xlu0 %v924, 112
  %v930 = vpop.permute.xlu0 %929
  %933 = vst.msk [vmem:[#allocation3] sm:$0xff] %vm84, %v928
  %934 = vst.msk [vmem:[#allocation3 + $0x8] sm:$0xff] %vm84, %v930
  %s935 = ssub.s32 5, %s65
  %v936 = vstv %s935
  %vm937 = vcmp.lt.s32.totalorder %v936, %v63
  %vm938 = vcmp.lt.s32.totalorder %v936, %v64
  %s939 = scalar_lea.vmem %s46, 80
  %v940 = vld [vmem:[%s939] sm:$0xff]
  %v941 = vld [vmem:[%s939 + $0x8] sm:$0xff]
  %v942 = vld [vmem:[#allocation4] sm:$0xff]
  %v943 = vld [vmem:[#allocation4 + $0x8] sm:$0xff]
  %v944 = vld [vmem:[#allocation5] sm:$0xff]
  %v945 = vld [vmem:[#allocation5 + $0x8] sm:$0xff]
  %v946 = vld [vmem:[%s4] sm:$0xf]
  %v947 = vld [vmem:[%s4 + $0x4] sm:$0xf]
  %v948 = vpack.c.bf16 %v943, %v942
  %v951 = vunpack.c.l.b16 %v946
  %v952 = vunpack.c.l.b16 %v947
  %v953 = vpack.c.b16 %v952, %v951
  %v956 = vsel %vm84, %v948, 0
  %958 = vmatprep.subr.bf16.mxu0 0
  %959 = vmatpush1.bf16.msra.mxu0 0
  %960 = vmatprep.subr.bf16.mxu0 0
  %961 = vmatpush1.bf16.msra.mxu0 0
  %962 = vmatprep.subr.bf16.mxu0 0
  %963 = vmatpush1.bf16.msra.mxu0 0
  %964 = vmatprep.subr.bf16.mxu0 0
  %965 = vmatpush1.bf16.msra.mxu0 0
  %966 = vmatprep.subr.bf16.mxu0 0
  %967 = vmatpush1.bf16.msra.mxu0 0
  %968 = vmatprep.subr.bf16.mxu0 0
  %969 = vmatpush1.bf16.msra.mxu0 0
  %970 = vmatprep.subr.bf16.mxu0 0
  %971 = vmatpush1.bf16.msra.mxu0 0
  %972 = vmatprep.subr.bf16.mxu0 0
  %973 = vmatpush1.bf16.msra.mxu0 %v953
  %974 = vmatprep.subr.bf16.mxu0 0
  %975 = vmatpush2.bf16.msra.mxu0 0
  %976 = vmatprep.subr.bf16.mxu0 0
  %977 = vmatpush2.bf16.msra.mxu0 0
  %978 = vmatprep.subr.bf16.mxu0 0
  %979 = vmatpush2.bf16.msra.mxu0 0
  %980 = vmatprep.subr.bf16.mxu0 0
  %981 = vmatpush2.bf16.msra.mxu0 0
  %982 = vmatprep.subr.bf16.mxu0 0
  %983 = vmatpush2.bf16.msra.mxu0 0
  %984 = vmatprep.subr.bf16.mxu0 0
  %985 = vmatpush2.bf16.msra.mxu0 0
  %986 = vmatprep.subr.bf16.mxu0 0
  %987 = vmatpush2.bf16.msra.mxu0 0
  %988 = vmatprep.subr.bf16.mxu0 0
  %989 = vmatpush2.bf16.msra.mxu0 0
  %990 = vmatprep.mubr.bf16.mxu0 0
  %991 = vmatmul.mubr.bf16.gmra.mxu0 %v956
  %v992 = vpop.f32.mrf.mxu0
  %v993 = vadd.f32 0.0, %v992
  %v994 = vpop.f32.mrf.mxu0
  %v995 = vpop.f32.mrf.mxu0
  %v996 = vadd.f32 0.0, %v995
  %v997 = vpop.f32.mrf.mxu0
  %998 = vdwg.mxu0
  %v999 = vadd.f32 %v940, %v993
  %v1000 = vadd.f32 %v941, %v996
  %v1001 = vxor.u32 %v999, 2147483648
  %v1002 = vxor.u32 %v1000, 2147483648
  %v1003 = vmul.f32 %v1001, 1.442695
  %v1004 = vpow.pop %v1003
  %v1005 = vmul.f32 %v1002, 1.442695
  %v1006 = vpow.pop %v1005
  %v1007 = vadd.f32 %v1004, 1.0
  %v1008 = vadd.f32 %v1006, 1.0
  %v1009 = vrcp.pop %v1007
  %v1010 = vmul.f32 1.0, %v1009
  %v1011 = vrcp.pop %v1008
  %v1012 = vmul.f32 1.0, %v1011
  %v1013 = vtanh.pop %v999
  %v1014 = vtanh.pop %v1000
  %1017 = vrot.lane.b32.xlu0 %v944, 16
  %v1018 = vpop.permute.xlu0 %1017
  %1019 = vrot.lane.b32.xlu0 %v945, 16
  %v1020 = vpop.permute.xlu0 %1019
  %v1023 = vmul.f32 %v1010, %v1018
  %v1024 = vmul.f32 %v1012, %v1020
  %1027 = vrot.lane.b32.xlu0 %v1013, 96
  %v1028 = vpop.permute.xlu0 %1027
  %1029 = vrot.lane.b32.xlu0 %v1014, 96
  %v1030 = vpop.permute.xlu0 %1029
  %v1033 = vmul.f32 %v1010, %v1028
  %v1034 = vmul.f32 %v1012, %v1030
  %1037 = vrot.lane.b32.xlu0 %v1033, 16
  %v1038 = vpop.permute.xlu0 %1037
  %1039 = vrot.lane.b32.xlu0 %v1034, 16
  %v1040 = vpop.permute.xlu0 %1039
  %v1043 = vadd.f32 %v1023, %v1038
  %v1044 = vadd.f32 %v1024, %v1040
  %v1045 = vtanh.pop %v1043
  %v1046 = vtanh.pop %v1044
  %1049 = vrot.lane.b32.xlu0 %v1045, 32
  %v1050 = vpop.permute.xlu0 %1049
  %1051 = vrot.lane.b32.xlu0 %v1046, 32
  %v1052 = vpop.permute.xlu0 %1051
  %v1055 = vmul.f32 %v1010, %v1050
  %v1056 = vmul.f32 %v1012, %v1052
  %v1057 = vsel %vm937, 1, 0
  %v1058 = vsel %vm938, 1, 0
  %1059 = vset.pattern.permute.xlu0 0
  %1060 = vperm.xlu0 %1059, %v1057
  %v1061 = vpop.permute.xlu0 %1060
  %1062 = vset.pattern.permute.xlu0 0
  %1063 = vperm.xlu0 %1062, %v1058
  %v1064 = vpop.permute.xlu0 %1063
  %vm1065 = vcmp.eq.s32.totalorder %v1061, 1
  %vm1066 = vcmp.eq.s32.totalorder %v1064, 1
  %1069 = vrot.lane.b32.xlu0 %v942, 48
  %v1070 = vpop.permute.xlu0 %1069
  %1071 = vrot.lane.b32.xlu0 %v943, 48
  %v1072 = vpop.permute.xlu0 %1071
  %v1075 = vsel %vm1065, %v1055, %v1070
  %v1076 = vsel %vm1066, %v1056, %v1072
  %1079 = vrot.lane.b32.xlu0 %v1075, 80
  %v1080 = vpop.permute.xlu0 %1079
  %1081 = vrot.lane.b32.xlu0 %v1076, 80
  %v1082 = vpop.permute.xlu0 %1081
  %1085 = vst.msk [vmem:[#allocation4] sm:$0xff] %vm84, %v1080
  %1086 = vst.msk [vmem:[#allocation4 + $0x8] sm:$0xff] %vm84, %v1082
  %v1087 = vld [vmem:[#allocation5] sm:$0xff]
  %v1088 = vld [vmem:[#allocation5 + $0x8] sm:$0xff]
  %1091 = vrot.lane.b32.xlu0 %v1087, 16
  %v1092 = vpop.permute.xlu0 %1091
  %1093 = vrot.lane.b32.xlu0 %v1088, 16
  %v1094 = vpop.permute.xlu0 %1093
  %v1097 = vsel %vm1065, %v1043, %v1092
  %v1098 = vsel %vm1066, %v1044, %v1094
  %1101 = vrot.lane.b32.xlu0 %v1097, 112
  %v1102 = vpop.permute.xlu0 %1101
  %1103 = vrot.lane.b32.xlu0 %v1098, 112
  %v1104 = vpop.permute.xlu0 %1103
  %1107 = vst.msk [vmem:[#allocation5] sm:$0xff] %vm84, %v1102
  %1108 = vst.msk [vmem:[#allocation5 + $0x8] sm:$0xff] %vm84, %v1104
  %s1109 = sadd.s32 %s65, 3
  %v1110 = vstv %s1109
  %vm1111 = vcmp.lt.s32.totalorder %v1110, %v63
  %vm1112 = vcmp.lt.s32.totalorder %v1110, %v64
  %s1113 = scalar_lea.vmem %s1, 48
  %v1114 = vld [vmem:[%s1113] sm:$0xff]
  %v1115 = vld [vmem:[%s1113 + $0x8] sm:$0xff]
  %v1116 = vld [vmem:[#allocation2] sm:$0xff]
  %v1117 = vld [vmem:[#allocation2 + $0x8] sm:$0xff]
  %v1118 = vld [vmem:[#allocation3] sm:$0xff]
  %v1119 = vld [vmem:[#allocation3 + $0x8] sm:$0xff]
  %v1120 = vld [vmem:[%s3] sm:$0xf]
  %v1121 = vld [vmem:[%s3 + $0x4] sm:$0xf]
  %v1122 = vpack.c.bf16 %v1117, %v1116
  %v1125 = vunpack.c.l.b16 %v1120
  %v1126 = vunpack.c.l.b16 %v1121
  %v1127 = vpack.c.b16 %v1126, %v1125
  %v1130 = vsel %vm84, %v1122, 0
  %1132 = vmatprep.subr.bf16.mxu0 0
  %1133 = vmatpush1.bf16.msra.mxu0 0
  %1134 = vmatprep.subr.bf16.mxu0 0
  %1135 = vmatpush1.bf16.msra.mxu0 0
  %1136 = vmatprep.subr.bf16.mxu0 0
  %1137 = vmatpush1.bf16.msra.mxu0 0
  %1138 = vmatprep.subr.bf16.mxu0 0
  %1139 = vmatpush1.bf16.msra.mxu0 0
  %1140 = vmatprep.subr.bf16.mxu0 0
  %1141 = vmatpush1.bf16.msra.mxu0 0
  %1142 = vmatprep.subr.bf16.mxu0 0
  %1143 = vmatpush1.bf16.msra.mxu0 0
  %1144 = vmatprep.subr.bf16.mxu0 0
  %1145 = vmatpush1.bf16.msra.mxu0 0
  %1146 = vmatprep.subr.bf16.mxu0 0
  %1147 = vmatpush1.bf16.msra.mxu0 %v1127
  %1148 = vmatprep.subr.bf16.mxu0 0
  %1149 = vmatpush2.bf16.msra.mxu0 0
  %1150 = vmatprep.subr.bf16.mxu0 0
  %1151 = vmatpush2.bf16.msra.mxu0 0
  %1152 = vmatprep.subr.bf16.mxu0 0
  %1153 = vmatpush2.bf16.msra.mxu0 0
  %1154 = vmatprep.subr.bf16.mxu0 0
  %1155 = vmatpush2.bf16.msra.mxu0 0
  %1156 = vmatprep.subr.bf16.mxu0 0
  %1157 = vmatpush2.bf16.msra.mxu0 0
  %1158 = vmatprep.subr.bf16.mxu0 0
  %1159 = vmatpush2.bf16.msra.mxu0 0
  %1160 = vmatprep.subr.bf16.mxu0 0
  %1161 = vmatpush2.bf16.msra.mxu0 0
  %1162 = vmatprep.subr.bf16.mxu0 0
  %1163 = vmatpush2.bf16.msra.mxu0 0
  %1164 = vmatprep.mubr.bf16.mxu0 0
  %1165 = vmatmul.mubr.bf16.gmra.mxu0 %v1130
  %v1166 = vpop.f32.mrf.mxu0
  %v1167 = vadd.f32 0.0, %v1166
  %v1168 = vpop.f32.mrf.mxu0
  %v1169 = vpop.f32.mrf.mxu0
  %v1170 = vadd.f32 0.0, %v1169
  %v1171 = vpop.f32.mrf.mxu0
  %1172 = vdwg.mxu0
  %v1173 = vadd.f32 %v1114, %v1167
  %v1174 = vadd.f32 %v1115, %v1170
  %v1175 = vxor.u32 %v1173, 2147483648
  %v1176 = vxor.u32 %v1174, 2147483648
  %v1177 = vmul.f32 %v1175, 1.442695
  %v1178 = vpow.pop %v1177
  %v1179 = vmul.f32 %v1176, 1.442695
  %v1180 = vpow.pop %v1179
  %v1181 = vadd.f32 %v1178, 1.0
  %v1182 = vadd.f32 %v1180, 1.0
  %v1183 = vrcp.pop %v1181
  %v1184 = vmul.f32 1.0, %v1183
  %v1185 = vrcp.pop %v1182
  %v1186 = vmul.f32 1.0, %v1185
  %v1187 = vtanh.pop %v1173
  %v1188 = vtanh.pop %v1174
  %1191 = vrot.lane.b32.xlu0 %v1118, 16
  %v1192 = vpop.permute.xlu0 %1191
  %1193 = vrot.lane.b32.xlu0 %v1119, 16
  %v1194 = vpop.permute.xlu0 %1193
  %v1197 = vmul.f32 %v1184, %v1192
  %v1198 = vmul.f32 %v1186, %v1194
  %1201 = vrot.lane.b32.xlu0 %v1187, 96
  %v1202 = vpop.permute.xlu0 %1201
  %1203 = vrot.lane.b32.xlu0 %v1188, 96
  %v1204 = vpop.permute.xlu0 %1203
  %v1207 = vmul.f32 %v1184, %v1202
  %v1208 = vmul.f32 %v1186, %v1204
  %1211 = vrot.lane.b32.xlu0 %v1207, 16
  %v1212 = vpop.permute.xlu0 %1211
  %1213 = vrot.lane.b32.xlu0 %v1208, 16
  %v1214 = vpop.permute.xlu0 %1213
  %v1217 = vadd.f32 %v1197, %v1212
  %v1218 = vadd.f32 %v1198, %v1214
  %v1219 = vtanh.pop %v1217
  %v1220 = vtanh.pop %v1218
  %1223 = vrot.lane.b32.xlu0 %v1219, 32
  %v1224 = vpop.permute.xlu0 %1223
  %1225 = vrot.lane.b32.xlu0 %v1220, 32
  %v1226 = vpop.permute.xlu0 %1225
  %v1229 = vmul.f32 %v1184, %v1224
  %v1230 = vmul.f32 %v1186, %v1226
  %v1231 = vsel %vm1111, 1, 0
  %v1232 = vsel %vm1112, 1, 0
  %1233 = vset.pattern.permute.xlu0 0
  %1234 = vperm.xlu0 %1233, %v1231
  %v1235 = vpop.permute.xlu0 %1234
  %1236 = vset.pattern.permute.xlu0 0
  %1237 = vperm.xlu0 %1236, %v1232
  %v1238 = vpop.permute.xlu0 %1237
  %vm1239 = vcmp.eq.s32.totalorder %v1235, 1
  %vm1240 = vcmp.eq.s32.totalorder %v1238, 1
  %1243 = vrot.lane.b32.xlu0 %v1116, 48
  %v1244 = vpop.permute.xlu0 %1243
  %1245 = vrot.lane.b32.xlu0 %v1117, 48
  %v1246 = vpop.permute.xlu0 %1245
  %v1249 = vsel %vm1239, %v1229, %v1244
  %v1250 = vsel %vm1240, %v1230, %v1246
  %1253 = vrot.lane.b32.xlu0 %v1249, 80
  %v1254 = vpop.permute.xlu0 %1253
  %1255 = vrot.lane.b32.xlu0 %v1250, 80
  %v1256 = vpop.permute.xlu0 %1255
  %1259 = vst.msk [vmem:[#allocation2] sm:$0xff] %vm84, %v1254
  %1260 = vst.msk [vmem:[#allocation2 + $0x8] sm:$0xff] %vm84, %v1256
  %v1261 = vld [vmem:[#allocation3] sm:$0xff]
  %v1262 = vld [vmem:[#allocation3 + $0x8] sm:$0xff]
  %1265 = vrot.lane.b32.xlu0 %v1261, 16
  %v1266 = vpop.permute.xlu0 %1265
  %1267 = vrot.lane.b32.xlu0 %v1262, 16
  %v1268 = vpop.permute.xlu0 %1267
  %v1271 = vsel %vm1239, %v1217, %v1266
  %v1272 = vsel %vm1240, %v1218, %v1268
  %1275 = vrot.lane.b32.xlu0 %v1271, 112
  %v1276 = vpop.permute.xlu0 %1275
  %1277 = vrot.lane.b32.xlu0 %v1272, 112
  %v1278 = vpop.permute.xlu0 %1277
  %1281 = vst.msk [vmem:[#allocation3] sm:$0xff] %vm84, %v1276
  %1282 = vst.msk [vmem:[#allocation3 + $0x8] sm:$0xff] %vm84, %v1278
  %s1283 = ssub.s32 4, %s65
  %v1284 = vstv %s1283
  %vm1285 = vcmp.lt.s32.totalorder %v1284, %v63
  %vm1286 = vcmp.lt.s32.totalorder %v1284, %v64
  %s1287 = scalar_lea.vmem %s46, 64
  %v1288 = vld [vmem:[%s1287] sm:$0xff]
  %v1289 = vld [vmem:[%s1287 + $0x8] sm:$0xff]
  %v1290 = vld [vmem:[#allocation4] sm:$0xff]
  %v1291 = vld [vmem:[#allocation4 + $0x8] sm:$0xff]
  %v1292 = vld [vmem:[#allocation5] sm:$0xff]
  %v1293 = vld [vmem:[#allocation5 + $0x8] sm:$0xff]
  %v1294 = vld [vmem:[%s4] sm:$0xf]
  %v1295 = vld [vmem:[%s4 + $0x4] sm:$0xf]
  %v1296 = vpack.c.bf16 %v1291, %v1290
  %v1299 = vunpack.c.l.b16 %v1294
  %v1300 = vunpack.c.l.b16 %v1295
  %v1301 = vpack.c.b16 %v1300, %v1299
  %v1304 = vsel %vm84, %v1296, 0
  %1306 = vmatprep.subr.bf16.mxu0 0
  %1307 = vmatpush1.bf16.msra.mxu0 0
  %1308 = vmatprep.subr.bf16.mxu0 0
  %1309 = vmatpush1.bf16.msra.mxu0 0
  %1310 = vmatprep.subr.bf16.mxu0 0
  %1311 = vmatpush1.bf16.msra.mxu0 0
  %1312 = vmatprep.subr.bf16.mxu0 0
  %1313 = vmatpush1.bf16.msra.mxu0 0
  %1314 = vmatprep.subr.bf16.mxu0 0
  %1315 = vmatpush1.bf16.msra.mxu0 0
  %1316 = vmatprep.subr.bf16.mxu0 0
  %1317 = vmatpush1.bf16.msra.mxu0 0
  %1318 = vmatprep.subr.bf16.mxu0 0
  %1319 = vmatpush1.bf16.msra.mxu0 0
  %1320 = vmatprep.subr.bf16.mxu0 0
  %1321 = vmatpush1.bf16.msra.mxu0 %v1301
  %1322 = vmatprep.subr.bf16.mxu0 0
  %1323 = vmatpush2.bf16.msra.mxu0 0
  %1324 = vmatprep.subr.bf16.mxu0 0
  %1325 = vmatpush2.bf16.msra.mxu0 0
  %1326 = vmatprep.subr.bf16.mxu0 0
  %1327 = vmatpush2.bf16.msra.mxu0 0
  %1328 = vmatprep.subr.bf16.mxu0 0
  %1329 = vmatpush2.bf16.msra.mxu0 0
  %1330 = vmatprep.subr.bf16.mxu0 0
  %1331 = vmatpush2.bf16.msra.mxu0 0
  %1332 = vmatprep.subr.bf16.mxu0 0
  %1333 = vmatpush2.bf16.msra.mxu0 0
  %1334 = vmatprep.subr.bf16.mxu0 0
  %1335 = vmatpush2.bf16.msra.mxu0 0
  %1336 = vmatprep.subr.bf16.mxu0 0
  %1337 = vmatpush2.bf16.msra.mxu0 0
  %1338 = vmatprep.mubr.bf16.mxu0 0
  %1339 = vmatmul.mubr.bf16.gmra.mxu0 %v1304
  %v1340 = vpop.f32.mrf.mxu0
  %v1341 = vadd.f32 0.0, %v1340
  %v1342 = vpop.f32.mrf.mxu0
  %v1343 = vpop.f32.mrf.mxu0
  %v1344 = vadd.f32 0.0, %v1343
  %v1345 = vpop.f32.mrf.mxu0
  %1346 = vdwg.mxu0
  %v1347 = vadd.f32 %v1288, %v1341
  %v1348 = vadd.f32 %v1289, %v1344
  %v1349 = vxor.u32 %v1347, 2147483648
  %v1350 = vxor.u32 %v1348, 2147483648
  %v1351 = vmul.f32 %v1349, 1.442695
  %v1352 = vpow.pop %v1351
  %v1353 = vmul.f32 %v1350, 1.442695
  %v1354 = vpow.pop %v1353
  %v1355 = vadd.f32 %v1352, 1.0
  %v1356 = vadd.f32 %v1354, 1.0
  %v1357 = vrcp.pop %v1355
  %v1358 = vmul.f32 1.0, %v1357
  %v1359 = vrcp.pop %v1356
  %v1360 = vmul.f32 1.0, %v1359
  %v1361 = vtanh.pop %v1347
  %v1362 = vtanh.pop %v1348
  %1365 = vrot.lane.b32.xlu0 %v1292, 16
  %v1366 = vpop.permute.xlu0 %1365
  %1367 = vrot.lane.b32.xlu0 %v1293, 16
  %v1368 = vpop.permute.xlu0 %1367
  %v1371 = vmul.f32 %v1358, %v1366
  %v1372 = vmul.f32 %v1360, %v1368
  %1375 = vrot.lane.b32.xlu0 %v1361, 96
  %v1376 = vpop.permute.xlu0 %1375
  %1377 = vrot.lane.b32.xlu0 %v1362, 96
  %v1378 = vpop.permute.xlu0 %1377
  %v1381 = vmul.f32 %v1358, %v1376
  %v1382 = vmul.f32 %v1360, %v1378
  %1385 = vrot.lane.b32.xlu0 %v1381, 16
  %v1386 = vpop.permute.xlu0 %1385
  %1387 = vrot.lane.b32.xlu0 %v1382, 16
  %v1388 = vpop.permute.xlu0 %1387
  %v1391 = vadd.f32 %v1371, %v1386
  %v1392 = vadd.f32 %v1372, %v1388
  %v1393 = vtanh.pop %v1391
  %v1394 = vtanh.pop %v1392
  %1397 = vrot.lane.b32.xlu0 %v1393, 32
  %v1398 = vpop.permute.xlu0 %1397
  %1399 = vrot.lane.b32.xlu0 %v1394, 32
  %v1400 = vpop.permute.xlu0 %1399
  %v1403 = vmul.f32 %v1358, %v1398
  %v1404 = vmul.f32 %v1360, %v1400
  %v1405 = vsel %vm1285, 1, 0
  %v1406 = vsel %vm1286, 1, 0
  %1407 = vset.pattern.permute.xlu0 0
  %1408 = vperm.xlu0 %1407, %v1405
  %v1409 = vpop.permute.xlu0 %1408
  %1410 = vset.pattern.permute.xlu0 0
  %1411 = vperm.xlu0 %1410, %v1406
  %v1412 = vpop.permute.xlu0 %1411
  %vm1413 = vcmp.eq.s32.totalorder %v1409, 1
  %vm1414 = vcmp.eq.s32.totalorder %v1412, 1
  %1417 = vrot.lane.b32.xlu0 %v1290, 48
  %v1418 = vpop.permute.xlu0 %1417
  %1419 = vrot.lane.b32.xlu0 %v1291, 48
  %v1420 = vpop.permute.xlu0 %1419
  %v1423 = vsel %vm1413, %v1403, %v1418
  %v1424 = vsel %vm1414, %v1404, %v1420
  %1427 = vrot.lane.b32.xlu0 %v1423, 80
  %v1428 = vpop.permute.xlu0 %1427
  %1429 = vrot.lane.b32.xlu0 %v1424, 80
  %v1430 = vpop.permute.xlu0 %1429
  %1433 = vst.msk [vmem:[#allocation4] sm:$0xff] %vm84, %v1428
  %1434 = vst.msk [vmem:[#allocation4 + $0x8] sm:$0xff] %vm84, %v1430
  %v1435 = vld [vmem:[#allocation5] sm:$0xff]
  %v1436 = vld [vmem:[#allocation5 + $0x8] sm:$0xff]
  %1439 = vrot.lane.b32.xlu0 %v1435, 16
  %v1440 = vpop.permute.xlu0 %1439
  %1441 = vrot.lane.b32.xlu0 %v1436, 16
  %v1442 = vpop.permute.xlu0 %1441
  %v1445 = vsel %vm1413, %v1391, %v1440
  %v1446 = vsel %vm1414, %v1392, %v1442
  %1449 = vrot.lane.b32.xlu0 %v1445, 112
  %v1450 = vpop.permute.xlu0 %1449
  %1451 = vrot.lane.b32.xlu0 %v1446, 112
  %v1452 = vpop.permute.xlu0 %1451
  %1455 = vst.msk [vmem:[#allocation5] sm:$0xff] %vm84, %v1450
  %1456 = vst.msk [vmem:[#allocation5 + $0x8] sm:$0xff] %vm84, %v1452
  %s1457 = sadd.s32 %s65, 4
  %v1458 = vstv %s1457
  %vm1459 = vcmp.lt.s32.totalorder %v1458, %v63
  %vm1460 = vcmp.lt.s32.totalorder %v1458, %v64
  %s1461 = scalar_lea.vmem %s1, 64
  %v1462 = vld [vmem:[%s1461] sm:$0xff]
  %v1463 = vld [vmem:[%s1461 + $0x8] sm:$0xff]
  %v1464 = vld [vmem:[#allocation2] sm:$0xff]
  %v1465 = vld [vmem:[#allocation2 + $0x8] sm:$0xff]
  %v1466 = vld [vmem:[#allocation3] sm:$0xff]
  %v1467 = vld [vmem:[#allocation3 + $0x8] sm:$0xff]
  %v1468 = vld [vmem:[%s3] sm:$0xf]
  %v1469 = vld [vmem:[%s3 + $0x4] sm:$0xf]
  %v1470 = vpack.c.bf16 %v1465, %v1464
  %v1473 = vunpack.c.l.b16 %v1468
  %v1474 = vunpack.c.l.b16 %v1469
  %v1475 = vpack.c.b16 %v1474, %v1473
  %v1478 = vsel %vm84, %v1470, 0
  %1480 = vmatprep.subr.bf16.mxu0 0
  %1481 = vmatpush1.bf16.msra.mxu0 0
  %1482 = vmatprep.subr.bf16.mxu0 0
  %1483 = vmatpush1.bf16.msra.mxu0 0
  %1484 = vmatprep.subr.bf16.mxu0 0
  %1485 = vmatpush1.bf16.msra.mxu0 0
  %1486 = vmatprep.subr.bf16.mxu0 0
  %1487 = vmatpush1.bf16.msra.mxu0 0
  %1488 = vmatprep.subr.bf16.mxu0 0
  %1489 = vmatpush1.bf16.msra.mxu0 0
  %1490 = vmatprep.subr.bf16.mxu0 0
  %1491 = vmatpush1.bf16.msra.mxu0 0
  %1492 = vmatprep.subr.bf16.mxu0 0
  %1493 = vmatpush1.bf16.msra.mxu0 0
  %1494 = vmatprep.subr.bf16.mxu0 0
  %1495 = vmatpush1.bf16.msra.mxu0 %v1475
  %1496 = vmatprep.subr.bf16.mxu0 0
  %1497 = vmatpush2.bf16.msra.mxu0 0
  %1498 = vmatprep.subr.bf16.mxu0 0
  %1499 = vmatpush2.bf16.msra.mxu0 0
  %1500 = vmatprep.subr.bf16.mxu0 0
  %1501 = vmatpush2.bf16.msra.mxu0 0
  %1502 = vmatprep.subr.bf16.mxu0 0
  %1503 = vmatpush2.bf16.msra.mxu0 0
  %1504 = vmatprep.subr.bf16.mxu0 0
  %1505 = vmatpush2.bf16.msra.mxu0 0
  %1506 = vmatprep.subr.bf16.mxu0 0
  %1507 = vmatpush2.bf16.msra.mxu0 0
  %1508 = vmatprep.subr.bf16.mxu0 0
  %1509 = vmatpush2.bf16.msra.mxu0 0
  %1510 = vmatprep.subr.bf16.mxu0 0
  %1511 = vmatpush2.bf16.msra.mxu0 0
  %1512 = vmatprep.mubr.bf16.mxu0 0
  %1513 = vmatmul.mubr.bf16.gmra.mxu0 %v1478
  %v1514 = vpop.f32.mrf.mxu0
  %v1515 = vadd.f32 0.0, %v1514
  %v1516 = vpop.f32.mrf.mxu0
  %v1517 = vpop.f32.mrf.mxu0
  %v1518 = vadd.f32 0.0, %v1517
  %v1519 = vpop.f32.mrf.mxu0
  %1520 = vdwg.mxu0
  %v1521 = vadd.f32 %v1462, %v1515
  %v1522 = vadd.f32 %v1463, %v1518
  %v1523 = vxor.u32 %v1521, 2147483648
  %v1524 = vxor.u32 %v1522, 2147483648
  %v1525 = vmul.f32 %v1523, 1.442695
  %v1526 = vpow.pop %v1525
  %v1527 = vmul.f32 %v1524, 1.442695
  %v1528 = vpow.pop %v1527
  %v1529 = vadd.f32 %v1526, 1.0
  %v1530 = vadd.f32 %v1528, 1.0
  %v1531 = vrcp.pop %v1529
  %v1532 = vmul.f32 1.0, %v1531
  %v1533 = vrcp.pop %v1530
  %v1534 = vmul.f32 1.0, %v1533
  %v1535 = vtanh.pop %v1521
  %v1536 = vtanh.pop %v1522
  %1539 = vrot.lane.b32.xlu0 %v1466, 16
  %v1540 = vpop.permute.xlu0 %1539
  %1541 = vrot.lane.b32.xlu0 %v1467, 16
  %v1542 = vpop.permute.xlu0 %1541
  %v1545 = vmul.f32 %v1532, %v1540
  %v1546 = vmul.f32 %v1534, %v1542
  %1549 = vrot.lane.b32.xlu0 %v1535, 96
  %v1550 = vpop.permute.xlu0 %1549
  %1551 = vrot.lane.b32.xlu0 %v1536, 96
  %v1552 = vpop.permute.xlu0 %1551
  %v1555 = vmul.f32 %v1532, %v1550
  %v1556 = vmul.f32 %v1534, %v1552
  %1559 = vrot.lane.b32.xlu0 %v1555, 16
  %v1560 = vpop.permute.xlu0 %1559
  %1561 = vrot.lane.b32.xlu0 %v1556, 16
  %v1562 = vpop.permute.xlu0 %1561
  %v1565 = vadd.f32 %v1545, %v1560
  %v1566 = vadd.f32 %v1546, %v1562
  %v1567 = vtanh.pop %v1565
  %v1568 = vtanh.pop %v1566
  %1571 = vrot.lane.b32.xlu0 %v1567, 32
  %v1572 = vpop.permute.xlu0 %1571
  %1573 = vrot.lane.b32.xlu0 %v1568, 32
  %v1574 = vpop.permute.xlu0 %1573
  %v1577 = vmul.f32 %v1532, %v1572
  %v1578 = vmul.f32 %v1534, %v1574
  %v1579 = vsel %vm1459, 1, 0
  %v1580 = vsel %vm1460, 1, 0
  %1581 = vset.pattern.permute.xlu0 0
  %1582 = vperm.xlu0 %1581, %v1579
  %v1583 = vpop.permute.xlu0 %1582
  %1584 = vset.pattern.permute.xlu0 0
  %1585 = vperm.xlu0 %1584, %v1580
  %v1586 = vpop.permute.xlu0 %1585
  %vm1587 = vcmp.eq.s32.totalorder %v1583, 1
  %vm1588 = vcmp.eq.s32.totalorder %v1586, 1
  %1591 = vrot.lane.b32.xlu0 %v1464, 48
  %v1592 = vpop.permute.xlu0 %1591
  %1593 = vrot.lane.b32.xlu0 %v1465, 48
  %v1594 = vpop.permute.xlu0 %1593
  %v1597 = vsel %vm1587, %v1577, %v1592
  %v1598 = vsel %vm1588, %v1578, %v1594
  %1601 = vrot.lane.b32.xlu0 %v1597, 80
  %v1602 = vpop.permute.xlu0 %1601
  %1603 = vrot.lane.b32.xlu0 %v1598, 80
  %v1604 = vpop.permute.xlu0 %1603
  %1607 = vst.msk [vmem:[#allocation2] sm:$0xff] %vm84, %v1602
  %1608 = vst.msk [vmem:[#allocation2 + $0x8] sm:$0xff] %vm84, %v1604
  %v1609 = vld [vmem:[#allocation3] sm:$0xff]
  %v1610 = vld [vmem:[#allocation3 + $0x8] sm:$0xff]
  %1613 = vrot.lane.b32.xlu0 %v1609, 16
  %v1614 = vpop.permute.xlu0 %1613
  %1615 = vrot.lane.b32.xlu0 %v1610, 16
  %v1616 = vpop.permute.xlu0 %1615
  %v1619 = vsel %vm1587, %v1565, %v1614
  %v1620 = vsel %vm1588, %v1566, %v1616
  %1623 = vrot.lane.b32.xlu0 %v1619, 112
  %v1624 = vpop.permute.xlu0 %1623
  %1625 = vrot.lane.b32.xlu0 %v1620, 112
  %v1626 = vpop.permute.xlu0 %1625
  %1629 = vst.msk [vmem:[#allocation3] sm:$0xff] %vm84, %v1624
  %1630 = vst.msk [vmem:[#allocation3 + $0x8] sm:$0xff] %vm84, %v1626
  %s1631 = ssub.s32 3, %s65
  %v1632 = vstv %s1631
  %vm1633 = vcmp.lt.s32.totalorder %v1632, %v63
  %vm1634 = vcmp.lt.s32.totalorder %v1632, %v64
  %s1635 = scalar_lea.vmem %s46, 48
  %v1636 = vld [vmem:[%s1635] sm:$0xff]
  %v1637 = vld [vmem:[%s1635 + $0x8] sm:$0xff]
  %v1638 = vld [vmem:[#allocation4] sm:$0xff]
  %v1639 = vld [vmem:[#allocation4 + $0x8] sm:$0xff]
  %v1640 = vld [vmem:[#allocation5] sm:$0xff]
  %v1641 = vld [vmem:[#allocation5 + $0x8] sm:$0xff]
  %v1642 = vld [vmem:[%s4] sm:$0xf]
  %v1643 = vld [vmem:[%s4 + $0x4] sm:$0xf]
  %v1644 = vpack.c.bf16 %v1639, %v1638
  %v1647 = vunpack.c.l.b16 %v1642
  %v1648 = vunpack.c.l.b16 %v1643
  %v1649 = vpack.c.b16 %v1648, %v1647
  %v1652 = vsel %vm84, %v1644, 0
  %1654 = vmatprep.subr.bf16.mxu0 0
  %1655 = vmatpush1.bf16.msra.mxu0 0
  %1656 = vmatprep.subr.bf16.mxu0 0
  %1657 = vmatpush1.bf16.msra.mxu0 0
  %1658 = vmatprep.subr.bf16.mxu0 0
  %1659 = vmatpush1.bf16.msra.mxu0 0
  %1660 = vmatprep.subr.bf16.mxu0 0
  %1661 = vmatpush1.bf16.msra.mxu0 0
  %1662 = vmatprep.subr.bf16.mxu0 0
  %1663 = vmatpush1.bf16.msra.mxu0 0
  %1664 = vmatprep.subr.bf16.mxu0 0
  %1665 = vmatpush1.bf16.msra.mxu0 0
  %1666 = vmatprep.subr.bf16.mxu0 0
  %1667 = vmatpush1.bf16.msra.mxu0 0
  %1668 = vmatprep.subr.bf16.mxu0 0
  %1669 = vmatpush1.bf16.msra.mxu0 %v1649
  %1670 = vmatprep.subr.bf16.mxu0 0
  %1671 = vmatpush2.bf16.msra.mxu0 0
  %1672 = vmatprep.subr.bf16.mxu0 0
  %1673 = vmatpush2.bf16.msra.mxu0 0
  %1674 = vmatprep.subr.bf16.mxu0 0
  %1675 = vmatpush2.bf16.msra.mxu0 0
  %1676 = vmatprep.subr.bf16.mxu0 0
  %1677 = vmatpush2.bf16.msra.mxu0 0
  %1678 = vmatprep.subr.bf16.mxu0 0
  %1679 = vmatpush2.bf16.msra.mxu0 0
  %1680 = vmatprep.subr.bf16.mxu0 0
  %1681 = vmatpush2.bf16.msra.mxu0 0
  %1682 = vmatprep.subr.bf16.mxu0 0
  %1683 = vmatpush2.bf16.msra.mxu0 0
  %1684 = vmatprep.subr.bf16.mxu0 0
  %1685 = vmatpush2.bf16.msra.mxu0 0
  %1686 = vmatprep.mubr.bf16.mxu0 0
  %1687 = vmatmul.mubr.bf16.gmra.mxu0 %v1652
  %v1688 = vpop.f32.mrf.mxu0
  %v1689 = vadd.f32 0.0, %v1688
  %v1690 = vpop.f32.mrf.mxu0
  %v1691 = vpop.f32.mrf.mxu0
  %v1692 = vadd.f32 0.0, %v1691
  %v1693 = vpop.f32.mrf.mxu0
  %1694 = vdwg.mxu0
  %v1695 = vadd.f32 %v1636, %v1689
  %v1696 = vadd.f32 %v1637, %v1692
  %v1697 = vxor.u32 %v1695, 2147483648
  %v1698 = vxor.u32 %v1696, 2147483648
  %v1699 = vmul.f32 %v1697, 1.442695
  %v1700 = vpow.pop %v1699
  %v1701 = vmul.f32 %v1698, 1.442695
  %v1702 = vpow.pop %v1701
  %v1703 = vadd.f32 %v1700, 1.0
  %v1704 = vadd.f32 %v1702, 1.0
  %v1705 = vrcp.pop %v1703
  %v1706 = vmul.f32 1.0, %v1705
  %v1707 = vrcp.pop %v1704
  %v1708 = vmul.f32 1.0, %v1707
  %v1709 = vtanh.pop %v1695
  %v1710 = vtanh.pop %v1696
  %1713 = vrot.lane.b32.xlu0 %v1640, 16
  %v1714 = vpop.permute.xlu0 %1713
  %1715 = vrot.lane.b32.xlu0 %v1641, 16
  %v1716 = vpop.permute.xlu0 %1715
  %v1719 = vmul.f32 %v1706, %v1714
  %v1720 = vmul.f32 %v1708, %v1716
  %1723 = vrot.lane.b32.xlu0 %v1709, 96
  %v1724 = vpop.permute.xlu0 %1723
  %1725 = vrot.lane.b32.xlu0 %v1710, 96
  %v1726 = vpop.permute.xlu0 %1725
  %v1729 = vmul.f32 %v1706, %v1724
  %v1730 = vmul.f32 %v1708, %v1726
  %1733 = vrot.lane.b32.xlu0 %v1729, 16
  %v1734 = vpop.permute.xlu0 %1733
  %1735 = vrot.lane.b32.xlu0 %v1730, 16
  %v1736 = vpop.permute.xlu0 %1735
  %v1739 = vadd.f32 %v1719, %v1734
  %v1740 = vadd.f32 %v1720, %v1736
  %v1741 = vtanh.pop %v1739
  %v1742 = vtanh.pop %v1740
  %1745 = vrot.lane.b32.xlu0 %v1741, 32
  %v1746 = vpop.permute.xlu0 %1745
  %1747 = vrot.lane.b32.xlu0 %v1742, 32
  %v1748 = vpop.permute.xlu0 %1747
  %v1751 = vmul.f32 %v1706, %v1746
  %v1752 = vmul.f32 %v1708, %v1748
  %v1753 = vsel %vm1633, 1, 0
  %v1754 = vsel %vm1634, 1, 0
  %1755 = vset.pattern.permute.xlu0 0
  %1756 = vperm.xlu0 %1755, %v1753
  %v1757 = vpop.permute.xlu0 %1756
  %1758 = vset.pattern.permute.xlu0 0
  %1759 = vperm.xlu0 %1758, %v1754
  %v1760 = vpop.permute.xlu0 %1759
  %vm1761 = vcmp.eq.s32.totalorder %v1757, 1
  %vm1762 = vcmp.eq.s32.totalorder %v1760, 1
  %1765 = vrot.lane.b32.xlu0 %v1638, 48
  %v1766 = vpop.permute.xlu0 %1765
  %1767 = vrot.lane.b32.xlu0 %v1639, 48
  %v1768 = vpop.permute.xlu0 %1767
  %v1771 = vsel %vm1761, %v1751, %v1766
  %v1772 = vsel %vm1762, %v1752, %v1768
  %1775 = vrot.lane.b32.xlu0 %v1771, 80
  %v1776 = vpop.permute.xlu0 %1775
  %1777 = vrot.lane.b32.xlu0 %v1772, 80
  %v1778 = vpop.permute.xlu0 %1777
  %1781 = vst.msk [vmem:[#allocation4] sm:$0xff] %vm84, %v1776
  %1782 = vst.msk [vmem:[#allocation4 + $0x8] sm:$0xff] %vm84, %v1778
  %v1783 = vld [vmem:[#allocation5] sm:$0xff]
  %v1784 = vld [vmem:[#allocation5 + $0x8] sm:$0xff]
  %1787 = vrot.lane.b32.xlu0 %v1783, 16
  %v1788 = vpop.permute.xlu0 %1787
  %1789 = vrot.lane.b32.xlu0 %v1784, 16
  %v1790 = vpop.permute.xlu0 %1789
  %v1793 = vsel %vm1761, %v1739, %v1788
  %v1794 = vsel %vm1762, %v1740, %v1790
  %1797 = vrot.lane.b32.xlu0 %v1793, 112
  %v1798 = vpop.permute.xlu0 %1797
  %1799 = vrot.lane.b32.xlu0 %v1794, 112
  %v1800 = vpop.permute.xlu0 %1799
  %1803 = vst.msk [vmem:[#allocation5] sm:$0xff] %vm84, %v1798
  %1804 = vst.msk [vmem:[#allocation5 + $0x8] sm:$0xff] %vm84, %v1800
  %s1805 = sadd.s32 %s65, 5
  %v1806 = vstv %s1805
  %vm1807 = vcmp.lt.s32.totalorder %v1806, %v63
  %vm1808 = vcmp.lt.s32.totalorder %v1806, %v64
  %s1809 = scalar_lea.vmem %s1, 80
  %v1810 = vld [vmem:[%s1809] sm:$0xff]
  %v1811 = vld [vmem:[%s1809 + $0x8] sm:$0xff]
  %v1812 = vld [vmem:[#allocation2] sm:$0xff]
  %v1813 = vld [vmem:[#allocation2 + $0x8] sm:$0xff]
  %v1814 = vld [vmem:[#allocation3] sm:$0xff]
  %v1815 = vld [vmem:[#allocation3 + $0x8] sm:$0xff]
  %v1816 = vld [vmem:[%s3] sm:$0xf]
  %v1817 = vld [vmem:[%s3 + $0x4] sm:$0xf]
  %v1818 = vpack.c.bf16 %v1813, %v1812
  %v1821 = vunpack.c.l.b16 %v1816
  %v1822 = vunpack.c.l.b16 %v1817
  %v1823 = vpack.c.b16 %v1822, %v1821
  %v1826 = vsel %vm84, %v1818, 0
  %1828 = vmatprep.subr.bf16.mxu0 0
  %1829 = vmatpush1.bf16.msra.mxu0 0
  %1830 = vmatprep.subr.bf16.mxu0 0
  %1831 = vmatpush1.bf16.msra.mxu0 0
  %1832 = vmatprep.subr.bf16.mxu0 0
  %1833 = vmatpush1.bf16.msra.mxu0 0
  %1834 = vmatprep.subr.bf16.mxu0 0
  %1835 = vmatpush1.bf16.msra.mxu0 0
  %1836 = vmatprep.subr.bf16.mxu0 0
  %1837 = vmatpush1.bf16.msra.mxu0 0
  %1838 = vmatprep.subr.bf16.mxu0 0
  %1839 = vmatpush1.bf16.msra.mxu0 0
  %1840 = vmatprep.subr.bf16.mxu0 0
  %1841 = vmatpush1.bf16.msra.mxu0 0
  %1842 = vmatprep.subr.bf16.mxu0 0
  %1843 = vmatpush1.bf16.msra.mxu0 %v1823
  %1844 = vmatprep.subr.bf16.mxu0 0
  %1845 = vmatpush2.bf16.msra.mxu0 0
  %1846 = vmatprep.subr.bf16.mxu0 0
  %1847 = vmatpush2.bf16.msra.mxu0 0
  %1848 = vmatprep.subr.bf16.mxu0 0
  %1849 = vmatpush2.bf16.msra.mxu0 0
  %1850 = vmatprep.subr.bf16.mxu0 0
  %1851 = vmatpush2.bf16.msra.mxu0 0
  %1852 = vmatprep.subr.bf16.mxu0 0
  %1853 = vmatpush2.bf16.msra.mxu0 0
  %1854 = vmatprep.subr.bf16.mxu0 0
  %1855 = vmatpush2.bf16.msra.mxu0 0
  %1856 = vmatprep.subr.bf16.mxu0 0
  %1857 = vmatpush2.bf16.msra.mxu0 0
  %1858 = vmatprep.subr.bf16.mxu0 0
  %1859 = vmatpush2.bf16.msra.mxu0 0
  %1860 = vmatprep.mubr.bf16.mxu0 0
  %1861 = vmatmul.mubr.bf16.gmra.mxu0 %v1826
  %v1862 = vpop.f32.mrf.mxu0
  %v1863 = vadd.f32 0.0, %v1862
  %v1864 = vpop.f32.mrf.mxu0
  %v1865 = vpop.f32.mrf.mxu0
  %v1866 = vadd.f32 0.0, %v1865
  %v1867 = vpop.f32.mrf.mxu0
  %1868 = vdwg.mxu0
  %v1869 = vadd.f32 %v1810, %v1863
  %v1870 = vadd.f32 %v1811, %v1866
  %v1871 = vxor.u32 %v1869, 2147483648
  %v1872 = vxor.u32 %v1870, 2147483648
  %v1873 = vmul.f32 %v1871, 1.442695
  %v1874 = vpow.pop %v1873
  %v1875 = vmul.f32 %v1872, 1.442695
  %v1876 = vpow.pop %v1875
  %v1877 = vadd.f32 %v1874, 1.0
  %v1878 = vadd.f32 %v1876, 1.0
  %v1879 = vrcp.pop %v1877
  %v1880 = vmul.f32 1.0, %v1879
  %v1881 = vrcp.pop %v1878
  %v1882 = vmul.f32 1.0, %v1881
  %v1883 = vtanh.pop %v1869
  %v1884 = vtanh.pop %v1870
  %1887 = vrot.lane.b32.xlu0 %v1814, 16
  %v1888 = vpop.permute.xlu0 %1887
  %1889 = vrot.lane.b32.xlu0 %v1815, 16
  %v1890 = vpop.permute.xlu0 %1889
  %v1893 = vmul.f32 %v1880, %v1888
  %v1894 = vmul.f32 %v1882, %v1890
  %1897 = vrot.lane.b32.xlu0 %v1883, 96
  %v1898 = vpop.permute.xlu0 %1897
  %1899 = vrot.lane.b32.xlu0 %v1884, 96
  %v1900 = vpop.permute.xlu0 %1899
  %v1903 = vmul.f32 %v1880, %v1898
  %v1904 = vmul.f32 %v1882, %v1900
  %1907 = vrot.lane.b32.xlu0 %v1903, 16
  %v1908 = vpop.permute.xlu0 %1907
  %1909 = vrot.lane.b32.xlu0 %v1904, 16
  %v1910 = vpop.permute.xlu0 %1909
  %v1913 = vadd.f32 %v1893, %v1908
  %v1914 = vadd.f32 %v1894, %v1910
  %v1915 = vtanh.pop %v1913
  %v1916 = vtanh.pop %v1914
  %1919 = vrot.lane.b32.xlu0 %v1915, 32
  %v1920 = vpop.permute.xlu0 %1919
  %1921 = vrot.lane.b32.xlu0 %v1916, 32
  %v1922 = vpop.permute.xlu0 %1921
  %v1925 = vmul.f32 %v1880, %v1920
  %v1926 = vmul.f32 %v1882, %v1922
  %v1927 = vsel %vm1807, 1, 0
  %v1928 = vsel %vm1808, 1, 0
  %1929 = vset.pattern.permute.xlu0 0
  %1930 = vperm.xlu0 %1929, %v1927
  %v1931 = vpop.permute.xlu0 %1930
  %1932 = vset.pattern.permute.xlu0 0
  %1933 = vperm.xlu0 %1932, %v1928
  %v1934 = vpop.permute.xlu0 %1933
  %vm1935 = vcmp.eq.s32.totalorder %v1931, 1
  %vm1936 = vcmp.eq.s32.totalorder %v1934, 1
  %1939 = vrot.lane.b32.xlu0 %v1812, 48
  %v1940 = vpop.permute.xlu0 %1939
  %1941 = vrot.lane.b32.xlu0 %v1813, 48
  %v1942 = vpop.permute.xlu0 %1941
  %v1945 = vsel %vm1935, %v1925, %v1940
  %v1946 = vsel %vm1936, %v1926, %v1942
  %1949 = vrot.lane.b32.xlu0 %v1945, 80
  %v1950 = vpop.permute.xlu0 %1949
  %1951 = vrot.lane.b32.xlu0 %v1946, 80
  %v1952 = vpop.permute.xlu0 %1951
  %1955 = vst.msk [vmem:[#allocation2] sm:$0xff] %vm84, %v1950
  %1956 = vst.msk [vmem:[#allocation2 + $0x8] sm:$0xff] %vm84, %v1952
  %v1957 = vld [vmem:[#allocation3] sm:$0xff]
  %v1958 = vld [vmem:[#allocation3 + $0x8] sm:$0xff]
  %1961 = vrot.lane.b32.xlu0 %v1957, 16
  %v1962 = vpop.permute.xlu0 %1961
  %1963 = vrot.lane.b32.xlu0 %v1958, 16
  %v1964 = vpop.permute.xlu0 %1963
  %v1967 = vsel %vm1935, %v1913, %v1962
  %v1968 = vsel %vm1936, %v1914, %v1964
  %1971 = vrot.lane.b32.xlu0 %v1967, 112
  %v1972 = vpop.permute.xlu0 %1971
  %1973 = vrot.lane.b32.xlu0 %v1968, 112
  %v1974 = vpop.permute.xlu0 %1973
  %1977 = vst.msk [vmem:[#allocation3] sm:$0xff] %vm84, %v1972
  %1978 = vst.msk [vmem:[#allocation3 + $0x8] sm:$0xff] %vm84, %v1974
  %s1979 = ssub.s32 2, %s65
  %v1980 = vstv %s1979
  %vm1981 = vcmp.lt.s32.totalorder %v1980, %v63
  %vm1982 = vcmp.lt.s32.totalorder %v1980, %v64
  %s1983 = scalar_lea.vmem %s46, 32
  %v1984 = vld [vmem:[%s1983] sm:$0xff]
  %v1985 = vld [vmem:[%s1983 + $0x8] sm:$0xff]
  %v1986 = vld [vmem:[#allocation4] sm:$0xff]
  %v1987 = vld [vmem:[#allocation4 + $0x8] sm:$0xff]
  %v1988 = vld [vmem:[#allocation5] sm:$0xff]
  %v1989 = vld [vmem:[#allocation5 + $0x8] sm:$0xff]
  %v1990 = vld [vmem:[%s4] sm:$0xf]
  %v1991 = vld [vmem:[%s4 + $0x4] sm:$0xf]
  %v1992 = vpack.c.bf16 %v1987, %v1986
  %v1995 = vunpack.c.l.b16 %v1990
  %v1996 = vunpack.c.l.b16 %v1991
  %v1997 = vpack.c.b16 %v1996, %v1995
  %v2000 = vsel %vm84, %v1992, 0
  %2002 = vmatprep.subr.bf16.mxu0 0
  %2003 = vmatpush1.bf16.msra.mxu0 0
  %2004 = vmatprep.subr.bf16.mxu0 0
  %2005 = vmatpush1.bf16.msra.mxu0 0
  %2006 = vmatprep.subr.bf16.mxu0 0
  %2007 = vmatpush1.bf16.msra.mxu0 0
  %2008 = vmatprep.subr.bf16.mxu0 0
  %2009 = vmatpush1.bf16.msra.mxu0 0
  %2010 = vmatprep.subr.bf16.mxu0 0
  %2011 = vmatpush1.bf16.msra.mxu0 0
  %2012 = vmatprep.subr.bf16.mxu0 0
  %2013 = vmatpush1.bf16.msra.mxu0 0
  %2014 = vmatprep.subr.bf16.mxu0 0
  %2015 = vmatpush1.bf16.msra.mxu0 0
  %2016 = vmatprep.subr.bf16.mxu0 0
  %2017 = vmatpush1.bf16.msra.mxu0 %v1997
  %2018 = vmatprep.subr.bf16.mxu0 0
  %2019 = vmatpush2.bf16.msra.mxu0 0
  %2020 = vmatprep.subr.bf16.mxu0 0
  %2021 = vmatpush2.bf16.msra.mxu0 0
  %2022 = vmatprep.subr.bf16.mxu0 0
  %2023 = vmatpush2.bf16.msra.mxu0 0
  %2024 = vmatprep.subr.bf16.mxu0 0
  %2025 = vmatpush2.bf16.msra.mxu0 0
  %2026 = vmatprep.subr.bf16.mxu0 0
  %2027 = vmatpush2.bf16.msra.mxu0 0
  %2028 = vmatprep.subr.bf16.mxu0 0
  %2029 = vmatpush2.bf16.msra.mxu0 0
  %2030 = vmatprep.subr.bf16.mxu0 0
  %2031 = vmatpush2.bf16.msra.mxu0 0
  %2032 = vmatprep.subr.bf16.mxu0 0
  %2033 = vmatpush2.bf16.msra.mxu0 0
  %2034 = vmatprep.mubr.bf16.mxu0 0
  %2035 = vmatmul.mubr.bf16.gmra.mxu0 %v2000
  %v2036 = vpop.f32.mrf.mxu0
  %v2037 = vadd.f32 0.0, %v2036
  %v2038 = vpop.f32.mrf.mxu0
  %v2039 = vpop.f32.mrf.mxu0
  %v2040 = vadd.f32 0.0, %v2039
  %v2041 = vpop.f32.mrf.mxu0
  %2042 = vdwg.mxu0
  %v2043 = vadd.f32 %v1984, %v2037
  %v2044 = vadd.f32 %v1985, %v2040
  %v2045 = vxor.u32 %v2043, 2147483648
  %v2046 = vxor.u32 %v2044, 2147483648
  %v2047 = vmul.f32 %v2045, 1.442695
  %v2048 = vpow.pop %v2047
  %v2049 = vmul.f32 %v2046, 1.442695
  %v2050 = vpow.pop %v2049
  %v2051 = vadd.f32 %v2048, 1.0
  %v2052 = vadd.f32 %v2050, 1.0
  %v2053 = vrcp.pop %v2051
  %v2054 = vmul.f32 1.0, %v2053
  %v2055 = vrcp.pop %v2052
  %v2056 = vmul.f32 1.0, %v2055
  %v2057 = vtanh.pop %v2043
  %v2058 = vtanh.pop %v2044
  %2061 = vrot.lane.b32.xlu0 %v1988, 16
  %v2062 = vpop.permute.xlu0 %2061
  %2063 = vrot.lane.b32.xlu0 %v1989, 16
  %v2064 = vpop.permute.xlu0 %2063
  %v2067 = vmul.f32 %v2054, %v2062
  %v2068 = vmul.f32 %v2056, %v2064
  %2071 = vrot.lane.b32.xlu0 %v2057, 96
  %v2072 = vpop.permute.xlu0 %2071
  %2073 = vrot.lane.b32.xlu0 %v2058, 96
  %v2074 = vpop.permute.xlu0 %2073
  %v2077 = vmul.f32 %v2054, %v2072
  %v2078 = vmul.f32 %v2056, %v2074
  %2081 = vrot.lane.b32.xlu0 %v2077, 16
  %v2082 = vpop.permute.xlu0 %2081
  %2083 = vrot.lane.b32.xlu0 %v2078, 16
  %v2084 = vpop.permute.xlu0 %2083
  %v2087 = vadd.f32 %v2067, %v2082
  %v2088 = vadd.f32 %v2068, %v2084
  %v2089 = vtanh.pop %v2087
  %v2090 = vtanh.pop %v2088
  %2093 = vrot.lane.b32.xlu0 %v2089, 32
  %v2094 = vpop.permute.xlu0 %2093
  %2095 = vrot.lane.b32.xlu0 %v2090, 32
  %v2096 = vpop.permute.xlu0 %2095
  %v2099 = vmul.f32 %v2054, %v2094
  %v2100 = vmul.f32 %v2056, %v2096
  %v2101 = vsel %vm1981, 1, 0
  %v2102 = vsel %vm1982, 1, 0
  %2103 = vset.pattern.permute.xlu0 0
  %2104 = vperm.xlu0 %2103, %v2101
  %v2105 = vpop.permute.xlu0 %2104
  %2106 = vset.pattern.permute.xlu0 0
  %2107 = vperm.xlu0 %2106, %v2102
  %v2108 = vpop.permute.xlu0 %2107
  %vm2109 = vcmp.eq.s32.totalorder %v2105, 1
  %vm2110 = vcmp.eq.s32.totalorder %v2108, 1
  %2113 = vrot.lane.b32.xlu0 %v1986, 48
  %v2114 = vpop.permute.xlu0 %2113
  %2115 = vrot.lane.b32.xlu0 %v1987, 48
  %v2116 = vpop.permute.xlu0 %2115
  %v2119 = vsel %vm2109, %v2099, %v2114
  %v2120 = vsel %vm2110, %v2100, %v2116
  %2123 = vrot.lane.b32.xlu0 %v2119, 80
  %v2124 = vpop.permute.xlu0 %2123
  %2125 = vrot.lane.b32.xlu0 %v2120, 80
  %v2126 = vpop.permute.xlu0 %2125
  %2129 = vst.msk [vmem:[#allocation4] sm:$0xff] %vm84, %v2124
  %2130 = vst.msk [vmem:[#allocation4 + $0x8] sm:$0xff] %vm84, %v2126
  %v2131 = vld [vmem:[#allocation5] sm:$0xff]
  %v2132 = vld [vmem:[#allocation5 + $0x8] sm:$0xff]
  %2135 = vrot.lane.b32.xlu0 %v2131, 16
  %v2136 = vpop.permute.xlu0 %2135
  %2137 = vrot.lane.b32.xlu0 %v2132, 16
  %v2138 = vpop.permute.xlu0 %2137
  %v2141 = vsel %vm2109, %v2087, %v2136
  %v2142 = vsel %vm2110, %v2088, %v2138
  %2145 = vrot.lane.b32.xlu0 %v2141, 112
  %v2146 = vpop.permute.xlu0 %2145
  %2147 = vrot.lane.b32.xlu0 %v2142, 112
  %v2148 = vpop.permute.xlu0 %2147
  %2151 = vst.msk [vmem:[#allocation5] sm:$0xff] %vm84, %v2146
  %2152 = vst.msk [vmem:[#allocation5 + $0x8] sm:$0xff] %vm84, %v2148
  %s2153 = sadd.s32 %s65, 6
  %v2154 = vstv %s2153
  %vm2155 = vcmp.lt.s32.totalorder %v2154, %v63
  %vm2156 = vcmp.lt.s32.totalorder %v2154, %v64
  %s2157 = scalar_lea.vmem %s1, 96
  %v2158 = vld [vmem:[%s2157] sm:$0xff]
  %v2159 = vld [vmem:[%s2157 + $0x8] sm:$0xff]
  %v2160 = vld [vmem:[#allocation2] sm:$0xff]
  %v2161 = vld [vmem:[#allocation2 + $0x8] sm:$0xff]
  %v2162 = vld [vmem:[#allocation3] sm:$0xff]
  %v2163 = vld [vmem:[#allocation3 + $0x8] sm:$0xff]
  %v2164 = vld [vmem:[%s3] sm:$0xf]
  %v2165 = vld [vmem:[%s3 + $0x4] sm:$0xf]
  %v2166 = vpack.c.bf16 %v2161, %v2160
  %v2169 = vunpack.c.l.b16 %v2164
  %v2170 = vunpack.c.l.b16 %v2165
  %v2171 = vpack.c.b16 %v2170, %v2169
  %v2174 = vsel %vm84, %v2166, 0
  %2176 = vmatprep.subr.bf16.mxu0 0
  %2177 = vmatpush1.bf16.msra.mxu0 0
  %2178 = vmatprep.subr.bf16.mxu0 0
  %2179 = vmatpush1.bf16.msra.mxu0 0
  %2180 = vmatprep.subr.bf16.mxu0 0
  %2181 = vmatpush1.bf16.msra.mxu0 0
  %2182 = vmatprep.subr.bf16.mxu0 0
  %2183 = vmatpush1.bf16.msra.mxu0 0
  %2184 = vmatprep.subr.bf16.mxu0 0
  %2185 = vmatpush1.bf16.msra.mxu0 0
  %2186 = vmatprep.subr.bf16.mxu0 0
  %2187 = vmatpush1.bf16.msra.mxu0 0
  %2188 = vmatprep.subr.bf16.mxu0 0
  %2189 = vmatpush1.bf16.msra.mxu0 0
  %2190 = vmatprep.subr.bf16.mxu0 0
  %2191 = vmatpush1.bf16.msra.mxu0 %v2171
  %2192 = vmatprep.subr.bf16.mxu0 0
  %2193 = vmatpush2.bf16.msra.mxu0 0
  %2194 = vmatprep.subr.bf16.mxu0 0
  %2195 = vmatpush2.bf16.msra.mxu0 0
  %2196 = vmatprep.subr.bf16.mxu0 0
  %2197 = vmatpush2.bf16.msra.mxu0 0
  %2198 = vmatprep.subr.bf16.mxu0 0
  %2199 = vmatpush2.bf16.msra.mxu0 0
  %2200 = vmatprep.subr.bf16.mxu0 0
  %2201 = vmatpush2.bf16.msra.mxu0 0
  %2202 = vmatprep.subr.bf16.mxu0 0
  %2203 = vmatpush2.bf16.msra.mxu0 0
  %2204 = vmatprep.subr.bf16.mxu0 0
  %2205 = vmatpush2.bf16.msra.mxu0 0
  %2206 = vmatprep.subr.bf16.mxu0 0
  %2207 = vmatpush2.bf16.msra.mxu0 0
  %2208 = vmatprep.mubr.bf16.mxu0 0
  %2209 = vmatmul.mubr.bf16.gmra.mxu0 %v2174
  %v2210 = vpop.f32.mrf.mxu0
  %v2211 = vadd.f32 0.0, %v2210
  %v2212 = vpop.f32.mrf.mxu0
  %v2213 = vpop.f32.mrf.mxu0
  %v2214 = vadd.f32 0.0, %v2213
  %v2215 = vpop.f32.mrf.mxu0
  %2216 = vdwg.mxu0
  %v2217 = vadd.f32 %v2158, %v2211
  %v2218 = vadd.f32 %v2159, %v2214
  %v2219 = vxor.u32 %v2217, 2147483648
  %v2220 = vxor.u32 %v2218, 2147483648
  %v2221 = vmul.f32 %v2219, 1.442695
  %v2222 = vpow.pop %v2221
  %v2223 = vmul.f32 %v2220, 1.442695
  %v2224 = vpow.pop %v2223
  %v2225 = vadd.f32 %v2222, 1.0
  %v2226 = vadd.f32 %v2224, 1.0
  %v2227 = vrcp.pop %v2225
  %v2228 = vmul.f32 1.0, %v2227
  %v2229 = vrcp.pop %v2226
  %v2230 = vmul.f32 1.0, %v2229
  %v2231 = vtanh.pop %v2217
  %v2232 = vtanh.pop %v2218
  %2235 = vrot.lane.b32.xlu0 %v2162, 16
  %v2236 = vpop.permute.xlu0 %2235
  %2237 = vrot.lane.b32.xlu0 %v2163, 16
  %v2238 = vpop.permute.xlu0 %2237
  %v2241 = vmul.f32 %v2228, %v2236
  %v2242 = vmul.f32 %v2230, %v2238
  %2245 = vrot.lane.b32.xlu0 %v2231, 96
  %v2246 = vpop.permute.xlu0 %2245
  %2247 = vrot.lane.b32.xlu0 %v2232, 96
  %v2248 = vpop.permute.xlu0 %2247
  %v2251 = vmul.f32 %v2228, %v2246
  %v2252 = vmul.f32 %v2230, %v2248
  %2255 = vrot.lane.b32.xlu0 %v2251, 16
  %v2256 = vpop.permute.xlu0 %2255
  %2257 = vrot.lane.b32.xlu0 %v2252, 16
  %v2258 = vpop.permute.xlu0 %2257
  %v2261 = vadd.f32 %v2241, %v2256
  %v2262 = vadd.f32 %v2242, %v2258
  %v2263 = vtanh.pop %v2261
  %v2264 = vtanh.pop %v2262
  %2267 = vrot.lane.b32.xlu0 %v2263, 32
  %v2268 = vpop.permute.xlu0 %2267
  %2269 = vrot.lane.b32.xlu0 %v2264, 32
  %v2270 = vpop.permute.xlu0 %2269
  %v2273 = vmul.f32 %v2228, %v2268
  %v2274 = vmul.f32 %v2230, %v2270
  %v2275 = vsel %vm2155, 1, 0
  %v2276 = vsel %vm2156, 1, 0
  %2277 = vset.pattern.permute.xlu0 0
  %2278 = vperm.xlu0 %2277, %v2275
  %v2279 = vpop.permute.xlu0 %2278
  %2280 = vset.pattern.permute.xlu0 0
  %2281 = vperm.xlu0 %2280, %v2276
  %v2282 = vpop.permute.xlu0 %2281
  %vm2283 = vcmp.eq.s32.totalorder %v2279, 1
  %vm2284 = vcmp.eq.s32.totalorder %v2282, 1
  %2287 = vrot.lane.b32.xlu0 %v2160, 48
  %v2288 = vpop.permute.xlu0 %2287
  %2289 = vrot.lane.b32.xlu0 %v2161, 48
  %v2290 = vpop.permute.xlu0 %2289
  %v2293 = vsel %vm2283, %v2273, %v2288
  %v2294 = vsel %vm2284, %v2274, %v2290
  %2297 = vrot.lane.b32.xlu0 %v2293, 80
  %v2298 = vpop.permute.xlu0 %2297
  %2299 = vrot.lane.b32.xlu0 %v2294, 80
  %v2300 = vpop.permute.xlu0 %2299
  %2303 = vst.msk [vmem:[#allocation2] sm:$0xff] %vm84, %v2298
  %2304 = vst.msk [vmem:[#allocation2 + $0x8] sm:$0xff] %vm84, %v2300
  %v2305 = vld [vmem:[#allocation3] sm:$0xff]
  %v2306 = vld [vmem:[#allocation3 + $0x8] sm:$0xff]
  %2309 = vrot.lane.b32.xlu0 %v2305, 16
  %v2310 = vpop.permute.xlu0 %2309
  %2311 = vrot.lane.b32.xlu0 %v2306, 16
  %v2312 = vpop.permute.xlu0 %2311
  %v2315 = vsel %vm2283, %v2261, %v2310
  %v2316 = vsel %vm2284, %v2262, %v2312
  %2319 = vrot.lane.b32.xlu0 %v2315, 112
  %v2320 = vpop.permute.xlu0 %2319
  %2321 = vrot.lane.b32.xlu0 %v2316, 112
  %v2322 = vpop.permute.xlu0 %2321
  %2325 = vst.msk [vmem:[#allocation3] sm:$0xff] %vm84, %v2320
  %2326 = vst.msk [vmem:[#allocation3 + $0x8] sm:$0xff] %vm84, %v2322
  %s2327 = ssub.s32 1, %s65
  %v2328 = vstv %s2327
  %vm2329 = vcmp.lt.s32.totalorder %v2328, %v63
  %vm2330 = vcmp.lt.s32.totalorder %v2328, %v64
  %s2331 = scalar_lea.vmem %s46, 16
  %v2332 = vld [vmem:[%s2331] sm:$0xff]
  %v2333 = vld [vmem:[%s2331 + $0x8] sm:$0xff]
  %v2334 = vld [vmem:[#allocation4] sm:$0xff]
  %v2335 = vld [vmem:[#allocation4 + $0x8] sm:$0xff]
  %v2336 = vld [vmem:[#allocation5] sm:$0xff]
  %v2337 = vld [vmem:[#allocation5 + $0x8] sm:$0xff]
  %v2338 = vld [vmem:[%s4] sm:$0xf]
  %v2339 = vld [vmem:[%s4 + $0x4] sm:$0xf]
  %v2340 = vpack.c.bf16 %v2335, %v2334
  %v2343 = vunpack.c.l.b16 %v2338
  %v2344 = vunpack.c.l.b16 %v2339
  %v2345 = vpack.c.b16 %v2344, %v2343
  %v2348 = vsel %vm84, %v2340, 0
  %2350 = vmatprep.subr.bf16.mxu0 0
  %2351 = vmatpush1.bf16.msra.mxu0 0
  %2352 = vmatprep.subr.bf16.mxu0 0
  %2353 = vmatpush1.bf16.msra.mxu0 0
  %2354 = vmatprep.subr.bf16.mxu0 0
  %2355 = vmatpush1.bf16.msra.mxu0 0
  %2356 = vmatprep.subr.bf16.mxu0 0
  %2357 = vmatpush1.bf16.msra.mxu0 0
  %2358 = vmatprep.subr.bf16.mxu0 0
  %2359 = vmatpush1.bf16.msra.mxu0 0
  %2360 = vmatprep.subr.bf16.mxu0 0
  %2361 = vmatpush1.bf16.msra.mxu0 0
  %2362 = vmatprep.subr.bf16.mxu0 0
  %2363 = vmatpush1.bf16.msra.mxu0 0
  %2364 = vmatprep.subr.bf16.mxu0 0
  %2365 = vmatpush1.bf16.msra.mxu0 %v2345
  %2366 = vmatprep.subr.bf16.mxu0 0
  %2367 = vmatpush2.bf16.msra.mxu0 0
  %2368 = vmatprep.subr.bf16.mxu0 0
  %2369 = vmatpush2.bf16.msra.mxu0 0
  %2370 = vmatprep.subr.bf16.mxu0 0
  %2371 = vmatpush2.bf16.msra.mxu0 0
  %2372 = vmatprep.subr.bf16.mxu0 0
  %2373 = vmatpush2.bf16.msra.mxu0 0
  %2374 = vmatprep.subr.bf16.mxu0 0
  %2375 = vmatpush2.bf16.msra.mxu0 0
  %2376 = vmatprep.subr.bf16.mxu0 0
  %2377 = vmatpush2.bf16.msra.mxu0 0
  %2378 = vmatprep.subr.bf16.mxu0 0
  %2379 = vmatpush2.bf16.msra.mxu0 0
  %2380 = vmatprep.subr.bf16.mxu0 0
  %2381 = vmatpush2.bf16.msra.mxu0 0
  %2382 = vmatprep.mubr.bf16.mxu0 0
  %2383 = vmatmul.mubr.bf16.gmra.mxu0 %v2348
  %v2384 = vpop.f32.mrf.mxu0
  %v2385 = vadd.f32 0.0, %v2384
  %v2386 = vpop.f32.mrf.mxu0
  %v2387 = vpop.f32.mrf.mxu0
  %v2388 = vadd.f32 0.0, %v2387
  %v2389 = vpop.f32.mrf.mxu0
  %2390 = vdwg.mxu0
  %v2391 = vadd.f32 %v2332, %v2385
  %v2392 = vadd.f32 %v2333, %v2388
  %v2393 = vxor.u32 %v2391, 2147483648
  %v2394 = vxor.u32 %v2392, 2147483648
  %v2395 = vmul.f32 %v2393, 1.442695
  %v2396 = vpow.pop %v2395
  %v2397 = vmul.f32 %v2394, 1.442695
  %v2398 = vpow.pop %v2397
  %v2399 = vadd.f32 %v2396, 1.0
  %v2400 = vadd.f32 %v2398, 1.0
  %v2401 = vrcp.pop %v2399
  %v2402 = vmul.f32 1.0, %v2401
  %v2403 = vrcp.pop %v2400
  %v2404 = vmul.f32 1.0, %v2403
  %v2405 = vtanh.pop %v2391
  %v2406 = vtanh.pop %v2392
  %2409 = vrot.lane.b32.xlu0 %v2336, 16
  %v2410 = vpop.permute.xlu0 %2409
  %2411 = vrot.lane.b32.xlu0 %v2337, 16
  %v2412 = vpop.permute.xlu0 %2411
  %v2415 = vmul.f32 %v2402, %v2410
  %v2416 = vmul.f32 %v2404, %v2412
  %2419 = vrot.lane.b32.xlu0 %v2405, 96
  %v2420 = vpop.permute.xlu0 %2419
  %2421 = vrot.lane.b32.xlu0 %v2406, 96
  %v2422 = vpop.permute.xlu0 %2421
  %v2425 = vmul.f32 %v2402, %v2420
  %v2426 = vmul.f32 %v2404, %v2422
  %2429 = vrot.lane.b32.xlu0 %v2425, 16
  %v2430 = vpop.permute.xlu0 %2429
  %2431 = vrot.lane.b32.xlu0 %v2426, 16
  %v2432 = vpop.permute.xlu0 %2431
  %v2435 = vadd.f32 %v2415, %v2430
  %v2436 = vadd.f32 %v2416, %v2432
  %v2437 = vtanh.pop %v2435
  %v2438 = vtanh.pop %v2436
  %2441 = vrot.lane.b32.xlu0 %v2437, 32
  %v2442 = vpop.permute.xlu0 %2441
  %2443 = vrot.lane.b32.xlu0 %v2438, 32
  %v2444 = vpop.permute.xlu0 %2443
  %v2447 = vmul.f32 %v2402, %v2442
  %v2448 = vmul.f32 %v2404, %v2444
  %v2449 = vsel %vm2329, 1, 0
  %v2450 = vsel %vm2330, 1, 0
  %2451 = vset.pattern.permute.xlu0 0
  %2452 = vperm.xlu0 %2451, %v2449
  %v2453 = vpop.permute.xlu0 %2452
  %2454 = vset.pattern.permute.xlu0 0
  %2455 = vperm.xlu0 %2454, %v2450
  %v2456 = vpop.permute.xlu0 %2455
  %vm2457 = vcmp.eq.s32.totalorder %v2453, 1
  %vm2458 = vcmp.eq.s32.totalorder %v2456, 1
  %2461 = vrot.lane.b32.xlu0 %v2334, 48
  %v2462 = vpop.permute.xlu0 %2461
  %2463 = vrot.lane.b32.xlu0 %v2335, 48
  %v2464 = vpop.permute.xlu0 %2463
  %v2467 = vsel %vm2457, %v2447, %v2462
  %v2468 = vsel %vm2458, %v2448, %v2464
  %2471 = vrot.lane.b32.xlu0 %v2467, 80
  %v2472 = vpop.permute.xlu0 %2471
  %2473 = vrot.lane.b32.xlu0 %v2468, 80
  %v2474 = vpop.permute.xlu0 %2473
  %2477 = vst.msk [vmem:[#allocation4] sm:$0xff] %vm84, %v2472
  %2478 = vst.msk [vmem:[#allocation4 + $0x8] sm:$0xff] %vm84, %v2474
  %v2479 = vld [vmem:[#allocation5] sm:$0xff]
  %v2480 = vld [vmem:[#allocation5 + $0x8] sm:$0xff]
  %2483 = vrot.lane.b32.xlu0 %v2479, 16
  %v2484 = vpop.permute.xlu0 %2483
  %2485 = vrot.lane.b32.xlu0 %v2480, 16
  %v2486 = vpop.permute.xlu0 %2485
  %v2489 = vsel %vm2457, %v2435, %v2484
  %v2490 = vsel %vm2458, %v2436, %v2486
  %2493 = vrot.lane.b32.xlu0 %v2489, 112
  %v2494 = vpop.permute.xlu0 %2493
  %2495 = vrot.lane.b32.xlu0 %v2490, 112
  %v2496 = vpop.permute.xlu0 %2495
  %2499 = vst.msk [vmem:[#allocation5] sm:$0xff] %vm84, %v2494
  %2500 = vst.msk [vmem:[#allocation5 + $0x8] sm:$0xff] %vm84, %v2496
  %s2501 = sadd.s32 %s65, 7
  %v2502 = vstv %s2501
  %vm2503 = vcmp.lt.s32.totalorder %v2502, %v63
  %vm2504 = vcmp.lt.s32.totalorder %v2502, %v64
  %s2505 = scalar_lea.vmem %s1, 112
  %v2506 = vld [vmem:[%s2505] sm:$0xff]
  %v2507 = vld [vmem:[%s2505 + $0x8] sm:$0xff]
  %v2508 = vld [vmem:[#allocation2] sm:$0xff]
  %v2509 = vld [vmem:[#allocation2 + $0x8] sm:$0xff]
  %v2510 = vld [vmem:[#allocation3] sm:$0xff]
  %v2511 = vld [vmem:[#allocation3 + $0x8] sm:$0xff]
  %v2512 = vld [vmem:[%s3] sm:$0xf]
  %v2513 = vld [vmem:[%s3 + $0x4] sm:$0xf]
  %v2514 = vpack.c.bf16 %v2509, %v2508
  %v2517 = vunpack.c.l.b16 %v2512
  %v2518 = vunpack.c.l.b16 %v2513
  %v2519 = vpack.c.b16 %v2518, %v2517
  %v2522 = vsel %vm84, %v2514, 0
  %2524 = vmatprep.subr.bf16.mxu0 0
  %2525 = vmatpush1.bf16.msra.mxu0 0
  %2526 = vmatprep.subr.bf16.mxu0 0
  %2527 = vmatpush1.bf16.msra.mxu0 0
  %2528 = vmatprep.subr.bf16.mxu0 0
  %2529 = vmatpush1.bf16.msra.mxu0 0
  %2530 = vmatprep.subr.bf16.mxu0 0
  %2531 = vmatpush1.bf16.msra.mxu0 0
  %2532 = vmatprep.subr.bf16.mxu0 0
  %2533 = vmatpush1.bf16.msra.mxu0 0
  %2534 = vmatprep.subr.bf16.mxu0 0
  %2535 = vmatpush1.bf16.msra.mxu0 0
  %2536 = vmatprep.subr.bf16.mxu0 0
  %2537 = vmatpush1.bf16.msra.mxu0 0
  %2538 = vmatprep.subr.bf16.mxu0 0
  %2539 = vmatpush1.bf16.msra.mxu0 %v2519
  %2540 = vmatprep.subr.bf16.mxu0 0
  %2541 = vmatpush2.bf16.msra.mxu0 0
  %2542 = vmatprep.subr.bf16.mxu0 0
  %2543 = vmatpush2.bf16.msra.mxu0 0
  %2544 = vmatprep.subr.bf16.mxu0 0
  %2545 = vmatpush2.bf16.msra.mxu0 0
  %2546 = vmatprep.subr.bf16.mxu0 0
  %2547 = vmatpush2.bf16.msra.mxu0 0
  %2548 = vmatprep.subr.bf16.mxu0 0
  %2549 = vmatpush2.bf16.msra.mxu0 0
  %2550 = vmatprep.subr.bf16.mxu0 0
  %2551 = vmatpush2.bf16.msra.mxu0 0
  %2552 = vmatprep.subr.bf16.mxu0 0
  %2553 = vmatpush2.bf16.msra.mxu0 0
  %2554 = vmatprep.subr.bf16.mxu0 0
  %2555 = vmatpush2.bf16.msra.mxu0 0
  %2556 = vmatprep.mubr.bf16.mxu0 0
  %2557 = vmatmul.mubr.bf16.gmra.mxu0 %v2522
  %v2558 = vpop.f32.mrf.mxu0
  %v2559 = vadd.f32 0.0, %v2558
  %v2560 = vpop.f32.mrf.mxu0
  %v2561 = vpop.f32.mrf.mxu0
  %v2562 = vadd.f32 0.0, %v2561
  %v2563 = vpop.f32.mrf.mxu0
  %2564 = vdwg.mxu0
  %v2565 = vadd.f32 %v2506, %v2559
  %v2566 = vadd.f32 %v2507, %v2562
  %v2567 = vxor.u32 %v2565, 2147483648
  %v2568 = vxor.u32 %v2566, 2147483648
  %v2569 = vmul.f32 %v2567, 1.442695
  %v2570 = vpow.pop %v2569
  %v2571 = vmul.f32 %v2568, 1.442695
  %v2572 = vpow.pop %v2571
  %v2573 = vadd.f32 %v2570, 1.0
  %v2574 = vadd.f32 %v2572, 1.0
  %v2575 = vrcp.pop %v2573
  %v2576 = vmul.f32 1.0, %v2575
  %v2577 = vrcp.pop %v2574
  %v2578 = vmul.f32 1.0, %v2577
  %v2579 = vtanh.pop %v2565
  %v2580 = vtanh.pop %v2566
  %2583 = vrot.lane.b32.xlu0 %v2510, 16
  %v2584 = vpop.permute.xlu0 %2583
  %2585 = vrot.lane.b32.xlu0 %v2511, 16
  %v2586 = vpop.permute.xlu0 %2585
  %v2589 = vmul.f32 %v2576, %v2584
  %v2590 = vmul.f32 %v2578, %v2586
  %2593 = vrot.lane.b32.xlu0 %v2579, 96
  %v2594 = vpop.permute.xlu0 %2593
  %2595 = vrot.lane.b32.xlu0 %v2580, 96
  %v2596 = vpop.permute.xlu0 %2595
  %v2599 = vmul.f32 %v2576, %v2594
  %v2600 = vmul.f32 %v2578, %v2596
  %2603 = vrot.lane.b32.xlu0 %v2599, 16
  %v2604 = vpop.permute.xlu0 %2603
  %2605 = vrot.lane.b32.xlu0 %v2600, 16
  %v2606 = vpop.permute.xlu0 %2605
  %v2609 = vadd.f32 %v2589, %v2604
  %v2610 = vadd.f32 %v2590, %v2606
  %v2611 = vtanh.pop %v2609
  %v2612 = vtanh.pop %v2610
  %2615 = vrot.lane.b32.xlu0 %v2611, 32
  %v2616 = vpop.permute.xlu0 %2615
  %2617 = vrot.lane.b32.xlu0 %v2612, 32
  %v2618 = vpop.permute.xlu0 %2617
  %v2621 = vmul.f32 %v2576, %v2616
  %v2622 = vmul.f32 %v2578, %v2618
  %v2623 = vsel %vm2503, 1, 0
  %v2624 = vsel %vm2504, 1, 0
  %2625 = vset.pattern.permute.xlu0 0
  %2626 = vperm.xlu0 %2625, %v2623
  %v2627 = vpop.permute.xlu0 %2626
  %2628 = vset.pattern.permute.xlu0 0
  %2629 = vperm.xlu0 %2628, %v2624
  %v2630 = vpop.permute.xlu0 %2629
  %vm2631 = vcmp.eq.s32.totalorder %v2627, 1
  %vm2632 = vcmp.eq.s32.totalorder %v2630, 1
  %2635 = vrot.lane.b32.xlu0 %v2508, 48
  %v2636 = vpop.permute.xlu0 %2635
  %2637 = vrot.lane.b32.xlu0 %v2509, 48
  %v2638 = vpop.permute.xlu0 %2637
  %v2641 = vsel %vm2631, %v2621, %v2636
  %v2642 = vsel %vm2632, %v2622, %v2638
  %2645 = vrot.lane.b32.xlu0 %v2641, 80
  %v2646 = vpop.permute.xlu0 %2645
  %2647 = vrot.lane.b32.xlu0 %v2642, 80
  %v2648 = vpop.permute.xlu0 %2647
  %2651 = vst.msk [vmem:[#allocation2] sm:$0xff] %vm84, %v2646
  %2652 = vst.msk [vmem:[#allocation2 + $0x8] sm:$0xff] %vm84, %v2648
  %v2653 = vld [vmem:[#allocation3] sm:$0xff]
  %v2654 = vld [vmem:[#allocation3 + $0x8] sm:$0xff]
  %2657 = vrot.lane.b32.xlu0 %v2653, 16
  %v2658 = vpop.permute.xlu0 %2657
  %2659 = vrot.lane.b32.xlu0 %v2654, 16
  %v2660 = vpop.permute.xlu0 %2659
  %v2663 = vsel %vm2631, %v2609, %v2658
  %v2664 = vsel %vm2632, %v2610, %v2660
  %2667 = vrot.lane.b32.xlu0 %v2663, 112
  %v2668 = vpop.permute.xlu0 %2667
  %2669 = vrot.lane.b32.xlu0 %v2664, 112
  %v2670 = vpop.permute.xlu0 %2669
  %2673 = vst.msk [vmem:[#allocation3] sm:$0xff] %vm84, %v2668
  %2674 = vst.msk [vmem:[#allocation3 + $0x8] sm:$0xff] %vm84, %v2670
  %s2675 = ssub.s32 0, %s65
  %v2676 = vstv %s2675
  %vm2677 = vcmp.lt.s32.totalorder %v2676, %v63
  %vm2678 = vcmp.lt.s32.totalorder %v2676, %v64
  %v2679 = vld [vmem:[%s46] sm:$0xff]
  %v2680 = vld [vmem:[%s46 + $0x8] sm:$0xff]
  %v2681 = vld [vmem:[#allocation4] sm:$0xff]
  %v2682 = vld [vmem:[#allocation4 + $0x8] sm:$0xff]
  %v2683 = vld [vmem:[#allocation5] sm:$0xff]
  %v2684 = vld [vmem:[#allocation5 + $0x8] sm:$0xff]
  %v2685 = vld [vmem:[%s4] sm:$0xf]
  %v2686 = vld [vmem:[%s4 + $0x4] sm:$0xf]
  %v2687 = vpack.c.bf16 %v2682, %v2681
  %v2690 = vunpack.c.l.b16 %v2685
  %v2691 = vunpack.c.l.b16 %v2686
  %v2692 = vpack.c.b16 %v2691, %v2690
  %v2695 = vsel %vm84, %v2687, 0
  %2697 = vmatprep.subr.bf16.mxu0 0
  %2698 = vmatpush1.bf16.msra.mxu0 0
  %2699 = vmatprep.subr.bf16.mxu0 0
  %2700 = vmatpush1.bf16.msra.mxu0 0
  %2701 = vmatprep.subr.bf16.mxu0 0
  %2702 = vmatpush1.bf16.msra.mxu0 0
  %2703 = vmatprep.subr.bf16.mxu0 0
  %2704 = vmatpush1.bf16.msra.mxu0 0
  %2705 = vmatprep.subr.bf16.mxu0 0
  %2706 = vmatpush1.bf16.msra.mxu0 0
  %2707 = vmatprep.subr.bf16.mxu0 0
  %2708 = vmatpush1.bf16.msra.mxu0 0
  %2709 = vmatprep.subr.bf16.mxu0 0
  %2710 = vmatpush1.bf16.msra.mxu0 0
  %2711 = vmatprep.subr.bf16.mxu0 0
  %2712 = vmatpush1.bf16.msra.mxu0 %v2692
  %2713 = vmatprep.subr.bf16.mxu0 0
  %2714 = vmatpush2.bf16.msra.mxu0 0
  %2715 = vmatprep.subr.bf16.mxu0 0
  %2716 = vmatpush2.bf16.msra.mxu0 0
  %2717 = vmatprep.subr.bf16.mxu0 0
  %2718 = vmatpush2.bf16.msra.mxu0 0
  %2719 = vmatprep.subr.bf16.mxu0 0
  %2720 = vmatpush2.bf16.msra.mxu0 0
  %2721 = vmatprep.subr.bf16.mxu0 0
  %2722 = vmatpush2.bf16.msra.mxu0 0
  %2723 = vmatprep.subr.bf16.mxu0 0
  %2724 = vmatpush2.bf16.msra.mxu0 0
  %2725 = vmatprep.subr.bf16.mxu0 0
  %2726 = vmatpush2.bf16.msra.mxu0 0
  %2727 = vmatprep.subr.bf16.mxu0 0
  %2728 = vmatpush2.bf16.msra.mxu0 0
  %2729 = vmatprep.mubr.bf16.mxu0 0
  %2730 = vmatmul.mubr.bf16.gmra.mxu0 %v2695
  %v2731 = vpop.f32.mrf.mxu0
  %v2732 = vadd.f32 0.0, %v2731
  %v2733 = vpop.f32.mrf.mxu0
  %v2734 = vpop.f32.mrf.mxu0
  %v2735 = vadd.f32 0.0, %v2734
  %v2736 = vpop.f32.mrf.mxu0
  %2737 = vdwg.mxu0
  %v2738 = vadd.f32 %v2679, %v2732
  %v2739 = vadd.f32 %v2680, %v2735
  %v2740 = vxor.u32 %v2738, 2147483648
  %v2741 = vxor.u32 %v2739, 2147483648
  %v2742 = vmul.f32 %v2740, 1.442695
  %v2743 = vpow.pop %v2742
  %v2744 = vmul.f32 %v2741, 1.442695
  %v2745 = vpow.pop %v2744
  %v2746 = vadd.f32 %v2743, 1.0
  %v2747 = vadd.f32 %v2745, 1.0
  %v2748 = vrcp.pop %v2746
  %v2749 = vmul.f32 1.0, %v2748
  %v2750 = vrcp.pop %v2747
  %v2751 = vmul.f32 1.0, %v2750
  %v2752 = vtanh.pop %v2738
  %v2753 = vtanh.pop %v2739
  %2756 = vrot.lane.b32.xlu0 %v2683, 16
  %v2757 = vpop.permute.xlu0 %2756
  %2758 = vrot.lane.b32.xlu0 %v2684, 16
  %v2759 = vpop.permute.xlu0 %2758
  %v2762 = vmul.f32 %v2749, %v2757
  %v2763 = vmul.f32 %v2751, %v2759
  %2766 = vrot.lane.b32.xlu0 %v2752, 96
  %v2767 = vpop.permute.xlu0 %2766
  %2768 = vrot.lane.b32.xlu0 %v2753, 96
  %v2769 = vpop.permute.xlu0 %2768
  %v2772 = vmul.f32 %v2749, %v2767
  %v2773 = vmul.f32 %v2751, %v2769
  %2776 = vrot.lane.b32.xlu0 %v2772, 16
  %v2777 = vpop.permute.xlu0 %2776
  %2778 = vrot.lane.b32.xlu0 %v2773, 16
  %v2779 = vpop.permute.xlu0 %2778
  %v2782 = vadd.f32 %v2762, %v2777
  %v2783 = vadd.f32 %v2763, %v2779
  %v2784 = vtanh.pop %v2782
  %v2785 = vtanh.pop %v2783
  %2788 = vrot.lane.b32.xlu0 %v2784, 32
  %v2789 = vpop.permute.xlu0 %2788
  %2790 = vrot.lane.b32.xlu0 %v2785, 32
  %v2791 = vpop.permute.xlu0 %2790
  %v2794 = vmul.f32 %v2749, %v2789
  %v2795 = vmul.f32 %v2751, %v2791
  %v2796 = vsel %vm2677, 1, 0
  %v2797 = vsel %vm2678, 1, 0
  %2798 = vset.pattern.permute.xlu0 0
  %2799 = vperm.xlu0 %2798, %v2796
  %v2800 = vpop.permute.xlu0 %2799
  %2801 = vset.pattern.permute.xlu0 0
  %2802 = vperm.xlu0 %2801, %v2797
  %v2803 = vpop.permute.xlu0 %2802
  %vm2804 = vcmp.eq.s32.totalorder %v2800, 1
  %vm2805 = vcmp.eq.s32.totalorder %v2803, 1
  %2808 = vrot.lane.b32.xlu0 %v2681, 48
  %v2809 = vpop.permute.xlu0 %2808
  %2810 = vrot.lane.b32.xlu0 %v2682, 48
  %v2811 = vpop.permute.xlu0 %2810
  %v2814 = vsel %vm2804, %v2794, %v2809
  %v2815 = vsel %vm2805, %v2795, %v2811
  %2818 = vrot.lane.b32.xlu0 %v2814, 80
  %v2819 = vpop.permute.xlu0 %2818
  %2820 = vrot.lane.b32.xlu0 %v2815, 80
  %v2821 = vpop.permute.xlu0 %2820
  %2824 = vst.msk [vmem:[#allocation4] sm:$0xff] %vm84, %v2819
  %2825 = vst.msk [vmem:[#allocation4 + $0x8] sm:$0xff] %vm84, %v2821
  %v2826 = vld [vmem:[#allocation5] sm:$0xff]
  %v2827 = vld [vmem:[#allocation5 + $0x8] sm:$0xff]
  %2830 = vrot.lane.b32.xlu0 %v2826, 16
  %v2831 = vpop.permute.xlu0 %2830
  %2832 = vrot.lane.b32.xlu0 %v2827, 16
  %v2833 = vpop.permute.xlu0 %2832
  %v2836 = vsel %vm2804, %v2782, %v2831
  %v2837 = vsel %vm2805, %v2783, %v2833
  %2840 = vrot.lane.b32.xlu0 %v2836, 112
  %v2841 = vpop.permute.xlu0 %2840
  %2842 = vrot.lane.b32.xlu0 %v2837, 112
  %v2843 = vpop.permute.xlu0 %2842
  %2846 = vst.msk [vmem:[#allocation5] sm:$0xff] %vm84, %v2841
  %2847 = vst.msk [vmem:[#allocation5 + $0x8] sm:$0xff] %vm84, %v2843
  // Predicated region
  $region26: #{seq2seq_forward.8} parent=0 // pred_check
    %p2848 = pneg %p50
  $region27: #{seq2seq_forward.8} parent=0 // pred_check_branch
    %2850 = sbr.rel (%p2848) target = $region29
  $region28: #{seq2seq_forward.8} parent=0 // pred_region
    %v2851 = vld [vmem:[#allocation2] sm:$0xff]
    %v2852 = vld [vmem:[#allocation2 + $0x8] sm:$0xff]
    %2853 = vst.msk [vmem:[%s5] sm:$0xff] %vm84, %v2851
    %2854 = vst.msk [vmem:[%s5 + $0x8] sm:$0xff] %vm84, %v2852
    %v2855 = vld [vmem:[#allocation3] sm:$0xff]
    %v2856 = vld [vmem:[#allocation3 + $0x8] sm:$0xff]
    %2857 = vst.msk [vmem:[%s6] sm:$0xff] %vm84, %v2855
    %2858 = vst.msk [vmem:[%s6 + $0x8] sm:$0xff] %vm84, %v2856
    %v2859 = vld [vmem:[#allocation4] sm:$0xff]
    %v2860 = vld [vmem:[#allocation4 + $0x8] sm:$0xff]
    %2861 = vst.msk [vmem:[%s7] sm:$0xff] %vm84, %v2859
    %2862 = vst.msk [vmem:[%s7 + $0x8] sm:$0xff] %vm84, %v2860
    %v2863 = vld [vmem:[#allocation5] sm:$0xff]
    %v2864 = vld [vmem:[#allocation5 + $0x8] sm:$0xff]
    %2865 = vst.msk [vmem:[%s8] sm:$0xff] %vm84, %v2863
    %2866 = vst.msk [vmem:[%s8 + $0x8] sm:$0xff] %vm84, %v2864
  $region29: #{seq2seq_forward.8} parent=0 // pred_fallthru
    _
  // Predicated region
  $region30: #{seq2seq_forward.8} parent=0 // pred_check
    _
  $region31: #{seq2seq_forward.8} parent=0 // pred_check_branch
    %2868 = sbr.rel (0) target = $region33
  $region32: #{seq2seq_forward.8} parent=0 // pred_region
    _
  $region33: #{seq2seq_forward.8} parent=0 // pred_fallthru
    _
  // Predicated region
  $region34: #{seq2seq_forward.8} parent=0 // pred_check
    _
  $region35: #{seq2seq_forward.8} parent=0 // pred_check_branch
    %2870 = sbr.rel (0) target = $region37
  $region36: #{seq2seq_forward.8} parent=0 // pred_region
    _
  $region37: #{seq2seq_forward.8} parent=0 // pred_fallthru
    _
  // Predicated region
  $region38: #{seq2seq_forward.8} parent=0 // pred_check
    _
  $region39: #{seq2seq_forward.8} parent=0 // pred_check_branch
    %2872 = sbr.rel (0) target = $region41
  $region40: #{seq2seq_forward.8} parent=0 // pred_region
    _
  $region41: #{seq2seq_forward.8} parent=0 // pred_fallthru
    _
  // Predicated region
  $region42: #{seq2seq_forward.8} parent=0 // pred_check
    _
  $region43: #{seq2seq_forward.8} parent=0 // pred_check_branch
    %2874 = sbr.rel (0) target = $region45
  $region44: #{seq2seq_forward.8} parent=0 // pred_region
    _
  $region45: #{seq2seq_forward.8} parent=0 // pred_fallthru
    _
  // Predicated region
  $region46: #{seq2seq_forward.8} parent=0 // pred_check
    _
  $region47: #{seq2seq_forward.8} parent=0 // pred_check_branch
    %2876 = sbr.rel (0) target = $region49
  $region48: #{seq2seq_forward.8} parent=0 // pred_region
    _
  $region49: #{seq2seq_forward.8} parent=0 // pred_fallthru
    _
  // Predicated region
  $region50: #{seq2seq_forward.8} parent=0 // pred_check
    _
  $region51: #{seq2seq_forward.8} parent=0 // pred_check_branch
    %2878 = sbr.rel (0) target = $region53
  $region52: #{seq2seq_forward.8} parent=0 // pred_region
    _
  $region53: #{seq2seq_forward.8} parent=0 // pred_fallthru
    _
  // Predicated region
  $region54: #{seq2seq_forward.8} parent=0 // pred_check
    _
  $region55: #{seq2seq_forward.8} parent=0 // pred_check_branch
    %2880 = sbr.rel (0) target = $region57
  $region56: #{seq2seq_forward.8} parent=0 // pred_region
    _
  $region57: #{seq2seq_forward.8} parent=0 // pred_fallthru
    _
  // Predicated region
  $region58: #{seq2seq_forward.8} parent=0 // pred_check
    _
  $region59: #{seq2seq_forward.8} parent=0 // pred_check_branch
    %2882 = sbr.rel (0) target = $region61
  $region60: #{seq2seq_forward.8} parent=0 // pred_region
    _
  $region61: #{seq2seq_forward.8} parent=0 // pred_fallthru
    _

</llo_original>
